<compile_context>
chip_gen: v7x
topology: tpu7x:2x2x1
jax: 0.10.0
libtpu: 0.0.40
codegen_flags: <defaults>
</compile_context>

<pallas_src>
import jax
import jax.numpy as jnp
from jax import lax
from jax.experimental import pallas as pl
from jax.experimental.pallas import tpu as pltpu


def _conv3x3_bn_relu_pool(x, w_ref, s_ref, t_ref):
    """VALID 3x3 conv (im2col -> one MXU matmul) + folded bias/BN + ReLU + 2x2 pool.

    x:     (H, W, NB, Ci) value, NB % 8 == 0
    w_ref: (9*Ci, Co) ref; row (ky*3+kx)*Ci + ci == w_torch[co, ci, ky, kx]
    s_ref, t_ref: (1, Co) refs (folded scale / shift)
    returns ((H-2)//2, (W-2)//2, NB, Co)
    """
    H, W, NB, Ci = x.shape
    Co = s_ref.shape[1]
    Ho, Wo = H - 2, W - 2

    # im2col: 9 shifted views (leading-dim slices), lane-concatenated.
    cols = [x[ky:ky + Ho, kx:kx + Wo] for ky in range(3) for kx in range(3)]
    patches = jnp.concatenate(cols, axis=-1)                 # (Ho, Wo, NB, 9*Ci)
    patches = patches.reshape(Ho * Wo * NB, 9 * Ci)          # tile-aligned (NB%8==0)

    y = jnp.dot(patches.astype(w_ref.dtype), w_ref[...],
                preferred_element_type=jnp.float32)          # single MXU matmul
    y = jnp.maximum(y * s_ref[...] + t_ref[...], 0.0)        # bias+BN folded, ReLU
    y = y.reshape(Ho, Wo, NB, Co)

    # 2x2 max-pool, floor mode (nn.MaxPool2d(2)); leading-dim reshapes only.
    Hp, Wp = Ho // 2, Wo // 2
    y = y[:Hp * 2, :Wp * 2]
    y = y.reshape(Hp, 2, Wp * 2, NB, Co)
    y = jnp.maximum(y[:, 0], y[:, 1])                        # pool over H
    y = y.reshape(Hp, Wp, 2, NB, Co)
    y = jnp.maximum(y[:, :, 0], y[:, :, 1])                  # pool over W
    return y


def _relation_kernel(x_ref, w1_ref, s1_ref, t1_ref, w2_ref, s2_ref, t2_ref,
                     fc1w_ref, fc1b_ref, fc2w_ref, fc2b_ref, out_ref):
    x = x_ref[...]                                           # (H, W, NB, 2C)
    y = _conv3x3_bn_relu_pool(x, w1_ref, s1_ref, t1_ref)     # layer1
    y = _conv3x3_bn_relu_pool(y, w2_ref, s2_ref, t2_ref)     # layer2
    H2, W2, NB, C = y.shape

    # Flatten to (NB, H2*W2*C) via lane concat of (NB, C) tiles; fc1 weight is
    # pre-permuted host-side so this ordering matches PyTorch's NCHW flatten.
    y_flat = jnp.concatenate([y[i, j] for i in range(H2) for j in range(W2)],
                             axis=-1)                        # (NB, H2*W2*C)
    h = jnp.dot(y_flat.astype(fc1w_ref.dtype), fc1w_ref[...],
                preferred_element_type=jnp.float32)          # fc1: one MXU matmul
    h = jnp.maximum(h + fc1b_ref[...], 0.0)                  # + bias, ReLU

    # fc2 as (1, hidden) x (NB, hidden)^T so the output block is lane-dense.
    z = lax.dot_general(fc2w_ref[...], h, (((1,), (1,)), ((), ())),
                        preferred_element_type=jnp.float32)
    z = z + fc2b_ref[...]
    out_ref[...] = jax.nn.sigmoid(z).reshape(out_ref.shape)  # 'mse' head
    # TODO(synk): loss_type='softmax' head (no sigmoid) not wired up.


def relation_module_forward(x_nchw, params, *, batch_block=32,
                            mxu_dtype=jnp.float32):
    """RelationModule forward (loss_type='mse', eval-mode BatchNorm).

    x_nchw: (N, 2*C, H, W).  mxu_dtype=jnp.bfloat16 runs the matmuls in bf16
    with f32 accumulation (useful on v6e/v7x); VPU-side math stays f32.
    """
    (w1, b1, g1, be1, m1, v1,
     w2, b2, g2, be2, m2, v2,
     fc1_w, fc1_b, fc2_w, fc2_b) = params
    eps = 1e-5
    N, Ci1, H, W = x_nchw.shape
    Co1 = w1.shape[0]
    Co2, Ci2 = w2.shape[0], w2.shape[1]
    hidden = fc1_w.shape[0]

    # padding == 0 branch: the module uses padding=1 only when BOTH spatial
    # dims are < 10, i.e. padding=0 iff H >= 10 or W >= 10.
    # TODO(synk): padding=1 branch (both spatial dims < 10) not implemented.
    assert H >= 10 or W >= 10
    assert batch_block % 8 == 0

    # Fold conv bias + eval-mode BatchNorm (running stats) into scale/shift.
    s1 = g1 / jnp.sqrt(v1 + eps)
    t1 = be1 + s1 * (b1 - m1)
    s2 = g2 / jnp.sqrt(v2 + eps)
    t2 = be2 + s2 * (b2 - m2)

    shrink = lambda s: ((s - 2) // 2 - 2) // 2
    H2, W2 = shrink(H), shrink(W)

    # Re-layout input / parameters for the kernel.
    x_t = jnp.transpose(x_nchw, (2, 3, 0, 1))                          # (H,W,N,2C)
    w1_k = jnp.transpose(w1, (2, 3, 1, 0)).reshape(9 * Ci1, Co1).astype(mxu_dtype)
    w2_k = jnp.transpose(w2, (2, 3, 1, 0)).reshape(9 * Ci2, Co2).astype(mxu_dtype)
    fc1w_k = jnp.transpose(fc1_w.reshape(hidden, Co2, H2, W2),
                           (2, 3, 1, 0)).reshape(H2 * W2 * Co2, hidden)
    fc1w_k = fc1w_k.astype(mxu_dtype)
    fc1b_k = fc1_b.reshape(1, hidden).astype(jnp.float32)
    fc2w_k = fc2_w.reshape(1, hidden).astype(jnp.float32)
    fc2b_k = fc2_b.reshape(1, 1).astype(jnp.float32)
    s1_k, t1_k = s1.reshape(1, Co1), t1.reshape(1, Co1)
    s2_k, t2_k = s2.reshape(1, Co2), t2.reshape(1, Co2)

    # Tile the pair/batch axis: NB pairs per grid step (NB a multiple of 8).
    round8 = lambda n: -(-n // 8) * 8
    nb = min(batch_block, round8(N))
    G = pl.cdiv(N, nb)
    n_pad = G * nb
    if n_pad != N:
        x_t = jnp.pad(x_t, ((0, 0), (0, 0), (0, n_pad - N), (0, 0)))

    weights = (w1_k, s1_k, t1_k, w2_k, s2_k, t2_k,
               fc1w_k, fc1b_k, fc2w_k, fc2b_k)

    def rep(a):                       # replicated full-array block
        zeros = (0,) * a.ndim
        return pl.BlockSpec(a.shape, lambda i: zeros)

    out = pl.pallas_call(
        _relation_kernel,
        out_shape=jax.ShapeDtypeStruct((G, 1, nb), jnp.float32),
        grid_spec=pltpu.PrefetchScalarGridSpec(
            num_scalar_prefetch=0,
            grid=(G,),
            in_specs=[pl.BlockSpec((H, W, nb, Ci1), lambda i: (0, 0, i, 0))]
                     + [rep(a) for a in weights],
            out_specs=pl.BlockSpec((1, 1, nb), lambda i: (i, 0, 0)),
        ),
        compiler_params=pltpu.CompilerParams(
            dimension_semantics=("parallel",)),
    )(x_t, *weights)

    return out.reshape(n_pad, 1)[:N]


def relation_module_ref(x, params):
    """Pure-JAX reference matching the PyTorch forward (eval-mode BN, 'mse')."""
    (w1, b1, g1, be1, m1, v1,
     w2, b2, g2, be2, m2, v2,
     fc1_w, fc1_b, fc2_w, fc2_b) = params
    eps = 1e-5

    def block(x, w, b, g, be, m, v):
        y = lax.conv_general_dilated(x, w, (1, 1), 'VALID',
                                     dimension_numbers=('NCHW', 'OIHW', 'NCHW'))
        y = y + b[None, :, None, None]
        y = (g[None, :, None, None] * (y - m[None, :, None, None])
             / jnp.sqrt(v + eps)[None, :, None, None] + be[None, :, None, None])
        y = jnp.maximum(y, 0.0)
        y = lax.reduce_window(y, -jnp.inf, lax.max,
                              (1, 1, 2, 2), (1, 1, 2, 2), 'VALID')
        return y

    y = block(x, w1, b1, g1, be1, m1, v1)
    y = block(y, w2, b2, g2, be2, m2, v2)
    y = y.reshape(y.shape[0], -1)
    h = jnp.maximum(y @ fc1_w.T + fc1_b, 0.0)
    z = h @ fc2_w.T + fc2_b
    return jax.nn.sigmoid(z)


if __name__ == "__main__":
    key = jax.random.PRNGKey(0)
    C, H, W = 4, 16, 16          # input_size = (4, 16, 16)  -> padding = 0
    N, hidden = 2, 32
    keys = jax.random.split(key, 8)

    x = jax.random.normal(keys[0], (N, 2 * C, H, W), jnp.float32)

    def conv_bn_params(k, ci, co):
        ks = jax.random.split(k, 6)
        w = 0.1 * jax.random.normal(ks[0], (co, ci, 3, 3), jnp.float32)
        b = 0.1 * jax.random.normal(ks[1], (co,), jnp.float32)
        gamma = 1.0 + 0.1 * jax.random.normal(ks[2], (co,), jnp.float32)
        beta = 0.1 * jax.random.normal(ks[3], (co,), jnp.float32)
        mean = 0.1 * jax.random.normal(ks[4], (co,), jnp.float32)
        var = jax.random.uniform(ks[5], (co,), jnp.float32, 0.5, 1.5)
        return w, b, gamma, beta, mean, var

    p1 = conv_bn_params(keys[1], 2 * C, C)     # layer1: Conv2d(2C -> C, 3)
    p2 = conv_bn_params(keys[2], C, C)         # layer2: Conv2d(C -> C, 3)
    H2 = ((H - 2) // 2 - 2) // 2
    W2 = ((W - 2) // 2 - 2) // 2
    fc1_w = 0.1 * jax.random.normal(keys[3], (hidden, C * H2 * W2), jnp.float32)
    fc1_b = 0.1 * jax.random.normal(keys[4], (hidden,), jnp.float32)
    fc2_w = 0.1 * jax.random.normal(keys[5], (1, hidden), jnp.float32)
    fc2_b = 0.1 * jax.random.normal(keys[6], (1,), jnp.float32)

    params = (*p1, *p2, fc1_w, fc1_b, fc2_w, fc2_b)

    out = relation_module_forward(x, params)
    out = jax.block_until_ready(out)

    ref = relation_module_ref(x, params)
    assert out.shape == (N, 1)
    assert bool(jnp.allclose(out, ref, atol=1e-3, rtol=1e-3)), (out, ref)
    print("KERNEL_OK")
</pallas_src>

<mosaic_0001>
module attributes {stable_mosaic.version = 11 : i64} {
  func.func @_relation_kernel(%arg0: i32, %arg1: memref<16x16x8x8xf32, #tpu.memory_space<vmem>>, %arg2: memref<72x4xf32, #tpu.memory_space<vmem>>, %arg3: memref<1x4xf32, #tpu.memory_space<vmem>>, %arg4: memref<1x4xf32, #tpu.memory_space<vmem>>, %arg5: memref<36x4xf32, #tpu.memory_space<vmem>>, %arg6: memref<1x4xf32, #tpu.memory_space<vmem>>, %arg7: memref<1x4xf32, #tpu.memory_space<vmem>>, %arg8: memref<16x32xf32, #tpu.memory_space<vmem>>, %arg9: memref<1x32xf32, #tpu.memory_space<vmem>>, %arg10: memref<1x32xf32, #tpu.memory_space<vmem>>, %arg11: memref<1x1xf32, #tpu.memory_space<vmem>>, %arg12: memref<1x1x8xf32, #tpu.memory_space<vmem>>) attributes {dimension_semantics = [#tpu.dimension_semantics<parallel>], iteration_bounds = array<i64: 1>, scalar_prefetch = 0 : i64, scratch_operands = 0 : i64, tpu.core_type = #tpu.core_type<tc>, window_params = [{transform_indices = @transform_0, window_bounds = array<i64: 16, 16, 8, 8>}, {pipeline_mode = #tpu.pipeline_mode<synchronous>, transform_indices = @transform_1, window_bounds = array<i64: 72, 4>}, {pipeline_mode = #tpu.pipeline_mode<synchronous>, transform_indices = @transform_2, window_bounds = array<i64: 1, 4>}, {pipeline_mode = #tpu.pipeline_mode<synchronous>, transform_indices = @transform_3, window_bounds = array<i64: 1, 4>}, {pipeline_mode = #tpu.pipeline_mode<synchronous>, transform_indices = @transform_4, window_bounds = array<i64: 36, 4>}, {pipeline_mode = #tpu.pipeline_mode<synchronous>, transform_indices = @transform_5, window_bounds = array<i64: 1, 4>}, {pipeline_mode = #tpu.pipeline_mode<synchronous>, transform_indices = @transform_6, window_bounds = array<i64: 1, 4>}, {pipeline_mode = #tpu.pipeline_mode<synchronous>, transform_indices = @transform_7, window_bounds = array<i64: 16, 32>}, {pipeline_mode = #tpu.pipeline_mode<synchronous>, transform_indices = @transform_8, window_bounds = array<i64: 1, 32>}, {pipeline_mode = #tpu.pipeline_mode<synchronous>, transform_indices = @transform_9, window_bounds = array<i64: 1, 32>}, {pipeline_mode = #tpu.pipeline_mode<synchronous>, transform_indices = @transform_10, window_bounds = array<i64: 1, 1>}, {transform_indices = @transform_11, window_bounds = array<i64: 1, 1, 8>}]} {
    %c0 = arith.constant 0 : index
    %c0_0 = arith.constant 0 : index
    %c0_1 = arith.constant 0 : index
    %c0_2 = arith.constant 0 : index
    %0 = vector.load %arg1[%c0, %c0_0, %c0_1, %c0_2] : memref<16x16x8x8xf32, #tpu.memory_space<vmem>>, vector<16x16x8x8xf32>
    %1 = vector.extract_strided_slice %0 {offsets = [0, 0, 0, 0], sizes = [14, 14, 8, 8], strides = [1, 1, 1, 1]} : vector<16x16x8x8xf32> to vector<14x14x8x8xf32>
    %2 = vector.extract_strided_slice %0 {offsets = [0, 1, 0, 0], sizes = [14, 14, 8, 8], strides = [1, 1, 1, 1]} : vector<16x16x8x8xf32> to vector<14x14x8x8xf32>
    %3 = vector.extract_strided_slice %0 {offsets = [0, 2, 0, 0], sizes = [14, 14, 8, 8], strides = [1, 1, 1, 1]} : vector<16x16x8x8xf32> to vector<14x14x8x8xf32>
    %4 = vector.extract_strided_slice %0 {offsets = [1, 0, 0, 0], sizes = [14, 14, 8, 8], strides = [1, 1, 1, 1]} : vector<16x16x8x8xf32> to vector<14x14x8x8xf32>
    %5 = vector.extract_strided_slice %0 {offsets = [1, 1, 0, 0], sizes = [14, 14, 8, 8], strides = [1, 1, 1, 1]} : vector<16x16x8x8xf32> to vector<14x14x8x8xf32>
    %6 = vector.extract_strided_slice %0 {offsets = [1, 2, 0, 0], sizes = [14, 14, 8, 8], strides = [1, 1, 1, 1]} : vector<16x16x8x8xf32> to vector<14x14x8x8xf32>
    %7 = vector.extract_strided_slice %0 {offsets = [2, 0, 0, 0], sizes = [14, 14, 8, 8], strides = [1, 1, 1, 1]} : vector<16x16x8x8xf32> to vector<14x14x8x8xf32>
    %8 = vector.extract_strided_slice %0 {offsets = [2, 1, 0, 0], sizes = [14, 14, 8, 8], strides = [1, 1, 1, 1]} : vector<16x16x8x8xf32> to vector<14x14x8x8xf32>
    %9 = vector.extract_strided_slice %0 {offsets = [2, 2, 0, 0], sizes = [14, 14, 8, 8], strides = [1, 1, 1, 1]} : vector<16x16x8x8xf32> to vector<14x14x8x8xf32>
    %10 = tpu.concatenate %1, %2, %3, %4, %5, %6, %7, %8, %9 in 3 : vector<14x14x8x8xf32>, vector<14x14x8x8xf32>, vector<14x14x8x8xf32>, vector<14x14x8x8xf32>, vector<14x14x8x8xf32>, vector<14x14x8x8xf32>, vector<14x14x8x8xf32>, vector<14x14x8x8xf32>, vector<14x14x8x8xf32> -> vector<14x14x8x72xf32>
    %11 = vector.shape_cast %10 : vector<14x14x8x72xf32> to vector<1568x72xf32>
    %c0_3 = arith.constant 0 : index
    %c0_4 = arith.constant 0 : index
    %12 = vector.load %arg2[%c0_3, %c0_4] : memref<72x4xf32, #tpu.memory_space<vmem>>, vector<72x4xf32>
    %cst = arith.constant dense<0.000000e+00> : vector<1568x4xf32>
    %13 = tpu.matmul %11, %12, %cst {dimension_numbers = #tpu.dot_dimension_numbers<[1], [0], [0], [1], [0, 0, 1, 1], [], []>} : vector<1568x72xf32>, vector<72x4xf32>, vector<1568x4xf32> -> vector<1568x4xf32>
    %c0_5 = arith.constant 0 : index
    %c0_6 = arith.constant 0 : index
    %14 = vector.load %arg3[%c0_5, %c0_6] : memref<1x4xf32, #tpu.memory_space<vmem>>, vector<1x4xf32>
    %15 = vector.broadcast %14 : vector<1x4xf32> to vector<1568x4xf32>
    %16 = arith.mulf %13, %15 : vector<1568x4xf32>
    %c0_7 = arith.constant 0 : index
    %c0_8 = arith.constant 0 : index
    %17 = vector.load %arg4[%c0_7, %c0_8] : memref<1x4xf32, #tpu.memory_space<vmem>>, vector<1x4xf32>
    %18 = vector.broadcast %17 : vector<1x4xf32> to vector<1568x4xf32>
    %19 = arith.addf %16, %18 : vector<1568x4xf32>
    %cst_9 = arith.constant 0.000000e+00 : f32
    %20 = vector.broadcast %cst_9 : f32 to vector<1568x4xf32>
    %21 = arith.maximumf %19, %20 : vector<1568x4xf32>
    %22 = vector.shape_cast %21 : vector<1568x4xf32> to vector<14x14x8x4xf32>
    %23 = vector.shape_cast %22 : vector<14x14x8x4xf32> to vector<7x2x14x8x4xf32>
    %24 = vector.extract_strided_slice %23 {offsets = [0, 0, 0, 0, 0], sizes = [7, 1, 14, 8, 4], strides = [1, 1, 1, 1, 1]} : vector<7x2x14x8x4xf32> to vector<7x1x14x8x4xf32>
    %25 = vector.shape_cast %24 : vector<7x1x14x8x4xf32> to vector<7x14x8x4xf32>
    %26 = vector.extract_strided_slice %23 {offsets = [0, 1, 0, 0, 0], sizes = [7, 1, 14, 8, 4], strides = [1, 1, 1, 1, 1]} : vector<7x2x14x8x4xf32> to vector<7x1x14x8x4xf32>
    %27 = vector.shape_cast %26 : vector<7x1x14x8x4xf32> to vector<7x14x8x4xf32>
    %28 = arith.maximumf %25, %27 : vector<7x14x8x4xf32>
    %29 = vector.shape_cast %28 : vector<7x14x8x4xf32> to vector<7x7x2x8x4xf32>
    %30 = vector.extract_strided_slice %29 {offsets = [0, 0, 0, 0, 0], sizes = [7, 7, 1, 8, 4], strides = [1, 1, 1, 1, 1]} : vector<7x7x2x8x4xf32> to vector<7x7x1x8x4xf32>
    %31 = vector.shape_cast %30 : vector<7x7x1x8x4xf32> to vector<7x7x8x4xf32>
    %32 = vector.extract_strided_slice %29 {offsets = [0, 0, 1, 0, 0], sizes = [7, 7, 1, 8, 4], strides = [1, 1, 1, 1, 1]} : vector<7x7x2x8x4xf32> to vector<7x7x1x8x4xf32>
    %33 = vector.shape_cast %32 : vector<7x7x1x8x4xf32> to vector<7x7x8x4xf32>
    %34 = arith.maximumf %31, %33 : vector<7x7x8x4xf32>
    %35 = vector.extract_strided_slice %34 {offsets = [0, 0, 0, 0], sizes = [5, 5, 8, 4], strides = [1, 1, 1, 1]} : vector<7x7x8x4xf32> to vector<5x5x8x4xf32>
    %36 = vector.extract_strided_slice %34 {offsets = [0, 1, 0, 0], sizes = [5, 5, 8, 4], strides = [1, 1, 1, 1]} : vector<7x7x8x4xf32> to vector<5x5x8x4xf32>
    %37 = vector.extract_strided_slice %34 {offsets = [0, 2, 0, 0], sizes = [5, 5, 8, 4], strides = [1, 1, 1, 1]} : vector<7x7x8x4xf32> to vector<5x5x8x4xf32>
    %38 = vector.extract_strided_slice %34 {offsets = [1, 0, 0, 0], sizes = [5, 5, 8, 4], strides = [1, 1, 1, 1]} : vector<7x7x8x4xf32> to vector<5x5x8x4xf32>
    %39 = vector.extract_strided_slice %34 {offsets = [1, 1, 0, 0], sizes = [5, 5, 8, 4], strides = [1, 1, 1, 1]} : vector<7x7x8x4xf32> to vector<5x5x8x4xf32>
    %40 = vector.extract_strided_slice %34 {offsets = [1, 2, 0, 0], sizes = [5, 5, 8, 4], strides = [1, 1, 1, 1]} : vector<7x7x8x4xf32> to vector<5x5x8x4xf32>
    %41 = vector.extract_strided_slice %34 {offsets = [2, 0, 0, 0], sizes = [5, 5, 8, 4], strides = [1, 1, 1, 1]} : vector<7x7x8x4xf32> to vector<5x5x8x4xf32>
    %42 = vector.extract_strided_slice %34 {offsets = [2, 1, 0, 0], sizes = [5, 5, 8, 4], strides = [1, 1, 1, 1]} : vector<7x7x8x4xf32> to vector<5x5x8x4xf32>
    %43 = vector.extract_strided_slice %34 {offsets = [2, 2, 0, 0], sizes = [5, 5, 8, 4], strides = [1, 1, 1, 1]} : vector<7x7x8x4xf32> to vector<5x5x8x4xf32>
    %44 = tpu.concatenate %35, %36, %37, %38, %39, %40, %41, %42, %43 in 3 : vector<5x5x8x4xf32>, vector<5x5x8x4xf32>, vector<5x5x8x4xf32>, vector<5x5x8x4xf32>, vector<5x5x8x4xf32>, vector<5x5x8x4xf32>, vector<5x5x8x4xf32>, vector<5x5x8x4xf32>, vector<5x5x8x4xf32> -> vector<5x5x8x36xf32>
    %45 = vector.shape_cast %44 : vector<5x5x8x36xf32> to vector<200x36xf32>
    %c0_10 = arith.constant 0 : index
    %c0_11 = arith.constant 0 : index
    %46 = vector.load %arg5[%c0_10, %c0_11] : memref<36x4xf32, #tpu.memory_space<vmem>>, vector<36x4xf32>
    %cst_12 = arith.constant dense<0.000000e+00> : vector<200x4xf32>
    %47 = tpu.matmul %45, %46, %cst_12 {dimension_numbers = #tpu.dot_dimension_numbers<[1], [0], [0], [1], [0, 0, 1, 1], [], []>} : vector<200x36xf32>, vector<36x4xf32>, vector<200x4xf32> -> vector<200x4xf32>
    %c0_13 = arith.constant 0 : index
    %c0_14 = arith.constant 0 : index
    %48 = vector.load %arg6[%c0_13, %c0_14] : memref<1x4xf32, #tpu.memory_space<vmem>>, vector<1x4xf32>
    %49 = vector.broadcast %48 : vector<1x4xf32> to vector<200x4xf32>
    %50 = arith.mulf %47, %49 : vector<200x4xf32>
    %c0_15 = arith.constant 0 : index
    %c0_16 = arith.constant 0 : index
    %51 = vector.load %arg7[%c0_15, %c0_16] : memref<1x4xf32, #tpu.memory_space<vmem>>, vector<1x4xf32>
    %52 = vector.broadcast %51 : vector<1x4xf32> to vector<200x4xf32>
    %53 = arith.addf %50, %52 : vector<200x4xf32>
    %cst_17 = arith.constant 0.000000e+00 : f32
    %54 = vector.broadcast %cst_17 : f32 to vector<200x4xf32>
    %55 = arith.maximumf %53, %54 : vector<200x4xf32>
    %56 = vector.shape_cast %55 : vector<200x4xf32> to vector<5x5x8x4xf32>
    %57 = vector.extract_strided_slice %56 {offsets = [0, 0, 0, 0], sizes = [4, 4, 8, 4], strides = [1, 1, 1, 1]} : vector<5x5x8x4xf32> to vector<4x4x8x4xf32>
    %58 = vector.shape_cast %57 : vector<4x4x8x4xf32> to vector<2x2x4x8x4xf32>
    %59 = vector.extract_strided_slice %58 {offsets = [0, 0, 0, 0, 0], sizes = [2, 1, 4, 8, 4], strides = [1, 1, 1, 1, 1]} : vector<2x2x4x8x4xf32> to vector<2x1x4x8x4xf32>
    %60 = vector.shape_cast %59 : vector<2x1x4x8x4xf32> to vector<2x4x8x4xf32>
    %61 = vector.extract_strided_slice %58 {offsets = [0, 1, 0, 0, 0], sizes = [2, 1, 4, 8, 4], strides = [1, 1, 1, 1, 1]} : vector<2x2x4x8x4xf32> to vector<2x1x4x8x4xf32>
    %62 = vector.shape_cast %61 : vector<2x1x4x8x4xf32> to vector<2x4x8x4xf32>
    %63 = arith.maximumf %60, %62 : vector<2x4x8x4xf32>
    %64 = vector.shape_cast %63 : vector<2x4x8x4xf32> to vector<2x2x2x8x4xf32>
    %65 = vector.extract_strided_slice %64 {offsets = [0, 0, 0, 0, 0], sizes = [2, 2, 1, 8, 4], strides = [1, 1, 1, 1, 1]} : vector<2x2x2x8x4xf32> to vector<2x2x1x8x4xf32>
    %66 = vector.shape_cast %65 : vector<2x2x1x8x4xf32> to vector<2x2x8x4xf32>
    %67 = vector.extract_strided_slice %64 {offsets = [0, 0, 1, 0, 0], sizes = [2, 2, 1, 8, 4], strides = [1, 1, 1, 1, 1]} : vector<2x2x2x8x4xf32> to vector<2x2x1x8x4xf32>
    %68 = vector.shape_cast %67 : vector<2x2x1x8x4xf32> to vector<2x2x8x4xf32>
    %69 = arith.maximumf %66, %68 : vector<2x2x8x4xf32>
    %70 = vector.extract_strided_slice %69 {offsets = [0, 0, 0, 0], sizes = [1, 1, 8, 4], strides = [1, 1, 1, 1]} : vector<2x2x8x4xf32> to vector<1x1x8x4xf32>
    %71 = vector.shape_cast %70 : vector<1x1x8x4xf32> to vector<8x4xf32>
    %72 = vector.extract_strided_slice %69 {offsets = [0, 1, 0, 0], sizes = [1, 1, 8, 4], strides = [1, 1, 1, 1]} : vector<2x2x8x4xf32> to vector<1x1x8x4xf32>
    %73 = vector.shape_cast %72 : vector<1x1x8x4xf32> to vector<8x4xf32>
    %74 = vector.extract_strided_slice %69 {offsets = [1, 0, 0, 0], sizes = [1, 1, 8, 4], strides = [1, 1, 1, 1]} : vector<2x2x8x4xf32> to vector<1x1x8x4xf32>
    %75 = vector.shape_cast %74 : vector<1x1x8x4xf32> to vector<8x4xf32>
    %76 = vector.extract_strided_slice %69 {offsets = [1, 1, 0, 0], sizes = [1, 1, 8, 4], strides = [1, 1, 1, 1]} : vector<2x2x8x4xf32> to vector<1x1x8x4xf32>
    %77 = vector.shape_cast %76 : vector<1x1x8x4xf32> to vector<8x4xf32>
    %78 = tpu.concatenate %71, %73, %75, %77 in 1 : vector<8x4xf32>, vector<8x4xf32>, vector<8x4xf32>, vector<8x4xf32> -> vector<8x16xf32>
    %c0_18 = arith.constant 0 : index
    %c0_19 = arith.constant 0 : index
    %79 = vector.load %arg8[%c0_18, %c0_19] : memref<16x32xf32, #tpu.memory_space<vmem>>, vector<16x32xf32>
    %cst_20 = arith.constant dense<0.000000e+00> : vector<8x32xf32>
    %80 = tpu.matmul %78, %79, %cst_20 {dimension_numbers = #tpu.dot_dimension_numbers<[1], [0], [0], [1], [0, 0, 1, 1], [], []>} : vector<8x16xf32>, vector<16x32xf32>, vector<8x32xf32> -> vector<8x32xf32>
    %c0_21 = arith.constant 0 : index
    %c0_22 = arith.constant 0 : index
    %81 = vector.load %arg9[%c0_21, %c0_22] : memref<1x32xf32, #tpu.memory_space<vmem>>, vector<1x32xf32>
    %82 = vector.broadcast %81 : vector<1x32xf32> to vector<8x32xf32>
    %83 = arith.addf %80, %82 : vector<8x32xf32>
    %cst_23 = arith.constant 0.000000e+00 : f32
    %84 = vector.broadcast %cst_23 : f32 to vector<8x32xf32>
    %85 = arith.maximumf %83, %84 : vector<8x32xf32>
    %c0_24 = arith.constant 0 : index
    %c0_25 = arith.constant 0 : index
    %86 = vector.load %arg10[%c0_24, %c0_25] : memref<1x32xf32, #tpu.memory_space<vmem>>, vector<1x32xf32>
    %cst_26 = arith.constant dense<0.000000e+00> : vector<1x8xf32>
    %87 = tpu.matmul %86, %85, %cst_26 {dimension_numbers = #tpu.dot_dimension_numbers<[1], [1], [0], [0], [0, 0, 1, 0], [], []>} : vector<1x32xf32>, vector<8x32xf32>, vector<1x8xf32> -> vector<1x8xf32>
    %c0_27 = arith.constant 0 : index
    %c0_28 = arith.constant 0 : index
    %88 = vector.load %arg11[%c0_27, %c0_28] : memref<1x1xf32, #tpu.memory_space<vmem>>, vector<1x1xf32>
    %89 = vector.broadcast %88 : vector<1x1xf32> to vector<1x8xf32>
    %90 = arith.addf %87, %89 : vector<1x8xf32>
    %91 = arith.negf %90 : vector<1x8xf32>
    %92 = math.exp %91 : vector<1x8xf32>
    %cst_29 = arith.constant 1.000000e+00 : f32
    %93 = vector.broadcast %cst_29 : f32 to vector<1x8xf32>
    %94 = arith.addf %93, %92 : vector<1x8xf32>
    %95 = arith.divf %93, %94 : vector<1x8xf32>
    %96 = vector.shape_cast %95 : vector<1x8xf32> to vector<1x1x8xf32>
    %c0_30 = arith.constant 0 : index
    %c0_31 = arith.constant 0 : index
    %c0_32 = arith.constant 0 : index
    %97 = vector.load %arg12[%c0_30, %c0_31, %c0_32] : memref<1x1x8xf32, #tpu.memory_space<vmem>>, vector<1x1x8xf32>
    tpu.vector_store %arg12[%c0_30, %c0_31, %c0_32], %96 {strides = array<i32>} : memref<1x1x8xf32, #tpu.memory_space<vmem>>, vector<1x1x8xf32>,
    return
  }
  func.func @transform_0(%arg0: i32) -> (i32, i32, i32, i32) {
    %c0_i32 = arith.constant 0 : i32
    %c0_i32_0 = arith.constant 0 : i32
    %c0_i32_1 = arith.constant 0 : i32
    %c0_i32_2 = arith.constant 0 : i32
    return %c0_i32, %c0_i32_0, %arg0, %c0_i32_1 : i32, i32, i32, i32
  }
  func.func @transform_1(%arg0: i32) -> (i32, i32) {
    %c0_i32 = arith.constant 0 : i32
    %c0_i32_0 = arith.constant 0 : i32
    %c0_i32_1 = arith.constant 0 : i32
    return %c0_i32, %c0_i32_0 : i32, i32
  }
  func.func @transform_2(%arg0: i32) -> (i32, i32) {
    %c0_i32 = arith.constant 0 : i32
    %c0_i32_0 = arith.constant 0 : i32
    %c0_i32_1 = arith.constant 0 : i32
    return %c0_i32, %c0_i32_0 : i32, i32
  }
  func.func @transform_3(%arg0: i32) -> (i32, i32) {
    %c0_i32 = arith.constant 0 : i32
    %c0_i32_0 = arith.constant 0 : i32
    %c0_i32_1 = arith.constant 0 : i32
    return %c0_i32, %c0_i32_0 : i32, i32
  }
  func.func @transform_4(%arg0: i32) -> (i32, i32) {
    %c0_i32 = arith.constant 0 : i32
    %c0_i32_0 = arith.constant 0 : i32
    %c0_i32_1 = arith.constant 0 : i32
    return %c0_i32, %c0_i32_0 : i32, i32
  }
  func.func @transform_5(%arg0: i32) -> (i32, i32) {
    %c0_i32 = arith.constant 0 : i32
    %c0_i32_0 = arith.constant 0 : i32
    %c0_i32_1 = arith.constant 0 : i32
    return %c0_i32, %c0_i32_0 : i32, i32
  }
  func.func @transform_6(%arg0: i32) -> (i32, i32) {
    %c0_i32 = arith.constant 0 : i32
    %c0_i32_0 = arith.constant 0 : i32
    %c0_i32_1 = arith.constant 0 : i32
    return %c0_i32, %c0_i32_0 : i32, i32
  }
  func.func @transform_7(%arg0: i32) -> (i32, i32) {
    %c0_i32 = arith.constant 0 : i32
    %c0_i32_0 = arith.constant 0 : i32
    %c0_i32_1 = arith.constant 0 : i32
    return %c0_i32, %c0_i32_0 : i32, i32
  }
  func.func @transform_8(%arg0: i32) -> (i32, i32) {
    %c0_i32 = arith.constant 0 : i32
    %c0_i32_0 = arith.constant 0 : i32
    %c0_i32_1 = arith.constant 0 : i32
    return %c0_i32, %c0_i32_0 : i32, i32
  }
  func.func @transform_9(%arg0: i32) -> (i32, i32) {
    %c0_i32 = arith.constant 0 : i32
    %c0_i32_0 = arith.constant 0 : i32
    %c0_i32_1 = arith.constant 0 : i32
    return %c0_i32, %c0_i32_0 : i32, i32
  }
  func.func @transform_10(%arg0: i32) -> (i32, i32) {
    %c0_i32 = arith.constant 0 : i32
    %c0_i32_0 = arith.constant 0 : i32
    %c0_i32_1 = arith.constant 0 : i32
    return %c0_i32, %c0_i32_0 : i32, i32
  }
  func.func @transform_11(%arg0: i32) -> (i32, i32, i32) {
    %c0_i32 = arith.constant 0 : i32
    %c0_i32_0 = arith.constant 0 : i32
    %c0_i32_1 = arith.constant 0 : i32
    return %arg0, %c0_i32, %c0_i32_0 : i32, i32, i32
  }
}

</mosaic_0001>

<llo_original>
// kernel: tpu_custom_call.1
$region0: #{tpu_custom_call.1}
  #allocation0 [shape = 'u32[]', space=smem, size = 0x4, offset = 0x4, fixed_abs, tag = 'smem constant byte address 0x4 - core index']
  #allocation1 [shape = 'u32[144,128]{1,0:T(1,128)}', space=vmem, size = 0x12000, scoped, tag = 'internal scratch']
  #allocation2 [shape = 'f32[1,1]{1,0:T(1,128)S(1)}', space=vmem, size = 0x200, scoped, tag = 'scoped memory for tpu_custom_call.1']
  %s0 = inlined_call_operand.vmem [shape: f32[16,16,8,8], index: 0, kind: input, shape index: {}]
  %s1 = inlined_call_operand.vmem [shape: f32[72,4], index: 1, kind: input, shape index: {}]
  %s2 = inlined_call_operand.vmem [shape: f32[1,4], index: 2, kind: input, shape index: {}]
  %s3 = inlined_call_operand.vmem [shape: f32[1,4], index: 3, kind: input, shape index: {}]
  %s4 = inlined_call_operand.vmem [shape: f32[36,4], index: 4, kind: input, shape index: {}]
  %s5 = inlined_call_operand.vmem [shape: f32[1,4], index: 5, kind: input, shape index: {}]
  %s6 = inlined_call_operand.vmem [shape: f32[1,4], index: 6, kind: input, shape index: {}]
  %s7 = inlined_call_operand.vmem [shape: f32[16,32], index: 7, kind: input, shape index: {}]
  %s8 = inlined_call_operand.vmem [shape: f32[1,32], index: 8, kind: input, shape index: {}]
  %s9 = inlined_call_operand.vmem [shape: f32[1,32], index: 9, kind: input, shape index: {}]
  %s10 = inlined_call_operand.<no memory space> [shape: f32[1,1], index: 10, kind: input, shape index: {}]
  %s11 = inlined_call_operand.hbm [shape: f32[1,1,8], index: 11, kind: output, shape index: {}]
  %s12 = sld [smem:[#allocation0]]
  $region54: #{tpu_custom_call.1} parent=0
    _
  %s14 = ssub.s32 1, %s12
  %s15 = scalar_select 0, %s14, %s12
  %v16 = vstv %s10
  %17 = vst [vmem:[#allocation2] sm:$0x1] %v16
  $region1: #{tpu_custom_call.1} parent=0
    #allocation3 [shape = 'u8[512]{0}', space=vmem, size = 0x400, scoped, tag = 'output window, operand 0, single buffered']
    #allocation4 [shape = 's32[1]{0}', space=sflag, size = 0x4, scoped, tag = 'scoped memory for tpu_custom_call.1']
    %18 = vsyncpa [#allocation4], 0
    // Predicated region
    $region2: #{tpu_custom_call.1} parent=1 // pred_check
      _
    $region3: #{tpu_custom_call.1} parent=1 // pred_check_branch
      %20 = sbr.rel (0) target = $region5
    $region4: #{tpu_custom_call.1} parent=1 // pred_region
      _
    $region5: #{tpu_custom_call.1} parent=1 // pred_fallthru
      _
    // Predicated region
    $region6: #{tpu_custom_call.1} parent=1 // pred_check
      _
    $region7: #{tpu_custom_call.1} parent=1 // pred_check_branch
      %22 = sbr.rel (0) target = $region9
    $region8: #{tpu_custom_call.1} parent=1 // pred_region
      _
    $region9: #{tpu_custom_call.1} parent=1 // pred_fallthru
      _
    // Predicated region
    $region10: #{tpu_custom_call.1} parent=1 // pred_check
      _
    $region11: #{tpu_custom_call.1} parent=1 // pred_check_branch
      %24 = sbr.rel (0) target = $region13
    $region12: #{tpu_custom_call.1} parent=1 // pred_region
      _
    $region13: #{tpu_custom_call.1} parent=1 // pred_fallthru
      _
    // Predicated region
    $region14: #{tpu_custom_call.1} parent=1 // pred_check
      _
    $region15: #{tpu_custom_call.1} parent=1 // pred_check_branch
      %26 = sbr.rel (0) target = $region17
    $region16: #{tpu_custom_call.1} parent=1 // pred_region
      _
    $region17: #{tpu_custom_call.1} parent=1 // pred_fallthru
      _
    // Predicated region
    $region18: #{tpu_custom_call.1} parent=1 // pred_check
      _
    $region19: #{tpu_custom_call.1} parent=1 // pred_check_branch
      %28 = sbr.rel (0) target = $region21
    $region20: #{tpu_custom_call.1} parent=1 // pred_region
      _
    $region21: #{tpu_custom_call.1} parent=1 // pred_fallthru
      _
    // Predicated region
    $region22: #{tpu_custom_call.1} parent=1 // pred_check
      _
    $region23: #{tpu_custom_call.1} parent=1 // pred_check_branch
      %30 = sbr.rel (0) target = $region25
    $region24: #{tpu_custom_call.1} parent=1 // pred_region
      _
    $region25: #{tpu_custom_call.1} parent=1 // pred_fallthru
      _
    // Predicated region
    $region26: #{tpu_custom_call.1} parent=1 // pred_check
      _
    $region27: #{tpu_custom_call.1} parent=1 // pred_check_branch
      %32 = sbr.rel (0) target = $region29
    $region28: #{tpu_custom_call.1} parent=1 // pred_region
      _
    $region29: #{tpu_custom_call.1} parent=1 // pred_fallthru
      _
    // Predicated region
    $region30: #{tpu_custom_call.1} parent=1 // pred_check
      _
    $region31: #{tpu_custom_call.1} parent=1 // pred_check_branch
      %34 = sbr.rel (0) target = $region33
    $region32: #{tpu_custom_call.1} parent=1 // pred_region
      _
    $region33: #{tpu_custom_call.1} parent=1 // pred_fallthru
      _
    // Predicated region
    $region34: #{tpu_custom_call.1} parent=1 // pred_check
      _
    $region35: #{tpu_custom_call.1} parent=1 // pred_check_branch
      %36 = sbr.rel (0) target = $region37
    $region36: #{tpu_custom_call.1} parent=1 // pred_region
      _
    $region37: #{tpu_custom_call.1} parent=1 // pred_fallthru
      _
    // Predicated region
    $region38: #{tpu_custom_call.1} parent=1 // pred_check
      _
    $region39: #{tpu_custom_call.1} parent=1 // pred_check_branch
      %38 = sbr.rel (0) target = $region41
    $region40: #{tpu_custom_call.1} parent=1 // pred_region
      _
    $region41: #{tpu_custom_call.1} parent=1 // pred_fallthru
      _
    // Predicated region
    $region42: #{tpu_custom_call.1} parent=1 // pred_check
      _
    $region43: #{tpu_custom_call.1} parent=1 // pred_check_branch
      %40 = sbr.rel (0) target = $region45
    $region44: #{tpu_custom_call.1} parent=1 // pred_region
      _
    $region45: #{tpu_custom_call.1} parent=1 // pred_fallthru
      _
    %v41 = vld [vmem:[%s0] sm:$0xff]
    %v42 = vld [vmem:[%s0 + $0x8] sm:$0xff]
    %v43 = vld [vmem:[%s0 + $0x10] sm:$0xff]
    %v44 = vld [vmem:[%s0 + $0x18] sm:$0xff]
    %v45 = vld [vmem:[%s0 + $0x20] sm:$0xff]
    %v46 = vld [vmem:[%s0 + $0x28] sm:$0xff]
    %v47 = vld [vmem:[%s0 + $0x30] sm:$0xff]
    %v48 = vld [vmem:[%s0 + $0x38] sm:$0xff]
    %v49 = vld [vmem:[%s0 + $0x40] sm:$0xff]
    %v50 = vld [vmem:[%s0 + $0x48] sm:$0xff]
    %v51 = vld [vmem:[%s0 + $0x50] sm:$0xff]
    %v52 = vld [vmem:[%s0 + $0x58] sm:$0xff]
    %v53 = vld [vmem:[%s0 + $0x60] sm:$0xff]
    %v54 = vld [vmem:[%s0 + $0x68] sm:$0xff]
    %v55 = vld [vmem:[%s0 + $0x70] sm:$0xff]
    %v56 = vld [vmem:[%s0 + $0x78] sm:$0xff]
    %v57 = vld [vmem:[%s0 + $0x80] sm:$0xff]
    %v58 = vld [vmem:[%s0 + $0x88] sm:$0xff]
    %v59 = vld [vmem:[%s0 + $0x90] sm:$0xff]
    %v60 = vld [vmem:[%s0 + $0x98] sm:$0xff]
    %v61 = vld [vmem:[%s0 + $0xa0] sm:$0xff]
    %v62 = vld [vmem:[%s0 + $0xa8] sm:$0xff]
    %v63 = vld [vmem:[%s0 + $0xb0] sm:$0xff]
    %v64 = vld [vmem:[%s0 + $0xb8] sm:$0xff]
    %v65 = vld [vmem:[%s0 + $0xc0] sm:$0xff]
    %v66 = vld [vmem:[%s0 + $0xc8] sm:$0xff]
    %v67 = vld [vmem:[%s0 + $0xd0] sm:$0xff]
    %v68 = vld [vmem:[%s0 + $0xd8] sm:$0xff]
    %v69 = vld [vmem:[%s0 + $0xe0] sm:$0xff]
    %v70 = vld [vmem:[%s0 + $0xe8] sm:$0xff]
    %v71 = vld [vmem:[%s0 + $0xf0] sm:$0xff]
    %v72 = vld [vmem:[%s0 + $0xf8] sm:$0xff]
    %v73 = vld [vmem:[%s0 + $0x100] sm:$0xff]
    %v74 = vld [vmem:[%s0 + $0x108] sm:$0xff]
    %v75 = vld [vmem:[%s0 + $0x110] sm:$0xff]
    %v76 = vld [vmem:[%s0 + $0x118] sm:$0xff]
    %v77 = vld [vmem:[%s0 + $0x120] sm:$0xff]
    %v78 = vld [vmem:[%s0 + $0x128] sm:$0xff]
    %v79 = vld [vmem:[%s0 + $0x130] sm:$0xff]
    %v80 = vld [vmem:[%s0 + $0x138] sm:$0xff]
    %v81 = vld [vmem:[%s0 + $0x140] sm:$0xff]
    %v82 = vld [vmem:[%s0 + $0x148] sm:$0xff]
    %v83 = vld [vmem:[%s0 + $0x150] sm:$0xff]
    %v84 = vld [vmem:[%s0 + $0x158] sm:$0xff]
    %v85 = vld [vmem:[%s0 + $0x160] sm:$0xff]
    %v86 = vld [vmem:[%s0 + $0x168] sm:$0xff]
    %v87 = vld [vmem:[%s0 + $0x170] sm:$0xff]
    %v88 = vld [vmem:[%s0 + $0x178] sm:$0xff]
    %v89 = vld [vmem:[%s0 + $0x180] sm:$0xff]
    %v90 = vld [vmem:[%s0 + $0x188] sm:$0xff]
    %v91 = vld [vmem:[%s0 + $0x190] sm:$0xff]
    %v92 = vld [vmem:[%s0 + $0x198] sm:$0xff]
    %v93 = vld [vmem:[%s0 + $0x1a0] sm:$0xff]
    %v94 = vld [vmem:[%s0 + $0x1a8] sm:$0xff]
    %v95 = vld [vmem:[%s0 + $0x1b0] sm:$0xff]
    %v96 = vld [vmem:[%s0 + $0x1b8] sm:$0xff]
    %v97 = vld [vmem:[%s0 + $0x1c0] sm:$0xff]
    %v98 = vld [vmem:[%s0 + $0x1c8] sm:$0xff]
    %v99 = vld [vmem:[%s0 + $0x1d0] sm:$0xff]
    %v100 = vld [vmem:[%s0 + $0x1d8] sm:$0xff]
    %v101 = vld [vmem:[%s0 + $0x1e0] sm:$0xff]
    %v102 = vld [vmem:[%s0 + $0x1e8] sm:$0xff]
    %v103 = vld [vmem:[%s0 + $0x1f0] sm:$0xff]
    %v104 = vld [vmem:[%s0 + $0x1f8] sm:$0xff]
    %v105 = vld [vmem:[%s0 + $0x200] sm:$0xff]
    %v106 = vld [vmem:[%s0 + $0x208] sm:$0xff]
    %v107 = vld [vmem:[%s0 + $0x210] sm:$0xff]
    %v108 = vld [vmem:[%s0 + $0x218] sm:$0xff]
    %v109 = vld [vmem:[%s0 + $0x220] sm:$0xff]
    %v110 = vld [vmem:[%s0 + $0x228] sm:$0xff]
    %v111 = vld [vmem:[%s0 + $0x230] sm:$0xff]
    %v112 = vld [vmem:[%s0 + $0x238] sm:$0xff]
    %v113 = vld [vmem:[%s0 + $0x240] sm:$0xff]
    %v114 = vld [vmem:[%s0 + $0x248] sm:$0xff]
    %v115 = vld [vmem:[%s0 + $0x250] sm:$0xff]
    %v116 = vld [vmem:[%s0 + $0x258] sm:$0xff]
    %v117 = vld [vmem:[%s0 + $0x260] sm:$0xff]
    %v118 = vld [vmem:[%s0 + $0x268] sm:$0xff]
    %v119 = vld [vmem:[%s0 + $0x270] sm:$0xff]
    %v120 = vld [vmem:[%s0 + $0x278] sm:$0xff]
    %v121 = vld [vmem:[%s0 + $0x280] sm:$0xff]
    %v122 = vld [vmem:[%s0 + $0x288] sm:$0xff]
    %v123 = vld [vmem:[%s0 + $0x290] sm:$0xff]
    %v124 = vld [vmem:[%s0 + $0x298] sm:$0xff]
    %v125 = vld [vmem:[%s0 + $0x2a0] sm:$0xff]
    %v126 = vld [vmem:[%s0 + $0x2a8] sm:$0xff]
    %v127 = vld [vmem:[%s0 + $0x2b0] sm:$0xff]
    %v128 = vld [vmem:[%s0 + $0x2b8] sm:$0xff]
    %v129 = vld [vmem:[%s0 + $0x2c0] sm:$0xff]
    %v130 = vld [vmem:[%s0 + $0x2c8] sm:$0xff]
    %v131 = vld [vmem:[%s0 + $0x2d0] sm:$0xff]
    %v132 = vld [vmem:[%s0 + $0x2d8] sm:$0xff]
    %v133 = vld [vmem:[%s0 + $0x2e0] sm:$0xff]
    %v134 = vld [vmem:[%s0 + $0x2e8] sm:$0xff]
    %v135 = vld [vmem:[%s0 + $0x2f0] sm:$0xff]
    %v136 = vld [vmem:[%s0 + $0x2f8] sm:$0xff]
    %v137 = vld [vmem:[%s0 + $0x300] sm:$0xff]
    %v138 = vld [vmem:[%s0 + $0x308] sm:$0xff]
    %v139 = vld [vmem:[%s0 + $0x310] sm:$0xff]
    %v140 = vld [vmem:[%s0 + $0x318] sm:$0xff]
    %v141 = vld [vmem:[%s0 + $0x320] sm:$0xff]
    %v142 = vld [vmem:[%s0 + $0x328] sm:$0xff]
    %v143 = vld [vmem:[%s0 + $0x330] sm:$0xff]
    %v144 = vld [vmem:[%s0 + $0x338] sm:$0xff]
    %v145 = vld [vmem:[%s0 + $0x340] sm:$0xff]
    %v146 = vld [vmem:[%s0 + $0x348] sm:$0xff]
    %v147 = vld [vmem:[%s0 + $0x350] sm:$0xff]
    %v148 = vld [vmem:[%s0 + $0x358] sm:$0xff]
    %v149 = vld [vmem:[%s0 + $0x360] sm:$0xff]
    %v150 = vld [vmem:[%s0 + $0x368] sm:$0xff]
    %v151 = vld [vmem:[%s0 + $0x370] sm:$0xff]
    %v152 = vld [vmem:[%s0 + $0x378] sm:$0xff]
    %v153 = vld [vmem:[%s0 + $0x380] sm:$0xff]
    %v154 = vld [vmem:[%s0 + $0x388] sm:$0xff]
    %v155 = vld [vmem:[%s0 + $0x390] sm:$0xff]
    %v156 = vld [vmem:[%s0 + $0x398] sm:$0xff]
    %v157 = vld [vmem:[%s0 + $0x3a0] sm:$0xff]
    %v158 = vld [vmem:[%s0 + $0x3a8] sm:$0xff]
    %v159 = vld [vmem:[%s0 + $0x3b0] sm:$0xff]
    %v160 = vld [vmem:[%s0 + $0x3b8] sm:$0xff]
    %v161 = vld [vmem:[%s0 + $0x3c0] sm:$0xff]
    %v162 = vld [vmem:[%s0 + $0x3c8] sm:$0xff]
    %v163 = vld [vmem:[%s0 + $0x3d0] sm:$0xff]
    %v164 = vld [vmem:[%s0 + $0x3d8] sm:$0xff]
    %v165 = vld [vmem:[%s0 + $0x3e0] sm:$0xff]
    %v166 = vld [vmem:[%s0 + $0x3e8] sm:$0xff]
    %v167 = vld [vmem:[%s0 + $0x3f0] sm:$0xff]
    %v168 = vld [vmem:[%s0 + $0x3f8] sm:$0xff]
    %v169 = vld [vmem:[%s0 + $0x400] sm:$0xff]
    %v170 = vld [vmem:[%s0 + $0x408] sm:$0xff]
    %v171 = vld [vmem:[%s0 + $0x410] sm:$0xff]
    %v172 = vld [vmem:[%s0 + $0x418] sm:$0xff]
    %v173 = vld [vmem:[%s0 + $0x420] sm:$0xff]
    %v174 = vld [vmem:[%s0 + $0x428] sm:$0xff]
    %v175 = vld [vmem:[%s0 + $0x430] sm:$0xff]
    %v176 = vld [vmem:[%s0 + $0x438] sm:$0xff]
    %v177 = vld [vmem:[%s0 + $0x440] sm:$0xff]
    %v178 = vld [vmem:[%s0 + $0x448] sm:$0xff]
    %v179 = vld [vmem:[%s0 + $0x450] sm:$0xff]
    %v180 = vld [vmem:[%s0 + $0x458] sm:$0xff]
    %v181 = vld [vmem:[%s0 + $0x460] sm:$0xff]
    %v182 = vld [vmem:[%s0 + $0x468] sm:$0xff]
    %v183 = vld [vmem:[%s0 + $0x470] sm:$0xff]
    %v184 = vld [vmem:[%s0 + $0x478] sm:$0xff]
    %v185 = vld [vmem:[%s0 + $0x480] sm:$0xff]
    %v186 = vld [vmem:[%s0 + $0x488] sm:$0xff]
    %v187 = vld [vmem:[%s0 + $0x490] sm:$0xff]
    %v188 = vld [vmem:[%s0 + $0x498] sm:$0xff]
    %v189 = vld [vmem:[%s0 + $0x4a0] sm:$0xff]
    %v190 = vld [vmem:[%s0 + $0x4a8] sm:$0xff]
    %v191 = vld [vmem:[%s0 + $0x4b0] sm:$0xff]
    %v192 = vld [vmem:[%s0 + $0x4b8] sm:$0xff]
    %v193 = vld [vmem:[%s0 + $0x4c0] sm:$0xff]
    %v194 = vld [vmem:[%s0 + $0x4c8] sm:$0xff]
    %v195 = vld [vmem:[%s0 + $0x4d0] sm:$0xff]
    %v196 = vld [vmem:[%s0 + $0x4d8] sm:$0xff]
    %v197 = vld [vmem:[%s0 + $0x4e0] sm:$0xff]
    %v198 = vld [vmem:[%s0 + $0x4e8] sm:$0xff]
    %v199 = vld [vmem:[%s0 + $0x4f0] sm:$0xff]
    %v200 = vld [vmem:[%s0 + $0x4f8] sm:$0xff]
    %v201 = vld [vmem:[%s0 + $0x500] sm:$0xff]
    %v202 = vld [vmem:[%s0 + $0x508] sm:$0xff]
    %v203 = vld [vmem:[%s0 + $0x510] sm:$0xff]
    %v204 = vld [vmem:[%s0 + $0x518] sm:$0xff]
    %v205 = vld [vmem:[%s0 + $0x520] sm:$0xff]
    %v206 = vld [vmem:[%s0 + $0x528] sm:$0xff]
    %v207 = vld [vmem:[%s0 + $0x530] sm:$0xff]
    %v208 = vld [vmem:[%s0 + $0x538] sm:$0xff]
    %v209 = vld [vmem:[%s0 + $0x540] sm:$0xff]
    %v210 = vld [vmem:[%s0 + $0x548] sm:$0xff]
    %v211 = vld [vmem:[%s0 + $0x550] sm:$0xff]
    %v212 = vld [vmem:[%s0 + $0x558] sm:$0xff]
    %v213 = vld [vmem:[%s0 + $0x560] sm:$0xff]
    %v214 = vld [vmem:[%s0 + $0x568] sm:$0xff]
    %v215 = vld [vmem:[%s0 + $0x570] sm:$0xff]
    %v216 = vld [vmem:[%s0 + $0x578] sm:$0xff]
    %v217 = vld [vmem:[%s0 + $0x580] sm:$0xff]
    %v218 = vld [vmem:[%s0 + $0x588] sm:$0xff]
    %v219 = vld [vmem:[%s0 + $0x590] sm:$0xff]
    %v220 = vld [vmem:[%s0 + $0x598] sm:$0xff]
    %v221 = vld [vmem:[%s0 + $0x5a0] sm:$0xff]
    %v222 = vld [vmem:[%s0 + $0x5a8] sm:$0xff]
    %v223 = vld [vmem:[%s0 + $0x5b0] sm:$0xff]
    %v224 = vld [vmem:[%s0 + $0x5b8] sm:$0xff]
    %v225 = vld [vmem:[%s0 + $0x5c0] sm:$0xff]
    %v226 = vld [vmem:[%s0 + $0x5c8] sm:$0xff]
    %v227 = vld [vmem:[%s0 + $0x5d0] sm:$0xff]
    %v228 = vld [vmem:[%s0 + $0x5d8] sm:$0xff]
    %v229 = vld [vmem:[%s0 + $0x5e0] sm:$0xff]
    %v230 = vld [vmem:[%s0 + $0x5e8] sm:$0xff]
    %v231 = vld [vmem:[%s0 + $0x5f0] sm:$0xff]
    %v232 = vld [vmem:[%s0 + $0x5f8] sm:$0xff]
    %v233 = vld [vmem:[%s0 + $0x600] sm:$0xff]
    %v234 = vld [vmem:[%s0 + $0x608] sm:$0xff]
    %v235 = vld [vmem:[%s0 + $0x610] sm:$0xff]
    %v236 = vld [vmem:[%s0 + $0x618] sm:$0xff]
    %v237 = vld [vmem:[%s0 + $0x620] sm:$0xff]
    %v238 = vld [vmem:[%s0 + $0x628] sm:$0xff]
    %v239 = vld [vmem:[%s0 + $0x630] sm:$0xff]
    %v240 = vld [vmem:[%s0 + $0x638] sm:$0xff]
    %v241 = vld [vmem:[%s0 + $0x640] sm:$0xff]
    %v242 = vld [vmem:[%s0 + $0x648] sm:$0xff]
    %v243 = vld [vmem:[%s0 + $0x650] sm:$0xff]
    %v244 = vld [vmem:[%s0 + $0x658] sm:$0xff]
    %v245 = vld [vmem:[%s0 + $0x660] sm:$0xff]
    %v246 = vld [vmem:[%s0 + $0x668] sm:$0xff]
    %v247 = vld [vmem:[%s0 + $0x670] sm:$0xff]
    %v248 = vld [vmem:[%s0 + $0x678] sm:$0xff]
    %v249 = vld [vmem:[%s0 + $0x680] sm:$0xff]
    %v250 = vld [vmem:[%s0 + $0x688] sm:$0xff]
    %v251 = vld [vmem:[%s0 + $0x690] sm:$0xff]
    %v252 = vld [vmem:[%s0 + $0x698] sm:$0xff]
    %v253 = vld [vmem:[%s0 + $0x6a0] sm:$0xff]
    %v254 = vld [vmem:[%s0 + $0x6a8] sm:$0xff]
    %v255 = vld [vmem:[%s0 + $0x6b0] sm:$0xff]
    %v256 = vld [vmem:[%s0 + $0x6b8] sm:$0xff]
    %v257 = vld [vmem:[%s0 + $0x6c0] sm:$0xff]
    %v258 = vld [vmem:[%s0 + $0x6c8] sm:$0xff]
    %v259 = vld [vmem:[%s0 + $0x6d0] sm:$0xff]
    %v260 = vld [vmem:[%s0 + $0x6d8] sm:$0xff]
    %v261 = vld [vmem:[%s0 + $0x6e0] sm:$0xff]
    %v262 = vld [vmem:[%s0 + $0x6e8] sm:$0xff]
    %v263 = vld [vmem:[%s0 + $0x6f0] sm:$0xff]
    %v264 = vld [vmem:[%s0 + $0x6f8] sm:$0xff]
    %v265 = vld [vmem:[%s0 + $0x700] sm:$0xff]
    %v266 = vld [vmem:[%s0 + $0x708] sm:$0xff]
    %v267 = vld [vmem:[%s0 + $0x710] sm:$0xff]
    %v268 = vld [vmem:[%s0 + $0x718] sm:$0xff]
    %v269 = vld [vmem:[%s0 + $0x720] sm:$0xff]
    %v270 = vld [vmem:[%s0 + $0x728] sm:$0xff]
    %v271 = vld [vmem:[%s0 + $0x730] sm:$0xff]
    %v272 = vld [vmem:[%s0 + $0x738] sm:$0xff]
    %v273 = vld [vmem:[%s0 + $0x740] sm:$0xff]
    %v274 = vld [vmem:[%s0 + $0x748] sm:$0xff]
    %v275 = vld [vmem:[%s0 + $0x750] sm:$0xff]
    %v276 = vld [vmem:[%s0 + $0x758] sm:$0xff]
    %v277 = vld [vmem:[%s0 + $0x760] sm:$0xff]
    %v278 = vld [vmem:[%s0 + $0x768] sm:$0xff]
    %v279 = vld [vmem:[%s0 + $0x770] sm:$0xff]
    %v280 = vld [vmem:[%s0 + $0x778] sm:$0xff]
    %v281 = vld [vmem:[%s0 + $0x780] sm:$0xff]
    %v282 = vld [vmem:[%s0 + $0x788] sm:$0xff]
    %v283 = vld [vmem:[%s0 + $0x790] sm:$0xff]
    %v284 = vld [vmem:[%s0 + $0x798] sm:$0xff]
    %v285 = vld [vmem:[%s0 + $0x7a0] sm:$0xff]
    %v286 = vld [vmem:[%s0 + $0x7a8] sm:$0xff]
    %v287 = vld [vmem:[%s0 + $0x7b0] sm:$0xff]
    %v288 = vld [vmem:[%s0 + $0x7b8] sm:$0xff]
    %v289 = vld [vmem:[%s0 + $0x7c0] sm:$0xff]
    %v290 = vld [vmem:[%s0 + $0x7c8] sm:$0xff]
    %v291 = vld [vmem:[%s0 + $0x7d0] sm:$0xff]
    %v292 = vld [vmem:[%s0 + $0x7d8] sm:$0xff]
    %v293 = vld [vmem:[%s0 + $0x7e0] sm:$0xff]
    %v294 = vld [vmem:[%s0 + $0x7e8] sm:$0xff]
    %v295 = vld [vmem:[%s0 + $0x7f0] sm:$0xff]
    %v296 = vld [vmem:[%s0 + $0x7f8] sm:$0xff]
    %493 = vrot.lane.b32.xlu0 %v42, 8
    %v494 = vpop.permute.xlu0 %493
    %495 = vrot.lane.b32.xlu0 %v43, 8
    %v496 = vpop.permute.xlu0 %495
    %497 = vrot.lane.b32.xlu0 %v44, 8
    %v498 = vpop.permute.xlu0 %497
    %499 = vrot.lane.b32.xlu0 %v45, 8
    %v500 = vpop.permute.xlu0 %499
    %501 = vrot.lane.b32.xlu0 %v46, 8
    %v502 = vpop.permute.xlu0 %501
    %503 = vrot.lane.b32.xlu0 %v47, 8
    %v504 = vpop.permute.xlu0 %503
    %505 = vrot.lane.b32.xlu0 %v48, 8
    %v506 = vpop.permute.xlu0 %505
    %507 = vrot.lane.b32.xlu0 %v49, 8
    %v508 = vpop.permute.xlu0 %507
    %509 = vrot.lane.b32.xlu0 %v50, 8
    %v510 = vpop.permute.xlu0 %509
    %511 = vrot.lane.b32.xlu0 %v51, 8
    %v512 = vpop.permute.xlu0 %511
    %513 = vrot.lane.b32.xlu0 %v52, 8
    %v514 = vpop.permute.xlu0 %513
    %515 = vrot.lane.b32.xlu0 %v53, 8
    %v516 = vpop.permute.xlu0 %515
    %517 = vrot.lane.b32.xlu0 %v54, 8
    %v518 = vpop.permute.xlu0 %517
    %519 = vrot.lane.b32.xlu0 %v55, 8
    %v520 = vpop.permute.xlu0 %519
    %521 = vrot.lane.b32.xlu0 %v58, 8
    %v522 = vpop.permute.xlu0 %521
    %523 = vrot.lane.b32.xlu0 %v59, 8
    %v524 = vpop.permute.xlu0 %523
    %525 = vrot.lane.b32.xlu0 %v60, 8
    %v526 = vpop.permute.xlu0 %525
    %527 = vrot.lane.b32.xlu0 %v61, 8
    %v528 = vpop.permute.xlu0 %527
    %529 = vrot.lane.b32.xlu0 %v62, 8
    %v530 = vpop.permute.xlu0 %529
    %531 = vrot.lane.b32.xlu0 %v63, 8
    %v532 = vpop.permute.xlu0 %531
    %533 = vrot.lane.b32.xlu0 %v64, 8
    %v534 = vpop.permute.xlu0 %533
    %535 = vrot.lane.b32.xlu0 %v65, 8
    %v536 = vpop.permute.xlu0 %535
    %537 = vrot.lane.b32.xlu0 %v66, 8
    %v538 = vpop.permute.xlu0 %537
    %539 = vrot.lane.b32.xlu0 %v67, 8
    %v540 = vpop.permute.xlu0 %539
    %541 = vrot.lane.b32.xlu0 %v68, 8
    %v542 = vpop.permute.xlu0 %541
    %543 = vrot.lane.b32.xlu0 %v69, 8
    %v544 = vpop.permute.xlu0 %543
    %545 = vrot.lane.b32.xlu0 %v70, 8
    %v546 = vpop.permute.xlu0 %545
    %547 = vrot.lane.b32.xlu0 %v71, 8
    %v548 = vpop.permute.xlu0 %547
    %549 = vrot.lane.b32.xlu0 %v74, 8
    %v550 = vpop.permute.xlu0 %549
    %551 = vrot.lane.b32.xlu0 %v75, 8
    %v552 = vpop.permute.xlu0 %551
    %553 = vrot.lane.b32.xlu0 %v76, 8
    %v554 = vpop.permute.xlu0 %553
    %555 = vrot.lane.b32.xlu0 %v77, 8
    %v556 = vpop.permute.xlu0 %555
    %557 = vrot.lane.b32.xlu0 %v78, 8
    %v558 = vpop.permute.xlu0 %557
    %559 = vrot.lane.b32.xlu0 %v79, 8
    %v560 = vpop.permute.xlu0 %559
    %561 = vrot.lane.b32.xlu0 %v80, 8
    %v562 = vpop.permute.xlu0 %561
    %563 = vrot.lane.b32.xlu0 %v81, 8
    %v564 = vpop.permute.xlu0 %563
    %565 = vrot.lane.b32.xlu0 %v82, 8
    %v566 = vpop.permute.xlu0 %565
    %567 = vrot.lane.b32.xlu0 %v83, 8
    %v568 = vpop.permute.xlu0 %567
    %569 = vrot.lane.b32.xlu0 %v84, 8
    %v570 = vpop.permute.xlu0 %569
    %571 = vrot.lane.b32.xlu0 %v85, 8
    %v572 = vpop.permute.xlu0 %571
    %573 = vrot.lane.b32.xlu0 %v86, 8
    %v574 = vpop.permute.xlu0 %573
    %575 = vrot.lane.b32.xlu0 %v87, 8
    %v576 = vpop.permute.xlu0 %575
    %577 = vrot.lane.b32.xlu0 %v90, 8
    %v578 = vpop.permute.xlu0 %577
    %579 = vrot.lane.b32.xlu0 %v91, 8
    %v580 = vpop.permute.xlu0 %579
    %581 = vrot.lane.b32.xlu0 %v92, 8
    %v582 = vpop.permute.xlu0 %581
    %583 = vrot.lane.b32.xlu0 %v93, 8
    %v584 = vpop.permute.xlu0 %583
    %585 = vrot.lane.b32.xlu0 %v94, 8
    %v586 = vpop.permute.xlu0 %585
    %587 = vrot.lane.b32.xlu0 %v95, 8
    %v588 = vpop.permute.xlu0 %587
    %589 = vrot.lane.b32.xlu0 %v96, 8
    %v590 = vpop.permute.xlu0 %589
    %591 = vrot.lane.b32.xlu0 %v97, 8
    %v592 = vpop.permute.xlu0 %591
    %593 = vrot.lane.b32.xlu0 %v98, 8
    %v594 = vpop.permute.xlu0 %593
    %595 = vrot.lane.b32.xlu0 %v99, 8
    %v596 = vpop.permute.xlu0 %595
    %597 = vrot.lane.b32.xlu0 %v100, 8
    %v598 = vpop.permute.xlu0 %597
    %599 = vrot.lane.b32.xlu0 %v101, 8
    %v600 = vpop.permute.xlu0 %599
    %601 = vrot.lane.b32.xlu0 %v102, 8
    %v602 = vpop.permute.xlu0 %601
    %603 = vrot.lane.b32.xlu0 %v103, 8
    %v604 = vpop.permute.xlu0 %603
    %605 = vrot.lane.b32.xlu0 %v106, 8
    %v606 = vpop.permute.xlu0 %605
    %607 = vrot.lane.b32.xlu0 %v107, 8
    %v608 = vpop.permute.xlu0 %607
    %609 = vrot.lane.b32.xlu0 %v108, 8
    %v610 = vpop.permute.xlu0 %609
    %611 = vrot.lane.b32.xlu0 %v109, 8
    %v612 = vpop.permute.xlu0 %611
    %613 = vrot.lane.b32.xlu0 %v110, 8
    %v614 = vpop.permute.xlu0 %613
    %615 = vrot.lane.b32.xlu0 %v111, 8
    %v616 = vpop.permute.xlu0 %615
    %617 = vrot.lane.b32.xlu0 %v112, 8
    %v618 = vpop.permute.xlu0 %617
    %619 = vrot.lane.b32.xlu0 %v113, 8
    %v620 = vpop.permute.xlu0 %619
    %621 = vrot.lane.b32.xlu0 %v114, 8
    %v622 = vpop.permute.xlu0 %621
    %623 = vrot.lane.b32.xlu0 %v115, 8
    %v624 = vpop.permute.xlu0 %623
    %625 = vrot.lane.b32.xlu0 %v116, 8
    %v626 = vpop.permute.xlu0 %625
    %627 = vrot.lane.b32.xlu0 %v117, 8
    %v628 = vpop.permute.xlu0 %627
    %629 = vrot.lane.b32.xlu0 %v118, 8
    %v630 = vpop.permute.xlu0 %629
    %631 = vrot.lane.b32.xlu0 %v119, 8
    %v632 = vpop.permute.xlu0 %631
    %633 = vrot.lane.b32.xlu0 %v122, 8
    %v634 = vpop.permute.xlu0 %633
    %635 = vrot.lane.b32.xlu0 %v123, 8
    %v636 = vpop.permute.xlu0 %635
    %637 = vrot.lane.b32.xlu0 %v124, 8
    %v638 = vpop.permute.xlu0 %637
    %639 = vrot.lane.b32.xlu0 %v125, 8
    %v640 = vpop.permute.xlu0 %639
    %641 = vrot.lane.b32.xlu0 %v126, 8
    %v642 = vpop.permute.xlu0 %641
    %643 = vrot.lane.b32.xlu0 %v127, 8
    %v644 = vpop.permute.xlu0 %643
    %645 = vrot.lane.b32.xlu0 %v128, 8
    %v646 = vpop.permute.xlu0 %645
    %647 = vrot.lane.b32.xlu0 %v129, 8
    %v648 = vpop.permute.xlu0 %647
    %649 = vrot.lane.b32.xlu0 %v130, 8
    %v650 = vpop.permute.xlu0 %649
    %651 = vrot.lane.b32.xlu0 %v131, 8
    %v652 = vpop.permute.xlu0 %651
    %653 = vrot.lane.b32.xlu0 %v132, 8
    %v654 = vpop.permute.xlu0 %653
    %655 = vrot.lane.b32.xlu0 %v133, 8
    %v656 = vpop.permute.xlu0 %655
    %657 = vrot.lane.b32.xlu0 %v134, 8
    %v658 = vpop.permute.xlu0 %657
    %659 = vrot.lane.b32.xlu0 %v135, 8
    %v660 = vpop.permute.xlu0 %659
    %661 = vrot.lane.b32.xlu0 %v138, 8
    %v662 = vpop.permute.xlu0 %661
    %663 = vrot.lane.b32.xlu0 %v139, 8
    %v664 = vpop.permute.xlu0 %663
    %665 = vrot.lane.b32.xlu0 %v140, 8
    %v666 = vpop.permute.xlu0 %665
    %667 = vrot.lane.b32.xlu0 %v141, 8
    %v668 = vpop.permute.xlu0 %667
    %669 = vrot.lane.b32.xlu0 %v142, 8
    %v670 = vpop.permute.xlu0 %669
    %671 = vrot.lane.b32.xlu0 %v143, 8
    %v672 = vpop.permute.xlu0 %671
    %673 = vrot.lane.b32.xlu0 %v144, 8
    %v674 = vpop.permute.xlu0 %673
    %675 = vrot.lane.b32.xlu0 %v145, 8
    %v676 = vpop.permute.xlu0 %675
    %677 = vrot.lane.b32.xlu0 %v146, 8
    %v678 = vpop.permute.xlu0 %677
    %679 = vrot.lane.b32.xlu0 %v147, 8
    %v680 = vpop.permute.xlu0 %679
    %681 = vrot.lane.b32.xlu0 %v148, 8
    %v682 = vpop.permute.xlu0 %681
    %683 = vrot.lane.b32.xlu0 %v149, 8
    %v684 = vpop.permute.xlu0 %683
    %685 = vrot.lane.b32.xlu0 %v150, 8
    %v686 = vpop.permute.xlu0 %685
    %687 = vrot.lane.b32.xlu0 %v151, 8
    %v688 = vpop.permute.xlu0 %687
    %689 = vrot.lane.b32.xlu0 %v154, 8
    %v690 = vpop.permute.xlu0 %689
    %691 = vrot.lane.b32.xlu0 %v155, 8
    %v692 = vpop.permute.xlu0 %691
    %693 = vrot.lane.b32.xlu0 %v156, 8
    %v694 = vpop.permute.xlu0 %693
    %695 = vrot.lane.b32.xlu0 %v157, 8
    %v696 = vpop.permute.xlu0 %695
    %697 = vrot.lane.b32.xlu0 %v158, 8
    %v698 = vpop.permute.xlu0 %697
    %699 = vrot.lane.b32.xlu0 %v159, 8
    %v700 = vpop.permute.xlu0 %699
    %701 = vrot.lane.b32.xlu0 %v160, 8
    %v702 = vpop.permute.xlu0 %701
    %703 = vrot.lane.b32.xlu0 %v161, 8
    %v704 = vpop.permute.xlu0 %703
    %705 = vrot.lane.b32.xlu0 %v162, 8
    %v706 = vpop.permute.xlu0 %705
    %707 = vrot.lane.b32.xlu0 %v163, 8
    %v708 = vpop.permute.xlu0 %707
    %709 = vrot.lane.b32.xlu0 %v164, 8
    %v710 = vpop.permute.xlu0 %709
    %711 = vrot.lane.b32.xlu0 %v165, 8
    %v712 = vpop.permute.xlu0 %711
    %713 = vrot.lane.b32.xlu0 %v166, 8
    %v714 = vpop.permute.xlu0 %713
    %715 = vrot.lane.b32.xlu0 %v167, 8
    %v716 = vpop.permute.xlu0 %715
    %717 = vrot.lane.b32.xlu0 %v170, 8
    %v718 = vpop.permute.xlu0 %717
    %719 = vrot.lane.b32.xlu0 %v171, 8
    %v720 = vpop.permute.xlu0 %719
    %721 = vrot.lane.b32.xlu0 %v172, 8
    %v722 = vpop.permute.xlu0 %721
    %723 = vrot.lane.b32.xlu0 %v173, 8
    %v724 = vpop.permute.xlu0 %723
    %725 = vrot.lane.b32.xlu0 %v174, 8
    %v726 = vpop.permute.xlu0 %725
    %727 = vrot.lane.b32.xlu0 %v175, 8
    %v728 = vpop.permute.xlu0 %727
    %729 = vrot.lane.b32.xlu0 %v176, 8
    %v730 = vpop.permute.xlu0 %729
    %731 = vrot.lane.b32.xlu0 %v177, 8
    %v732 = vpop.permute.xlu0 %731
    %733 = vrot.lane.b32.xlu0 %v178, 8
    %v734 = vpop.permute.xlu0 %733
    %735 = vrot.lane.b32.xlu0 %v179, 8
    %v736 = vpop.permute.xlu0 %735
    %737 = vrot.lane.b32.xlu0 %v180, 8
    %v738 = vpop.permute.xlu0 %737
    %739 = vrot.lane.b32.xlu0 %v181, 8
    %v740 = vpop.permute.xlu0 %739
    %741 = vrot.lane.b32.xlu0 %v182, 8
    %v742 = vpop.permute.xlu0 %741
    %743 = vrot.lane.b32.xlu0 %v183, 8
    %v744 = vpop.permute.xlu0 %743
    %745 = vrot.lane.b32.xlu0 %v186, 8
    %v746 = vpop.permute.xlu0 %745
    %747 = vrot.lane.b32.xlu0 %v187, 8
    %v748 = vpop.permute.xlu0 %747
    %749 = vrot.lane.b32.xlu0 %v188, 8
    %v750 = vpop.permute.xlu0 %749
    %751 = vrot.lane.b32.xlu0 %v189, 8
    %v752 = vpop.permute.xlu0 %751
    %753 = vrot.lane.b32.xlu0 %v190, 8
    %v754 = vpop.permute.xlu0 %753
    %755 = vrot.lane.b32.xlu0 %v191, 8
    %v756 = vpop.permute.xlu0 %755
    %757 = vrot.lane.b32.xlu0 %v192, 8
    %v758 = vpop.permute.xlu0 %757
    %759 = vrot.lane.b32.xlu0 %v193, 8
    %v760 = vpop.permute.xlu0 %759
    %761 = vrot.lane.b32.xlu0 %v194, 8
    %v762 = vpop.permute.xlu0 %761
    %763 = vrot.lane.b32.xlu0 %v195, 8
    %v764 = vpop.permute.xlu0 %763
    %765 = vrot.lane.b32.xlu0 %v196, 8
    %v766 = vpop.permute.xlu0 %765
    %767 = vrot.lane.b32.xlu0 %v197, 8
    %v768 = vpop.permute.xlu0 %767
    %769 = vrot.lane.b32.xlu0 %v198, 8
    %v770 = vpop.permute.xlu0 %769
    %771 = vrot.lane.b32.xlu0 %v199, 8
    %v772 = vpop.permute.xlu0 %771
    %773 = vrot.lane.b32.xlu0 %v202, 8
    %v774 = vpop.permute.xlu0 %773
    %775 = vrot.lane.b32.xlu0 %v203, 8
    %v776 = vpop.permute.xlu0 %775
    %777 = vrot.lane.b32.xlu0 %v204, 8
    %v778 = vpop.permute.xlu0 %777
    %779 = vrot.lane.b32.xlu0 %v205, 8
    %v780 = vpop.permute.xlu0 %779
    %781 = vrot.lane.b32.xlu0 %v206, 8
    %v782 = vpop.permute.xlu0 %781
    %783 = vrot.lane.b32.xlu0 %v207, 8
    %v784 = vpop.permute.xlu0 %783
    %785 = vrot.lane.b32.xlu0 %v208, 8
    %v786 = vpop.permute.xlu0 %785
    %787 = vrot.lane.b32.xlu0 %v209, 8
    %v788 = vpop.permute.xlu0 %787
    %789 = vrot.lane.b32.xlu0 %v210, 8
    %v790 = vpop.permute.xlu0 %789
    %791 = vrot.lane.b32.xlu0 %v211, 8
    %v792 = vpop.permute.xlu0 %791
    %793 = vrot.lane.b32.xlu0 %v212, 8
    %v794 = vpop.permute.xlu0 %793
    %795 = vrot.lane.b32.xlu0 %v213, 8
    %v796 = vpop.permute.xlu0 %795
    %797 = vrot.lane.b32.xlu0 %v214, 8
    %v798 = vpop.permute.xlu0 %797
    %799 = vrot.lane.b32.xlu0 %v215, 8
    %v800 = vpop.permute.xlu0 %799
    %801 = vrot.lane.b32.xlu0 %v218, 8
    %v802 = vpop.permute.xlu0 %801
    %803 = vrot.lane.b32.xlu0 %v219, 8
    %v804 = vpop.permute.xlu0 %803
    %805 = vrot.lane.b32.xlu0 %v220, 8
    %v806 = vpop.permute.xlu0 %805
    %807 = vrot.lane.b32.xlu0 %v221, 8
    %v808 = vpop.permute.xlu0 %807
    %809 = vrot.lane.b32.xlu0 %v222, 8
    %v810 = vpop.permute.xlu0 %809
    %811 = vrot.lane.b32.xlu0 %v223, 8
    %v812 = vpop.permute.xlu0 %811
    %813 = vrot.lane.b32.xlu0 %v224, 8
    %v814 = vpop.permute.xlu0 %813
    %815 = vrot.lane.b32.xlu0 %v225, 8
    %v816 = vpop.permute.xlu0 %815
    %817 = vrot.lane.b32.xlu0 %v226, 8
    %v818 = vpop.permute.xlu0 %817
    %819 = vrot.lane.b32.xlu0 %v227, 8
    %v820 = vpop.permute.xlu0 %819
    %821 = vrot.lane.b32.xlu0 %v228, 8
    %v822 = vpop.permute.xlu0 %821
    %823 = vrot.lane.b32.xlu0 %v229, 8
    %v824 = vpop.permute.xlu0 %823
    %825 = vrot.lane.b32.xlu0 %v230, 8
    %v826 = vpop.permute.xlu0 %825
    %827 = vrot.lane.b32.xlu0 %v231, 8
    %v828 = vpop.permute.xlu0 %827
    %829 = vrot.lane.b32.xlu0 %v234, 8
    %v830 = vpop.permute.xlu0 %829
    %831 = vrot.lane.b32.xlu0 %v235, 8
    %v832 = vpop.permute.xlu0 %831
    %833 = vrot.lane.b32.xlu0 %v236, 8
    %v834 = vpop.permute.xlu0 %833
    %835 = vrot.lane.b32.xlu0 %v237, 8
    %v836 = vpop.permute.xlu0 %835
    %837 = vrot.lane.b32.xlu0 %v238, 8
    %v838 = vpop.permute.xlu0 %837
    %839 = vrot.lane.b32.xlu0 %v239, 8
    %v840 = vpop.permute.xlu0 %839
    %841 = vrot.lane.b32.xlu0 %v240, 8
    %v842 = vpop.permute.xlu0 %841
    %843 = vrot.lane.b32.xlu0 %v241, 8
    %v844 = vpop.permute.xlu0 %843
    %845 = vrot.lane.b32.xlu0 %v242, 8
    %v846 = vpop.permute.xlu0 %845
    %847 = vrot.lane.b32.xlu0 %v243, 8
    %v848 = vpop.permute.xlu0 %847
    %849 = vrot.lane.b32.xlu0 %v244, 8
    %v850 = vpop.permute.xlu0 %849
    %851 = vrot.lane.b32.xlu0 %v245, 8
    %v852 = vpop.permute.xlu0 %851
    %853 = vrot.lane.b32.xlu0 %v246, 8
    %v854 = vpop.permute.xlu0 %853
    %855 = vrot.lane.b32.xlu0 %v247, 8
    %v856 = vpop.permute.xlu0 %855
    %857 = vrot.lane.b32.xlu0 %v250, 8
    %v858 = vpop.permute.xlu0 %857
    %859 = vrot.lane.b32.xlu0 %v251, 8
    %v860 = vpop.permute.xlu0 %859
    %861 = vrot.lane.b32.xlu0 %v252, 8
    %v862 = vpop.permute.xlu0 %861
    %863 = vrot.lane.b32.xlu0 %v253, 8
    %v864 = vpop.permute.xlu0 %863
    %865 = vrot.lane.b32.xlu0 %v254, 8
    %v866 = vpop.permute.xlu0 %865
    %867 = vrot.lane.b32.xlu0 %v255, 8
    %v868 = vpop.permute.xlu0 %867
    %869 = vrot.lane.b32.xlu0 %v256, 8
    %v870 = vpop.permute.xlu0 %869
    %871 = vrot.lane.b32.xlu0 %v257, 8
    %v872 = vpop.permute.xlu0 %871
    %873 = vrot.lane.b32.xlu0 %v258, 8
    %v874 = vpop.permute.xlu0 %873
    %875 = vrot.lane.b32.xlu0 %v259, 8
    %v876 = vpop.permute.xlu0 %875
    %877 = vrot.lane.b32.xlu0 %v260, 8
    %v878 = vpop.permute.xlu0 %877
    %879 = vrot.lane.b32.xlu0 %v261, 8
    %v880 = vpop.permute.xlu0 %879
    %881 = vrot.lane.b32.xlu0 %v262, 8
    %v882 = vpop.permute.xlu0 %881
    %883 = vrot.lane.b32.xlu0 %v263, 8
    %v884 = vpop.permute.xlu0 %883
    %1095 = vrot.lane.b32.xlu0 %v43, 16
    %v1096 = vpop.permute.xlu0 %1095
    %1097 = vrot.lane.b32.xlu0 %v44, 16
    %v1098 = vpop.permute.xlu0 %1097
    %1099 = vrot.lane.b32.xlu0 %v45, 16
    %v1100 = vpop.permute.xlu0 %1099
    %1101 = vrot.lane.b32.xlu0 %v46, 16
    %v1102 = vpop.permute.xlu0 %1101
    %1103 = vrot.lane.b32.xlu0 %v47, 16
    %v1104 = vpop.permute.xlu0 %1103
    %1105 = vrot.lane.b32.xlu0 %v48, 16
    %v1106 = vpop.permute.xlu0 %1105
    %1107 = vrot.lane.b32.xlu0 %v49, 16
    %v1108 = vpop.permute.xlu0 %1107
    %1109 = vrot.lane.b32.xlu0 %v50, 16
    %v1110 = vpop.permute.xlu0 %1109
    %1111 = vrot.lane.b32.xlu0 %v51, 16
    %v1112 = vpop.permute.xlu0 %1111
    %1113 = vrot.lane.b32.xlu0 %v52, 16
    %v1114 = vpop.permute.xlu0 %1113
    %1115 = vrot.lane.b32.xlu0 %v53, 16
    %v1116 = vpop.permute.xlu0 %1115
    %1117 = vrot.lane.b32.xlu0 %v54, 16
    %v1118 = vpop.permute.xlu0 %1117
    %1119 = vrot.lane.b32.xlu0 %v55, 16
    %v1120 = vpop.permute.xlu0 %1119
    %1121 = vrot.lane.b32.xlu0 %v56, 16
    %v1122 = vpop.permute.xlu0 %1121
    %1123 = vrot.lane.b32.xlu0 %v59, 16
    %v1124 = vpop.permute.xlu0 %1123
    %1125 = vrot.lane.b32.xlu0 %v60, 16
    %v1126 = vpop.permute.xlu0 %1125
    %1127 = vrot.lane.b32.xlu0 %v61, 16
    %v1128 = vpop.permute.xlu0 %1127
    %1129 = vrot.lane.b32.xlu0 %v62, 16
    %v1130 = vpop.permute.xlu0 %1129
    %1131 = vrot.lane.b32.xlu0 %v63, 16
    %v1132 = vpop.permute.xlu0 %1131
    %1133 = vrot.lane.b32.xlu0 %v64, 16
    %v1134 = vpop.permute.xlu0 %1133
    %1135 = vrot.lane.b32.xlu0 %v65, 16
    %v1136 = vpop.permute.xlu0 %1135
    %1137 = vrot.lane.b32.xlu0 %v66, 16
    %v1138 = vpop.permute.xlu0 %1137
    %1139 = vrot.lane.b32.xlu0 %v67, 16
    %v1140 = vpop.permute.xlu0 %1139
    %1141 = vrot.lane.b32.xlu0 %v68, 16
    %v1142 = vpop.permute.xlu0 %1141
    %1143 = vrot.lane.b32.xlu0 %v69, 16
    %v1144 = vpop.permute.xlu0 %1143
    %1145 = vrot.lane.b32.xlu0 %v70, 16
    %v1146 = vpop.permute.xlu0 %1145
    %1147 = vrot.lane.b32.xlu0 %v71, 16
    %v1148 = vpop.permute.xlu0 %1147
    %1149 = vrot.lane.b32.xlu0 %v72, 16
    %v1150 = vpop.permute.xlu0 %1149
    %1151 = vrot.lane.b32.xlu0 %v75, 16
    %v1152 = vpop.permute.xlu0 %1151
    %1153 = vrot.lane.b32.xlu0 %v76, 16
    %v1154 = vpop.permute.xlu0 %1153
    %1155 = vrot.lane.b32.xlu0 %v77, 16
    %v1156 = vpop.permute.xlu0 %1155
    %1157 = vrot.lane.b32.xlu0 %v78, 16
    %v1158 = vpop.permute.xlu0 %1157
    %1159 = vrot.lane.b32.xlu0 %v79, 16
    %v1160 = vpop.permute.xlu0 %1159
    %1161 = vrot.lane.b32.xlu0 %v80, 16
    %v1162 = vpop.permute.xlu0 %1161
    %1163 = vrot.lane.b32.xlu0 %v81, 16
    %v1164 = vpop.permute.xlu0 %1163
    %1165 = vrot.lane.b32.xlu0 %v82, 16
    %v1166 = vpop.permute.xlu0 %1165
    %1167 = vrot.lane.b32.xlu0 %v83, 16
    %v1168 = vpop.permute.xlu0 %1167
    %1169 = vrot.lane.b32.xlu0 %v84, 16
    %v1170 = vpop.permute.xlu0 %1169
    %1171 = vrot.lane.b32.xlu0 %v85, 16
    %v1172 = vpop.permute.xlu0 %1171
    %1173 = vrot.lane.b32.xlu0 %v86, 16
    %v1174 = vpop.permute.xlu0 %1173
    %1175 = vrot.lane.b32.xlu0 %v87, 16
    %v1176 = vpop.permute.xlu0 %1175
    %1177 = vrot.lane.b32.xlu0 %v88, 16
    %v1178 = vpop.permute.xlu0 %1177
    %1179 = vrot.lane.b32.xlu0 %v91, 16
    %v1180 = vpop.permute.xlu0 %1179
    %1181 = vrot.lane.b32.xlu0 %v92, 16
    %v1182 = vpop.permute.xlu0 %1181
    %1183 = vrot.lane.b32.xlu0 %v93, 16
    %v1184 = vpop.permute.xlu0 %1183
    %1185 = vrot.lane.b32.xlu0 %v94, 16
    %v1186 = vpop.permute.xlu0 %1185
    %1187 = vrot.lane.b32.xlu0 %v95, 16
    %v1188 = vpop.permute.xlu0 %1187
    %1189 = vrot.lane.b32.xlu0 %v96, 16
    %v1190 = vpop.permute.xlu0 %1189
    %1191 = vrot.lane.b32.xlu0 %v97, 16
    %v1192 = vpop.permute.xlu0 %1191
    %1193 = vrot.lane.b32.xlu0 %v98, 16
    %v1194 = vpop.permute.xlu0 %1193
    %1195 = vrot.lane.b32.xlu0 %v99, 16
    %v1196 = vpop.permute.xlu0 %1195
    %1197 = vrot.lane.b32.xlu0 %v100, 16
    %v1198 = vpop.permute.xlu0 %1197
    %1199 = vrot.lane.b32.xlu0 %v101, 16
    %v1200 = vpop.permute.xlu0 %1199
    %1201 = vrot.lane.b32.xlu0 %v102, 16
    %v1202 = vpop.permute.xlu0 %1201
    %1203 = vrot.lane.b32.xlu0 %v103, 16
    %v1204 = vpop.permute.xlu0 %1203
    %1205 = vrot.lane.b32.xlu0 %v104, 16
    %v1206 = vpop.permute.xlu0 %1205
    %1207 = vrot.lane.b32.xlu0 %v107, 16
    %v1208 = vpop.permute.xlu0 %1207
    %1209 = vrot.lane.b32.xlu0 %v108, 16
    %v1210 = vpop.permute.xlu0 %1209
    %1211 = vrot.lane.b32.xlu0 %v109, 16
    %v1212 = vpop.permute.xlu0 %1211
    %1213 = vrot.lane.b32.xlu0 %v110, 16
    %v1214 = vpop.permute.xlu0 %1213
    %1215 = vrot.lane.b32.xlu0 %v111, 16
    %v1216 = vpop.permute.xlu0 %1215
    %1217 = vrot.lane.b32.xlu0 %v112, 16
    %v1218 = vpop.permute.xlu0 %1217
    %1219 = vrot.lane.b32.xlu0 %v113, 16
    %v1220 = vpop.permute.xlu0 %1219
    %1221 = vrot.lane.b32.xlu0 %v114, 16
    %v1222 = vpop.permute.xlu0 %1221
    %1223 = vrot.lane.b32.xlu0 %v115, 16
    %v1224 = vpop.permute.xlu0 %1223
    %1225 = vrot.lane.b32.xlu0 %v116, 16
    %v1226 = vpop.permute.xlu0 %1225
    %1227 = vrot.lane.b32.xlu0 %v117, 16
    %v1228 = vpop.permute.xlu0 %1227
    %1229 = vrot.lane.b32.xlu0 %v118, 16
    %v1230 = vpop.permute.xlu0 %1229
    %1231 = vrot.lane.b32.xlu0 %v119, 16
    %v1232 = vpop.permute.xlu0 %1231
    %1233 = vrot.lane.b32.xlu0 %v120, 16
    %v1234 = vpop.permute.xlu0 %1233
    %1235 = vrot.lane.b32.xlu0 %v123, 16
    %v1236 = vpop.permute.xlu0 %1235
    %1237 = vrot.lane.b32.xlu0 %v124, 16
    %v1238 = vpop.permute.xlu0 %1237
    %1239 = vrot.lane.b32.xlu0 %v125, 16
    %v1240 = vpop.permute.xlu0 %1239
    %1241 = vrot.lane.b32.xlu0 %v126, 16
    %v1242 = vpop.permute.xlu0 %1241
    %1243 = vrot.lane.b32.xlu0 %v127, 16
    %v1244 = vpop.permute.xlu0 %1243
    %1245 = vrot.lane.b32.xlu0 %v128, 16
    %v1246 = vpop.permute.xlu0 %1245
    %1247 = vrot.lane.b32.xlu0 %v129, 16
    %v1248 = vpop.permute.xlu0 %1247
    %1249 = vrot.lane.b32.xlu0 %v130, 16
    %v1250 = vpop.permute.xlu0 %1249
    %1251 = vrot.lane.b32.xlu0 %v131, 16
    %v1252 = vpop.permute.xlu0 %1251
    %1253 = vrot.lane.b32.xlu0 %v132, 16
    %v1254 = vpop.permute.xlu0 %1253
    %1255 = vrot.lane.b32.xlu0 %v133, 16
    %v1256 = vpop.permute.xlu0 %1255
    %1257 = vrot.lane.b32.xlu0 %v134, 16
    %v1258 = vpop.permute.xlu0 %1257
    %1259 = vrot.lane.b32.xlu0 %v135, 16
    %v1260 = vpop.permute.xlu0 %1259
    %1261 = vrot.lane.b32.xlu0 %v136, 16
    %v1262 = vpop.permute.xlu0 %1261
    %1263 = vrot.lane.b32.xlu0 %v139, 16
    %v1264 = vpop.permute.xlu0 %1263
    %1265 = vrot.lane.b32.xlu0 %v140, 16
    %v1266 = vpop.permute.xlu0 %1265
    %1267 = vrot.lane.b32.xlu0 %v141, 16
    %v1268 = vpop.permute.xlu0 %1267
    %1269 = vrot.lane.b32.xlu0 %v142, 16
    %v1270 = vpop.permute.xlu0 %1269
    %1271 = vrot.lane.b32.xlu0 %v143, 16
    %v1272 = vpop.permute.xlu0 %1271
    %1273 = vrot.lane.b32.xlu0 %v144, 16
    %v1274 = vpop.permute.xlu0 %1273
    %1275 = vrot.lane.b32.xlu0 %v145, 16
    %v1276 = vpop.permute.xlu0 %1275
    %1277 = vrot.lane.b32.xlu0 %v146, 16
    %v1278 = vpop.permute.xlu0 %1277
    %1279 = vrot.lane.b32.xlu0 %v147, 16
    %v1280 = vpop.permute.xlu0 %1279
    %1281 = vrot.lane.b32.xlu0 %v148, 16
    %v1282 = vpop.permute.xlu0 %1281
    %1283 = vrot.lane.b32.xlu0 %v149, 16
    %v1284 = vpop.permute.xlu0 %1283
    %1285 = vrot.lane.b32.xlu0 %v150, 16
    %v1286 = vpop.permute.xlu0 %1285
    %1287 = vrot.lane.b32.xlu0 %v151, 16
    %v1288 = vpop.permute.xlu0 %1287
    %1289 = vrot.lane.b32.xlu0 %v152, 16
    %v1290 = vpop.permute.xlu0 %1289
    %1291 = vrot.lane.b32.xlu0 %v155, 16
    %v1292 = vpop.permute.xlu0 %1291
    %1293 = vrot.lane.b32.xlu0 %v156, 16
    %v1294 = vpop.permute.xlu0 %1293
    %1295 = vrot.lane.b32.xlu0 %v157, 16
    %v1296 = vpop.permute.xlu0 %1295
    %1297 = vrot.lane.b32.xlu0 %v158, 16
    %v1298 = vpop.permute.xlu0 %1297
    %1299 = vrot.lane.b32.xlu0 %v159, 16
    %v1300 = vpop.permute.xlu0 %1299
    %1301 = vrot.lane.b32.xlu0 %v160, 16
    %v1302 = vpop.permute.xlu0 %1301
    %1303 = vrot.lane.b32.xlu0 %v161, 16
    %v1304 = vpop.permute.xlu0 %1303
    %1305 = vrot.lane.b32.xlu0 %v162, 16
    %v1306 = vpop.permute.xlu0 %1305
    %1307 = vrot.lane.b32.xlu0 %v163, 16
    %v1308 = vpop.permute.xlu0 %1307
    %1309 = vrot.lane.b32.xlu0 %v164, 16
    %v1310 = vpop.permute.xlu0 %1309
    %1311 = vrot.lane.b32.xlu0 %v165, 16
    %v1312 = vpop.permute.xlu0 %1311
    %1313 = vrot.lane.b32.xlu0 %v166, 16
    %v1314 = vpop.permute.xlu0 %1313
    %1315 = vrot.lane.b32.xlu0 %v167, 16
    %v1316 = vpop.permute.xlu0 %1315
    %1317 = vrot.lane.b32.xlu0 %v168, 16
    %v1318 = vpop.permute.xlu0 %1317
    %1319 = vrot.lane.b32.xlu0 %v171, 16
    %v1320 = vpop.permute.xlu0 %1319
    %1321 = vrot.lane.b32.xlu0 %v172, 16
    %v1322 = vpop.permute.xlu0 %1321
    %1323 = vrot.lane.b32.xlu0 %v173, 16
    %v1324 = vpop.permute.xlu0 %1323
    %1325 = vrot.lane.b32.xlu0 %v174, 16
    %v1326 = vpop.permute.xlu0 %1325
    %1327 = vrot.lane.b32.xlu0 %v175, 16
    %v1328 = vpop.permute.xlu0 %1327
    %1329 = vrot.lane.b32.xlu0 %v176, 16
    %v1330 = vpop.permute.xlu0 %1329
    %1331 = vrot.lane.b32.xlu0 %v177, 16
    %v1332 = vpop.permute.xlu0 %1331
    %1333 = vrot.lane.b32.xlu0 %v178, 16
    %v1334 = vpop.permute.xlu0 %1333
    %1335 = vrot.lane.b32.xlu0 %v179, 16
    %v1336 = vpop.permute.xlu0 %1335
    %1337 = vrot.lane.b32.xlu0 %v180, 16
    %v1338 = vpop.permute.xlu0 %1337
    %1339 = vrot.lane.b32.xlu0 %v181, 16
    %v1340 = vpop.permute.xlu0 %1339
    %1341 = vrot.lane.b32.xlu0 %v182, 16
    %v1342 = vpop.permute.xlu0 %1341
    %1343 = vrot.lane.b32.xlu0 %v183, 16
    %v1344 = vpop.permute.xlu0 %1343
    %1345 = vrot.lane.b32.xlu0 %v184, 16
    %v1346 = vpop.permute.xlu0 %1345
    %1347 = vrot.lane.b32.xlu0 %v187, 16
    %v1348 = vpop.permute.xlu0 %1347
    %1349 = vrot.lane.b32.xlu0 %v188, 16
    %v1350 = vpop.permute.xlu0 %1349
    %1351 = vrot.lane.b32.xlu0 %v189, 16
    %v1352 = vpop.permute.xlu0 %1351
    %1353 = vrot.lane.b32.xlu0 %v190, 16
    %v1354 = vpop.permute.xlu0 %1353
    %1355 = vrot.lane.b32.xlu0 %v191, 16
    %v1356 = vpop.permute.xlu0 %1355
    %1357 = vrot.lane.b32.xlu0 %v192, 16
    %v1358 = vpop.permute.xlu0 %1357
    %1359 = vrot.lane.b32.xlu0 %v193, 16
    %v1360 = vpop.permute.xlu0 %1359
    %1361 = vrot.lane.b32.xlu0 %v194, 16
    %v1362 = vpop.permute.xlu0 %1361
    %1363 = vrot.lane.b32.xlu0 %v195, 16
    %v1364 = vpop.permute.xlu0 %1363
    %1365 = vrot.lane.b32.xlu0 %v196, 16
    %v1366 = vpop.permute.xlu0 %1365
    %1367 = vrot.lane.b32.xlu0 %v197, 16
    %v1368 = vpop.permute.xlu0 %1367
    %1369 = vrot.lane.b32.xlu0 %v198, 16
    %v1370 = vpop.permute.xlu0 %1369
    %1371 = vrot.lane.b32.xlu0 %v199, 16
    %v1372 = vpop.permute.xlu0 %1371
    %1373 = vrot.lane.b32.xlu0 %v200, 16
    %v1374 = vpop.permute.xlu0 %1373
    %1375 = vrot.lane.b32.xlu0 %v203, 16
    %v1376 = vpop.permute.xlu0 %1375
    %1377 = vrot.lane.b32.xlu0 %v204, 16
    %v1378 = vpop.permute.xlu0 %1377
    %1379 = vrot.lane.b32.xlu0 %v205, 16
    %v1380 = vpop.permute.xlu0 %1379
    %1381 = vrot.lane.b32.xlu0 %v206, 16
    %v1382 = vpop.permute.xlu0 %1381
    %1383 = vrot.lane.b32.xlu0 %v207, 16
    %v1384 = vpop.permute.xlu0 %1383
    %1385 = vrot.lane.b32.xlu0 %v208, 16
    %v1386 = vpop.permute.xlu0 %1385
    %1387 = vrot.lane.b32.xlu0 %v209, 16
    %v1388 = vpop.permute.xlu0 %1387
    %1389 = vrot.lane.b32.xlu0 %v210, 16
    %v1390 = vpop.permute.xlu0 %1389
    %1391 = vrot.lane.b32.xlu0 %v211, 16
    %v1392 = vpop.permute.xlu0 %1391
    %1393 = vrot.lane.b32.xlu0 %v212, 16
    %v1394 = vpop.permute.xlu0 %1393
    %1395 = vrot.lane.b32.xlu0 %v213, 16
    %v1396 = vpop.permute.xlu0 %1395
    %1397 = vrot.lane.b32.xlu0 %v214, 16
    %v1398 = vpop.permute.xlu0 %1397
    %1399 = vrot.lane.b32.xlu0 %v215, 16
    %v1400 = vpop.permute.xlu0 %1399
    %1401 = vrot.lane.b32.xlu0 %v216, 16
    %v1402 = vpop.permute.xlu0 %1401
    %1403 = vrot.lane.b32.xlu0 %v219, 16
    %v1404 = vpop.permute.xlu0 %1403
    %1405 = vrot.lane.b32.xlu0 %v220, 16
    %v1406 = vpop.permute.xlu0 %1405
    %1407 = vrot.lane.b32.xlu0 %v221, 16
    %v1408 = vpop.permute.xlu0 %1407
    %1409 = vrot.lane.b32.xlu0 %v222, 16
    %v1410 = vpop.permute.xlu0 %1409
    %1411 = vrot.lane.b32.xlu0 %v223, 16
    %v1412 = vpop.permute.xlu0 %1411
    %1413 = vrot.lane.b32.xlu0 %v224, 16
    %v1414 = vpop.permute.xlu0 %1413
    %1415 = vrot.lane.b32.xlu0 %v225, 16
    %v1416 = vpop.permute.xlu0 %1415
    %1417 = vrot.lane.b32.xlu0 %v226, 16
    %v1418 = vpop.permute.xlu0 %1417
    %1419 = vrot.lane.b32.xlu0 %v227, 16
    %v1420 = vpop.permute.xlu0 %1419
    %1421 = vrot.lane.b32.xlu0 %v228, 16
    %v1422 = vpop.permute.xlu0 %1421
    %1423 = vrot.lane.b32.xlu0 %v229, 16
    %v1424 = vpop.permute.xlu0 %1423
    %1425 = vrot.lane.b32.xlu0 %v230, 16
    %v1426 = vpop.permute.xlu0 %1425
    %1427 = vrot.lane.b32.xlu0 %v231, 16
    %v1428 = vpop.permute.xlu0 %1427
    %1429 = vrot.lane.b32.xlu0 %v232, 16
    %v1430 = vpop.permute.xlu0 %1429
    %1431 = vrot.lane.b32.xlu0 %v235, 16
    %v1432 = vpop.permute.xlu0 %1431
    %1433 = vrot.lane.b32.xlu0 %v236, 16
    %v1434 = vpop.permute.xlu0 %1433
    %1435 = vrot.lane.b32.xlu0 %v237, 16
    %v1436 = vpop.permute.xlu0 %1435
    %1437 = vrot.lane.b32.xlu0 %v238, 16
    %v1438 = vpop.permute.xlu0 %1437
    %1439 = vrot.lane.b32.xlu0 %v239, 16
    %v1440 = vpop.permute.xlu0 %1439
    %1441 = vrot.lane.b32.xlu0 %v240, 16
    %v1442 = vpop.permute.xlu0 %1441
    %1443 = vrot.lane.b32.xlu0 %v241, 16
    %v1444 = vpop.permute.xlu0 %1443
    %1445 = vrot.lane.b32.xlu0 %v242, 16
    %v1446 = vpop.permute.xlu0 %1445
    %1447 = vrot.lane.b32.xlu0 %v243, 16
    %v1448 = vpop.permute.xlu0 %1447
    %1449 = vrot.lane.b32.xlu0 %v244, 16
    %v1450 = vpop.permute.xlu0 %1449
    %1451 = vrot.lane.b32.xlu0 %v245, 16
    %v1452 = vpop.permute.xlu0 %1451
    %1453 = vrot.lane.b32.xlu0 %v246, 16
    %v1454 = vpop.permute.xlu0 %1453
    %1455 = vrot.lane.b32.xlu0 %v247, 16
    %v1456 = vpop.permute.xlu0 %1455
    %1457 = vrot.lane.b32.xlu0 %v248, 16
    %v1458 = vpop.permute.xlu0 %1457
    %1459 = vrot.lane.b32.xlu0 %v251, 16
    %v1460 = vpop.permute.xlu0 %1459
    %1461 = vrot.lane.b32.xlu0 %v252, 16
    %v1462 = vpop.permute.xlu0 %1461
    %1463 = vrot.lane.b32.xlu0 %v253, 16
    %v1464 = vpop.permute.xlu0 %1463
    %1465 = vrot.lane.b32.xlu0 %v254, 16
    %v1466 = vpop.permute.xlu0 %1465
    %1467 = vrot.lane.b32.xlu0 %v255, 16
    %v1468 = vpop.permute.xlu0 %1467
    %1469 = vrot.lane.b32.xlu0 %v256, 16
    %v1470 = vpop.permute.xlu0 %1469
    %1471 = vrot.lane.b32.xlu0 %v257, 16
    %v1472 = vpop.permute.xlu0 %1471
    %1473 = vrot.lane.b32.xlu0 %v258, 16
    %v1474 = vpop.permute.xlu0 %1473
    %1475 = vrot.lane.b32.xlu0 %v259, 16
    %v1476 = vpop.permute.xlu0 %1475
    %1477 = vrot.lane.b32.xlu0 %v260, 16
    %v1478 = vpop.permute.xlu0 %1477
    %1479 = vrot.lane.b32.xlu0 %v261, 16
    %v1480 = vpop.permute.xlu0 %1479
    %1481 = vrot.lane.b32.xlu0 %v262, 16
    %v1482 = vpop.permute.xlu0 %1481
    %1483 = vrot.lane.b32.xlu0 %v263, 16
    %v1484 = vpop.permute.xlu0 %1483
    %1485 = vrot.lane.b32.xlu0 %v264, 16
    %v1486 = vpop.permute.xlu0 %1485
    %1710 = vrot.lane.b32.xlu0 %v57, 24
    %v1711 = vpop.permute.xlu0 %1710
    %1712 = vrot.lane.b32.xlu0 %v58, 24
    %v1713 = vpop.permute.xlu0 %1712
    %1714 = vrot.lane.b32.xlu0 %v59, 24
    %v1715 = vpop.permute.xlu0 %1714
    %1716 = vrot.lane.b32.xlu0 %v60, 24
    %v1717 = vpop.permute.xlu0 %1716
    %1718 = vrot.lane.b32.xlu0 %v61, 24
    %v1719 = vpop.permute.xlu0 %1718
    %1720 = vrot.lane.b32.xlu0 %v62, 24
    %v1721 = vpop.permute.xlu0 %1720
    %1722 = vrot.lane.b32.xlu0 %v63, 24
    %v1723 = vpop.permute.xlu0 %1722
    %1724 = vrot.lane.b32.xlu0 %v64, 24
    %v1725 = vpop.permute.xlu0 %1724
    %1726 = vrot.lane.b32.xlu0 %v65, 24
    %v1727 = vpop.permute.xlu0 %1726
    %1728 = vrot.lane.b32.xlu0 %v66, 24
    %v1729 = vpop.permute.xlu0 %1728
    %1730 = vrot.lane.b32.xlu0 %v67, 24
    %v1731 = vpop.permute.xlu0 %1730
    %1732 = vrot.lane.b32.xlu0 %v68, 24
    %v1733 = vpop.permute.xlu0 %1732
    %1734 = vrot.lane.b32.xlu0 %v69, 24
    %v1735 = vpop.permute.xlu0 %1734
    %1736 = vrot.lane.b32.xlu0 %v70, 24
    %v1737 = vpop.permute.xlu0 %1736
    %1738 = vrot.lane.b32.xlu0 %v73, 24
    %v1739 = vpop.permute.xlu0 %1738
    %1740 = vrot.lane.b32.xlu0 %v74, 24
    %v1741 = vpop.permute.xlu0 %1740
    %1742 = vrot.lane.b32.xlu0 %v75, 24
    %v1743 = vpop.permute.xlu0 %1742
    %1744 = vrot.lane.b32.xlu0 %v76, 24
    %v1745 = vpop.permute.xlu0 %1744
    %1746 = vrot.lane.b32.xlu0 %v77, 24
    %v1747 = vpop.permute.xlu0 %1746
    %1748 = vrot.lane.b32.xlu0 %v78, 24
    %v1749 = vpop.permute.xlu0 %1748
    %1750 = vrot.lane.b32.xlu0 %v79, 24
    %v1751 = vpop.permute.xlu0 %1750
    %1752 = vrot.lane.b32.xlu0 %v80, 24
    %v1753 = vpop.permute.xlu0 %1752
    %1754 = vrot.lane.b32.xlu0 %v81, 24
    %v1755 = vpop.permute.xlu0 %1754
    %1756 = vrot.lane.b32.xlu0 %v82, 24
    %v1757 = vpop.permute.xlu0 %1756
    %1758 = vrot.lane.b32.xlu0 %v83, 24
    %v1759 = vpop.permute.xlu0 %1758
    %1760 = vrot.lane.b32.xlu0 %v84, 24
    %v1761 = vpop.permute.xlu0 %1760
    %1762 = vrot.lane.b32.xlu0 %v85, 24
    %v1763 = vpop.permute.xlu0 %1762
    %1764 = vrot.lane.b32.xlu0 %v86, 24
    %v1765 = vpop.permute.xlu0 %1764
    %1766 = vrot.lane.b32.xlu0 %v89, 24
    %v1767 = vpop.permute.xlu0 %1766
    %1768 = vrot.lane.b32.xlu0 %v90, 24
    %v1769 = vpop.permute.xlu0 %1768
    %1770 = vrot.lane.b32.xlu0 %v91, 24
    %v1771 = vpop.permute.xlu0 %1770
    %1772 = vrot.lane.b32.xlu0 %v92, 24
    %v1773 = vpop.permute.xlu0 %1772
    %1774 = vrot.lane.b32.xlu0 %v93, 24
    %v1775 = vpop.permute.xlu0 %1774
    %1776 = vrot.lane.b32.xlu0 %v94, 24
    %v1777 = vpop.permute.xlu0 %1776
    %1778 = vrot.lane.b32.xlu0 %v95, 24
    %v1779 = vpop.permute.xlu0 %1778
    %1780 = vrot.lane.b32.xlu0 %v96, 24
    %v1781 = vpop.permute.xlu0 %1780
    %1782 = vrot.lane.b32.xlu0 %v97, 24
    %v1783 = vpop.permute.xlu0 %1782
    %1784 = vrot.lane.b32.xlu0 %v98, 24
    %v1785 = vpop.permute.xlu0 %1784
    %1786 = vrot.lane.b32.xlu0 %v99, 24
    %v1787 = vpop.permute.xlu0 %1786
    %1788 = vrot.lane.b32.xlu0 %v100, 24
    %v1789 = vpop.permute.xlu0 %1788
    %1790 = vrot.lane.b32.xlu0 %v101, 24
    %v1791 = vpop.permute.xlu0 %1790
    %1792 = vrot.lane.b32.xlu0 %v102, 24
    %v1793 = vpop.permute.xlu0 %1792
    %1794 = vrot.lane.b32.xlu0 %v105, 24
    %v1795 = vpop.permute.xlu0 %1794
    %1796 = vrot.lane.b32.xlu0 %v106, 24
    %v1797 = vpop.permute.xlu0 %1796
    %1798 = vrot.lane.b32.xlu0 %v107, 24
    %v1799 = vpop.permute.xlu0 %1798
    %1800 = vrot.lane.b32.xlu0 %v108, 24
    %v1801 = vpop.permute.xlu0 %1800
    %1802 = vrot.lane.b32.xlu0 %v109, 24
    %v1803 = vpop.permute.xlu0 %1802
    %1804 = vrot.lane.b32.xlu0 %v110, 24
    %v1805 = vpop.permute.xlu0 %1804
    %1806 = vrot.lane.b32.xlu0 %v111, 24
    %v1807 = vpop.permute.xlu0 %1806
    %1808 = vrot.lane.b32.xlu0 %v112, 24
    %v1809 = vpop.permute.xlu0 %1808
    %1810 = vrot.lane.b32.xlu0 %v113, 24
    %v1811 = vpop.permute.xlu0 %1810
    %1812 = vrot.lane.b32.xlu0 %v114, 24
    %v1813 = vpop.permute.xlu0 %1812
    %1814 = vrot.lane.b32.xlu0 %v115, 24
    %v1815 = vpop.permute.xlu0 %1814
    %1816 = vrot.lane.b32.xlu0 %v116, 24
    %v1817 = vpop.permute.xlu0 %1816
    %1818 = vrot.lane.b32.xlu0 %v117, 24
    %v1819 = vpop.permute.xlu0 %1818
    %1820 = vrot.lane.b32.xlu0 %v118, 24
    %v1821 = vpop.permute.xlu0 %1820
    %1822 = vrot.lane.b32.xlu0 %v121, 24
    %v1823 = vpop.permute.xlu0 %1822
    %1824 = vrot.lane.b32.xlu0 %v122, 24
    %v1825 = vpop.permute.xlu0 %1824
    %1826 = vrot.lane.b32.xlu0 %v123, 24
    %v1827 = vpop.permute.xlu0 %1826
    %1828 = vrot.lane.b32.xlu0 %v124, 24
    %v1829 = vpop.permute.xlu0 %1828
    %1830 = vrot.lane.b32.xlu0 %v125, 24
    %v1831 = vpop.permute.xlu0 %1830
    %1832 = vrot.lane.b32.xlu0 %v126, 24
    %v1833 = vpop.permute.xlu0 %1832
    %1834 = vrot.lane.b32.xlu0 %v127, 24
    %v1835 = vpop.permute.xlu0 %1834
    %1836 = vrot.lane.b32.xlu0 %v128, 24
    %v1837 = vpop.permute.xlu0 %1836
    %1838 = vrot.lane.b32.xlu0 %v129, 24
    %v1839 = vpop.permute.xlu0 %1838
    %1840 = vrot.lane.b32.xlu0 %v130, 24
    %v1841 = vpop.permute.xlu0 %1840
    %1842 = vrot.lane.b32.xlu0 %v131, 24
    %v1843 = vpop.permute.xlu0 %1842
    %1844 = vrot.lane.b32.xlu0 %v132, 24
    %v1845 = vpop.permute.xlu0 %1844
    %1846 = vrot.lane.b32.xlu0 %v133, 24
    %v1847 = vpop.permute.xlu0 %1846
    %1848 = vrot.lane.b32.xlu0 %v134, 24
    %v1849 = vpop.permute.xlu0 %1848
    %1850 = vrot.lane.b32.xlu0 %v137, 24
    %v1851 = vpop.permute.xlu0 %1850
    %1852 = vrot.lane.b32.xlu0 %v138, 24
    %v1853 = vpop.permute.xlu0 %1852
    %1854 = vrot.lane.b32.xlu0 %v139, 24
    %v1855 = vpop.permute.xlu0 %1854
    %1856 = vrot.lane.b32.xlu0 %v140, 24
    %v1857 = vpop.permute.xlu0 %1856
    %1858 = vrot.lane.b32.xlu0 %v141, 24
    %v1859 = vpop.permute.xlu0 %1858
    %1860 = vrot.lane.b32.xlu0 %v142, 24
    %v1861 = vpop.permute.xlu0 %1860
    %1862 = vrot.lane.b32.xlu0 %v143, 24
    %v1863 = vpop.permute.xlu0 %1862
    %1864 = vrot.lane.b32.xlu0 %v144, 24
    %v1865 = vpop.permute.xlu0 %1864
    %1866 = vrot.lane.b32.xlu0 %v145, 24
    %v1867 = vpop.permute.xlu0 %1866
    %1868 = vrot.lane.b32.xlu0 %v146, 24
    %v1869 = vpop.permute.xlu0 %1868
    %1870 = vrot.lane.b32.xlu0 %v147, 24
    %v1871 = vpop.permute.xlu0 %1870
    %1872 = vrot.lane.b32.xlu0 %v148, 24
    %v1873 = vpop.permute.xlu0 %1872
    %1874 = vrot.lane.b32.xlu0 %v149, 24
    %v1875 = vpop.permute.xlu0 %1874
    %1876 = vrot.lane.b32.xlu0 %v150, 24
    %v1877 = vpop.permute.xlu0 %1876
    %1878 = vrot.lane.b32.xlu0 %v153, 24
    %v1879 = vpop.permute.xlu0 %1878
    %1880 = vrot.lane.b32.xlu0 %v154, 24
    %v1881 = vpop.permute.xlu0 %1880
    %1882 = vrot.lane.b32.xlu0 %v155, 24
    %v1883 = vpop.permute.xlu0 %1882
    %1884 = vrot.lane.b32.xlu0 %v156, 24
    %v1885 = vpop.permute.xlu0 %1884
    %1886 = vrot.lane.b32.xlu0 %v157, 24
    %v1887 = vpop.permute.xlu0 %1886
    %1888 = vrot.lane.b32.xlu0 %v158, 24
    %v1889 = vpop.permute.xlu0 %1888
    %1890 = vrot.lane.b32.xlu0 %v159, 24
    %v1891 = vpop.permute.xlu0 %1890
    %1892 = vrot.lane.b32.xlu0 %v160, 24
    %v1893 = vpop.permute.xlu0 %1892
    %1894 = vrot.lane.b32.xlu0 %v161, 24
    %v1895 = vpop.permute.xlu0 %1894
    %1896 = vrot.lane.b32.xlu0 %v162, 24
    %v1897 = vpop.permute.xlu0 %1896
    %1898 = vrot.lane.b32.xlu0 %v163, 24
    %v1899 = vpop.permute.xlu0 %1898
    %1900 = vrot.lane.b32.xlu0 %v164, 24
    %v1901 = vpop.permute.xlu0 %1900
    %1902 = vrot.lane.b32.xlu0 %v165, 24
    %v1903 = vpop.permute.xlu0 %1902
    %1904 = vrot.lane.b32.xlu0 %v166, 24
    %v1905 = vpop.permute.xlu0 %1904
    %1906 = vrot.lane.b32.xlu0 %v169, 24
    %v1907 = vpop.permute.xlu0 %1906
    %1908 = vrot.lane.b32.xlu0 %v170, 24
    %v1909 = vpop.permute.xlu0 %1908
    %1910 = vrot.lane.b32.xlu0 %v171, 24
    %v1911 = vpop.permute.xlu0 %1910
    %1912 = vrot.lane.b32.xlu0 %v172, 24
    %v1913 = vpop.permute.xlu0 %1912
    %1914 = vrot.lane.b32.xlu0 %v173, 24
    %v1915 = vpop.permute.xlu0 %1914
    %1916 = vrot.lane.b32.xlu0 %v174, 24
    %v1917 = vpop.permute.xlu0 %1916
    %1918 = vrot.lane.b32.xlu0 %v175, 24
    %v1919 = vpop.permute.xlu0 %1918
    %1920 = vrot.lane.b32.xlu0 %v176, 24
    %v1921 = vpop.permute.xlu0 %1920
    %1922 = vrot.lane.b32.xlu0 %v177, 24
    %v1923 = vpop.permute.xlu0 %1922
    %1924 = vrot.lane.b32.xlu0 %v178, 24
    %v1925 = vpop.permute.xlu0 %1924
    %1926 = vrot.lane.b32.xlu0 %v179, 24
    %v1927 = vpop.permute.xlu0 %1926
    %1928 = vrot.lane.b32.xlu0 %v180, 24
    %v1929 = vpop.permute.xlu0 %1928
    %1930 = vrot.lane.b32.xlu0 %v181, 24
    %v1931 = vpop.permute.xlu0 %1930
    %1932 = vrot.lane.b32.xlu0 %v182, 24
    %v1933 = vpop.permute.xlu0 %1932
    %1934 = vrot.lane.b32.xlu0 %v185, 24
    %v1935 = vpop.permute.xlu0 %1934
    %1936 = vrot.lane.b32.xlu0 %v186, 24
    %v1937 = vpop.permute.xlu0 %1936
    %1938 = vrot.lane.b32.xlu0 %v187, 24
    %v1939 = vpop.permute.xlu0 %1938
    %1940 = vrot.lane.b32.xlu0 %v188, 24
    %v1941 = vpop.permute.xlu0 %1940
    %1942 = vrot.lane.b32.xlu0 %v189, 24
    %v1943 = vpop.permute.xlu0 %1942
    %1944 = vrot.lane.b32.xlu0 %v190, 24
    %v1945 = vpop.permute.xlu0 %1944
    %1946 = vrot.lane.b32.xlu0 %v191, 24
    %v1947 = vpop.permute.xlu0 %1946
    %1948 = vrot.lane.b32.xlu0 %v192, 24
    %v1949 = vpop.permute.xlu0 %1948
    %1950 = vrot.lane.b32.xlu0 %v193, 24
    %v1951 = vpop.permute.xlu0 %1950
    %1952 = vrot.lane.b32.xlu0 %v194, 24
    %v1953 = vpop.permute.xlu0 %1952
    %1954 = vrot.lane.b32.xlu0 %v195, 24
    %v1955 = vpop.permute.xlu0 %1954
    %1956 = vrot.lane.b32.xlu0 %v196, 24
    %v1957 = vpop.permute.xlu0 %1956
    %1958 = vrot.lane.b32.xlu0 %v197, 24
    %v1959 = vpop.permute.xlu0 %1958
    %1960 = vrot.lane.b32.xlu0 %v198, 24
    %v1961 = vpop.permute.xlu0 %1960
    %1962 = vrot.lane.b32.xlu0 %v201, 24
    %v1963 = vpop.permute.xlu0 %1962
    %1964 = vrot.lane.b32.xlu0 %v202, 24
    %v1965 = vpop.permute.xlu0 %1964
    %1966 = vrot.lane.b32.xlu0 %v203, 24
    %v1967 = vpop.permute.xlu0 %1966
    %1968 = vrot.lane.b32.xlu0 %v204, 24
    %v1969 = vpop.permute.xlu0 %1968
    %1970 = vrot.lane.b32.xlu0 %v205, 24
    %v1971 = vpop.permute.xlu0 %1970
    %1972 = vrot.lane.b32.xlu0 %v206, 24
    %v1973 = vpop.permute.xlu0 %1972
    %1974 = vrot.lane.b32.xlu0 %v207, 24
    %v1975 = vpop.permute.xlu0 %1974
    %1976 = vrot.lane.b32.xlu0 %v208, 24
    %v1977 = vpop.permute.xlu0 %1976
    %1978 = vrot.lane.b32.xlu0 %v209, 24
    %v1979 = vpop.permute.xlu0 %1978
    %1980 = vrot.lane.b32.xlu0 %v210, 24
    %v1981 = vpop.permute.xlu0 %1980
    %1982 = vrot.lane.b32.xlu0 %v211, 24
    %v1983 = vpop.permute.xlu0 %1982
    %1984 = vrot.lane.b32.xlu0 %v212, 24
    %v1985 = vpop.permute.xlu0 %1984
    %1986 = vrot.lane.b32.xlu0 %v213, 24
    %v1987 = vpop.permute.xlu0 %1986
    %1988 = vrot.lane.b32.xlu0 %v214, 24
    %v1989 = vpop.permute.xlu0 %1988
    %1990 = vrot.lane.b32.xlu0 %v217, 24
    %v1991 = vpop.permute.xlu0 %1990
    %1992 = vrot.lane.b32.xlu0 %v218, 24
    %v1993 = vpop.permute.xlu0 %1992
    %1994 = vrot.lane.b32.xlu0 %v219, 24
    %v1995 = vpop.permute.xlu0 %1994
    %1996 = vrot.lane.b32.xlu0 %v220, 24
    %v1997 = vpop.permute.xlu0 %1996
    %1998 = vrot.lane.b32.xlu0 %v221, 24
    %v1999 = vpop.permute.xlu0 %1998
    %2000 = vrot.lane.b32.xlu0 %v222, 24
    %v2001 = vpop.permute.xlu0 %2000
    %2002 = vrot.lane.b32.xlu0 %v223, 24
    %v2003 = vpop.permute.xlu0 %2002
    %2004 = vrot.lane.b32.xlu0 %v224, 24
    %v2005 = vpop.permute.xlu0 %2004
    %2006 = vrot.lane.b32.xlu0 %v225, 24
    %v2007 = vpop.permute.xlu0 %2006
    %2008 = vrot.lane.b32.xlu0 %v226, 24
    %v2009 = vpop.permute.xlu0 %2008
    %2010 = vrot.lane.b32.xlu0 %v227, 24
    %v2011 = vpop.permute.xlu0 %2010
    %2012 = vrot.lane.b32.xlu0 %v228, 24
    %v2013 = vpop.permute.xlu0 %2012
    %2014 = vrot.lane.b32.xlu0 %v229, 24
    %v2015 = vpop.permute.xlu0 %2014
    %2016 = vrot.lane.b32.xlu0 %v230, 24
    %v2017 = vpop.permute.xlu0 %2016
    %2018 = vrot.lane.b32.xlu0 %v233, 24
    %v2019 = vpop.permute.xlu0 %2018
    %2020 = vrot.lane.b32.xlu0 %v234, 24
    %v2021 = vpop.permute.xlu0 %2020
    %2022 = vrot.lane.b32.xlu0 %v235, 24
    %v2023 = vpop.permute.xlu0 %2022
    %2024 = vrot.lane.b32.xlu0 %v236, 24
    %v2025 = vpop.permute.xlu0 %2024
    %2026 = vrot.lane.b32.xlu0 %v237, 24
    %v2027 = vpop.permute.xlu0 %2026
    %2028 = vrot.lane.b32.xlu0 %v238, 24
    %v2029 = vpop.permute.xlu0 %2028
    %2030 = vrot.lane.b32.xlu0 %v239, 24
    %v2031 = vpop.permute.xlu0 %2030
    %2032 = vrot.lane.b32.xlu0 %v240, 24
    %v2033 = vpop.permute.xlu0 %2032
    %2034 = vrot.lane.b32.xlu0 %v241, 24
    %v2035 = vpop.permute.xlu0 %2034
    %2036 = vrot.lane.b32.xlu0 %v242, 24
    %v2037 = vpop.permute.xlu0 %2036
    %2038 = vrot.lane.b32.xlu0 %v243, 24
    %v2039 = vpop.permute.xlu0 %2038
    %2040 = vrot.lane.b32.xlu0 %v244, 24
    %v2041 = vpop.permute.xlu0 %2040
    %2042 = vrot.lane.b32.xlu0 %v245, 24
    %v2043 = vpop.permute.xlu0 %2042
    %2044 = vrot.lane.b32.xlu0 %v246, 24
    %v2045 = vpop.permute.xlu0 %2044
    %2046 = vrot.lane.b32.xlu0 %v249, 24
    %v2047 = vpop.permute.xlu0 %2046
    %2048 = vrot.lane.b32.xlu0 %v250, 24
    %v2049 = vpop.permute.xlu0 %2048
    %2050 = vrot.lane.b32.xlu0 %v251, 24
    %v2051 = vpop.permute.xlu0 %2050
    %2052 = vrot.lane.b32.xlu0 %v252, 24
    %v2053 = vpop.permute.xlu0 %2052
    %2054 = vrot.lane.b32.xlu0 %v253, 24
    %v2055 = vpop.permute.xlu0 %2054
    %2056 = vrot.lane.b32.xlu0 %v254, 24
    %v2057 = vpop.permute.xlu0 %2056
    %2058 = vrot.lane.b32.xlu0 %v255, 24
    %v2059 = vpop.permute.xlu0 %2058
    %2060 = vrot.lane.b32.xlu0 %v256, 24
    %v2061 = vpop.permute.xlu0 %2060
    %2062 = vrot.lane.b32.xlu0 %v257, 24
    %v2063 = vpop.permute.xlu0 %2062
    %2064 = vrot.lane.b32.xlu0 %v258, 24
    %v2065 = vpop.permute.xlu0 %2064
    %2066 = vrot.lane.b32.xlu0 %v259, 24
    %v2067 = vpop.permute.xlu0 %2066
    %2068 = vrot.lane.b32.xlu0 %v260, 24
    %v2069 = vpop.permute.xlu0 %2068
    %2070 = vrot.lane.b32.xlu0 %v261, 24
    %v2071 = vpop.permute.xlu0 %2070
    %2072 = vrot.lane.b32.xlu0 %v262, 24
    %v2073 = vpop.permute.xlu0 %2072
    %2074 = vrot.lane.b32.xlu0 %v265, 24
    %v2075 = vpop.permute.xlu0 %2074
    %2076 = vrot.lane.b32.xlu0 %v266, 24
    %v2077 = vpop.permute.xlu0 %2076
    %2078 = vrot.lane.b32.xlu0 %v267, 24
    %v2079 = vpop.permute.xlu0 %2078
    %2080 = vrot.lane.b32.xlu0 %v268, 24
    %v2081 = vpop.permute.xlu0 %2080
    %2082 = vrot.lane.b32.xlu0 %v269, 24
    %v2083 = vpop.permute.xlu0 %2082
    %2084 = vrot.lane.b32.xlu0 %v270, 24
    %v2085 = vpop.permute.xlu0 %2084
    %2086 = vrot.lane.b32.xlu0 %v271, 24
    %v2087 = vpop.permute.xlu0 %2086
    %2088 = vrot.lane.b32.xlu0 %v272, 24
    %v2089 = vpop.permute.xlu0 %2088
    %2090 = vrot.lane.b32.xlu0 %v273, 24
    %v2091 = vpop.permute.xlu0 %2090
    %2092 = vrot.lane.b32.xlu0 %v274, 24
    %v2093 = vpop.permute.xlu0 %2092
    %2094 = vrot.lane.b32.xlu0 %v275, 24
    %v2095 = vpop.permute.xlu0 %2094
    %2096 = vrot.lane.b32.xlu0 %v276, 24
    %v2097 = vpop.permute.xlu0 %2096
    %2098 = vrot.lane.b32.xlu0 %v277, 24
    %v2099 = vpop.permute.xlu0 %2098
    %2100 = vrot.lane.b32.xlu0 %v278, 24
    %v2101 = vpop.permute.xlu0 %2100
    %2299 = vrot.lane.b32.xlu0 %v58, 32
    %v2300 = vpop.permute.xlu0 %2299
    %2301 = vrot.lane.b32.xlu0 %v59, 32
    %v2302 = vpop.permute.xlu0 %2301
    %2303 = vrot.lane.b32.xlu0 %v60, 32
    %v2304 = vpop.permute.xlu0 %2303
    %2305 = vrot.lane.b32.xlu0 %v61, 32
    %v2306 = vpop.permute.xlu0 %2305
    %2307 = vrot.lane.b32.xlu0 %v62, 32
    %v2308 = vpop.permute.xlu0 %2307
    %2309 = vrot.lane.b32.xlu0 %v63, 32
    %v2310 = vpop.permute.xlu0 %2309
    %2311 = vrot.lane.b32.xlu0 %v64, 32
    %v2312 = vpop.permute.xlu0 %2311
    %2313 = vrot.lane.b32.xlu0 %v65, 32
    %v2314 = vpop.permute.xlu0 %2313
    %2315 = vrot.lane.b32.xlu0 %v66, 32
    %v2316 = vpop.permute.xlu0 %2315
    %2317 = vrot.lane.b32.xlu0 %v67, 32
    %v2318 = vpop.permute.xlu0 %2317
    %2319 = vrot.lane.b32.xlu0 %v68, 32
    %v2320 = vpop.permute.xlu0 %2319
    %2321 = vrot.lane.b32.xlu0 %v69, 32
    %v2322 = vpop.permute.xlu0 %2321
    %2323 = vrot.lane.b32.xlu0 %v70, 32
    %v2324 = vpop.permute.xlu0 %2323
    %2325 = vrot.lane.b32.xlu0 %v71, 32
    %v2326 = vpop.permute.xlu0 %2325
    %2327 = vrot.lane.b32.xlu0 %v74, 32
    %v2328 = vpop.permute.xlu0 %2327
    %2329 = vrot.lane.b32.xlu0 %v75, 32
    %v2330 = vpop.permute.xlu0 %2329
    %2331 = vrot.lane.b32.xlu0 %v76, 32
    %v2332 = vpop.permute.xlu0 %2331
    %2333 = vrot.lane.b32.xlu0 %v77, 32
    %v2334 = vpop.permute.xlu0 %2333
    %2335 = vrot.lane.b32.xlu0 %v78, 32
    %v2336 = vpop.permute.xlu0 %2335
    %2337 = vrot.lane.b32.xlu0 %v79, 32
    %v2338 = vpop.permute.xlu0 %2337
    %2339 = vrot.lane.b32.xlu0 %v80, 32
    %v2340 = vpop.permute.xlu0 %2339
    %2341 = vrot.lane.b32.xlu0 %v81, 32
    %v2342 = vpop.permute.xlu0 %2341
    %2343 = vrot.lane.b32.xlu0 %v82, 32
    %v2344 = vpop.permute.xlu0 %2343
    %2345 = vrot.lane.b32.xlu0 %v83, 32
    %v2346 = vpop.permute.xlu0 %2345
    %2347 = vrot.lane.b32.xlu0 %v84, 32
    %v2348 = vpop.permute.xlu0 %2347
    %2349 = vrot.lane.b32.xlu0 %v85, 32
    %v2350 = vpop.permute.xlu0 %2349
    %2351 = vrot.lane.b32.xlu0 %v86, 32
    %v2352 = vpop.permute.xlu0 %2351
    %2353 = vrot.lane.b32.xlu0 %v87, 32
    %v2354 = vpop.permute.xlu0 %2353
    %2355 = vrot.lane.b32.xlu0 %v90, 32
    %v2356 = vpop.permute.xlu0 %2355
    %2357 = vrot.lane.b32.xlu0 %v91, 32
    %v2358 = vpop.permute.xlu0 %2357
    %2359 = vrot.lane.b32.xlu0 %v92, 32
    %v2360 = vpop.permute.xlu0 %2359
    %2361 = vrot.lane.b32.xlu0 %v93, 32
    %v2362 = vpop.permute.xlu0 %2361
    %2363 = vrot.lane.b32.xlu0 %v94, 32
    %v2364 = vpop.permute.xlu0 %2363
    %2365 = vrot.lane.b32.xlu0 %v95, 32
    %v2366 = vpop.permute.xlu0 %2365
    %2367 = vrot.lane.b32.xlu0 %v96, 32
    %v2368 = vpop.permute.xlu0 %2367
    %2369 = vrot.lane.b32.xlu0 %v97, 32
    %v2370 = vpop.permute.xlu0 %2369
    %2371 = vrot.lane.b32.xlu0 %v98, 32
    %v2372 = vpop.permute.xlu0 %2371
    %2373 = vrot.lane.b32.xlu0 %v99, 32
    %v2374 = vpop.permute.xlu0 %2373
    %2375 = vrot.lane.b32.xlu0 %v100, 32
    %v2376 = vpop.permute.xlu0 %2375
    %2377 = vrot.lane.b32.xlu0 %v101, 32
    %v2378 = vpop.permute.xlu0 %2377
    %2379 = vrot.lane.b32.xlu0 %v102, 32
    %v2380 = vpop.permute.xlu0 %2379
    %2381 = vrot.lane.b32.xlu0 %v103, 32
    %v2382 = vpop.permute.xlu0 %2381
    %2383 = vrot.lane.b32.xlu0 %v106, 32
    %v2384 = vpop.permute.xlu0 %2383
    %2385 = vrot.lane.b32.xlu0 %v107, 32
    %v2386 = vpop.permute.xlu0 %2385
    %2387 = vrot.lane.b32.xlu0 %v108, 32
    %v2388 = vpop.permute.xlu0 %2387
    %2389 = vrot.lane.b32.xlu0 %v109, 32
    %v2390 = vpop.permute.xlu0 %2389
    %2391 = vrot.lane.b32.xlu0 %v110, 32
    %v2392 = vpop.permute.xlu0 %2391
    %2393 = vrot.lane.b32.xlu0 %v111, 32
    %v2394 = vpop.permute.xlu0 %2393
    %2395 = vrot.lane.b32.xlu0 %v112, 32
    %v2396 = vpop.permute.xlu0 %2395
    %2397 = vrot.lane.b32.xlu0 %v113, 32
    %v2398 = vpop.permute.xlu0 %2397
    %2399 = vrot.lane.b32.xlu0 %v114, 32
    %v2400 = vpop.permute.xlu0 %2399
    %2401 = vrot.lane.b32.xlu0 %v115, 32
    %v2402 = vpop.permute.xlu0 %2401
    %2403 = vrot.lane.b32.xlu0 %v116, 32
    %v2404 = vpop.permute.xlu0 %2403
    %2405 = vrot.lane.b32.xlu0 %v117, 32
    %v2406 = vpop.permute.xlu0 %2405
    %2407 = vrot.lane.b32.xlu0 %v118, 32
    %v2408 = vpop.permute.xlu0 %2407
    %2409 = vrot.lane.b32.xlu0 %v119, 32
    %v2410 = vpop.permute.xlu0 %2409
    %2411 = vrot.lane.b32.xlu0 %v122, 32
    %v2412 = vpop.permute.xlu0 %2411
    %2413 = vrot.lane.b32.xlu0 %v123, 32
    %v2414 = vpop.permute.xlu0 %2413
    %2415 = vrot.lane.b32.xlu0 %v124, 32
    %v2416 = vpop.permute.xlu0 %2415
    %2417 = vrot.lane.b32.xlu0 %v125, 32
    %v2418 = vpop.permute.xlu0 %2417
    %2419 = vrot.lane.b32.xlu0 %v126, 32
    %v2420 = vpop.permute.xlu0 %2419
    %2421 = vrot.lane.b32.xlu0 %v127, 32
    %v2422 = vpop.permute.xlu0 %2421
    %2423 = vrot.lane.b32.xlu0 %v128, 32
    %v2424 = vpop.permute.xlu0 %2423
    %2425 = vrot.lane.b32.xlu0 %v129, 32
    %v2426 = vpop.permute.xlu0 %2425
    %2427 = vrot.lane.b32.xlu0 %v130, 32
    %v2428 = vpop.permute.xlu0 %2427
    %2429 = vrot.lane.b32.xlu0 %v131, 32
    %v2430 = vpop.permute.xlu0 %2429
    %2431 = vrot.lane.b32.xlu0 %v132, 32
    %v2432 = vpop.permute.xlu0 %2431
    %2433 = vrot.lane.b32.xlu0 %v133, 32
    %v2434 = vpop.permute.xlu0 %2433
    %2435 = vrot.lane.b32.xlu0 %v134, 32
    %v2436 = vpop.permute.xlu0 %2435
    %2437 = vrot.lane.b32.xlu0 %v135, 32
    %v2438 = vpop.permute.xlu0 %2437
    %2439 = vrot.lane.b32.xlu0 %v138, 32
    %v2440 = vpop.permute.xlu0 %2439
    %2441 = vrot.lane.b32.xlu0 %v139, 32
    %v2442 = vpop.permute.xlu0 %2441
    %2443 = vrot.lane.b32.xlu0 %v140, 32
    %v2444 = vpop.permute.xlu0 %2443
    %2445 = vrot.lane.b32.xlu0 %v141, 32
    %v2446 = vpop.permute.xlu0 %2445
    %2447 = vrot.lane.b32.xlu0 %v142, 32
    %v2448 = vpop.permute.xlu0 %2447
    %2449 = vrot.lane.b32.xlu0 %v143, 32
    %v2450 = vpop.permute.xlu0 %2449
    %2451 = vrot.lane.b32.xlu0 %v144, 32
    %v2452 = vpop.permute.xlu0 %2451
    %2453 = vrot.lane.b32.xlu0 %v145, 32
    %v2454 = vpop.permute.xlu0 %2453
    %2455 = vrot.lane.b32.xlu0 %v146, 32
    %v2456 = vpop.permute.xlu0 %2455
    %2457 = vrot.lane.b32.xlu0 %v147, 32
    %v2458 = vpop.permute.xlu0 %2457
    %2459 = vrot.lane.b32.xlu0 %v148, 32
    %v2460 = vpop.permute.xlu0 %2459
    %2461 = vrot.lane.b32.xlu0 %v149, 32
    %v2462 = vpop.permute.xlu0 %2461
    %2463 = vrot.lane.b32.xlu0 %v150, 32
    %v2464 = vpop.permute.xlu0 %2463
    %2465 = vrot.lane.b32.xlu0 %v151, 32
    %v2466 = vpop.permute.xlu0 %2465
    %2467 = vrot.lane.b32.xlu0 %v154, 32
    %v2468 = vpop.permute.xlu0 %2467
    %2469 = vrot.lane.b32.xlu0 %v155, 32
    %v2470 = vpop.permute.xlu0 %2469
    %2471 = vrot.lane.b32.xlu0 %v156, 32
    %v2472 = vpop.permute.xlu0 %2471
    %2473 = vrot.lane.b32.xlu0 %v157, 32
    %v2474 = vpop.permute.xlu0 %2473
    %2475 = vrot.lane.b32.xlu0 %v158, 32
    %v2476 = vpop.permute.xlu0 %2475
    %2477 = vrot.lane.b32.xlu0 %v159, 32
    %v2478 = vpop.permute.xlu0 %2477
    %2479 = vrot.lane.b32.xlu0 %v160, 32
    %v2480 = vpop.permute.xlu0 %2479
    %2481 = vrot.lane.b32.xlu0 %v161, 32
    %v2482 = vpop.permute.xlu0 %2481
    %2483 = vrot.lane.b32.xlu0 %v162, 32
    %v2484 = vpop.permute.xlu0 %2483
    %2485 = vrot.lane.b32.xlu0 %v163, 32
    %v2486 = vpop.permute.xlu0 %2485
    %2487 = vrot.lane.b32.xlu0 %v164, 32
    %v2488 = vpop.permute.xlu0 %2487
    %2489 = vrot.lane.b32.xlu0 %v165, 32
    %v2490 = vpop.permute.xlu0 %2489
    %2491 = vrot.lane.b32.xlu0 %v166, 32
    %v2492 = vpop.permute.xlu0 %2491
    %2493 = vrot.lane.b32.xlu0 %v167, 32
    %v2494 = vpop.permute.xlu0 %2493
    %2495 = vrot.lane.b32.xlu0 %v170, 32
    %v2496 = vpop.permute.xlu0 %2495
    %2497 = vrot.lane.b32.xlu0 %v171, 32
    %v2498 = vpop.permute.xlu0 %2497
    %2499 = vrot.lane.b32.xlu0 %v172, 32
    %v2500 = vpop.permute.xlu0 %2499
    %2501 = vrot.lane.b32.xlu0 %v173, 32
    %v2502 = vpop.permute.xlu0 %2501
    %2503 = vrot.lane.b32.xlu0 %v174, 32
    %v2504 = vpop.permute.xlu0 %2503
    %2505 = vrot.lane.b32.xlu0 %v175, 32
    %v2506 = vpop.permute.xlu0 %2505
    %2507 = vrot.lane.b32.xlu0 %v176, 32
    %v2508 = vpop.permute.xlu0 %2507
    %2509 = vrot.lane.b32.xlu0 %v177, 32
    %v2510 = vpop.permute.xlu0 %2509
    %2511 = vrot.lane.b32.xlu0 %v178, 32
    %v2512 = vpop.permute.xlu0 %2511
    %2513 = vrot.lane.b32.xlu0 %v179, 32
    %v2514 = vpop.permute.xlu0 %2513
    %2515 = vrot.lane.b32.xlu0 %v180, 32
    %v2516 = vpop.permute.xlu0 %2515
    %2517 = vrot.lane.b32.xlu0 %v181, 32
    %v2518 = vpop.permute.xlu0 %2517
    %2519 = vrot.lane.b32.xlu0 %v182, 32
    %v2520 = vpop.permute.xlu0 %2519
    %2521 = vrot.lane.b32.xlu0 %v183, 32
    %v2522 = vpop.permute.xlu0 %2521
    %2523 = vrot.lane.b32.xlu0 %v186, 32
    %v2524 = vpop.permute.xlu0 %2523
    %2525 = vrot.lane.b32.xlu0 %v187, 32
    %v2526 = vpop.permute.xlu0 %2525
    %2527 = vrot.lane.b32.xlu0 %v188, 32
    %v2528 = vpop.permute.xlu0 %2527
    %2529 = vrot.lane.b32.xlu0 %v189, 32
    %v2530 = vpop.permute.xlu0 %2529
    %2531 = vrot.lane.b32.xlu0 %v190, 32
    %v2532 = vpop.permute.xlu0 %2531
    %2533 = vrot.lane.b32.xlu0 %v191, 32
    %v2534 = vpop.permute.xlu0 %2533
    %2535 = vrot.lane.b32.xlu0 %v192, 32
    %v2536 = vpop.permute.xlu0 %2535
    %2537 = vrot.lane.b32.xlu0 %v193, 32
    %v2538 = vpop.permute.xlu0 %2537
    %2539 = vrot.lane.b32.xlu0 %v194, 32
    %v2540 = vpop.permute.xlu0 %2539
    %2541 = vrot.lane.b32.xlu0 %v195, 32
    %v2542 = vpop.permute.xlu0 %2541
    %2543 = vrot.lane.b32.xlu0 %v196, 32
    %v2544 = vpop.permute.xlu0 %2543
    %2545 = vrot.lane.b32.xlu0 %v197, 32
    %v2546 = vpop.permute.xlu0 %2545
    %2547 = vrot.lane.b32.xlu0 %v198, 32
    %v2548 = vpop.permute.xlu0 %2547
    %2549 = vrot.lane.b32.xlu0 %v199, 32
    %v2550 = vpop.permute.xlu0 %2549
    %2551 = vrot.lane.b32.xlu0 %v202, 32
    %v2552 = vpop.permute.xlu0 %2551
    %2553 = vrot.lane.b32.xlu0 %v203, 32
    %v2554 = vpop.permute.xlu0 %2553
    %2555 = vrot.lane.b32.xlu0 %v204, 32
    %v2556 = vpop.permute.xlu0 %2555
    %2557 = vrot.lane.b32.xlu0 %v205, 32
    %v2558 = vpop.permute.xlu0 %2557
    %2559 = vrot.lane.b32.xlu0 %v206, 32
    %v2560 = vpop.permute.xlu0 %2559
    %2561 = vrot.lane.b32.xlu0 %v207, 32
    %v2562 = vpop.permute.xlu0 %2561
    %2563 = vrot.lane.b32.xlu0 %v208, 32
    %v2564 = vpop.permute.xlu0 %2563
    %2565 = vrot.lane.b32.xlu0 %v209, 32
    %v2566 = vpop.permute.xlu0 %2565
    %2567 = vrot.lane.b32.xlu0 %v210, 32
    %v2568 = vpop.permute.xlu0 %2567
    %2569 = vrot.lane.b32.xlu0 %v211, 32
    %v2570 = vpop.permute.xlu0 %2569
    %2571 = vrot.lane.b32.xlu0 %v212, 32
    %v2572 = vpop.permute.xlu0 %2571
    %2573 = vrot.lane.b32.xlu0 %v213, 32
    %v2574 = vpop.permute.xlu0 %2573
    %2575 = vrot.lane.b32.xlu0 %v214, 32
    %v2576 = vpop.permute.xlu0 %2575
    %2577 = vrot.lane.b32.xlu0 %v215, 32
    %v2578 = vpop.permute.xlu0 %2577
    %2579 = vrot.lane.b32.xlu0 %v218, 32
    %v2580 = vpop.permute.xlu0 %2579
    %2581 = vrot.lane.b32.xlu0 %v219, 32
    %v2582 = vpop.permute.xlu0 %2581
    %2583 = vrot.lane.b32.xlu0 %v220, 32
    %v2584 = vpop.permute.xlu0 %2583
    %2585 = vrot.lane.b32.xlu0 %v221, 32
    %v2586 = vpop.permute.xlu0 %2585
    %2587 = vrot.lane.b32.xlu0 %v222, 32
    %v2588 = vpop.permute.xlu0 %2587
    %2589 = vrot.lane.b32.xlu0 %v223, 32
    %v2590 = vpop.permute.xlu0 %2589
    %2591 = vrot.lane.b32.xlu0 %v224, 32
    %v2592 = vpop.permute.xlu0 %2591
    %2593 = vrot.lane.b32.xlu0 %v225, 32
    %v2594 = vpop.permute.xlu0 %2593
    %2595 = vrot.lane.b32.xlu0 %v226, 32
    %v2596 = vpop.permute.xlu0 %2595
    %2597 = vrot.lane.b32.xlu0 %v227, 32
    %v2598 = vpop.permute.xlu0 %2597
    %2599 = vrot.lane.b32.xlu0 %v228, 32
    %v2600 = vpop.permute.xlu0 %2599
    %2601 = vrot.lane.b32.xlu0 %v229, 32
    %v2602 = vpop.permute.xlu0 %2601
    %2603 = vrot.lane.b32.xlu0 %v230, 32
    %v2604 = vpop.permute.xlu0 %2603
    %2605 = vrot.lane.b32.xlu0 %v231, 32
    %v2606 = vpop.permute.xlu0 %2605
    %2607 = vrot.lane.b32.xlu0 %v234, 32
    %v2608 = vpop.permute.xlu0 %2607
    %2609 = vrot.lane.b32.xlu0 %v235, 32
    %v2610 = vpop.permute.xlu0 %2609
    %2611 = vrot.lane.b32.xlu0 %v236, 32
    %v2612 = vpop.permute.xlu0 %2611
    %2613 = vrot.lane.b32.xlu0 %v237, 32
    %v2614 = vpop.permute.xlu0 %2613
    %2615 = vrot.lane.b32.xlu0 %v238, 32
    %v2616 = vpop.permute.xlu0 %2615
    %2617 = vrot.lane.b32.xlu0 %v239, 32
    %v2618 = vpop.permute.xlu0 %2617
    %2619 = vrot.lane.b32.xlu0 %v240, 32
    %v2620 = vpop.permute.xlu0 %2619
    %2621 = vrot.lane.b32.xlu0 %v241, 32
    %v2622 = vpop.permute.xlu0 %2621
    %2623 = vrot.lane.b32.xlu0 %v242, 32
    %v2624 = vpop.permute.xlu0 %2623
    %2625 = vrot.lane.b32.xlu0 %v243, 32
    %v2626 = vpop.permute.xlu0 %2625
    %2627 = vrot.lane.b32.xlu0 %v244, 32
    %v2628 = vpop.permute.xlu0 %2627
    %2629 = vrot.lane.b32.xlu0 %v245, 32
    %v2630 = vpop.permute.xlu0 %2629
    %2631 = vrot.lane.b32.xlu0 %v246, 32
    %v2632 = vpop.permute.xlu0 %2631
    %2633 = vrot.lane.b32.xlu0 %v247, 32
    %v2634 = vpop.permute.xlu0 %2633
    %2635 = vrot.lane.b32.xlu0 %v250, 32
    %v2636 = vpop.permute.xlu0 %2635
    %2637 = vrot.lane.b32.xlu0 %v251, 32
    %v2638 = vpop.permute.xlu0 %2637
    %2639 = vrot.lane.b32.xlu0 %v252, 32
    %v2640 = vpop.permute.xlu0 %2639
    %2641 = vrot.lane.b32.xlu0 %v253, 32
    %v2642 = vpop.permute.xlu0 %2641
    %2643 = vrot.lane.b32.xlu0 %v254, 32
    %v2644 = vpop.permute.xlu0 %2643
    %2645 = vrot.lane.b32.xlu0 %v255, 32
    %v2646 = vpop.permute.xlu0 %2645
    %2647 = vrot.lane.b32.xlu0 %v256, 32
    %v2648 = vpop.permute.xlu0 %2647
    %2649 = vrot.lane.b32.xlu0 %v257, 32
    %v2650 = vpop.permute.xlu0 %2649
    %2651 = vrot.lane.b32.xlu0 %v258, 32
    %v2652 = vpop.permute.xlu0 %2651
    %2653 = vrot.lane.b32.xlu0 %v259, 32
    %v2654 = vpop.permute.xlu0 %2653
    %2655 = vrot.lane.b32.xlu0 %v260, 32
    %v2656 = vpop.permute.xlu0 %2655
    %2657 = vrot.lane.b32.xlu0 %v261, 32
    %v2658 = vpop.permute.xlu0 %2657
    %2659 = vrot.lane.b32.xlu0 %v262, 32
    %v2660 = vpop.permute.xlu0 %2659
    %2661 = vrot.lane.b32.xlu0 %v263, 32
    %v2662 = vpop.permute.xlu0 %2661
    %2663 = vrot.lane.b32.xlu0 %v266, 32
    %v2664 = vpop.permute.xlu0 %2663
    %2665 = vrot.lane.b32.xlu0 %v267, 32
    %v2666 = vpop.permute.xlu0 %2665
    %2667 = vrot.lane.b32.xlu0 %v268, 32
    %v2668 = vpop.permute.xlu0 %2667
    %2669 = vrot.lane.b32.xlu0 %v269, 32
    %v2670 = vpop.permute.xlu0 %2669
    %2671 = vrot.lane.b32.xlu0 %v270, 32
    %v2672 = vpop.permute.xlu0 %2671
    %2673 = vrot.lane.b32.xlu0 %v271, 32
    %v2674 = vpop.permute.xlu0 %2673
    %2675 = vrot.lane.b32.xlu0 %v272, 32
    %v2676 = vpop.permute.xlu0 %2675
    %2677 = vrot.lane.b32.xlu0 %v273, 32
    %v2678 = vpop.permute.xlu0 %2677
    %2679 = vrot.lane.b32.xlu0 %v274, 32
    %v2680 = vpop.permute.xlu0 %2679
    %2681 = vrot.lane.b32.xlu0 %v275, 32
    %v2682 = vpop.permute.xlu0 %2681
    %2683 = vrot.lane.b32.xlu0 %v276, 32
    %v2684 = vpop.permute.xlu0 %2683
    %2685 = vrot.lane.b32.xlu0 %v277, 32
    %v2686 = vpop.permute.xlu0 %2685
    %2687 = vrot.lane.b32.xlu0 %v278, 32
    %v2688 = vpop.permute.xlu0 %2687
    %2689 = vrot.lane.b32.xlu0 %v279, 32
    %v2690 = vpop.permute.xlu0 %2689
    %2888 = vrot.lane.b32.xlu0 %v59, 40
    %v2889 = vpop.permute.xlu0 %2888
    %2890 = vrot.lane.b32.xlu0 %v60, 40
    %v2891 = vpop.permute.xlu0 %2890
    %2892 = vrot.lane.b32.xlu0 %v61, 40
    %v2893 = vpop.permute.xlu0 %2892
    %2894 = vrot.lane.b32.xlu0 %v62, 40
    %v2895 = vpop.permute.xlu0 %2894
    %2896 = vrot.lane.b32.xlu0 %v63, 40
    %v2897 = vpop.permute.xlu0 %2896
    %2898 = vrot.lane.b32.xlu0 %v64, 40
    %v2899 = vpop.permute.xlu0 %2898
    %2900 = vrot.lane.b32.xlu0 %v65, 40
    %v2901 = vpop.permute.xlu0 %2900
    %2902 = vrot.lane.b32.xlu0 %v66, 40
    %v2903 = vpop.permute.xlu0 %2902
    %2904 = vrot.lane.b32.xlu0 %v67, 40
    %v2905 = vpop.permute.xlu0 %2904
    %2906 = vrot.lane.b32.xlu0 %v68, 40
    %v2907 = vpop.permute.xlu0 %2906
    %2908 = vrot.lane.b32.xlu0 %v69, 40
    %v2909 = vpop.permute.xlu0 %2908
    %2910 = vrot.lane.b32.xlu0 %v70, 40
    %v2911 = vpop.permute.xlu0 %2910
    %2912 = vrot.lane.b32.xlu0 %v71, 40
    %v2913 = vpop.permute.xlu0 %2912
    %2914 = vrot.lane.b32.xlu0 %v72, 40
    %v2915 = vpop.permute.xlu0 %2914
    %2916 = vrot.lane.b32.xlu0 %v75, 40
    %v2917 = vpop.permute.xlu0 %2916
    %2918 = vrot.lane.b32.xlu0 %v76, 40
    %v2919 = vpop.permute.xlu0 %2918
    %2920 = vrot.lane.b32.xlu0 %v77, 40
    %v2921 = vpop.permute.xlu0 %2920
    %2922 = vrot.lane.b32.xlu0 %v78, 40
    %v2923 = vpop.permute.xlu0 %2922
    %2924 = vrot.lane.b32.xlu0 %v79, 40
    %v2925 = vpop.permute.xlu0 %2924
    %2926 = vrot.lane.b32.xlu0 %v80, 40
    %v2927 = vpop.permute.xlu0 %2926
    %2928 = vrot.lane.b32.xlu0 %v81, 40
    %v2929 = vpop.permute.xlu0 %2928
    %2930 = vrot.lane.b32.xlu0 %v82, 40
    %v2931 = vpop.permute.xlu0 %2930
    %2932 = vrot.lane.b32.xlu0 %v83, 40
    %v2933 = vpop.permute.xlu0 %2932
    %2934 = vrot.lane.b32.xlu0 %v84, 40
    %v2935 = vpop.permute.xlu0 %2934
    %2936 = vrot.lane.b32.xlu0 %v85, 40
    %v2937 = vpop.permute.xlu0 %2936
    %2938 = vrot.lane.b32.xlu0 %v86, 40
    %v2939 = vpop.permute.xlu0 %2938
    %2940 = vrot.lane.b32.xlu0 %v87, 40
    %v2941 = vpop.permute.xlu0 %2940
    %2942 = vrot.lane.b32.xlu0 %v88, 40
    %v2943 = vpop.permute.xlu0 %2942
    %2944 = vrot.lane.b32.xlu0 %v91, 40
    %v2945 = vpop.permute.xlu0 %2944
    %2946 = vrot.lane.b32.xlu0 %v92, 40
    %v2947 = vpop.permute.xlu0 %2946
    %2948 = vrot.lane.b32.xlu0 %v93, 40
    %v2949 = vpop.permute.xlu0 %2948
    %2950 = vrot.lane.b32.xlu0 %v94, 40
    %v2951 = vpop.permute.xlu0 %2950
    %2952 = vrot.lane.b32.xlu0 %v95, 40
    %v2953 = vpop.permute.xlu0 %2952
    %2954 = vrot.lane.b32.xlu0 %v96, 40
    %v2955 = vpop.permute.xlu0 %2954
    %2956 = vrot.lane.b32.xlu0 %v97, 40
    %v2957 = vpop.permute.xlu0 %2956
    %2958 = vrot.lane.b32.xlu0 %v98, 40
    %v2959 = vpop.permute.xlu0 %2958
    %2960 = vrot.lane.b32.xlu0 %v99, 40
    %v2961 = vpop.permute.xlu0 %2960
    %2962 = vrot.lane.b32.xlu0 %v100, 40
    %v2963 = vpop.permute.xlu0 %2962
    %2964 = vrot.lane.b32.xlu0 %v101, 40
    %v2965 = vpop.permute.xlu0 %2964
    %2966 = vrot.lane.b32.xlu0 %v102, 40
    %v2967 = vpop.permute.xlu0 %2966
    %2968 = vrot.lane.b32.xlu0 %v103, 40
    %v2969 = vpop.permute.xlu0 %2968
    %2970 = vrot.lane.b32.xlu0 %v104, 40
    %v2971 = vpop.permute.xlu0 %2970
    %2972 = vrot.lane.b32.xlu0 %v107, 40
    %v2973 = vpop.permute.xlu0 %2972
    %2974 = vrot.lane.b32.xlu0 %v108, 40
    %v2975 = vpop.permute.xlu0 %2974
    %2976 = vrot.lane.b32.xlu0 %v109, 40
    %v2977 = vpop.permute.xlu0 %2976
    %2978 = vrot.lane.b32.xlu0 %v110, 40
    %v2979 = vpop.permute.xlu0 %2978
    %2980 = vrot.lane.b32.xlu0 %v111, 40
    %v2981 = vpop.permute.xlu0 %2980
    %2982 = vrot.lane.b32.xlu0 %v112, 40
    %v2983 = vpop.permute.xlu0 %2982
    %2984 = vrot.lane.b32.xlu0 %v113, 40
    %v2985 = vpop.permute.xlu0 %2984
    %2986 = vrot.lane.b32.xlu0 %v114, 40
    %v2987 = vpop.permute.xlu0 %2986
    %2988 = vrot.lane.b32.xlu0 %v115, 40
    %v2989 = vpop.permute.xlu0 %2988
    %2990 = vrot.lane.b32.xlu0 %v116, 40
    %v2991 = vpop.permute.xlu0 %2990
    %2992 = vrot.lane.b32.xlu0 %v117, 40
    %v2993 = vpop.permute.xlu0 %2992
    %2994 = vrot.lane.b32.xlu0 %v118, 40
    %v2995 = vpop.permute.xlu0 %2994
    %2996 = vrot.lane.b32.xlu0 %v119, 40
    %v2997 = vpop.permute.xlu0 %2996
    %2998 = vrot.lane.b32.xlu0 %v120, 40
    %v2999 = vpop.permute.xlu0 %2998
    %3000 = vrot.lane.b32.xlu0 %v123, 40
    %v3001 = vpop.permute.xlu0 %3000
    %3002 = vrot.lane.b32.xlu0 %v124, 40
    %v3003 = vpop.permute.xlu0 %3002
    %3004 = vrot.lane.b32.xlu0 %v125, 40
    %v3005 = vpop.permute.xlu0 %3004
    %3006 = vrot.lane.b32.xlu0 %v126, 40
    %v3007 = vpop.permute.xlu0 %3006
    %3008 = vrot.lane.b32.xlu0 %v127, 40
    %v3009 = vpop.permute.xlu0 %3008
    %3010 = vrot.lane.b32.xlu0 %v128, 40
    %v3011 = vpop.permute.xlu0 %3010
    %3012 = vrot.lane.b32.xlu0 %v129, 40
    %v3013 = vpop.permute.xlu0 %3012
    %3014 = vrot.lane.b32.xlu0 %v130, 40
    %v3015 = vpop.permute.xlu0 %3014
    %3016 = vrot.lane.b32.xlu0 %v131, 40
    %v3017 = vpop.permute.xlu0 %3016
    %3018 = vrot.lane.b32.xlu0 %v132, 40
    %v3019 = vpop.permute.xlu0 %3018
    %3020 = vrot.lane.b32.xlu0 %v133, 40
    %v3021 = vpop.permute.xlu0 %3020
    %3022 = vrot.lane.b32.xlu0 %v134, 40
    %v3023 = vpop.permute.xlu0 %3022
    %3024 = vrot.lane.b32.xlu0 %v135, 40
    %v3025 = vpop.permute.xlu0 %3024
    %3026 = vrot.lane.b32.xlu0 %v136, 40
    %v3027 = vpop.permute.xlu0 %3026
    %3028 = vrot.lane.b32.xlu0 %v139, 40
    %v3029 = vpop.permute.xlu0 %3028
    %3030 = vrot.lane.b32.xlu0 %v140, 40
    %v3031 = vpop.permute.xlu0 %3030
    %3032 = vrot.lane.b32.xlu0 %v141, 40
    %v3033 = vpop.permute.xlu0 %3032
    %3034 = vrot.lane.b32.xlu0 %v142, 40
    %v3035 = vpop.permute.xlu0 %3034
    %3036 = vrot.lane.b32.xlu0 %v143, 40
    %v3037 = vpop.permute.xlu0 %3036
    %3038 = vrot.lane.b32.xlu0 %v144, 40
    %v3039 = vpop.permute.xlu0 %3038
    %3040 = vrot.lane.b32.xlu0 %v145, 40
    %v3041 = vpop.permute.xlu0 %3040
    %3042 = vrot.lane.b32.xlu0 %v146, 40
    %v3043 = vpop.permute.xlu0 %3042
    %3044 = vrot.lane.b32.xlu0 %v147, 40
    %v3045 = vpop.permute.xlu0 %3044
    %3046 = vrot.lane.b32.xlu0 %v148, 40
    %v3047 = vpop.permute.xlu0 %3046
    %3048 = vrot.lane.b32.xlu0 %v149, 40
    %v3049 = vpop.permute.xlu0 %3048
    %3050 = vrot.lane.b32.xlu0 %v150, 40
    %v3051 = vpop.permute.xlu0 %3050
    %3052 = vrot.lane.b32.xlu0 %v151, 40
    %v3053 = vpop.permute.xlu0 %3052
    %3054 = vrot.lane.b32.xlu0 %v152, 40
    %v3055 = vpop.permute.xlu0 %3054
    %3056 = vrot.lane.b32.xlu0 %v155, 40
    %v3057 = vpop.permute.xlu0 %3056
    %3058 = vrot.lane.b32.xlu0 %v156, 40
    %v3059 = vpop.permute.xlu0 %3058
    %3060 = vrot.lane.b32.xlu0 %v157, 40
    %v3061 = vpop.permute.xlu0 %3060
    %3062 = vrot.lane.b32.xlu0 %v158, 40
    %v3063 = vpop.permute.xlu0 %3062
    %3064 = vrot.lane.b32.xlu0 %v159, 40
    %v3065 = vpop.permute.xlu0 %3064
    %3066 = vrot.lane.b32.xlu0 %v160, 40
    %v3067 = vpop.permute.xlu0 %3066
    %3068 = vrot.lane.b32.xlu0 %v161, 40
    %v3069 = vpop.permute.xlu0 %3068
    %3070 = vrot.lane.b32.xlu0 %v162, 40
    %v3071 = vpop.permute.xlu0 %3070
    %3072 = vrot.lane.b32.xlu0 %v163, 40
    %v3073 = vpop.permute.xlu0 %3072
    %3074 = vrot.lane.b32.xlu0 %v164, 40
    %v3075 = vpop.permute.xlu0 %3074
    %3076 = vrot.lane.b32.xlu0 %v165, 40
    %v3077 = vpop.permute.xlu0 %3076
    %3078 = vrot.lane.b32.xlu0 %v166, 40
    %v3079 = vpop.permute.xlu0 %3078
    %3080 = vrot.lane.b32.xlu0 %v167, 40
    %v3081 = vpop.permute.xlu0 %3080
    %3082 = vrot.lane.b32.xlu0 %v168, 40
    %v3083 = vpop.permute.xlu0 %3082
    %3084 = vrot.lane.b32.xlu0 %v171, 40
    %v3085 = vpop.permute.xlu0 %3084
    %3086 = vrot.lane.b32.xlu0 %v172, 40
    %v3087 = vpop.permute.xlu0 %3086
    %3088 = vrot.lane.b32.xlu0 %v173, 40
    %v3089 = vpop.permute.xlu0 %3088
    %3090 = vrot.lane.b32.xlu0 %v174, 40
    %v3091 = vpop.permute.xlu0 %3090
    %3092 = vrot.lane.b32.xlu0 %v175, 40
    %v3093 = vpop.permute.xlu0 %3092
    %3094 = vrot.lane.b32.xlu0 %v176, 40
    %v3095 = vpop.permute.xlu0 %3094
    %3096 = vrot.lane.b32.xlu0 %v177, 40
    %v3097 = vpop.permute.xlu0 %3096
    %3098 = vrot.lane.b32.xlu0 %v178, 40
    %v3099 = vpop.permute.xlu0 %3098
    %3100 = vrot.lane.b32.xlu0 %v179, 40
    %v3101 = vpop.permute.xlu0 %3100
    %3102 = vrot.lane.b32.xlu0 %v180, 40
    %v3103 = vpop.permute.xlu0 %3102
    %3104 = vrot.lane.b32.xlu0 %v181, 40
    %v3105 = vpop.permute.xlu0 %3104
    %3106 = vrot.lane.b32.xlu0 %v182, 40
    %v3107 = vpop.permute.xlu0 %3106
    %3108 = vrot.lane.b32.xlu0 %v183, 40
    %v3109 = vpop.permute.xlu0 %3108
    %3110 = vrot.lane.b32.xlu0 %v184, 40
    %v3111 = vpop.permute.xlu0 %3110
    %3112 = vrot.lane.b32.xlu0 %v187, 40
    %v3113 = vpop.permute.xlu0 %3112
    %3114 = vrot.lane.b32.xlu0 %v188, 40
    %v3115 = vpop.permute.xlu0 %3114
    %3116 = vrot.lane.b32.xlu0 %v189, 40
    %v3117 = vpop.permute.xlu0 %3116
    %3118 = vrot.lane.b32.xlu0 %v190, 40
    %v3119 = vpop.permute.xlu0 %3118
    %3120 = vrot.lane.b32.xlu0 %v191, 40
    %v3121 = vpop.permute.xlu0 %3120
    %3122 = vrot.lane.b32.xlu0 %v192, 40
    %v3123 = vpop.permute.xlu0 %3122
    %3124 = vrot.lane.b32.xlu0 %v193, 40
    %v3125 = vpop.permute.xlu0 %3124
    %3126 = vrot.lane.b32.xlu0 %v194, 40
    %v3127 = vpop.permute.xlu0 %3126
    %3128 = vrot.lane.b32.xlu0 %v195, 40
    %v3129 = vpop.permute.xlu0 %3128
    %3130 = vrot.lane.b32.xlu0 %v196, 40
    %v3131 = vpop.permute.xlu0 %3130
    %3132 = vrot.lane.b32.xlu0 %v197, 40
    %v3133 = vpop.permute.xlu0 %3132
    %3134 = vrot.lane.b32.xlu0 %v198, 40
    %v3135 = vpop.permute.xlu0 %3134
    %3136 = vrot.lane.b32.xlu0 %v199, 40
    %v3137 = vpop.permute.xlu0 %3136
    %3138 = vrot.lane.b32.xlu0 %v200, 40
    %v3139 = vpop.permute.xlu0 %3138
    %3140 = vrot.lane.b32.xlu0 %v203, 40
    %v3141 = vpop.permute.xlu0 %3140
    %3142 = vrot.lane.b32.xlu0 %v204, 40
    %v3143 = vpop.permute.xlu0 %3142
    %3144 = vrot.lane.b32.xlu0 %v205, 40
    %v3145 = vpop.permute.xlu0 %3144
    %3146 = vrot.lane.b32.xlu0 %v206, 40
    %v3147 = vpop.permute.xlu0 %3146
    %3148 = vrot.lane.b32.xlu0 %v207, 40
    %v3149 = vpop.permute.xlu0 %3148
    %3150 = vrot.lane.b32.xlu0 %v208, 40
    %v3151 = vpop.permute.xlu0 %3150
    %3152 = vrot.lane.b32.xlu0 %v209, 40
    %v3153 = vpop.permute.xlu0 %3152
    %3154 = vrot.lane.b32.xlu0 %v210, 40
    %v3155 = vpop.permute.xlu0 %3154
    %3156 = vrot.lane.b32.xlu0 %v211, 40
    %v3157 = vpop.permute.xlu0 %3156
    %3158 = vrot.lane.b32.xlu0 %v212, 40
    %v3159 = vpop.permute.xlu0 %3158
    %3160 = vrot.lane.b32.xlu0 %v213, 40
    %v3161 = vpop.permute.xlu0 %3160
    %3162 = vrot.lane.b32.xlu0 %v214, 40
    %v3163 = vpop.permute.xlu0 %3162
    %3164 = vrot.lane.b32.xlu0 %v215, 40
    %v3165 = vpop.permute.xlu0 %3164
    %3166 = vrot.lane.b32.xlu0 %v216, 40
    %v3167 = vpop.permute.xlu0 %3166
    %3168 = vrot.lane.b32.xlu0 %v219, 40
    %v3169 = vpop.permute.xlu0 %3168
    %3170 = vrot.lane.b32.xlu0 %v220, 40
    %v3171 = vpop.permute.xlu0 %3170
    %3172 = vrot.lane.b32.xlu0 %v221, 40
    %v3173 = vpop.permute.xlu0 %3172
    %3174 = vrot.lane.b32.xlu0 %v222, 40
    %v3175 = vpop.permute.xlu0 %3174
    %3176 = vrot.lane.b32.xlu0 %v223, 40
    %v3177 = vpop.permute.xlu0 %3176
    %3178 = vrot.lane.b32.xlu0 %v224, 40
    %v3179 = vpop.permute.xlu0 %3178
    %3180 = vrot.lane.b32.xlu0 %v225, 40
    %v3181 = vpop.permute.xlu0 %3180
    %3182 = vrot.lane.b32.xlu0 %v226, 40
    %v3183 = vpop.permute.xlu0 %3182
    %3184 = vrot.lane.b32.xlu0 %v227, 40
    %v3185 = vpop.permute.xlu0 %3184
    %3186 = vrot.lane.b32.xlu0 %v228, 40
    %v3187 = vpop.permute.xlu0 %3186
    %3188 = vrot.lane.b32.xlu0 %v229, 40
    %v3189 = vpop.permute.xlu0 %3188
    %3190 = vrot.lane.b32.xlu0 %v230, 40
    %v3191 = vpop.permute.xlu0 %3190
    %3192 = vrot.lane.b32.xlu0 %v231, 40
    %v3193 = vpop.permute.xlu0 %3192
    %3194 = vrot.lane.b32.xlu0 %v232, 40
    %v3195 = vpop.permute.xlu0 %3194
    %3196 = vrot.lane.b32.xlu0 %v235, 40
    %v3197 = vpop.permute.xlu0 %3196
    %3198 = vrot.lane.b32.xlu0 %v236, 40
    %v3199 = vpop.permute.xlu0 %3198
    %3200 = vrot.lane.b32.xlu0 %v237, 40
    %v3201 = vpop.permute.xlu0 %3200
    %3202 = vrot.lane.b32.xlu0 %v238, 40
    %v3203 = vpop.permute.xlu0 %3202
    %3204 = vrot.lane.b32.xlu0 %v239, 40
    %v3205 = vpop.permute.xlu0 %3204
    %3206 = vrot.lane.b32.xlu0 %v240, 40
    %v3207 = vpop.permute.xlu0 %3206
    %3208 = vrot.lane.b32.xlu0 %v241, 40
    %v3209 = vpop.permute.xlu0 %3208
    %3210 = vrot.lane.b32.xlu0 %v242, 40
    %v3211 = vpop.permute.xlu0 %3210
    %3212 = vrot.lane.b32.xlu0 %v243, 40
    %v3213 = vpop.permute.xlu0 %3212
    %3214 = vrot.lane.b32.xlu0 %v244, 40
    %v3215 = vpop.permute.xlu0 %3214
    %3216 = vrot.lane.b32.xlu0 %v245, 40
    %v3217 = vpop.permute.xlu0 %3216
    %3218 = vrot.lane.b32.xlu0 %v246, 40
    %v3219 = vpop.permute.xlu0 %3218
    %3220 = vrot.lane.b32.xlu0 %v247, 40
    %v3221 = vpop.permute.xlu0 %3220
    %3222 = vrot.lane.b32.xlu0 %v248, 40
    %v3223 = vpop.permute.xlu0 %3222
    %3224 = vrot.lane.b32.xlu0 %v251, 40
    %v3225 = vpop.permute.xlu0 %3224
    %3226 = vrot.lane.b32.xlu0 %v252, 40
    %v3227 = vpop.permute.xlu0 %3226
    %3228 = vrot.lane.b32.xlu0 %v253, 40
    %v3229 = vpop.permute.xlu0 %3228
    %3230 = vrot.lane.b32.xlu0 %v254, 40
    %v3231 = vpop.permute.xlu0 %3230
    %3232 = vrot.lane.b32.xlu0 %v255, 40
    %v3233 = vpop.permute.xlu0 %3232
    %3234 = vrot.lane.b32.xlu0 %v256, 40
    %v3235 = vpop.permute.xlu0 %3234
    %3236 = vrot.lane.b32.xlu0 %v257, 40
    %v3237 = vpop.permute.xlu0 %3236
    %3238 = vrot.lane.b32.xlu0 %v258, 40
    %v3239 = vpop.permute.xlu0 %3238
    %3240 = vrot.lane.b32.xlu0 %v259, 40
    %v3241 = vpop.permute.xlu0 %3240
    %3242 = vrot.lane.b32.xlu0 %v260, 40
    %v3243 = vpop.permute.xlu0 %3242
    %3244 = vrot.lane.b32.xlu0 %v261, 40
    %v3245 = vpop.permute.xlu0 %3244
    %3246 = vrot.lane.b32.xlu0 %v262, 40
    %v3247 = vpop.permute.xlu0 %3246
    %3248 = vrot.lane.b32.xlu0 %v263, 40
    %v3249 = vpop.permute.xlu0 %3248
    %3250 = vrot.lane.b32.xlu0 %v264, 40
    %v3251 = vpop.permute.xlu0 %3250
    %3252 = vrot.lane.b32.xlu0 %v267, 40
    %v3253 = vpop.permute.xlu0 %3252
    %3254 = vrot.lane.b32.xlu0 %v268, 40
    %v3255 = vpop.permute.xlu0 %3254
    %3256 = vrot.lane.b32.xlu0 %v269, 40
    %v3257 = vpop.permute.xlu0 %3256
    %3258 = vrot.lane.b32.xlu0 %v270, 40
    %v3259 = vpop.permute.xlu0 %3258
    %3260 = vrot.lane.b32.xlu0 %v271, 40
    %v3261 = vpop.permute.xlu0 %3260
    %3262 = vrot.lane.b32.xlu0 %v272, 40
    %v3263 = vpop.permute.xlu0 %3262
    %3264 = vrot.lane.b32.xlu0 %v273, 40
    %v3265 = vpop.permute.xlu0 %3264
    %3266 = vrot.lane.b32.xlu0 %v274, 40
    %v3267 = vpop.permute.xlu0 %3266
    %3268 = vrot.lane.b32.xlu0 %v275, 40
    %v3269 = vpop.permute.xlu0 %3268
    %3270 = vrot.lane.b32.xlu0 %v276, 40
    %v3271 = vpop.permute.xlu0 %3270
    %3272 = vrot.lane.b32.xlu0 %v277, 40
    %v3273 = vpop.permute.xlu0 %3272
    %3274 = vrot.lane.b32.xlu0 %v278, 40
    %v3275 = vpop.permute.xlu0 %3274
    %3276 = vrot.lane.b32.xlu0 %v279, 40
    %v3277 = vpop.permute.xlu0 %3276
    %3278 = vrot.lane.b32.xlu0 %v280, 40
    %v3279 = vpop.permute.xlu0 %3278
    %3490 = vrot.lane.b32.xlu0 %v73, 48
    %v3491 = vpop.permute.xlu0 %3490
    %3492 = vrot.lane.b32.xlu0 %v74, 48
    %v3493 = vpop.permute.xlu0 %3492
    %3494 = vrot.lane.b32.xlu0 %v75, 48
    %v3495 = vpop.permute.xlu0 %3494
    %3496 = vrot.lane.b32.xlu0 %v76, 48
    %v3497 = vpop.permute.xlu0 %3496
    %3498 = vrot.lane.b32.xlu0 %v77, 48
    %v3499 = vpop.permute.xlu0 %3498
    %3500 = vrot.lane.b32.xlu0 %v78, 48
    %v3501 = vpop.permute.xlu0 %3500
    %3502 = vrot.lane.b32.xlu0 %v79, 48
    %v3503 = vpop.permute.xlu0 %3502
    %3504 = vrot.lane.b32.xlu0 %v80, 48
    %v3505 = vpop.permute.xlu0 %3504
    %3506 = vrot.lane.b32.xlu0 %v81, 48
    %v3507 = vpop.permute.xlu0 %3506
    %3508 = vrot.lane.b32.xlu0 %v82, 48
    %v3509 = vpop.permute.xlu0 %3508
    %3510 = vrot.lane.b32.xlu0 %v83, 48
    %v3511 = vpop.permute.xlu0 %3510
    %3512 = vrot.lane.b32.xlu0 %v84, 48
    %v3513 = vpop.permute.xlu0 %3512
    %3514 = vrot.lane.b32.xlu0 %v85, 48
    %v3515 = vpop.permute.xlu0 %3514
    %3516 = vrot.lane.b32.xlu0 %v86, 48
    %v3517 = vpop.permute.xlu0 %3516
    %3518 = vrot.lane.b32.xlu0 %v89, 48
    %v3519 = vpop.permute.xlu0 %3518
    %3520 = vrot.lane.b32.xlu0 %v90, 48
    %v3521 = vpop.permute.xlu0 %3520
    %3522 = vrot.lane.b32.xlu0 %v91, 48
    %v3523 = vpop.permute.xlu0 %3522
    %3524 = vrot.lane.b32.xlu0 %v92, 48
    %v3525 = vpop.permute.xlu0 %3524
    %3526 = vrot.lane.b32.xlu0 %v93, 48
    %v3527 = vpop.permute.xlu0 %3526
    %3528 = vrot.lane.b32.xlu0 %v94, 48
    %v3529 = vpop.permute.xlu0 %3528
    %3530 = vrot.lane.b32.xlu0 %v95, 48
    %v3531 = vpop.permute.xlu0 %3530
    %3532 = vrot.lane.b32.xlu0 %v96, 48
    %v3533 = vpop.permute.xlu0 %3532
    %3534 = vrot.lane.b32.xlu0 %v97, 48
    %v3535 = vpop.permute.xlu0 %3534
    %3536 = vrot.lane.b32.xlu0 %v98, 48
    %v3537 = vpop.permute.xlu0 %3536
    %3538 = vrot.lane.b32.xlu0 %v99, 48
    %v3539 = vpop.permute.xlu0 %3538
    %3540 = vrot.lane.b32.xlu0 %v100, 48
    %v3541 = vpop.permute.xlu0 %3540
    %3542 = vrot.lane.b32.xlu0 %v101, 48
    %v3543 = vpop.permute.xlu0 %3542
    %3544 = vrot.lane.b32.xlu0 %v102, 48
    %v3545 = vpop.permute.xlu0 %3544
    %3546 = vrot.lane.b32.xlu0 %v105, 48
    %v3547 = vpop.permute.xlu0 %3546
    %3548 = vrot.lane.b32.xlu0 %v106, 48
    %v3549 = vpop.permute.xlu0 %3548
    %3550 = vrot.lane.b32.xlu0 %v107, 48
    %v3551 = vpop.permute.xlu0 %3550
    %3552 = vrot.lane.b32.xlu0 %v108, 48
    %v3553 = vpop.permute.xlu0 %3552
    %3554 = vrot.lane.b32.xlu0 %v109, 48
    %v3555 = vpop.permute.xlu0 %3554
    %3556 = vrot.lane.b32.xlu0 %v110, 48
    %v3557 = vpop.permute.xlu0 %3556
    %3558 = vrot.lane.b32.xlu0 %v111, 48
    %v3559 = vpop.permute.xlu0 %3558
    %3560 = vrot.lane.b32.xlu0 %v112, 48
    %v3561 = vpop.permute.xlu0 %3560
    %3562 = vrot.lane.b32.xlu0 %v113, 48
    %v3563 = vpop.permute.xlu0 %3562
    %3564 = vrot.lane.b32.xlu0 %v114, 48
    %v3565 = vpop.permute.xlu0 %3564
    %3566 = vrot.lane.b32.xlu0 %v115, 48
    %v3567 = vpop.permute.xlu0 %3566
    %3568 = vrot.lane.b32.xlu0 %v116, 48
    %v3569 = vpop.permute.xlu0 %3568
    %3570 = vrot.lane.b32.xlu0 %v117, 48
    %v3571 = vpop.permute.xlu0 %3570
    %3572 = vrot.lane.b32.xlu0 %v118, 48
    %v3573 = vpop.permute.xlu0 %3572
    %3574 = vrot.lane.b32.xlu0 %v121, 48
    %v3575 = vpop.permute.xlu0 %3574
    %3576 = vrot.lane.b32.xlu0 %v122, 48
    %v3577 = vpop.permute.xlu0 %3576
    %3578 = vrot.lane.b32.xlu0 %v123, 48
    %v3579 = vpop.permute.xlu0 %3578
    %3580 = vrot.lane.b32.xlu0 %v124, 48
    %v3581 = vpop.permute.xlu0 %3580
    %3582 = vrot.lane.b32.xlu0 %v125, 48
    %v3583 = vpop.permute.xlu0 %3582
    %3584 = vrot.lane.b32.xlu0 %v126, 48
    %v3585 = vpop.permute.xlu0 %3584
    %3586 = vrot.lane.b32.xlu0 %v127, 48
    %v3587 = vpop.permute.xlu0 %3586
    %3588 = vrot.lane.b32.xlu0 %v128, 48
    %v3589 = vpop.permute.xlu0 %3588
    %3590 = vrot.lane.b32.xlu0 %v129, 48
    %v3591 = vpop.permute.xlu0 %3590
    %3592 = vrot.lane.b32.xlu0 %v130, 48
    %v3593 = vpop.permute.xlu0 %3592
    %3594 = vrot.lane.b32.xlu0 %v131, 48
    %v3595 = vpop.permute.xlu0 %3594
    %3596 = vrot.lane.b32.xlu0 %v132, 48
    %v3597 = vpop.permute.xlu0 %3596
    %3598 = vrot.lane.b32.xlu0 %v133, 48
    %v3599 = vpop.permute.xlu0 %3598
    %3600 = vrot.lane.b32.xlu0 %v134, 48
    %v3601 = vpop.permute.xlu0 %3600
    %3602 = vrot.lane.b32.xlu0 %v137, 48
    %v3603 = vpop.permute.xlu0 %3602
    %3604 = vrot.lane.b32.xlu0 %v138, 48
    %v3605 = vpop.permute.xlu0 %3604
    %3606 = vrot.lane.b32.xlu0 %v139, 48
    %v3607 = vpop.permute.xlu0 %3606
    %3608 = vrot.lane.b32.xlu0 %v140, 48
    %v3609 = vpop.permute.xlu0 %3608
    %3610 = vrot.lane.b32.xlu0 %v141, 48
    %v3611 = vpop.permute.xlu0 %3610
    %3612 = vrot.lane.b32.xlu0 %v142, 48
    %v3613 = vpop.permute.xlu0 %3612
    %3614 = vrot.lane.b32.xlu0 %v143, 48
    %v3615 = vpop.permute.xlu0 %3614
    %3616 = vrot.lane.b32.xlu0 %v144, 48
    %v3617 = vpop.permute.xlu0 %3616
    %3618 = vrot.lane.b32.xlu0 %v145, 48
    %v3619 = vpop.permute.xlu0 %3618
    %3620 = vrot.lane.b32.xlu0 %v146, 48
    %v3621 = vpop.permute.xlu0 %3620
    %3622 = vrot.lane.b32.xlu0 %v147, 48
    %v3623 = vpop.permute.xlu0 %3622
    %3624 = vrot.lane.b32.xlu0 %v148, 48
    %v3625 = vpop.permute.xlu0 %3624
    %3626 = vrot.lane.b32.xlu0 %v149, 48
    %v3627 = vpop.permute.xlu0 %3626
    %3628 = vrot.lane.b32.xlu0 %v150, 48
    %v3629 = vpop.permute.xlu0 %3628
    %3630 = vrot.lane.b32.xlu0 %v153, 48
    %v3631 = vpop.permute.xlu0 %3630
    %3632 = vrot.lane.b32.xlu0 %v154, 48
    %v3633 = vpop.permute.xlu0 %3632
    %3634 = vrot.lane.b32.xlu0 %v155, 48
    %v3635 = vpop.permute.xlu0 %3634
    %3636 = vrot.lane.b32.xlu0 %v156, 48
    %v3637 = vpop.permute.xlu0 %3636
    %3638 = vrot.lane.b32.xlu0 %v157, 48
    %v3639 = vpop.permute.xlu0 %3638
    %3640 = vrot.lane.b32.xlu0 %v158, 48
    %v3641 = vpop.permute.xlu0 %3640
    %3642 = vrot.lane.b32.xlu0 %v159, 48
    %v3643 = vpop.permute.xlu0 %3642
    %3644 = vrot.lane.b32.xlu0 %v160, 48
    %v3645 = vpop.permute.xlu0 %3644
    %3646 = vrot.lane.b32.xlu0 %v161, 48
    %v3647 = vpop.permute.xlu0 %3646
    %3648 = vrot.lane.b32.xlu0 %v162, 48
    %v3649 = vpop.permute.xlu0 %3648
    %3650 = vrot.lane.b32.xlu0 %v163, 48
    %v3651 = vpop.permute.xlu0 %3650
    %3652 = vrot.lane.b32.xlu0 %v164, 48
    %v3653 = vpop.permute.xlu0 %3652
    %3654 = vrot.lane.b32.xlu0 %v165, 48
    %v3655 = vpop.permute.xlu0 %3654
    %3656 = vrot.lane.b32.xlu0 %v166, 48
    %v3657 = vpop.permute.xlu0 %3656
    %3658 = vrot.lane.b32.xlu0 %v169, 48
    %v3659 = vpop.permute.xlu0 %3658
    %3660 = vrot.lane.b32.xlu0 %v170, 48
    %v3661 = vpop.permute.xlu0 %3660
    %3662 = vrot.lane.b32.xlu0 %v171, 48
    %v3663 = vpop.permute.xlu0 %3662
    %3664 = vrot.lane.b32.xlu0 %v172, 48
    %v3665 = vpop.permute.xlu0 %3664
    %3666 = vrot.lane.b32.xlu0 %v173, 48
    %v3667 = vpop.permute.xlu0 %3666
    %3668 = vrot.lane.b32.xlu0 %v174, 48
    %v3669 = vpop.permute.xlu0 %3668
    %3670 = vrot.lane.b32.xlu0 %v175, 48
    %v3671 = vpop.permute.xlu0 %3670
    %3672 = vrot.lane.b32.xlu0 %v176, 48
    %v3673 = vpop.permute.xlu0 %3672
    %3674 = vrot.lane.b32.xlu0 %v177, 48
    %v3675 = vpop.permute.xlu0 %3674
    %3676 = vrot.lane.b32.xlu0 %v178, 48
    %v3677 = vpop.permute.xlu0 %3676
    %3678 = vrot.lane.b32.xlu0 %v179, 48
    %v3679 = vpop.permute.xlu0 %3678
    %3680 = vrot.lane.b32.xlu0 %v180, 48
    %v3681 = vpop.permute.xlu0 %3680
    %3682 = vrot.lane.b32.xlu0 %v181, 48
    %v3683 = vpop.permute.xlu0 %3682
    %3684 = vrot.lane.b32.xlu0 %v182, 48
    %v3685 = vpop.permute.xlu0 %3684
    %3686 = vrot.lane.b32.xlu0 %v185, 48
    %v3687 = vpop.permute.xlu0 %3686
    %3688 = vrot.lane.b32.xlu0 %v186, 48
    %v3689 = vpop.permute.xlu0 %3688
    %3690 = vrot.lane.b32.xlu0 %v187, 48
    %v3691 = vpop.permute.xlu0 %3690
    %3692 = vrot.lane.b32.xlu0 %v188, 48
    %v3693 = vpop.permute.xlu0 %3692
    %3694 = vrot.lane.b32.xlu0 %v189, 48
    %v3695 = vpop.permute.xlu0 %3694
    %3696 = vrot.lane.b32.xlu0 %v190, 48
    %v3697 = vpop.permute.xlu0 %3696
    %3698 = vrot.lane.b32.xlu0 %v191, 48
    %v3699 = vpop.permute.xlu0 %3698
    %3700 = vrot.lane.b32.xlu0 %v192, 48
    %v3701 = vpop.permute.xlu0 %3700
    %3702 = vrot.lane.b32.xlu0 %v193, 48
    %v3703 = vpop.permute.xlu0 %3702
    %3704 = vrot.lane.b32.xlu0 %v194, 48
    %v3705 = vpop.permute.xlu0 %3704
    %3706 = vrot.lane.b32.xlu0 %v195, 48
    %v3707 = vpop.permute.xlu0 %3706
    %3708 = vrot.lane.b32.xlu0 %v196, 48
    %v3709 = vpop.permute.xlu0 %3708
    %3710 = vrot.lane.b32.xlu0 %v197, 48
    %v3711 = vpop.permute.xlu0 %3710
    %3712 = vrot.lane.b32.xlu0 %v198, 48
    %v3713 = vpop.permute.xlu0 %3712
    %3714 = vrot.lane.b32.xlu0 %v201, 48
    %v3715 = vpop.permute.xlu0 %3714
    %3716 = vrot.lane.b32.xlu0 %v202, 48
    %v3717 = vpop.permute.xlu0 %3716
    %3718 = vrot.lane.b32.xlu0 %v203, 48
    %v3719 = vpop.permute.xlu0 %3718
    %3720 = vrot.lane.b32.xlu0 %v204, 48
    %v3721 = vpop.permute.xlu0 %3720
    %3722 = vrot.lane.b32.xlu0 %v205, 48
    %v3723 = vpop.permute.xlu0 %3722
    %3724 = vrot.lane.b32.xlu0 %v206, 48
    %v3725 = vpop.permute.xlu0 %3724
    %3726 = vrot.lane.b32.xlu0 %v207, 48
    %v3727 = vpop.permute.xlu0 %3726
    %3728 = vrot.lane.b32.xlu0 %v208, 48
    %v3729 = vpop.permute.xlu0 %3728
    %3730 = vrot.lane.b32.xlu0 %v209, 48
    %v3731 = vpop.permute.xlu0 %3730
    %3732 = vrot.lane.b32.xlu0 %v210, 48
    %v3733 = vpop.permute.xlu0 %3732
    %3734 = vrot.lane.b32.xlu0 %v211, 48
    %v3735 = vpop.permute.xlu0 %3734
    %3736 = vrot.lane.b32.xlu0 %v212, 48
    %v3737 = vpop.permute.xlu0 %3736
    %3738 = vrot.lane.b32.xlu0 %v213, 48
    %v3739 = vpop.permute.xlu0 %3738
    %3740 = vrot.lane.b32.xlu0 %v214, 48
    %v3741 = vpop.permute.xlu0 %3740
    %3742 = vrot.lane.b32.xlu0 %v217, 48
    %v3743 = vpop.permute.xlu0 %3742
    %3744 = vrot.lane.b32.xlu0 %v218, 48
    %v3745 = vpop.permute.xlu0 %3744
    %3746 = vrot.lane.b32.xlu0 %v219, 48
    %v3747 = vpop.permute.xlu0 %3746
    %3748 = vrot.lane.b32.xlu0 %v220, 48
    %v3749 = vpop.permute.xlu0 %3748
    %3750 = vrot.lane.b32.xlu0 %v221, 48
    %v3751 = vpop.permute.xlu0 %3750
    %3752 = vrot.lane.b32.xlu0 %v222, 48
    %v3753 = vpop.permute.xlu0 %3752
    %3754 = vrot.lane.b32.xlu0 %v223, 48
    %v3755 = vpop.permute.xlu0 %3754
    %3756 = vrot.lane.b32.xlu0 %v224, 48
    %v3757 = vpop.permute.xlu0 %3756
    %3758 = vrot.lane.b32.xlu0 %v225, 48
    %v3759 = vpop.permute.xlu0 %3758
    %3760 = vrot.lane.b32.xlu0 %v226, 48
    %v3761 = vpop.permute.xlu0 %3760
    %3762 = vrot.lane.b32.xlu0 %v227, 48
    %v3763 = vpop.permute.xlu0 %3762
    %3764 = vrot.lane.b32.xlu0 %v228, 48
    %v3765 = vpop.permute.xlu0 %3764
    %3766 = vrot.lane.b32.xlu0 %v229, 48
    %v3767 = vpop.permute.xlu0 %3766
    %3768 = vrot.lane.b32.xlu0 %v230, 48
    %v3769 = vpop.permute.xlu0 %3768
    %3770 = vrot.lane.b32.xlu0 %v233, 48
    %v3771 = vpop.permute.xlu0 %3770
    %3772 = vrot.lane.b32.xlu0 %v234, 48
    %v3773 = vpop.permute.xlu0 %3772
    %3774 = vrot.lane.b32.xlu0 %v235, 48
    %v3775 = vpop.permute.xlu0 %3774
    %3776 = vrot.lane.b32.xlu0 %v236, 48
    %v3777 = vpop.permute.xlu0 %3776
    %3778 = vrot.lane.b32.xlu0 %v237, 48
    %v3779 = vpop.permute.xlu0 %3778
    %3780 = vrot.lane.b32.xlu0 %v238, 48
    %v3781 = vpop.permute.xlu0 %3780
    %3782 = vrot.lane.b32.xlu0 %v239, 48
    %v3783 = vpop.permute.xlu0 %3782
    %3784 = vrot.lane.b32.xlu0 %v240, 48
    %v3785 = vpop.permute.xlu0 %3784
    %3786 = vrot.lane.b32.xlu0 %v241, 48
    %v3787 = vpop.permute.xlu0 %3786
    %3788 = vrot.lane.b32.xlu0 %v242, 48
    %v3789 = vpop.permute.xlu0 %3788
    %3790 = vrot.lane.b32.xlu0 %v243, 48
    %v3791 = vpop.permute.xlu0 %3790
    %3792 = vrot.lane.b32.xlu0 %v244, 48
    %v3793 = vpop.permute.xlu0 %3792
    %3794 = vrot.lane.b32.xlu0 %v245, 48
    %v3795 = vpop.permute.xlu0 %3794
    %3796 = vrot.lane.b32.xlu0 %v246, 48
    %v3797 = vpop.permute.xlu0 %3796
    %3798 = vrot.lane.b32.xlu0 %v249, 48
    %v3799 = vpop.permute.xlu0 %3798
    %3800 = vrot.lane.b32.xlu0 %v250, 48
    %v3801 = vpop.permute.xlu0 %3800
    %3802 = vrot.lane.b32.xlu0 %v251, 48
    %v3803 = vpop.permute.xlu0 %3802
    %3804 = vrot.lane.b32.xlu0 %v252, 48
    %v3805 = vpop.permute.xlu0 %3804
    %3806 = vrot.lane.b32.xlu0 %v253, 48
    %v3807 = vpop.permute.xlu0 %3806
    %3808 = vrot.lane.b32.xlu0 %v254, 48
    %v3809 = vpop.permute.xlu0 %3808
    %3810 = vrot.lane.b32.xlu0 %v255, 48
    %v3811 = vpop.permute.xlu0 %3810
    %3812 = vrot.lane.b32.xlu0 %v256, 48
    %v3813 = vpop.permute.xlu0 %3812
    %3814 = vrot.lane.b32.xlu0 %v257, 48
    %v3815 = vpop.permute.xlu0 %3814
    %3816 = vrot.lane.b32.xlu0 %v258, 48
    %v3817 = vpop.permute.xlu0 %3816
    %3818 = vrot.lane.b32.xlu0 %v259, 48
    %v3819 = vpop.permute.xlu0 %3818
    %3820 = vrot.lane.b32.xlu0 %v260, 48
    %v3821 = vpop.permute.xlu0 %3820
    %3822 = vrot.lane.b32.xlu0 %v261, 48
    %v3823 = vpop.permute.xlu0 %3822
    %3824 = vrot.lane.b32.xlu0 %v262, 48
    %v3825 = vpop.permute.xlu0 %3824
    %3826 = vrot.lane.b32.xlu0 %v265, 48
    %v3827 = vpop.permute.xlu0 %3826
    %3828 = vrot.lane.b32.xlu0 %v266, 48
    %v3829 = vpop.permute.xlu0 %3828
    %3830 = vrot.lane.b32.xlu0 %v267, 48
    %v3831 = vpop.permute.xlu0 %3830
    %3832 = vrot.lane.b32.xlu0 %v268, 48
    %v3833 = vpop.permute.xlu0 %3832
    %3834 = vrot.lane.b32.xlu0 %v269, 48
    %v3835 = vpop.permute.xlu0 %3834
    %3836 = vrot.lane.b32.xlu0 %v270, 48
    %v3837 = vpop.permute.xlu0 %3836
    %3838 = vrot.lane.b32.xlu0 %v271, 48
    %v3839 = vpop.permute.xlu0 %3838
    %3840 = vrot.lane.b32.xlu0 %v272, 48
    %v3841 = vpop.permute.xlu0 %3840
    %3842 = vrot.lane.b32.xlu0 %v273, 48
    %v3843 = vpop.permute.xlu0 %3842
    %3844 = vrot.lane.b32.xlu0 %v274, 48
    %v3845 = vpop.permute.xlu0 %3844
    %3846 = vrot.lane.b32.xlu0 %v275, 48
    %v3847 = vpop.permute.xlu0 %3846
    %3848 = vrot.lane.b32.xlu0 %v276, 48
    %v3849 = vpop.permute.xlu0 %3848
    %3850 = vrot.lane.b32.xlu0 %v277, 48
    %v3851 = vpop.permute.xlu0 %3850
    %3852 = vrot.lane.b32.xlu0 %v278, 48
    %v3853 = vpop.permute.xlu0 %3852
    %3854 = vrot.lane.b32.xlu0 %v281, 48
    %v3855 = vpop.permute.xlu0 %3854
    %3856 = vrot.lane.b32.xlu0 %v282, 48
    %v3857 = vpop.permute.xlu0 %3856
    %3858 = vrot.lane.b32.xlu0 %v283, 48
    %v3859 = vpop.permute.xlu0 %3858
    %3860 = vrot.lane.b32.xlu0 %v284, 48
    %v3861 = vpop.permute.xlu0 %3860
    %3862 = vrot.lane.b32.xlu0 %v285, 48
    %v3863 = vpop.permute.xlu0 %3862
    %3864 = vrot.lane.b32.xlu0 %v286, 48
    %v3865 = vpop.permute.xlu0 %3864
    %3866 = vrot.lane.b32.xlu0 %v287, 48
    %v3867 = vpop.permute.xlu0 %3866
    %3868 = vrot.lane.b32.xlu0 %v288, 48
    %v3869 = vpop.permute.xlu0 %3868
    %3870 = vrot.lane.b32.xlu0 %v289, 48
    %v3871 = vpop.permute.xlu0 %3870
    %3872 = vrot.lane.b32.xlu0 %v290, 48
    %v3873 = vpop.permute.xlu0 %3872
    %3874 = vrot.lane.b32.xlu0 %v291, 48
    %v3875 = vpop.permute.xlu0 %3874
    %3876 = vrot.lane.b32.xlu0 %v292, 48
    %v3877 = vpop.permute.xlu0 %3876
    %3878 = vrot.lane.b32.xlu0 %v293, 48
    %v3879 = vpop.permute.xlu0 %3878
    %3880 = vrot.lane.b32.xlu0 %v294, 48
    %v3881 = vpop.permute.xlu0 %3880
    %4079 = vrot.lane.b32.xlu0 %v74, 56
    %v4080 = vpop.permute.xlu0 %4079
    %4081 = vrot.lane.b32.xlu0 %v75, 56
    %v4082 = vpop.permute.xlu0 %4081
    %4083 = vrot.lane.b32.xlu0 %v76, 56
    %v4084 = vpop.permute.xlu0 %4083
    %4085 = vrot.lane.b32.xlu0 %v77, 56
    %v4086 = vpop.permute.xlu0 %4085
    %4087 = vrot.lane.b32.xlu0 %v78, 56
    %v4088 = vpop.permute.xlu0 %4087
    %4089 = vrot.lane.b32.xlu0 %v79, 56
    %v4090 = vpop.permute.xlu0 %4089
    %4091 = vrot.lane.b32.xlu0 %v80, 56
    %v4092 = vpop.permute.xlu0 %4091
    %4093 = vrot.lane.b32.xlu0 %v81, 56
    %v4094 = vpop.permute.xlu0 %4093
    %4095 = vrot.lane.b32.xlu0 %v82, 56
    %v4096 = vpop.permute.xlu0 %4095
    %4097 = vrot.lane.b32.xlu0 %v83, 56
    %v4098 = vpop.permute.xlu0 %4097
    %4099 = vrot.lane.b32.xlu0 %v84, 56
    %v4100 = vpop.permute.xlu0 %4099
    %4101 = vrot.lane.b32.xlu0 %v85, 56
    %v4102 = vpop.permute.xlu0 %4101
    %4103 = vrot.lane.b32.xlu0 %v86, 56
    %v4104 = vpop.permute.xlu0 %4103
    %4105 = vrot.lane.b32.xlu0 %v87, 56
    %v4106 = vpop.permute.xlu0 %4105
    %4107 = vrot.lane.b32.xlu0 %v90, 56
    %v4108 = vpop.permute.xlu0 %4107
    %4109 = vrot.lane.b32.xlu0 %v91, 56
    %v4110 = vpop.permute.xlu0 %4109
    %4111 = vrot.lane.b32.xlu0 %v92, 56
    %v4112 = vpop.permute.xlu0 %4111
    %4113 = vrot.lane.b32.xlu0 %v93, 56
    %v4114 = vpop.permute.xlu0 %4113
    %4115 = vrot.lane.b32.xlu0 %v94, 56
    %v4116 = vpop.permute.xlu0 %4115
    %4117 = vrot.lane.b32.xlu0 %v95, 56
    %v4118 = vpop.permute.xlu0 %4117
    %4119 = vrot.lane.b32.xlu0 %v96, 56
    %v4120 = vpop.permute.xlu0 %4119
    %4121 = vrot.lane.b32.xlu0 %v97, 56
    %v4122 = vpop.permute.xlu0 %4121
    %4123 = vrot.lane.b32.xlu0 %v98, 56
    %v4124 = vpop.permute.xlu0 %4123
    %4125 = vrot.lane.b32.xlu0 %v99, 56
    %v4126 = vpop.permute.xlu0 %4125
    %4127 = vrot.lane.b32.xlu0 %v100, 56
    %v4128 = vpop.permute.xlu0 %4127
    %4129 = vrot.lane.b32.xlu0 %v101, 56
    %v4130 = vpop.permute.xlu0 %4129
    %4131 = vrot.lane.b32.xlu0 %v102, 56
    %v4132 = vpop.permute.xlu0 %4131
    %4133 = vrot.lane.b32.xlu0 %v103, 56
    %v4134 = vpop.permute.xlu0 %4133
    %4135 = vrot.lane.b32.xlu0 %v106, 56
    %v4136 = vpop.permute.xlu0 %4135
    %4137 = vrot.lane.b32.xlu0 %v107, 56
    %v4138 = vpop.permute.xlu0 %4137
    %4139 = vrot.lane.b32.xlu0 %v108, 56
    %v4140 = vpop.permute.xlu0 %4139
    %4141 = vrot.lane.b32.xlu0 %v109, 56
    %v4142 = vpop.permute.xlu0 %4141
    %4143 = vrot.lane.b32.xlu0 %v110, 56
    %v4144 = vpop.permute.xlu0 %4143
    %4145 = vrot.lane.b32.xlu0 %v111, 56
    %v4146 = vpop.permute.xlu0 %4145
    %4147 = vrot.lane.b32.xlu0 %v112, 56
    %v4148 = vpop.permute.xlu0 %4147
    %4149 = vrot.lane.b32.xlu0 %v113, 56
    %v4150 = vpop.permute.xlu0 %4149
    %4151 = vrot.lane.b32.xlu0 %v114, 56
    %v4152 = vpop.permute.xlu0 %4151
    %4153 = vrot.lane.b32.xlu0 %v115, 56
    %v4154 = vpop.permute.xlu0 %4153
    %4155 = vrot.lane.b32.xlu0 %v116, 56
    %v4156 = vpop.permute.xlu0 %4155
    %4157 = vrot.lane.b32.xlu0 %v117, 56
    %v4158 = vpop.permute.xlu0 %4157
    %4159 = vrot.lane.b32.xlu0 %v118, 56
    %v4160 = vpop.permute.xlu0 %4159
    %4161 = vrot.lane.b32.xlu0 %v119, 56
    %v4162 = vpop.permute.xlu0 %4161
    %4163 = vrot.lane.b32.xlu0 %v122, 56
    %v4164 = vpop.permute.xlu0 %4163
    %4165 = vrot.lane.b32.xlu0 %v123, 56
    %v4166 = vpop.permute.xlu0 %4165
    %4167 = vrot.lane.b32.xlu0 %v124, 56
    %v4168 = vpop.permute.xlu0 %4167
    %4169 = vrot.lane.b32.xlu0 %v125, 56
    %v4170 = vpop.permute.xlu0 %4169
    %4171 = vrot.lane.b32.xlu0 %v126, 56
    %v4172 = vpop.permute.xlu0 %4171
    %4173 = vrot.lane.b32.xlu0 %v127, 56
    %v4174 = vpop.permute.xlu0 %4173
    %4175 = vrot.lane.b32.xlu0 %v128, 56
    %v4176 = vpop.permute.xlu0 %4175
    %4177 = vrot.lane.b32.xlu0 %v129, 56
    %v4178 = vpop.permute.xlu0 %4177
    %4179 = vrot.lane.b32.xlu0 %v130, 56
    %v4180 = vpop.permute.xlu0 %4179
    %4181 = vrot.lane.b32.xlu0 %v131, 56
    %v4182 = vpop.permute.xlu0 %4181
    %4183 = vrot.lane.b32.xlu0 %v132, 56
    %v4184 = vpop.permute.xlu0 %4183
    %4185 = vrot.lane.b32.xlu0 %v133, 56
    %v4186 = vpop.permute.xlu0 %4185
    %4187 = vrot.lane.b32.xlu0 %v134, 56
    %v4188 = vpop.permute.xlu0 %4187
    %4189 = vrot.lane.b32.xlu0 %v135, 56
    %v4190 = vpop.permute.xlu0 %4189
    %4191 = vrot.lane.b32.xlu0 %v138, 56
    %v4192 = vpop.permute.xlu0 %4191
    %4193 = vrot.lane.b32.xlu0 %v139, 56
    %v4194 = vpop.permute.xlu0 %4193
    %4195 = vrot.lane.b32.xlu0 %v140, 56
    %v4196 = vpop.permute.xlu0 %4195
    %4197 = vrot.lane.b32.xlu0 %v141, 56
    %v4198 = vpop.permute.xlu0 %4197
    %4199 = vrot.lane.b32.xlu0 %v142, 56
    %v4200 = vpop.permute.xlu0 %4199
    %4201 = vrot.lane.b32.xlu0 %v143, 56
    %v4202 = vpop.permute.xlu0 %4201
    %4203 = vrot.lane.b32.xlu0 %v144, 56
    %v4204 = vpop.permute.xlu0 %4203
    %4205 = vrot.lane.b32.xlu0 %v145, 56
    %v4206 = vpop.permute.xlu0 %4205
    %4207 = vrot.lane.b32.xlu0 %v146, 56
    %v4208 = vpop.permute.xlu0 %4207
    %4209 = vrot.lane.b32.xlu0 %v147, 56
    %v4210 = vpop.permute.xlu0 %4209
    %4211 = vrot.lane.b32.xlu0 %v148, 56
    %v4212 = vpop.permute.xlu0 %4211
    %4213 = vrot.lane.b32.xlu0 %v149, 56
    %v4214 = vpop.permute.xlu0 %4213
    %4215 = vrot.lane.b32.xlu0 %v150, 56
    %v4216 = vpop.permute.xlu0 %4215
    %4217 = vrot.lane.b32.xlu0 %v151, 56
    %v4218 = vpop.permute.xlu0 %4217
    %4219 = vrot.lane.b32.xlu0 %v154, 56
    %v4220 = vpop.permute.xlu0 %4219
    %4221 = vrot.lane.b32.xlu0 %v155, 56
    %v4222 = vpop.permute.xlu0 %4221
    %4223 = vrot.lane.b32.xlu0 %v156, 56
    %v4224 = vpop.permute.xlu0 %4223
    %4225 = vrot.lane.b32.xlu0 %v157, 56
    %v4226 = vpop.permute.xlu0 %4225
    %4227 = vrot.lane.b32.xlu0 %v158, 56
    %v4228 = vpop.permute.xlu0 %4227
    %4229 = vrot.lane.b32.xlu0 %v159, 56
    %v4230 = vpop.permute.xlu0 %4229
    %4231 = vrot.lane.b32.xlu0 %v160, 56
    %v4232 = vpop.permute.xlu0 %4231
    %4233 = vrot.lane.b32.xlu0 %v161, 56
    %v4234 = vpop.permute.xlu0 %4233
    %4235 = vrot.lane.b32.xlu0 %v162, 56
    %v4236 = vpop.permute.xlu0 %4235
    %4237 = vrot.lane.b32.xlu0 %v163, 56
    %v4238 = vpop.permute.xlu0 %4237
    %4239 = vrot.lane.b32.xlu0 %v164, 56
    %v4240 = vpop.permute.xlu0 %4239
    %4241 = vrot.lane.b32.xlu0 %v165, 56
    %v4242 = vpop.permute.xlu0 %4241
    %4243 = vrot.lane.b32.xlu0 %v166, 56
    %v4244 = vpop.permute.xlu0 %4243
    %4245 = vrot.lane.b32.xlu0 %v167, 56
    %v4246 = vpop.permute.xlu0 %4245
    %4247 = vrot.lane.b32.xlu0 %v170, 56
    %v4248 = vpop.permute.xlu0 %4247
    %4249 = vrot.lane.b32.xlu0 %v171, 56
    %v4250 = vpop.permute.xlu0 %4249
    %4251 = vrot.lane.b32.xlu0 %v172, 56
    %v4252 = vpop.permute.xlu0 %4251
    %4253 = vrot.lane.b32.xlu0 %v173, 56
    %v4254 = vpop.permute.xlu0 %4253
    %4255 = vrot.lane.b32.xlu0 %v174, 56
    %v4256 = vpop.permute.xlu0 %4255
    %4257 = vrot.lane.b32.xlu0 %v175, 56
    %v4258 = vpop.permute.xlu0 %4257
    %4259 = vrot.lane.b32.xlu0 %v176, 56
    %v4260 = vpop.permute.xlu0 %4259
    %4261 = vrot.lane.b32.xlu0 %v177, 56
    %v4262 = vpop.permute.xlu0 %4261
    %4263 = vrot.lane.b32.xlu0 %v178, 56
    %v4264 = vpop.permute.xlu0 %4263
    %4265 = vrot.lane.b32.xlu0 %v179, 56
    %v4266 = vpop.permute.xlu0 %4265
    %4267 = vrot.lane.b32.xlu0 %v180, 56
    %v4268 = vpop.permute.xlu0 %4267
    %4269 = vrot.lane.b32.xlu0 %v181, 56
    %v4270 = vpop.permute.xlu0 %4269
    %4271 = vrot.lane.b32.xlu0 %v182, 56
    %v4272 = vpop.permute.xlu0 %4271
    %4273 = vrot.lane.b32.xlu0 %v183, 56
    %v4274 = vpop.permute.xlu0 %4273
    %4275 = vrot.lane.b32.xlu0 %v186, 56
    %v4276 = vpop.permute.xlu0 %4275
    %4277 = vrot.lane.b32.xlu0 %v187, 56
    %v4278 = vpop.permute.xlu0 %4277
    %4279 = vrot.lane.b32.xlu0 %v188, 56
    %v4280 = vpop.permute.xlu0 %4279
    %4281 = vrot.lane.b32.xlu0 %v189, 56
    %v4282 = vpop.permute.xlu0 %4281
    %4283 = vrot.lane.b32.xlu0 %v190, 56
    %v4284 = vpop.permute.xlu0 %4283
    %4285 = vrot.lane.b32.xlu0 %v191, 56
    %v4286 = vpop.permute.xlu0 %4285
    %4287 = vrot.lane.b32.xlu0 %v192, 56
    %v4288 = vpop.permute.xlu0 %4287
    %4289 = vrot.lane.b32.xlu0 %v193, 56
    %v4290 = vpop.permute.xlu0 %4289
    %4291 = vrot.lane.b32.xlu0 %v194, 56
    %v4292 = vpop.permute.xlu0 %4291
    %4293 = vrot.lane.b32.xlu0 %v195, 56
    %v4294 = vpop.permute.xlu0 %4293
    %4295 = vrot.lane.b32.xlu0 %v196, 56
    %v4296 = vpop.permute.xlu0 %4295
    %4297 = vrot.lane.b32.xlu0 %v197, 56
    %v4298 = vpop.permute.xlu0 %4297
    %4299 = vrot.lane.b32.xlu0 %v198, 56
    %v4300 = vpop.permute.xlu0 %4299
    %4301 = vrot.lane.b32.xlu0 %v199, 56
    %v4302 = vpop.permute.xlu0 %4301
    %4303 = vrot.lane.b32.xlu0 %v202, 56
    %v4304 = vpop.permute.xlu0 %4303
    %4305 = vrot.lane.b32.xlu0 %v203, 56
    %v4306 = vpop.permute.xlu0 %4305
    %4307 = vrot.lane.b32.xlu0 %v204, 56
    %v4308 = vpop.permute.xlu0 %4307
    %4309 = vrot.lane.b32.xlu0 %v205, 56
    %v4310 = vpop.permute.xlu0 %4309
    %4311 = vrot.lane.b32.xlu0 %v206, 56
    %v4312 = vpop.permute.xlu0 %4311
    %4313 = vrot.lane.b32.xlu0 %v207, 56
    %v4314 = vpop.permute.xlu0 %4313
    %4315 = vrot.lane.b32.xlu0 %v208, 56
    %v4316 = vpop.permute.xlu0 %4315
    %4317 = vrot.lane.b32.xlu0 %v209, 56
    %v4318 = vpop.permute.xlu0 %4317
    %4319 = vrot.lane.b32.xlu0 %v210, 56
    %v4320 = vpop.permute.xlu0 %4319
    %4321 = vrot.lane.b32.xlu0 %v211, 56
    %v4322 = vpop.permute.xlu0 %4321
    %4323 = vrot.lane.b32.xlu0 %v212, 56
    %v4324 = vpop.permute.xlu0 %4323
    %4325 = vrot.lane.b32.xlu0 %v213, 56
    %v4326 = vpop.permute.xlu0 %4325
    %4327 = vrot.lane.b32.xlu0 %v214, 56
    %v4328 = vpop.permute.xlu0 %4327
    %4329 = vrot.lane.b32.xlu0 %v215, 56
    %v4330 = vpop.permute.xlu0 %4329
    %4331 = vrot.lane.b32.xlu0 %v218, 56
    %v4332 = vpop.permute.xlu0 %4331
    %4333 = vrot.lane.b32.xlu0 %v219, 56
    %v4334 = vpop.permute.xlu0 %4333
    %4335 = vrot.lane.b32.xlu0 %v220, 56
    %v4336 = vpop.permute.xlu0 %4335
    %4337 = vrot.lane.b32.xlu0 %v221, 56
    %v4338 = vpop.permute.xlu0 %4337
    %4339 = vrot.lane.b32.xlu0 %v222, 56
    %v4340 = vpop.permute.xlu0 %4339
    %4341 = vrot.lane.b32.xlu0 %v223, 56
    %v4342 = vpop.permute.xlu0 %4341
    %4343 = vrot.lane.b32.xlu0 %v224, 56
    %v4344 = vpop.permute.xlu0 %4343
    %4345 = vrot.lane.b32.xlu0 %v225, 56
    %v4346 = vpop.permute.xlu0 %4345
    %4347 = vrot.lane.b32.xlu0 %v226, 56
    %v4348 = vpop.permute.xlu0 %4347
    %4349 = vrot.lane.b32.xlu0 %v227, 56
    %v4350 = vpop.permute.xlu0 %4349
    %4351 = vrot.lane.b32.xlu0 %v228, 56
    %v4352 = vpop.permute.xlu0 %4351
    %4353 = vrot.lane.b32.xlu0 %v229, 56
    %v4354 = vpop.permute.xlu0 %4353
    %4355 = vrot.lane.b32.xlu0 %v230, 56
    %v4356 = vpop.permute.xlu0 %4355
    %4357 = vrot.lane.b32.xlu0 %v231, 56
    %v4358 = vpop.permute.xlu0 %4357
    %4359 = vrot.lane.b32.xlu0 %v234, 56
    %v4360 = vpop.permute.xlu0 %4359
    %4361 = vrot.lane.b32.xlu0 %v235, 56
    %v4362 = vpop.permute.xlu0 %4361
    %4363 = vrot.lane.b32.xlu0 %v236, 56
    %v4364 = vpop.permute.xlu0 %4363
    %4365 = vrot.lane.b32.xlu0 %v237, 56
    %v4366 = vpop.permute.xlu0 %4365
    %4367 = vrot.lane.b32.xlu0 %v238, 56
    %v4368 = vpop.permute.xlu0 %4367
    %4369 = vrot.lane.b32.xlu0 %v239, 56
    %v4370 = vpop.permute.xlu0 %4369
    %4371 = vrot.lane.b32.xlu0 %v240, 56
    %v4372 = vpop.permute.xlu0 %4371
    %4373 = vrot.lane.b32.xlu0 %v241, 56
    %v4374 = vpop.permute.xlu0 %4373
    %4375 = vrot.lane.b32.xlu0 %v242, 56
    %v4376 = vpop.permute.xlu0 %4375
    %4377 = vrot.lane.b32.xlu0 %v243, 56
    %v4378 = vpop.permute.xlu0 %4377
    %4379 = vrot.lane.b32.xlu0 %v244, 56
    %v4380 = vpop.permute.xlu0 %4379
    %4381 = vrot.lane.b32.xlu0 %v245, 56
    %v4382 = vpop.permute.xlu0 %4381
    %4383 = vrot.lane.b32.xlu0 %v246, 56
    %v4384 = vpop.permute.xlu0 %4383
    %4385 = vrot.lane.b32.xlu0 %v247, 56
    %v4386 = vpop.permute.xlu0 %4385
    %4387 = vrot.lane.b32.xlu0 %v250, 56
    %v4388 = vpop.permute.xlu0 %4387
    %4389 = vrot.lane.b32.xlu0 %v251, 56
    %v4390 = vpop.permute.xlu0 %4389
    %4391 = vrot.lane.b32.xlu0 %v252, 56
    %v4392 = vpop.permute.xlu0 %4391
    %4393 = vrot.lane.b32.xlu0 %v253, 56
    %v4394 = vpop.permute.xlu0 %4393
    %4395 = vrot.lane.b32.xlu0 %v254, 56
    %v4396 = vpop.permute.xlu0 %4395
    %4397 = vrot.lane.b32.xlu0 %v255, 56
    %v4398 = vpop.permute.xlu0 %4397
    %4399 = vrot.lane.b32.xlu0 %v256, 56
    %v4400 = vpop.permute.xlu0 %4399
    %4401 = vrot.lane.b32.xlu0 %v257, 56
    %v4402 = vpop.permute.xlu0 %4401
    %4403 = vrot.lane.b32.xlu0 %v258, 56
    %v4404 = vpop.permute.xlu0 %4403
    %4405 = vrot.lane.b32.xlu0 %v259, 56
    %v4406 = vpop.permute.xlu0 %4405
    %4407 = vrot.lane.b32.xlu0 %v260, 56
    %v4408 = vpop.permute.xlu0 %4407
    %4409 = vrot.lane.b32.xlu0 %v261, 56
    %v4410 = vpop.permute.xlu0 %4409
    %4411 = vrot.lane.b32.xlu0 %v262, 56
    %v4412 = vpop.permute.xlu0 %4411
    %4413 = vrot.lane.b32.xlu0 %v263, 56
    %v4414 = vpop.permute.xlu0 %4413
    %4415 = vrot.lane.b32.xlu0 %v266, 56
    %v4416 = vpop.permute.xlu0 %4415
    %4417 = vrot.lane.b32.xlu0 %v267, 56
    %v4418 = vpop.permute.xlu0 %4417
    %4419 = vrot.lane.b32.xlu0 %v268, 56
    %v4420 = vpop.permute.xlu0 %4419
    %4421 = vrot.lane.b32.xlu0 %v269, 56
    %v4422 = vpop.permute.xlu0 %4421
    %4423 = vrot.lane.b32.xlu0 %v270, 56
    %v4424 = vpop.permute.xlu0 %4423
    %4425 = vrot.lane.b32.xlu0 %v271, 56
    %v4426 = vpop.permute.xlu0 %4425
    %4427 = vrot.lane.b32.xlu0 %v272, 56
    %v4428 = vpop.permute.xlu0 %4427
    %4429 = vrot.lane.b32.xlu0 %v273, 56
    %v4430 = vpop.permute.xlu0 %4429
    %4431 = vrot.lane.b32.xlu0 %v274, 56
    %v4432 = vpop.permute.xlu0 %4431
    %4433 = vrot.lane.b32.xlu0 %v275, 56
    %v4434 = vpop.permute.xlu0 %4433
    %4435 = vrot.lane.b32.xlu0 %v276, 56
    %v4436 = vpop.permute.xlu0 %4435
    %4437 = vrot.lane.b32.xlu0 %v277, 56
    %v4438 = vpop.permute.xlu0 %4437
    %4439 = vrot.lane.b32.xlu0 %v278, 56
    %v4440 = vpop.permute.xlu0 %4439
    %4441 = vrot.lane.b32.xlu0 %v279, 56
    %v4442 = vpop.permute.xlu0 %4441
    %4443 = vrot.lane.b32.xlu0 %v282, 56
    %v4444 = vpop.permute.xlu0 %4443
    %4445 = vrot.lane.b32.xlu0 %v283, 56
    %v4446 = vpop.permute.xlu0 %4445
    %4447 = vrot.lane.b32.xlu0 %v284, 56
    %v4448 = vpop.permute.xlu0 %4447
    %4449 = vrot.lane.b32.xlu0 %v285, 56
    %v4450 = vpop.permute.xlu0 %4449
    %4451 = vrot.lane.b32.xlu0 %v286, 56
    %v4452 = vpop.permute.xlu0 %4451
    %4453 = vrot.lane.b32.xlu0 %v287, 56
    %v4454 = vpop.permute.xlu0 %4453
    %4455 = vrot.lane.b32.xlu0 %v288, 56
    %v4456 = vpop.permute.xlu0 %4455
    %4457 = vrot.lane.b32.xlu0 %v289, 56
    %v4458 = vpop.permute.xlu0 %4457
    %4459 = vrot.lane.b32.xlu0 %v290, 56
    %v4460 = vpop.permute.xlu0 %4459
    %4461 = vrot.lane.b32.xlu0 %v291, 56
    %v4462 = vpop.permute.xlu0 %4461
    %4463 = vrot.lane.b32.xlu0 %v292, 56
    %v4464 = vpop.permute.xlu0 %4463
    %4465 = vrot.lane.b32.xlu0 %v293, 56
    %v4466 = vpop.permute.xlu0 %4465
    %4467 = vrot.lane.b32.xlu0 %v294, 56
    %v4468 = vpop.permute.xlu0 %4467
    %4469 = vrot.lane.b32.xlu0 %v295, 56
    %v4470 = vpop.permute.xlu0 %4469
    %4668 = vrot.lane.b32.xlu0 %v75, 64
    %v4669 = vpop.permute.xlu0 %4668
    %4670 = vrot.lane.b32.xlu0 %v76, 64
    %v4671 = vpop.permute.xlu0 %4670
    %4672 = vrot.lane.b32.xlu0 %v77, 64
    %v4673 = vpop.permute.xlu0 %4672
    %4674 = vrot.lane.b32.xlu0 %v78, 64
    %v4675 = vpop.permute.xlu0 %4674
    %4676 = vrot.lane.b32.xlu0 %v79, 64
    %v4677 = vpop.permute.xlu0 %4676
    %4678 = vrot.lane.b32.xlu0 %v80, 64
    %v4679 = vpop.permute.xlu0 %4678
    %4680 = vrot.lane.b32.xlu0 %v81, 64
    %v4681 = vpop.permute.xlu0 %4680
    %4682 = vrot.lane.b32.xlu0 %v82, 64
    %v4683 = vpop.permute.xlu0 %4682
    %4684 = vrot.lane.b32.xlu0 %v83, 64
    %v4685 = vpop.permute.xlu0 %4684
    %4686 = vrot.lane.b32.xlu0 %v84, 64
    %v4687 = vpop.permute.xlu0 %4686
    %4688 = vrot.lane.b32.xlu0 %v85, 64
    %v4689 = vpop.permute.xlu0 %4688
    %4690 = vrot.lane.b32.xlu0 %v86, 64
    %v4691 = vpop.permute.xlu0 %4690
    %4692 = vrot.lane.b32.xlu0 %v87, 64
    %v4693 = vpop.permute.xlu0 %4692
    %4694 = vrot.lane.b32.xlu0 %v88, 64
    %v4695 = vpop.permute.xlu0 %4694
    %4696 = vrot.lane.b32.xlu0 %v91, 64
    %v4697 = vpop.permute.xlu0 %4696
    %4698 = vrot.lane.b32.xlu0 %v92, 64
    %v4699 = vpop.permute.xlu0 %4698
    %4700 = vrot.lane.b32.xlu0 %v93, 64
    %v4701 = vpop.permute.xlu0 %4700
    %4702 = vrot.lane.b32.xlu0 %v94, 64
    %v4703 = vpop.permute.xlu0 %4702
    %4704 = vrot.lane.b32.xlu0 %v95, 64
    %v4705 = vpop.permute.xlu0 %4704
    %4706 = vrot.lane.b32.xlu0 %v96, 64
    %v4707 = vpop.permute.xlu0 %4706
    %4708 = vrot.lane.b32.xlu0 %v97, 64
    %v4709 = vpop.permute.xlu0 %4708
    %4710 = vrot.lane.b32.xlu0 %v98, 64
    %v4711 = vpop.permute.xlu0 %4710
    %4712 = vrot.lane.b32.xlu0 %v99, 64
    %v4713 = vpop.permute.xlu0 %4712
    %4714 = vrot.lane.b32.xlu0 %v100, 64
    %v4715 = vpop.permute.xlu0 %4714
    %4716 = vrot.lane.b32.xlu0 %v101, 64
    %v4717 = vpop.permute.xlu0 %4716
    %4718 = vrot.lane.b32.xlu0 %v102, 64
    %v4719 = vpop.permute.xlu0 %4718
    %4720 = vrot.lane.b32.xlu0 %v103, 64
    %v4721 = vpop.permute.xlu0 %4720
    %4722 = vrot.lane.b32.xlu0 %v104, 64
    %v4723 = vpop.permute.xlu0 %4722
    %4724 = vrot.lane.b32.xlu0 %v107, 64
    %v4725 = vpop.permute.xlu0 %4724
    %4726 = vrot.lane.b32.xlu0 %v108, 64
    %v4727 = vpop.permute.xlu0 %4726
    %4728 = vrot.lane.b32.xlu0 %v109, 64
    %v4729 = vpop.permute.xlu0 %4728
    %4730 = vrot.lane.b32.xlu0 %v110, 64
    %v4731 = vpop.permute.xlu0 %4730
    %4732 = vrot.lane.b32.xlu0 %v111, 64
    %v4733 = vpop.permute.xlu0 %4732
    %4734 = vrot.lane.b32.xlu0 %v112, 64
    %v4735 = vpop.permute.xlu0 %4734
    %4736 = vrot.lane.b32.xlu0 %v113, 64
    %v4737 = vpop.permute.xlu0 %4736
    %4738 = vrot.lane.b32.xlu0 %v114, 64
    %v4739 = vpop.permute.xlu0 %4738
    %4740 = vrot.lane.b32.xlu0 %v115, 64
    %v4741 = vpop.permute.xlu0 %4740
    %4742 = vrot.lane.b32.xlu0 %v116, 64
    %v4743 = vpop.permute.xlu0 %4742
    %4744 = vrot.lane.b32.xlu0 %v117, 64
    %v4745 = vpop.permute.xlu0 %4744
    %4746 = vrot.lane.b32.xlu0 %v118, 64
    %v4747 = vpop.permute.xlu0 %4746
    %4748 = vrot.lane.b32.xlu0 %v119, 64
    %v4749 = vpop.permute.xlu0 %4748
    %4750 = vrot.lane.b32.xlu0 %v120, 64
    %v4751 = vpop.permute.xlu0 %4750
    %4752 = vrot.lane.b32.xlu0 %v123, 64
    %v4753 = vpop.permute.xlu0 %4752
    %4754 = vrot.lane.b32.xlu0 %v124, 64
    %v4755 = vpop.permute.xlu0 %4754
    %4756 = vrot.lane.b32.xlu0 %v125, 64
    %v4757 = vpop.permute.xlu0 %4756
    %4758 = vrot.lane.b32.xlu0 %v126, 64
    %v4759 = vpop.permute.xlu0 %4758
    %4760 = vrot.lane.b32.xlu0 %v127, 64
    %v4761 = vpop.permute.xlu0 %4760
    %4762 = vrot.lane.b32.xlu0 %v128, 64
    %v4763 = vpop.permute.xlu0 %4762
    %4764 = vrot.lane.b32.xlu0 %v129, 64
    %v4765 = vpop.permute.xlu0 %4764
    %4766 = vrot.lane.b32.xlu0 %v130, 64
    %v4767 = vpop.permute.xlu0 %4766
    %4768 = vrot.lane.b32.xlu0 %v131, 64
    %v4769 = vpop.permute.xlu0 %4768
    %4770 = vrot.lane.b32.xlu0 %v132, 64
    %v4771 = vpop.permute.xlu0 %4770
    %4772 = vrot.lane.b32.xlu0 %v133, 64
    %v4773 = vpop.permute.xlu0 %4772
    %4774 = vrot.lane.b32.xlu0 %v134, 64
    %v4775 = vpop.permute.xlu0 %4774
    %4776 = vrot.lane.b32.xlu0 %v135, 64
    %v4777 = vpop.permute.xlu0 %4776
    %4778 = vrot.lane.b32.xlu0 %v136, 64
    %v4779 = vpop.permute.xlu0 %4778
    %4780 = vrot.lane.b32.xlu0 %v139, 64
    %v4781 = vpop.permute.xlu0 %4780
    %4782 = vrot.lane.b32.xlu0 %v140, 64
    %v4783 = vpop.permute.xlu0 %4782
    %4784 = vrot.lane.b32.xlu0 %v141, 64
    %v4785 = vpop.permute.xlu0 %4784
    %4786 = vrot.lane.b32.xlu0 %v142, 64
    %v4787 = vpop.permute.xlu0 %4786
    %4788 = vrot.lane.b32.xlu0 %v143, 64
    %v4789 = vpop.permute.xlu0 %4788
    %4790 = vrot.lane.b32.xlu0 %v144, 64
    %v4791 = vpop.permute.xlu0 %4790
    %4792 = vrot.lane.b32.xlu0 %v145, 64
    %v4793 = vpop.permute.xlu0 %4792
    %4794 = vrot.lane.b32.xlu0 %v146, 64
    %v4795 = vpop.permute.xlu0 %4794
    %4796 = vrot.lane.b32.xlu0 %v147, 64
    %v4797 = vpop.permute.xlu0 %4796
    %4798 = vrot.lane.b32.xlu0 %v148, 64
    %v4799 = vpop.permute.xlu0 %4798
    %4800 = vrot.lane.b32.xlu0 %v149, 64
    %v4801 = vpop.permute.xlu0 %4800
    %4802 = vrot.lane.b32.xlu0 %v150, 64
    %v4803 = vpop.permute.xlu0 %4802
    %4804 = vrot.lane.b32.xlu0 %v151, 64
    %v4805 = vpop.permute.xlu0 %4804
    %4806 = vrot.lane.b32.xlu0 %v152, 64
    %v4807 = vpop.permute.xlu0 %4806
    %4808 = vrot.lane.b32.xlu0 %v155, 64
    %v4809 = vpop.permute.xlu0 %4808
    %4810 = vrot.lane.b32.xlu0 %v156, 64
    %v4811 = vpop.permute.xlu0 %4810
    %4812 = vrot.lane.b32.xlu0 %v157, 64
    %v4813 = vpop.permute.xlu0 %4812
    %4814 = vrot.lane.b32.xlu0 %v158, 64
    %v4815 = vpop.permute.xlu0 %4814
    %4816 = vrot.lane.b32.xlu0 %v159, 64
    %v4817 = vpop.permute.xlu0 %4816
    %4818 = vrot.lane.b32.xlu0 %v160, 64
    %v4819 = vpop.permute.xlu0 %4818
    %4820 = vrot.lane.b32.xlu0 %v161, 64
    %v4821 = vpop.permute.xlu0 %4820
    %4822 = vrot.lane.b32.xlu0 %v162, 64
    %v4823 = vpop.permute.xlu0 %4822
    %4824 = vrot.lane.b32.xlu0 %v163, 64
    %v4825 = vpop.permute.xlu0 %4824
    %4826 = vrot.lane.b32.xlu0 %v164, 64
    %v4827 = vpop.permute.xlu0 %4826
    %4828 = vrot.lane.b32.xlu0 %v165, 64
    %v4829 = vpop.permute.xlu0 %4828
    %4830 = vrot.lane.b32.xlu0 %v166, 64
    %v4831 = vpop.permute.xlu0 %4830
    %4832 = vrot.lane.b32.xlu0 %v167, 64
    %v4833 = vpop.permute.xlu0 %4832
    %4834 = vrot.lane.b32.xlu0 %v168, 64
    %v4835 = vpop.permute.xlu0 %4834
    %4836 = vrot.lane.b32.xlu0 %v171, 64
    %v4837 = vpop.permute.xlu0 %4836
    %4838 = vrot.lane.b32.xlu0 %v172, 64
    %v4839 = vpop.permute.xlu0 %4838
    %4840 = vrot.lane.b32.xlu0 %v173, 64
    %v4841 = vpop.permute.xlu0 %4840
    %4842 = vrot.lane.b32.xlu0 %v174, 64
    %v4843 = vpop.permute.xlu0 %4842
    %4844 = vrot.lane.b32.xlu0 %v175, 64
    %v4845 = vpop.permute.xlu0 %4844
    %4846 = vrot.lane.b32.xlu0 %v176, 64
    %v4847 = vpop.permute.xlu0 %4846
    %4848 = vrot.lane.b32.xlu0 %v177, 64
    %v4849 = vpop.permute.xlu0 %4848
    %4850 = vrot.lane.b32.xlu0 %v178, 64
    %v4851 = vpop.permute.xlu0 %4850
    %4852 = vrot.lane.b32.xlu0 %v179, 64
    %v4853 = vpop.permute.xlu0 %4852
    %4854 = vrot.lane.b32.xlu0 %v180, 64
    %v4855 = vpop.permute.xlu0 %4854
    %4856 = vrot.lane.b32.xlu0 %v181, 64
    %v4857 = vpop.permute.xlu0 %4856
    %4858 = vrot.lane.b32.xlu0 %v182, 64
    %v4859 = vpop.permute.xlu0 %4858
    %4860 = vrot.lane.b32.xlu0 %v183, 64
    %v4861 = vpop.permute.xlu0 %4860
    %4862 = vrot.lane.b32.xlu0 %v184, 64
    %v4863 = vpop.permute.xlu0 %4862
    %4864 = vrot.lane.b32.xlu0 %v187, 64
    %v4865 = vpop.permute.xlu0 %4864
    %4866 = vrot.lane.b32.xlu0 %v188, 64
    %v4867 = vpop.permute.xlu0 %4866
    %4868 = vrot.lane.b32.xlu0 %v189, 64
    %v4869 = vpop.permute.xlu0 %4868
    %4870 = vrot.lane.b32.xlu0 %v190, 64
    %v4871 = vpop.permute.xlu0 %4870
    %4872 = vrot.lane.b32.xlu0 %v191, 64
    %v4873 = vpop.permute.xlu0 %4872
    %4874 = vrot.lane.b32.xlu0 %v192, 64
    %v4875 = vpop.permute.xlu0 %4874
    %4876 = vrot.lane.b32.xlu0 %v193, 64
    %v4877 = vpop.permute.xlu0 %4876
    %4878 = vrot.lane.b32.xlu0 %v194, 64
    %v4879 = vpop.permute.xlu0 %4878
    %4880 = vrot.lane.b32.xlu0 %v195, 64
    %v4881 = vpop.permute.xlu0 %4880
    %4882 = vrot.lane.b32.xlu0 %v196, 64
    %v4883 = vpop.permute.xlu0 %4882
    %4884 = vrot.lane.b32.xlu0 %v197, 64
    %v4885 = vpop.permute.xlu0 %4884
    %4886 = vrot.lane.b32.xlu0 %v198, 64
    %v4887 = vpop.permute.xlu0 %4886
    %4888 = vrot.lane.b32.xlu0 %v199, 64
    %v4889 = vpop.permute.xlu0 %4888
    %4890 = vrot.lane.b32.xlu0 %v200, 64
    %v4891 = vpop.permute.xlu0 %4890
    %4892 = vrot.lane.b32.xlu0 %v203, 64
    %v4893 = vpop.permute.xlu0 %4892
    %4894 = vrot.lane.b32.xlu0 %v204, 64
    %v4895 = vpop.permute.xlu0 %4894
    %4896 = vrot.lane.b32.xlu0 %v205, 64
    %v4897 = vpop.permute.xlu0 %4896
    %4898 = vrot.lane.b32.xlu0 %v206, 64
    %v4899 = vpop.permute.xlu0 %4898
    %4900 = vrot.lane.b32.xlu0 %v207, 64
    %v4901 = vpop.permute.xlu0 %4900
    %4902 = vrot.lane.b32.xlu0 %v208, 64
    %v4903 = vpop.permute.xlu0 %4902
    %4904 = vrot.lane.b32.xlu0 %v209, 64
    %v4905 = vpop.permute.xlu0 %4904
    %4906 = vrot.lane.b32.xlu0 %v210, 64
    %v4907 = vpop.permute.xlu0 %4906
    %4908 = vrot.lane.b32.xlu0 %v211, 64
    %v4909 = vpop.permute.xlu0 %4908
    %4910 = vrot.lane.b32.xlu0 %v212, 64
    %v4911 = vpop.permute.xlu0 %4910
    %4912 = vrot.lane.b32.xlu0 %v213, 64
    %v4913 = vpop.permute.xlu0 %4912
    %4914 = vrot.lane.b32.xlu0 %v214, 64
    %v4915 = vpop.permute.xlu0 %4914
    %4916 = vrot.lane.b32.xlu0 %v215, 64
    %v4917 = vpop.permute.xlu0 %4916
    %4918 = vrot.lane.b32.xlu0 %v216, 64
    %v4919 = vpop.permute.xlu0 %4918
    %4920 = vrot.lane.b32.xlu0 %v219, 64
    %v4921 = vpop.permute.xlu0 %4920
    %4922 = vrot.lane.b32.xlu0 %v220, 64
    %v4923 = vpop.permute.xlu0 %4922
    %4924 = vrot.lane.b32.xlu0 %v221, 64
    %v4925 = vpop.permute.xlu0 %4924
    %4926 = vrot.lane.b32.xlu0 %v222, 64
    %v4927 = vpop.permute.xlu0 %4926
    %4928 = vrot.lane.b32.xlu0 %v223, 64
    %v4929 = vpop.permute.xlu0 %4928
    %4930 = vrot.lane.b32.xlu0 %v224, 64
    %v4931 = vpop.permute.xlu0 %4930
    %4932 = vrot.lane.b32.xlu0 %v225, 64
    %v4933 = vpop.permute.xlu0 %4932
    %4934 = vrot.lane.b32.xlu0 %v226, 64
    %v4935 = vpop.permute.xlu0 %4934
    %4936 = vrot.lane.b32.xlu0 %v227, 64
    %v4937 = vpop.permute.xlu0 %4936
    %4938 = vrot.lane.b32.xlu0 %v228, 64
    %v4939 = vpop.permute.xlu0 %4938
    %4940 = vrot.lane.b32.xlu0 %v229, 64
    %v4941 = vpop.permute.xlu0 %4940
    %4942 = vrot.lane.b32.xlu0 %v230, 64
    %v4943 = vpop.permute.xlu0 %4942
    %4944 = vrot.lane.b32.xlu0 %v231, 64
    %v4945 = vpop.permute.xlu0 %4944
    %4946 = vrot.lane.b32.xlu0 %v232, 64
    %v4947 = vpop.permute.xlu0 %4946
    %4948 = vrot.lane.b32.xlu0 %v235, 64
    %v4949 = vpop.permute.xlu0 %4948
    %4950 = vrot.lane.b32.xlu0 %v236, 64
    %v4951 = vpop.permute.xlu0 %4950
    %4952 = vrot.lane.b32.xlu0 %v237, 64
    %v4953 = vpop.permute.xlu0 %4952
    %4954 = vrot.lane.b32.xlu0 %v238, 64
    %v4955 = vpop.permute.xlu0 %4954
    %4956 = vrot.lane.b32.xlu0 %v239, 64
    %v4957 = vpop.permute.xlu0 %4956
    %4958 = vrot.lane.b32.xlu0 %v240, 64
    %v4959 = vpop.permute.xlu0 %4958
    %4960 = vrot.lane.b32.xlu0 %v241, 64
    %v4961 = vpop.permute.xlu0 %4960
    %4962 = vrot.lane.b32.xlu0 %v242, 64
    %v4963 = vpop.permute.xlu0 %4962
    %4964 = vrot.lane.b32.xlu0 %v243, 64
    %v4965 = vpop.permute.xlu0 %4964
    %4966 = vrot.lane.b32.xlu0 %v244, 64
    %v4967 = vpop.permute.xlu0 %4966
    %4968 = vrot.lane.b32.xlu0 %v245, 64
    %v4969 = vpop.permute.xlu0 %4968
    %4970 = vrot.lane.b32.xlu0 %v246, 64
    %v4971 = vpop.permute.xlu0 %4970
    %4972 = vrot.lane.b32.xlu0 %v247, 64
    %v4973 = vpop.permute.xlu0 %4972
    %4974 = vrot.lane.b32.xlu0 %v248, 64
    %v4975 = vpop.permute.xlu0 %4974
    %4976 = vrot.lane.b32.xlu0 %v251, 64
    %v4977 = vpop.permute.xlu0 %4976
    %4978 = vrot.lane.b32.xlu0 %v252, 64
    %v4979 = vpop.permute.xlu0 %4978
    %4980 = vrot.lane.b32.xlu0 %v253, 64
    %v4981 = vpop.permute.xlu0 %4980
    %4982 = vrot.lane.b32.xlu0 %v254, 64
    %v4983 = vpop.permute.xlu0 %4982
    %4984 = vrot.lane.b32.xlu0 %v255, 64
    %v4985 = vpop.permute.xlu0 %4984
    %4986 = vrot.lane.b32.xlu0 %v256, 64
    %v4987 = vpop.permute.xlu0 %4986
    %4988 = vrot.lane.b32.xlu0 %v257, 64
    %v4989 = vpop.permute.xlu0 %4988
    %4990 = vrot.lane.b32.xlu0 %v258, 64
    %v4991 = vpop.permute.xlu0 %4990
    %4992 = vrot.lane.b32.xlu0 %v259, 64
    %v4993 = vpop.permute.xlu0 %4992
    %4994 = vrot.lane.b32.xlu0 %v260, 64
    %v4995 = vpop.permute.xlu0 %4994
    %4996 = vrot.lane.b32.xlu0 %v261, 64
    %v4997 = vpop.permute.xlu0 %4996
    %4998 = vrot.lane.b32.xlu0 %v262, 64
    %v4999 = vpop.permute.xlu0 %4998
    %5000 = vrot.lane.b32.xlu0 %v263, 64
    %v5001 = vpop.permute.xlu0 %5000
    %5002 = vrot.lane.b32.xlu0 %v264, 64
    %v5003 = vpop.permute.xlu0 %5002
    %5004 = vrot.lane.b32.xlu0 %v267, 64
    %v5005 = vpop.permute.xlu0 %5004
    %5006 = vrot.lane.b32.xlu0 %v268, 64
    %v5007 = vpop.permute.xlu0 %5006
    %5008 = vrot.lane.b32.xlu0 %v269, 64
    %v5009 = vpop.permute.xlu0 %5008
    %5010 = vrot.lane.b32.xlu0 %v270, 64
    %v5011 = vpop.permute.xlu0 %5010
    %5012 = vrot.lane.b32.xlu0 %v271, 64
    %v5013 = vpop.permute.xlu0 %5012
    %5014 = vrot.lane.b32.xlu0 %v272, 64
    %v5015 = vpop.permute.xlu0 %5014
    %5016 = vrot.lane.b32.xlu0 %v273, 64
    %v5017 = vpop.permute.xlu0 %5016
    %5018 = vrot.lane.b32.xlu0 %v274, 64
    %v5019 = vpop.permute.xlu0 %5018
    %5020 = vrot.lane.b32.xlu0 %v275, 64
    %v5021 = vpop.permute.xlu0 %5020
    %5022 = vrot.lane.b32.xlu0 %v276, 64
    %v5023 = vpop.permute.xlu0 %5022
    %5024 = vrot.lane.b32.xlu0 %v277, 64
    %v5025 = vpop.permute.xlu0 %5024
    %5026 = vrot.lane.b32.xlu0 %v278, 64
    %v5027 = vpop.permute.xlu0 %5026
    %5028 = vrot.lane.b32.xlu0 %v279, 64
    %v5029 = vpop.permute.xlu0 %5028
    %5030 = vrot.lane.b32.xlu0 %v280, 64
    %v5031 = vpop.permute.xlu0 %5030
    %5032 = vrot.lane.b32.xlu0 %v283, 64
    %v5033 = vpop.permute.xlu0 %5032
    %5034 = vrot.lane.b32.xlu0 %v284, 64
    %v5035 = vpop.permute.xlu0 %5034
    %5036 = vrot.lane.b32.xlu0 %v285, 64
    %v5037 = vpop.permute.xlu0 %5036
    %5038 = vrot.lane.b32.xlu0 %v286, 64
    %v5039 = vpop.permute.xlu0 %5038
    %5040 = vrot.lane.b32.xlu0 %v287, 64
    %v5041 = vpop.permute.xlu0 %5040
    %5042 = vrot.lane.b32.xlu0 %v288, 64
    %v5043 = vpop.permute.xlu0 %5042
    %5044 = vrot.lane.b32.xlu0 %v289, 64
    %v5045 = vpop.permute.xlu0 %5044
    %5046 = vrot.lane.b32.xlu0 %v290, 64
    %v5047 = vpop.permute.xlu0 %5046
    %5048 = vrot.lane.b32.xlu0 %v291, 64
    %v5049 = vpop.permute.xlu0 %5048
    %5050 = vrot.lane.b32.xlu0 %v292, 64
    %v5051 = vpop.permute.xlu0 %5050
    %5052 = vrot.lane.b32.xlu0 %v293, 64
    %v5053 = vpop.permute.xlu0 %5052
    %5054 = vrot.lane.b32.xlu0 %v294, 64
    %v5055 = vpop.permute.xlu0 %5054
    %5056 = vrot.lane.b32.xlu0 %v295, 64
    %v5057 = vpop.permute.xlu0 %5056
    %5058 = vrot.lane.b32.xlu0 %v296, 64
    %v5059 = vpop.permute.xlu0 %5058
    %vm5256 = vcmask 64512
    %v5257 = vsel %vm5256, %v41, %v494
    %v5258 = vsel %vm5256, %v42, %v496
    %v5259 = vsel %vm5256, %v43, %v498
    %v5260 = vsel %vm5256, %v44, %v500
    %v5261 = vsel %vm5256, %v45, %v502
    %v5262 = vsel %vm5256, %v46, %v504
    %v5263 = vsel %vm5256, %v47, %v506
    %v5264 = vsel %vm5256, %v48, %v508
    %v5265 = vsel %vm5256, %v49, %v510
    %v5266 = vsel %vm5256, %v50, %v512
    %v5267 = vsel %vm5256, %v51, %v514
    %v5268 = vsel %vm5256, %v52, %v516
    %v5269 = vsel %vm5256, %v53, %v518
    %v5270 = vsel %vm5256, %v54, %v520
    %v5271 = vsel %vm5256, %v57, %v522
    %v5272 = vsel %vm5256, %v58, %v524
    %v5273 = vsel %vm5256, %v59, %v526
    %v5274 = vsel %vm5256, %v60, %v528
    %v5275 = vsel %vm5256, %v61, %v530
    %v5276 = vsel %vm5256, %v62, %v532
    %v5277 = vsel %vm5256, %v63, %v534
    %v5278 = vsel %vm5256, %v64, %v536
    %v5279 = vsel %vm5256, %v65, %v538
    %v5280 = vsel %vm5256, %v66, %v540
    %v5281 = vsel %vm5256, %v67, %v542
    %v5282 = vsel %vm5256, %v68, %v544
    %v5283 = vsel %vm5256, %v69, %v546
    %v5284 = vsel %vm5256, %v70, %v548
    %v5285 = vsel %vm5256, %v73, %v550
    %v5286 = vsel %vm5256, %v74, %v552
    %v5287 = vsel %vm5256, %v75, %v554
    %v5288 = vsel %vm5256, %v76, %v556
    %v5289 = vsel %vm5256, %v77, %v558
    %v5290 = vsel %vm5256, %v78, %v560
    %v5291 = vsel %vm5256, %v79, %v562
    %v5292 = vsel %vm5256, %v80, %v564
    %v5293 = vsel %vm5256, %v81, %v566
    %v5294 = vsel %vm5256, %v82, %v568
    %v5295 = vsel %vm5256, %v83, %v570
    %v5296 = vsel %vm5256, %v84, %v572
    %v5297 = vsel %vm5256, %v85, %v574
    %v5298 = vsel %vm5256, %v86, %v576
    %v5299 = vsel %vm5256, %v89, %v578
    %v5300 = vsel %vm5256, %v90, %v580
    %v5301 = vsel %vm5256, %v91, %v582
    %v5302 = vsel %vm5256, %v92, %v584
    %v5303 = vsel %vm5256, %v93, %v586
    %v5304 = vsel %vm5256, %v94, %v588
    %v5305 = vsel %vm5256, %v95, %v590
    %v5306 = vsel %vm5256, %v96, %v592
    %v5307 = vsel %vm5256, %v97, %v594
    %v5308 = vsel %vm5256, %v98, %v596
    %v5309 = vsel %vm5256, %v99, %v598
    %v5310 = vsel %vm5256, %v100, %v600
    %v5311 = vsel %vm5256, %v101, %v602
    %v5312 = vsel %vm5256, %v102, %v604
    %v5313 = vsel %vm5256, %v105, %v606
    %v5314 = vsel %vm5256, %v106, %v608
    %v5315 = vsel %vm5256, %v107, %v610
    %v5316 = vsel %vm5256, %v108, %v612
    %v5317 = vsel %vm5256, %v109, %v614
    %v5318 = vsel %vm5256, %v110, %v616
    %v5319 = vsel %vm5256, %v111, %v618
    %v5320 = vsel %vm5256, %v112, %v620
    %v5321 = vsel %vm5256, %v113, %v622
    %v5322 = vsel %vm5256, %v114, %v624
    %v5323 = vsel %vm5256, %v115, %v626
    %v5324 = vsel %vm5256, %v116, %v628
    %v5325 = vsel %vm5256, %v117, %v630
    %v5326 = vsel %vm5256, %v118, %v632
    %v5327 = vsel %vm5256, %v121, %v634
    %v5328 = vsel %vm5256, %v122, %v636
    %v5329 = vsel %vm5256, %v123, %v638
    %v5330 = vsel %vm5256, %v124, %v640
    %v5331 = vsel %vm5256, %v125, %v642
    %v5332 = vsel %vm5256, %v126, %v644
    %v5333 = vsel %vm5256, %v127, %v646
    %v5334 = vsel %vm5256, %v128, %v648
    %v5335 = vsel %vm5256, %v129, %v650
    %v5336 = vsel %vm5256, %v130, %v652
    %v5337 = vsel %vm5256, %v131, %v654
    %v5338 = vsel %vm5256, %v132, %v656
    %v5339 = vsel %vm5256, %v133, %v658
    %v5340 = vsel %vm5256, %v134, %v660
    %v5341 = vsel %vm5256, %v137, %v662
    %v5342 = vsel %vm5256, %v138, %v664
    %v5343 = vsel %vm5256, %v139, %v666
    %v5344 = vsel %vm5256, %v140, %v668
    %v5345 = vsel %vm5256, %v141, %v670
    %v5346 = vsel %vm5256, %v142, %v672
    %v5347 = vsel %vm5256, %v143, %v674
    %v5348 = vsel %vm5256, %v144, %v676
    %v5349 = vsel %vm5256, %v145, %v678
    %v5350 = vsel %vm5256, %v146, %v680
    %v5351 = vsel %vm5256, %v147, %v682
    %v5352 = vsel %vm5256, %v148, %v684
    %v5353 = vsel %vm5256, %v149, %v686
    %v5354 = vsel %vm5256, %v150, %v688
    %v5355 = vsel %vm5256, %v153, %v690
    %v5356 = vsel %vm5256, %v154, %v692
    %v5357 = vsel %vm5256, %v155, %v694
    %v5358 = vsel %vm5256, %v156, %v696
    %v5359 = vsel %vm5256, %v157, %v698
    %v5360 = vsel %vm5256, %v158, %v700
    %v5361 = vsel %vm5256, %v159, %v702
    %v5362 = vsel %vm5256, %v160, %v704
    %v5363 = vsel %vm5256, %v161, %v706
    %v5364 = vsel %vm5256, %v162, %v708
    %v5365 = vsel %vm5256, %v163, %v710
    %v5366 = vsel %vm5256, %v164, %v712
    %v5367 = vsel %vm5256, %v165, %v714
    %v5368 = vsel %vm5256, %v166, %v716
    %v5369 = vsel %vm5256, %v169, %v718
    %v5370 = vsel %vm5256, %v170, %v720
    %v5371 = vsel %vm5256, %v171, %v722
    %v5372 = vsel %vm5256, %v172, %v724
    %v5373 = vsel %vm5256, %v173, %v726
    %v5374 = vsel %vm5256, %v174, %v728
    %v5375 = vsel %vm5256, %v175, %v730
    %v5376 = vsel %vm5256, %v176, %v732
    %v5377 = vsel %vm5256, %v177, %v734
    %v5378 = vsel %vm5256, %v178, %v736
    %v5379 = vsel %vm5256, %v179, %v738
    %v5380 = vsel %vm5256, %v180, %v740
    %v5381 = vsel %vm5256, %v181, %v742
    %v5382 = vsel %vm5256, %v182, %v744
    %v5383 = vsel %vm5256, %v185, %v746
    %v5384 = vsel %vm5256, %v186, %v748
    %v5385 = vsel %vm5256, %v187, %v750
    %v5386 = vsel %vm5256, %v188, %v752
    %v5387 = vsel %vm5256, %v189, %v754
    %v5388 = vsel %vm5256, %v190, %v756
    %v5389 = vsel %vm5256, %v191, %v758
    %v5390 = vsel %vm5256, %v192, %v760
    %v5391 = vsel %vm5256, %v193, %v762
    %v5392 = vsel %vm5256, %v194, %v764
    %v5393 = vsel %vm5256, %v195, %v766
    %v5394 = vsel %vm5256, %v196, %v768
    %v5395 = vsel %vm5256, %v197, %v770
    %v5396 = vsel %vm5256, %v198, %v772
    %v5397 = vsel %vm5256, %v201, %v774
    %v5398 = vsel %vm5256, %v202, %v776
    %v5399 = vsel %vm5256, %v203, %v778
    %v5400 = vsel %vm5256, %v204, %v780
    %v5401 = vsel %vm5256, %v205, %v782
    %v5402 = vsel %vm5256, %v206, %v784
    %v5403 = vsel %vm5256, %v207, %v786
    %v5404 = vsel %vm5256, %v208, %v788
    %v5405 = vsel %vm5256, %v209, %v790
    %v5406 = vsel %vm5256, %v210, %v792
    %v5407 = vsel %vm5256, %v211, %v794
    %v5408 = vsel %vm5256, %v212, %v796
    %v5409 = vsel %vm5256, %v213, %v798
    %v5410 = vsel %vm5256, %v214, %v800
    %v5411 = vsel %vm5256, %v217, %v802
    %v5412 = vsel %vm5256, %v218, %v804
    %v5413 = vsel %vm5256, %v219, %v806
    %v5414 = vsel %vm5256, %v220, %v808
    %v5415 = vsel %vm5256, %v221, %v810
    %v5416 = vsel %vm5256, %v222, %v812
    %v5417 = vsel %vm5256, %v223, %v814
    %v5418 = vsel %vm5256, %v224, %v816
    %v5419 = vsel %vm5256, %v225, %v818
    %v5420 = vsel %vm5256, %v226, %v820
    %v5421 = vsel %vm5256, %v227, %v822
    %v5422 = vsel %vm5256, %v228, %v824
    %v5423 = vsel %vm5256, %v229, %v826
    %v5424 = vsel %vm5256, %v230, %v828
    %v5425 = vsel %vm5256, %v233, %v830
    %v5426 = vsel %vm5256, %v234, %v832
    %v5427 = vsel %vm5256, %v235, %v834
    %v5428 = vsel %vm5256, %v236, %v836
    %v5429 = vsel %vm5256, %v237, %v838
    %v5430 = vsel %vm5256, %v238, %v840
    %v5431 = vsel %vm5256, %v239, %v842
    %v5432 = vsel %vm5256, %v240, %v844
    %v5433 = vsel %vm5256, %v241, %v846
    %v5434 = vsel %vm5256, %v242, %v848
    %v5435 = vsel %vm5256, %v243, %v850
    %v5436 = vsel %vm5256, %v244, %v852
    %v5437 = vsel %vm5256, %v245, %v854
    %v5438 = vsel %vm5256, %v246, %v856
    %v5439 = vsel %vm5256, %v249, %v858
    %v5440 = vsel %vm5256, %v250, %v860
    %v5441 = vsel %vm5256, %v251, %v862
    %v5442 = vsel %vm5256, %v252, %v864
    %v5443 = vsel %vm5256, %v253, %v866
    %v5444 = vsel %vm5256, %v254, %v868
    %v5445 = vsel %vm5256, %v255, %v870
    %v5446 = vsel %vm5256, %v256, %v872
    %v5447 = vsel %vm5256, %v257, %v874
    %v5448 = vsel %vm5256, %v258, %v876
    %v5449 = vsel %vm5256, %v259, %v878
    %v5450 = vsel %vm5256, %v260, %v880
    %v5451 = vsel %vm5256, %v261, %v882
    %v5452 = vsel %vm5256, %v262, %v884
    %vm5453 = vcmask 130048
    %v5454 = vsel %vm5453, %v5257, %v1096
    %v5455 = vsel %vm5453, %v5258, %v1098
    %v5456 = vsel %vm5453, %v5259, %v1100
    %v5457 = vsel %vm5453, %v5260, %v1102
    %v5458 = vsel %vm5453, %v5261, %v1104
    %v5459 = vsel %vm5453, %v5262, %v1106
    %v5460 = vsel %vm5453, %v5263, %v1108
    %v5461 = vsel %vm5453, %v5264, %v1110
    %v5462 = vsel %vm5453, %v5265, %v1112
    %v5463 = vsel %vm5453, %v5266, %v1114
    %v5464 = vsel %vm5453, %v5267, %v1116
    %v5465 = vsel %vm5453, %v5268, %v1118
    %v5466 = vsel %vm5453, %v5269, %v1120
    %v5467 = vsel %vm5453, %v5270, %v1122
    %v5468 = vsel %vm5453, %v5271, %v1124
    %v5469 = vsel %vm5453, %v5272, %v1126
    %v5470 = vsel %vm5453, %v5273, %v1128
    %v5471 = vsel %vm5453, %v5274, %v1130
    %v5472 = vsel %vm5453, %v5275, %v1132
    %v5473 = vsel %vm5453, %v5276, %v1134
    %v5474 = vsel %vm5453, %v5277, %v1136
    %v5475 = vsel %vm5453, %v5278, %v1138
    %v5476 = vsel %vm5453, %v5279, %v1140
    %v5477 = vsel %vm5453, %v5280, %v1142
    %v5478 = vsel %vm5453, %v5281, %v1144
    %v5479 = vsel %vm5453, %v5282, %v1146
    %v5480 = vsel %vm5453, %v5283, %v1148
    %v5481 = vsel %vm5453, %v5284, %v1150
    %v5482 = vsel %vm5453, %v5285, %v1152
    %v5483 = vsel %vm5453, %v5286, %v1154
    %v5484 = vsel %vm5453, %v5287, %v1156
    %v5485 = vsel %vm5453, %v5288, %v1158
    %v5486 = vsel %vm5453, %v5289, %v1160
    %v5487 = vsel %vm5453, %v5290, %v1162
    %v5488 = vsel %vm5453, %v5291, %v1164
    %v5489 = vsel %vm5453, %v5292, %v1166
    %v5490 = vsel %vm5453, %v5293, %v1168
    %v5491 = vsel %vm5453, %v5294, %v1170
    %v5492 = vsel %vm5453, %v5295, %v1172
    %v5493 = vsel %vm5453, %v5296, %v1174
    %v5494 = vsel %vm5453, %v5297, %v1176
    %v5495 = vsel %vm5453, %v5298, %v1178
    %v5496 = vsel %vm5453, %v5299, %v1180
    %v5497 = vsel %vm5453, %v5300, %v1182
    %v5498 = vsel %vm5453, %v5301, %v1184
    %v5499 = vsel %vm5453, %v5302, %v1186
    %v5500 = vsel %vm5453, %v5303, %v1188
    %v5501 = vsel %vm5453, %v5304, %v1190
    %v5502 = vsel %vm5453, %v5305, %v1192
    %v5503 = vsel %vm5453, %v5306, %v1194
    %v5504 = vsel %vm5453, %v5307, %v1196
    %v5505 = vsel %vm5453, %v5308, %v1198
    %v5506 = vsel %vm5453, %v5309, %v1200
    %v5507 = vsel %vm5453, %v5310, %v1202
    %v5508 = vsel %vm5453, %v5311, %v1204
    %v5509 = vsel %vm5453, %v5312, %v1206
    %v5510 = vsel %vm5453, %v5313, %v1208
    %v5511 = vsel %vm5453, %v5314, %v1210
    %v5512 = vsel %vm5453, %v5315, %v1212
    %v5513 = vsel %vm5453, %v5316, %v1214
    %v5514 = vsel %vm5453, %v5317, %v1216
    %v5515 = vsel %vm5453, %v5318, %v1218
    %v5516 = vsel %vm5453, %v5319, %v1220
    %v5517 = vsel %vm5453, %v5320, %v1222
    %v5518 = vsel %vm5453, %v5321, %v1224
    %v5519 = vsel %vm5453, %v5322, %v1226
    %v5520 = vsel %vm5453, %v5323, %v1228
    %v5521 = vsel %vm5453, %v5324, %v1230
    %v5522 = vsel %vm5453, %v5325, %v1232
    %v5523 = vsel %vm5453, %v5326, %v1234
    %v5524 = vsel %vm5453, %v5327, %v1236
    %v5525 = vsel %vm5453, %v5328, %v1238
    %v5526 = vsel %vm5453, %v5329, %v1240
    %v5527 = vsel %vm5453, %v5330, %v1242
    %v5528 = vsel %vm5453, %v5331, %v1244
    %v5529 = vsel %vm5453, %v5332, %v1246
    %v5530 = vsel %vm5453, %v5333, %v1248
    %v5531 = vsel %vm5453, %v5334, %v1250
    %v5532 = vsel %vm5453, %v5335, %v1252
    %v5533 = vsel %vm5453, %v5336, %v1254
    %v5534 = vsel %vm5453, %v5337, %v1256
    %v5535 = vsel %vm5453, %v5338, %v1258
    %v5536 = vsel %vm5453, %v5339, %v1260
    %v5537 = vsel %vm5453, %v5340, %v1262
    %v5538 = vsel %vm5453, %v5341, %v1264
    %v5539 = vsel %vm5453, %v5342, %v1266
    %v5540 = vsel %vm5453, %v5343, %v1268
    %v5541 = vsel %vm5453, %v5344, %v1270
    %v5542 = vsel %vm5453, %v5345, %v1272
    %v5543 = vsel %vm5453, %v5346, %v1274
    %v5544 = vsel %vm5453, %v5347, %v1276
    %v5545 = vsel %vm5453, %v5348, %v1278
    %v5546 = vsel %vm5453, %v5349, %v1280
    %v5547 = vsel %vm5453, %v5350, %v1282
    %v5548 = vsel %vm5453, %v5351, %v1284
    %v5549 = vsel %vm5453, %v5352, %v1286
    %v5550 = vsel %vm5453, %v5353, %v1288
    %v5551 = vsel %vm5453, %v5354, %v1290
    %v5552 = vsel %vm5453, %v5355, %v1292
    %v5553 = vsel %vm5453, %v5356, %v1294
    %v5554 = vsel %vm5453, %v5357, %v1296
    %v5555 = vsel %vm5453, %v5358, %v1298
    %v5556 = vsel %vm5453, %v5359, %v1300
    %v5557 = vsel %vm5453, %v5360, %v1302
    %v5558 = vsel %vm5453, %v5361, %v1304
    %v5559 = vsel %vm5453, %v5362, %v1306
    %v5560 = vsel %vm5453, %v5363, %v1308
    %v5561 = vsel %vm5453, %v5364, %v1310
    %v5562 = vsel %vm5453, %v5365, %v1312
    %v5563 = vsel %vm5453, %v5366, %v1314
    %v5564 = vsel %vm5453, %v5367, %v1316
    %v5565 = vsel %vm5453, %v5368, %v1318
    %v5566 = vsel %vm5453, %v5369, %v1320
    %v5567 = vsel %vm5453, %v5370, %v1322
    %v5568 = vsel %vm5453, %v5371, %v1324
    %v5569 = vsel %vm5453, %v5372, %v1326
    %v5570 = vsel %vm5453, %v5373, %v1328
    %v5571 = vsel %vm5453, %v5374, %v1330
    %v5572 = vsel %vm5453, %v5375, %v1332
    %v5573 = vsel %vm5453, %v5376, %v1334
    %v5574 = vsel %vm5453, %v5377, %v1336
    %v5575 = vsel %vm5453, %v5378, %v1338
    %v5576 = vsel %vm5453, %v5379, %v1340
    %v5577 = vsel %vm5453, %v5380, %v1342
    %v5578 = vsel %vm5453, %v5381, %v1344
    %v5579 = vsel %vm5453, %v5382, %v1346
    %v5580 = vsel %vm5453, %v5383, %v1348
    %v5581 = vsel %vm5453, %v5384, %v1350
    %v5582 = vsel %vm5453, %v5385, %v1352
    %v5583 = vsel %vm5453, %v5386, %v1354
    %v5584 = vsel %vm5453, %v5387, %v1356
    %v5585 = vsel %vm5453, %v5388, %v1358
    %v5586 = vsel %vm5453, %v5389, %v1360
    %v5587 = vsel %vm5453, %v5390, %v1362
    %v5588 = vsel %vm5453, %v5391, %v1364
    %v5589 = vsel %vm5453, %v5392, %v1366
    %v5590 = vsel %vm5453, %v5393, %v1368
    %v5591 = vsel %vm5453, %v5394, %v1370
    %v5592 = vsel %vm5453, %v5395, %v1372
    %v5593 = vsel %vm5453, %v5396, %v1374
    %v5594 = vsel %vm5453, %v5397, %v1376
    %v5595 = vsel %vm5453, %v5398, %v1378
    %v5596 = vsel %vm5453, %v5399, %v1380
    %v5597 = vsel %vm5453, %v5400, %v1382
    %v5598 = vsel %vm5453, %v5401, %v1384
    %v5599 = vsel %vm5453, %v5402, %v1386
    %v5600 = vsel %vm5453, %v5403, %v1388
    %v5601 = vsel %vm5453, %v5404, %v1390
    %v5602 = vsel %vm5453, %v5405, %v1392
    %v5603 = vsel %vm5453, %v5406, %v1394
    %v5604 = vsel %vm5453, %v5407, %v1396
    %v5605 = vsel %vm5453, %v5408, %v1398
    %v5606 = vsel %vm5453, %v5409, %v1400
    %v5607 = vsel %vm5453, %v5410, %v1402
    %v5608 = vsel %vm5453, %v5411, %v1404
    %v5609 = vsel %vm5453, %v5412, %v1406
    %v5610 = vsel %vm5453, %v5413, %v1408
    %v5611 = vsel %vm5453, %v5414, %v1410
    %v5612 = vsel %vm5453, %v5415, %v1412
    %v5613 = vsel %vm5453, %v5416, %v1414
    %v5614 = vsel %vm5453, %v5417, %v1416
    %v5615 = vsel %vm5453, %v5418, %v1418
    %v5616 = vsel %vm5453, %v5419, %v1420
    %v5617 = vsel %vm5453, %v5420, %v1422
    %v5618 = vsel %vm5453, %v5421, %v1424
    %v5619 = vsel %vm5453, %v5422, %v1426
    %v5620 = vsel %vm5453, %v5423, %v1428
    %v5621 = vsel %vm5453, %v5424, %v1430
    %v5622 = vsel %vm5453, %v5425, %v1432
    %v5623 = vsel %vm5453, %v5426, %v1434
    %v5624 = vsel %vm5453, %v5427, %v1436
    %v5625 = vsel %vm5453, %v5428, %v1438
    %v5626 = vsel %vm5453, %v5429, %v1440
    %v5627 = vsel %vm5453, %v5430, %v1442
    %v5628 = vsel %vm5453, %v5431, %v1444
    %v5629 = vsel %vm5453, %v5432, %v1446
    %v5630 = vsel %vm5453, %v5433, %v1448
    %v5631 = vsel %vm5453, %v5434, %v1450
    %v5632 = vsel %vm5453, %v5435, %v1452
    %v5633 = vsel %vm5453, %v5436, %v1454
    %v5634 = vsel %vm5453, %v5437, %v1456
    %v5635 = vsel %vm5453, %v5438, %v1458
    %v5636 = vsel %vm5453, %v5439, %v1460
    %v5637 = vsel %vm5453, %v5440, %v1462
    %v5638 = vsel %vm5453, %v5441, %v1464
    %v5639 = vsel %vm5453, %v5442, %v1466
    %v5640 = vsel %vm5453, %v5443, %v1468
    %v5641 = vsel %vm5453, %v5444, %v1470
    %v5642 = vsel %vm5453, %v5445, %v1472
    %v5643 = vsel %vm5453, %v5446, %v1474
    %v5644 = vsel %vm5453, %v5447, %v1476
    %v5645 = vsel %vm5453, %v5448, %v1478
    %v5646 = vsel %vm5453, %v5449, %v1480
    %v5647 = vsel %vm5453, %v5450, %v1482
    %v5648 = vsel %vm5453, %v5451, %v1484
    %v5649 = vsel %vm5453, %v5452, %v1486
    %vm5650 = vcmask 195584
    %v5651 = vsel %vm5650, %v5454, %v1711
    %v5652 = vsel %vm5650, %v5455, %v1713
    %v5653 = vsel %vm5650, %v5456, %v1715
    %v5654 = vsel %vm5650, %v5457, %v1717
    %v5655 = vsel %vm5650, %v5458, %v1719
    %v5656 = vsel %vm5650, %v5459, %v1721
    %v5657 = vsel %vm5650, %v5460, %v1723
    %v5658 = vsel %vm5650, %v5461, %v1725
    %v5659 = vsel %vm5650, %v5462, %v1727
    %v5660 = vsel %vm5650, %v5463, %v1729
    %v5661 = vsel %vm5650, %v5464, %v1731
    %v5662 = vsel %vm5650, %v5465, %v1733
    %v5663 = vsel %vm5650, %v5466, %v1735
    %v5664 = vsel %vm5650, %v5467, %v1737
    %v5665 = vsel %vm5650, %v5468, %v1739
    %v5666 = vsel %vm5650, %v5469, %v1741
    %v5667 = vsel %vm5650, %v5470, %v1743
    %v5668 = vsel %vm5650, %v5471, %v1745
    %v5669 = vsel %vm5650, %v5472, %v1747
    %v5670 = vsel %vm5650, %v5473, %v1749
    %v5671 = vsel %vm5650, %v5474, %v1751
    %v5672 = vsel %vm5650, %v5475, %v1753
    %v5673 = vsel %vm5650, %v5476, %v1755
    %v5674 = vsel %vm5650, %v5477, %v1757
    %v5675 = vsel %vm5650, %v5478, %v1759
    %v5676 = vsel %vm5650, %v5479, %v1761
    %v5677 = vsel %vm5650, %v5480, %v1763
    %v5678 = vsel %vm5650, %v5481, %v1765
    %v5679 = vsel %vm5650, %v5482, %v1767
    %v5680 = vsel %vm5650, %v5483, %v1769
    %v5681 = vsel %vm5650, %v5484, %v1771
    %v5682 = vsel %vm5650, %v5485, %v1773
    %v5683 = vsel %vm5650, %v5486, %v1775
    %v5684 = vsel %vm5650, %v5487, %v1777
    %v5685 = vsel %vm5650, %v5488, %v1779
    %v5686 = vsel %vm5650, %v5489, %v1781
    %v5687 = vsel %vm5650, %v5490, %v1783
    %v5688 = vsel %vm5650, %v5491, %v1785
    %v5689 = vsel %vm5650, %v5492, %v1787
    %v5690 = vsel %vm5650, %v5493, %v1789
    %v5691 = vsel %vm5650, %v5494, %v1791
    %v5692 = vsel %vm5650, %v5495, %v1793
    %v5693 = vsel %vm5650, %v5496, %v1795
    %v5694 = vsel %vm5650, %v5497, %v1797
    %v5695 = vsel %vm5650, %v5498, %v1799
    %v5696 = vsel %vm5650, %v5499, %v1801
    %v5697 = vsel %vm5650, %v5500, %v1803
    %v5698 = vsel %vm5650, %v5501, %v1805
    %v5699 = vsel %vm5650, %v5502, %v1807
    %v5700 = vsel %vm5650, %v5503, %v1809
    %v5701 = vsel %vm5650, %v5504, %v1811
    %v5702 = vsel %vm5650, %v5505, %v1813
    %v5703 = vsel %vm5650, %v5506, %v1815
    %v5704 = vsel %vm5650, %v5507, %v1817
    %v5705 = vsel %vm5650, %v5508, %v1819
    %v5706 = vsel %vm5650, %v5509, %v1821
    %v5707 = vsel %vm5650, %v5510, %v1823
    %v5708 = vsel %vm5650, %v5511, %v1825
    %v5709 = vsel %vm5650, %v5512, %v1827
    %v5710 = vsel %vm5650, %v5513, %v1829
    %v5711 = vsel %vm5650, %v5514, %v1831
    %v5712 = vsel %vm5650, %v5515, %v1833
    %v5713 = vsel %vm5650, %v5516, %v1835
    %v5714 = vsel %vm5650, %v5517, %v1837
    %v5715 = vsel %vm5650, %v5518, %v1839
    %v5716 = vsel %vm5650, %v5519, %v1841
    %v5717 = vsel %vm5650, %v5520, %v1843
    %v5718 = vsel %vm5650, %v5521, %v1845
    %v5719 = vsel %vm5650, %v5522, %v1847
    %v5720 = vsel %vm5650, %v5523, %v1849
    %v5721 = vsel %vm5650, %v5524, %v1851
    %v5722 = vsel %vm5650, %v5525, %v1853
    %v5723 = vsel %vm5650, %v5526, %v1855
    %v5724 = vsel %vm5650, %v5527, %v1857
    %v5725 = vsel %vm5650, %v5528, %v1859
    %v5726 = vsel %vm5650, %v5529, %v1861
    %v5727 = vsel %vm5650, %v5530, %v1863
    %v5728 = vsel %vm5650, %v5531, %v1865
    %v5729 = vsel %vm5650, %v5532, %v1867
    %v5730 = vsel %vm5650, %v5533, %v1869
    %v5731 = vsel %vm5650, %v5534, %v1871
    %v5732 = vsel %vm5650, %v5535, %v1873
    %v5733 = vsel %vm5650, %v5536, %v1875
    %v5734 = vsel %vm5650, %v5537, %v1877
    %v5735 = vsel %vm5650, %v5538, %v1879
    %v5736 = vsel %vm5650, %v5539, %v1881
    %v5737 = vsel %vm5650, %v5540, %v1883
    %v5738 = vsel %vm5650, %v5541, %v1885
    %v5739 = vsel %vm5650, %v5542, %v1887
    %v5740 = vsel %vm5650, %v5543, %v1889
    %v5741 = vsel %vm5650, %v5544, %v1891
    %v5742 = vsel %vm5650, %v5545, %v1893
    %v5743 = vsel %vm5650, %v5546, %v1895
    %v5744 = vsel %vm5650, %v5547, %v1897
    %v5745 = vsel %vm5650, %v5548, %v1899
    %v5746 = vsel %vm5650, %v5549, %v1901
    %v5747 = vsel %vm5650, %v5550, %v1903
    %v5748 = vsel %vm5650, %v5551, %v1905
    %v5749 = vsel %vm5650, %v5552, %v1907
    %v5750 = vsel %vm5650, %v5553, %v1909
    %v5751 = vsel %vm5650, %v5554, %v1911
    %v5752 = vsel %vm5650, %v5555, %v1913
    %v5753 = vsel %vm5650, %v5556, %v1915
    %v5754 = vsel %vm5650, %v5557, %v1917
    %v5755 = vsel %vm5650, %v5558, %v1919
    %v5756 = vsel %vm5650, %v5559, %v1921
    %v5757 = vsel %vm5650, %v5560, %v1923
    %v5758 = vsel %vm5650, %v5561, %v1925
    %v5759 = vsel %vm5650, %v5562, %v1927
    %v5760 = vsel %vm5650, %v5563, %v1929
    %v5761 = vsel %vm5650, %v5564, %v1931
    %v5762 = vsel %vm5650, %v5565, %v1933
    %v5763 = vsel %vm5650, %v5566, %v1935
    %v5764 = vsel %vm5650, %v5567, %v1937
    %v5765 = vsel %vm5650, %v5568, %v1939
    %v5766 = vsel %vm5650, %v5569, %v1941
    %v5767 = vsel %vm5650, %v5570, %v1943
    %v5768 = vsel %vm5650, %v5571, %v1945
    %v5769 = vsel %vm5650, %v5572, %v1947
    %v5770 = vsel %vm5650, %v5573, %v1949
    %v5771 = vsel %vm5650, %v5574, %v1951
    %v5772 = vsel %vm5650, %v5575, %v1953
    %v5773 = vsel %vm5650, %v5576, %v1955
    %v5774 = vsel %vm5650, %v5577, %v1957
    %v5775 = vsel %vm5650, %v5578, %v1959
    %v5776 = vsel %vm5650, %v5579, %v1961
    %v5777 = vsel %vm5650, %v5580, %v1963
    %v5778 = vsel %vm5650, %v5581, %v1965
    %v5779 = vsel %vm5650, %v5582, %v1967
    %v5780 = vsel %vm5650, %v5583, %v1969
    %v5781 = vsel %vm5650, %v5584, %v1971
    %v5782 = vsel %vm5650, %v5585, %v1973
    %v5783 = vsel %vm5650, %v5586, %v1975
    %v5784 = vsel %vm5650, %v5587, %v1977
    %v5785 = vsel %vm5650, %v5588, %v1979
    %v5786 = vsel %vm5650, %v5589, %v1981
    %v5787 = vsel %vm5650, %v5590, %v1983
    %v5788 = vsel %vm5650, %v5591, %v1985
    %v5789 = vsel %vm5650, %v5592, %v1987
    %v5790 = vsel %vm5650, %v5593, %v1989
    %v5791 = vsel %vm5650, %v5594, %v1991
    %v5792 = vsel %vm5650, %v5595, %v1993
    %v5793 = vsel %vm5650, %v5596, %v1995
    %v5794 = vsel %vm5650, %v5597, %v1997
    %v5795 = vsel %vm5650, %v5598, %v1999
    %v5796 = vsel %vm5650, %v5599, %v2001
    %v5797 = vsel %vm5650, %v5600, %v2003
    %v5798 = vsel %vm5650, %v5601, %v2005
    %v5799 = vsel %vm5650, %v5602, %v2007
    %v5800 = vsel %vm5650, %v5603, %v2009
    %v5801 = vsel %vm5650, %v5604, %v2011
    %v5802 = vsel %vm5650, %v5605, %v2013
    %v5803 = vsel %vm5650, %v5606, %v2015
    %v5804 = vsel %vm5650, %v5607, %v2017
    %v5805 = vsel %vm5650, %v5608, %v2019
    %v5806 = vsel %vm5650, %v5609, %v2021
    %v5807 = vsel %vm5650, %v5610, %v2023
    %v5808 = vsel %vm5650, %v5611, %v2025
    %v5809 = vsel %vm5650, %v5612, %v2027
    %v5810 = vsel %vm5650, %v5613, %v2029
    %v5811 = vsel %vm5650, %v5614, %v2031
    %v5812 = vsel %vm5650, %v5615, %v2033
    %v5813 = vsel %vm5650, %v5616, %v2035
    %v5814 = vsel %vm5650, %v5617, %v2037
    %v5815 = vsel %vm5650, %v5618, %v2039
    %v5816 = vsel %vm5650, %v5619, %v2041
    %v5817 = vsel %vm5650, %v5620, %v2043
    %v5818 = vsel %vm5650, %v5621, %v2045
    %v5819 = vsel %vm5650, %v5622, %v2047
    %v5820 = vsel %vm5650, %v5623, %v2049
    %v5821 = vsel %vm5650, %v5624, %v2051
    %v5822 = vsel %vm5650, %v5625, %v2053
    %v5823 = vsel %vm5650, %v5626, %v2055
    %v5824 = vsel %vm5650, %v5627, %v2057
    %v5825 = vsel %vm5650, %v5628, %v2059
    %v5826 = vsel %vm5650, %v5629, %v2061
    %v5827 = vsel %vm5650, %v5630, %v2063
    %v5828 = vsel %vm5650, %v5631, %v2065
    %v5829 = vsel %vm5650, %v5632, %v2067
    %v5830 = vsel %vm5650, %v5633, %v2069
    %v5831 = vsel %vm5650, %v5634, %v2071
    %v5832 = vsel %vm5650, %v5635, %v2073
    %v5833 = vsel %vm5650, %v5636, %v2075
    %v5834 = vsel %vm5650, %v5637, %v2077
    %v5835 = vsel %vm5650, %v5638, %v2079
    %v5836 = vsel %vm5650, %v5639, %v2081
    %v5837 = vsel %vm5650, %v5640, %v2083
    %v5838 = vsel %vm5650, %v5641, %v2085
    %v5839 = vsel %vm5650, %v5642, %v2087
    %v5840 = vsel %vm5650, %v5643, %v2089
    %v5841 = vsel %vm5650, %v5644, %v2091
    %v5842 = vsel %vm5650, %v5645, %v2093
    %v5843 = vsel %vm5650, %v5646, %v2095
    %v5844 = vsel %vm5650, %v5647, %v2097
    %v5845 = vsel %vm5650, %v5648, %v2099
    %v5846 = vsel %vm5650, %v5649, %v2101
    %vm5847 = vcmask 261120
    %v5848 = vsel %vm5847, %v5651, %v2300
    %v5849 = vsel %vm5847, %v5652, %v2302
    %v5850 = vsel %vm5847, %v5653, %v2304
    %v5851 = vsel %vm5847, %v5654, %v2306
    %v5852 = vsel %vm5847, %v5655, %v2308
    %v5853 = vsel %vm5847, %v5656, %v2310
    %v5854 = vsel %vm5847, %v5657, %v2312
    %v5855 = vsel %vm5847, %v5658, %v2314
    %v5856 = vsel %vm5847, %v5659, %v2316
    %v5857 = vsel %vm5847, %v5660, %v2318
    %v5858 = vsel %vm5847, %v5661, %v2320
    %v5859 = vsel %vm5847, %v5662, %v2322
    %v5860 = vsel %vm5847, %v5663, %v2324
    %v5861 = vsel %vm5847, %v5664, %v2326
    %v5862 = vsel %vm5847, %v5665, %v2328
    %v5863 = vsel %vm5847, %v5666, %v2330
    %v5864 = vsel %vm5847, %v5667, %v2332
    %v5865 = vsel %vm5847, %v5668, %v2334
    %v5866 = vsel %vm5847, %v5669, %v2336
    %v5867 = vsel %vm5847, %v5670, %v2338
    %v5868 = vsel %vm5847, %v5671, %v2340
    %v5869 = vsel %vm5847, %v5672, %v2342
    %v5870 = vsel %vm5847, %v5673, %v2344
    %v5871 = vsel %vm5847, %v5674, %v2346
    %v5872 = vsel %vm5847, %v5675, %v2348
    %v5873 = vsel %vm5847, %v5676, %v2350
    %v5874 = vsel %vm5847, %v5677, %v2352
    %v5875 = vsel %vm5847, %v5678, %v2354
    %v5876 = vsel %vm5847, %v5679, %v2356
    %v5877 = vsel %vm5847, %v5680, %v2358
    %v5878 = vsel %vm5847, %v5681, %v2360
    %v5879 = vsel %vm5847, %v5682, %v2362
    %v5880 = vsel %vm5847, %v5683, %v2364
    %v5881 = vsel %vm5847, %v5684, %v2366
    %v5882 = vsel %vm5847, %v5685, %v2368
    %v5883 = vsel %vm5847, %v5686, %v2370
    %v5884 = vsel %vm5847, %v5687, %v2372
    %v5885 = vsel %vm5847, %v5688, %v2374
    %v5886 = vsel %vm5847, %v5689, %v2376
    %v5887 = vsel %vm5847, %v5690, %v2378
    %v5888 = vsel %vm5847, %v5691, %v2380
    %v5889 = vsel %vm5847, %v5692, %v2382
    %v5890 = vsel %vm5847, %v5693, %v2384
    %v5891 = vsel %vm5847, %v5694, %v2386
    %v5892 = vsel %vm5847, %v5695, %v2388
    %v5893 = vsel %vm5847, %v5696, %v2390
    %v5894 = vsel %vm5847, %v5697, %v2392
    %v5895 = vsel %vm5847, %v5698, %v2394
    %v5896 = vsel %vm5847, %v5699, %v2396
    %v5897 = vsel %vm5847, %v5700, %v2398
    %v5898 = vsel %vm5847, %v5701, %v2400
    %v5899 = vsel %vm5847, %v5702, %v2402
    %v5900 = vsel %vm5847, %v5703, %v2404
    %v5901 = vsel %vm5847, %v5704, %v2406
    %v5902 = vsel %vm5847, %v5705, %v2408
    %v5903 = vsel %vm5847, %v5706, %v2410
    %v5904 = vsel %vm5847, %v5707, %v2412
    %v5905 = vsel %vm5847, %v5708, %v2414
    %v5906 = vsel %vm5847, %v5709, %v2416
    %v5907 = vsel %vm5847, %v5710, %v2418
    %v5908 = vsel %vm5847, %v5711, %v2420
    %v5909 = vsel %vm5847, %v5712, %v2422
    %v5910 = vsel %vm5847, %v5713, %v2424
    %v5911 = vsel %vm5847, %v5714, %v2426
    %v5912 = vsel %vm5847, %v5715, %v2428
    %v5913 = vsel %vm5847, %v5716, %v2430
    %v5914 = vsel %vm5847, %v5717, %v2432
    %v5915 = vsel %vm5847, %v5718, %v2434
    %v5916 = vsel %vm5847, %v5719, %v2436
    %v5917 = vsel %vm5847, %v5720, %v2438
    %v5918 = vsel %vm5847, %v5721, %v2440
    %v5919 = vsel %vm5847, %v5722, %v2442
    %v5920 = vsel %vm5847, %v5723, %v2444
    %v5921 = vsel %vm5847, %v5724, %v2446
    %v5922 = vsel %vm5847, %v5725, %v2448
    %v5923 = vsel %vm5847, %v5726, %v2450
    %v5924 = vsel %vm5847, %v5727, %v2452
    %v5925 = vsel %vm5847, %v5728, %v2454
    %v5926 = vsel %vm5847, %v5729, %v2456
    %v5927 = vsel %vm5847, %v5730, %v2458
    %v5928 = vsel %vm5847, %v5731, %v2460
    %v5929 = vsel %vm5847, %v5732, %v2462
    %v5930 = vsel %vm5847, %v5733, %v2464
    %v5931 = vsel %vm5847, %v5734, %v2466
    %v5932 = vsel %vm5847, %v5735, %v2468
    %v5933 = vsel %vm5847, %v5736, %v2470
    %v5934 = vsel %vm5847, %v5737, %v2472
    %v5935 = vsel %vm5847, %v5738, %v2474
    %v5936 = vsel %vm5847, %v5739, %v2476
    %v5937 = vsel %vm5847, %v5740, %v2478
    %v5938 = vsel %vm5847, %v5741, %v2480
    %v5939 = vsel %vm5847, %v5742, %v2482
    %v5940 = vsel %vm5847, %v5743, %v2484
    %v5941 = vsel %vm5847, %v5744, %v2486
    %v5942 = vsel %vm5847, %v5745, %v2488
    %v5943 = vsel %vm5847, %v5746, %v2490
    %v5944 = vsel %vm5847, %v5747, %v2492
    %v5945 = vsel %vm5847, %v5748, %v2494
    %v5946 = vsel %vm5847, %v5749, %v2496
    %v5947 = vsel %vm5847, %v5750, %v2498
    %v5948 = vsel %vm5847, %v5751, %v2500
    %v5949 = vsel %vm5847, %v5752, %v2502
    %v5950 = vsel %vm5847, %v5753, %v2504
    %v5951 = vsel %vm5847, %v5754, %v2506
    %v5952 = vsel %vm5847, %v5755, %v2508
    %v5953 = vsel %vm5847, %v5756, %v2510
    %v5954 = vsel %vm5847, %v5757, %v2512
    %v5955 = vsel %vm5847, %v5758, %v2514
    %v5956 = vsel %vm5847, %v5759, %v2516
    %v5957 = vsel %vm5847, %v5760, %v2518
    %v5958 = vsel %vm5847, %v5761, %v2520
    %v5959 = vsel %vm5847, %v5762, %v2522
    %v5960 = vsel %vm5847, %v5763, %v2524
    %v5961 = vsel %vm5847, %v5764, %v2526
    %v5962 = vsel %vm5847, %v5765, %v2528
    %v5963 = vsel %vm5847, %v5766, %v2530
    %v5964 = vsel %vm5847, %v5767, %v2532
    %v5965 = vsel %vm5847, %v5768, %v2534
    %v5966 = vsel %vm5847, %v5769, %v2536
    %v5967 = vsel %vm5847, %v5770, %v2538
    %v5968 = vsel %vm5847, %v5771, %v2540
    %v5969 = vsel %vm5847, %v5772, %v2542
    %v5970 = vsel %vm5847, %v5773, %v2544
    %v5971 = vsel %vm5847, %v5774, %v2546
    %v5972 = vsel %vm5847, %v5775, %v2548
    %v5973 = vsel %vm5847, %v5776, %v2550
    %v5974 = vsel %vm5847, %v5777, %v2552
    %v5975 = vsel %vm5847, %v5778, %v2554
    %v5976 = vsel %vm5847, %v5779, %v2556
    %v5977 = vsel %vm5847, %v5780, %v2558
    %v5978 = vsel %vm5847, %v5781, %v2560
    %v5979 = vsel %vm5847, %v5782, %v2562
    %v5980 = vsel %vm5847, %v5783, %v2564
    %v5981 = vsel %vm5847, %v5784, %v2566
    %v5982 = vsel %vm5847, %v5785, %v2568
    %v5983 = vsel %vm5847, %v5786, %v2570
    %v5984 = vsel %vm5847, %v5787, %v2572
    %v5985 = vsel %vm5847, %v5788, %v2574
    %v5986 = vsel %vm5847, %v5789, %v2576
    %v5987 = vsel %vm5847, %v5790, %v2578
    %v5988 = vsel %vm5847, %v5791, %v2580
    %v5989 = vsel %vm5847, %v5792, %v2582
    %v5990 = vsel %vm5847, %v5793, %v2584
    %v5991 = vsel %vm5847, %v5794, %v2586
    %v5992 = vsel %vm5847, %v5795, %v2588
    %v5993 = vsel %vm5847, %v5796, %v2590
    %v5994 = vsel %vm5847, %v5797, %v2592
    %v5995 = vsel %vm5847, %v5798, %v2594
    %v5996 = vsel %vm5847, %v5799, %v2596
    %v5997 = vsel %vm5847, %v5800, %v2598
    %v5998 = vsel %vm5847, %v5801, %v2600
    %v5999 = vsel %vm5847, %v5802, %v2602
    %v6000 = vsel %vm5847, %v5803, %v2604
    %v6001 = vsel %vm5847, %v5804, %v2606
    %v6002 = vsel %vm5847, %v5805, %v2608
    %v6003 = vsel %vm5847, %v5806, %v2610
    %v6004 = vsel %vm5847, %v5807, %v2612
    %v6005 = vsel %vm5847, %v5808, %v2614
    %v6006 = vsel %vm5847, %v5809, %v2616
    %v6007 = vsel %vm5847, %v5810, %v2618
    %v6008 = vsel %vm5847, %v5811, %v2620
    %v6009 = vsel %vm5847, %v5812, %v2622
    %v6010 = vsel %vm5847, %v5813, %v2624
    %v6011 = vsel %vm5847, %v5814, %v2626
    %v6012 = vsel %vm5847, %v5815, %v2628
    %v6013 = vsel %vm5847, %v5816, %v2630
    %v6014 = vsel %vm5847, %v5817, %v2632
    %v6015 = vsel %vm5847, %v5818, %v2634
    %v6016 = vsel %vm5847, %v5819, %v2636
    %v6017 = vsel %vm5847, %v5820, %v2638
    %v6018 = vsel %vm5847, %v5821, %v2640
    %v6019 = vsel %vm5847, %v5822, %v2642
    %v6020 = vsel %vm5847, %v5823, %v2644
    %v6021 = vsel %vm5847, %v5824, %v2646
    %v6022 = vsel %vm5847, %v5825, %v2648
    %v6023 = vsel %vm5847, %v5826, %v2650
    %v6024 = vsel %vm5847, %v5827, %v2652
    %v6025 = vsel %vm5847, %v5828, %v2654
    %v6026 = vsel %vm5847, %v5829, %v2656
    %v6027 = vsel %vm5847, %v5830, %v2658
    %v6028 = vsel %vm5847, %v5831, %v2660
    %v6029 = vsel %vm5847, %v5832, %v2662
    %v6030 = vsel %vm5847, %v5833, %v2664
    %v6031 = vsel %vm5847, %v5834, %v2666
    %v6032 = vsel %vm5847, %v5835, %v2668
    %v6033 = vsel %vm5847, %v5836, %v2670
    %v6034 = vsel %vm5847, %v5837, %v2672
    %v6035 = vsel %vm5847, %v5838, %v2674
    %v6036 = vsel %vm5847, %v5839, %v2676
    %v6037 = vsel %vm5847, %v5840, %v2678
    %v6038 = vsel %vm5847, %v5841, %v2680
    %v6039 = vsel %vm5847, %v5842, %v2682
    %v6040 = vsel %vm5847, %v5843, %v2684
    %v6041 = vsel %vm5847, %v5844, %v2686
    %v6042 = vsel %vm5847, %v5845, %v2688
    %v6043 = vsel %vm5847, %v5846, %v2690
    %vm6044 = vcmask 326656
    %v6045 = vsel %vm6044, %v5848, %v2889
    %v6046 = vsel %vm6044, %v5849, %v2891
    %v6047 = vsel %vm6044, %v5850, %v2893
    %v6048 = vsel %vm6044, %v5851, %v2895
    %v6049 = vsel %vm6044, %v5852, %v2897
    %v6050 = vsel %vm6044, %v5853, %v2899
    %v6051 = vsel %vm6044, %v5854, %v2901
    %v6052 = vsel %vm6044, %v5855, %v2903
    %v6053 = vsel %vm6044, %v5856, %v2905
    %v6054 = vsel %vm6044, %v5857, %v2907
    %v6055 = vsel %vm6044, %v5858, %v2909
    %v6056 = vsel %vm6044, %v5859, %v2911
    %v6057 = vsel %vm6044, %v5860, %v2913
    %v6058 = vsel %vm6044, %v5861, %v2915
    %v6059 = vsel %vm6044, %v5862, %v2917
    %v6060 = vsel %vm6044, %v5863, %v2919
    %v6061 = vsel %vm6044, %v5864, %v2921
    %v6062 = vsel %vm6044, %v5865, %v2923
    %v6063 = vsel %vm6044, %v5866, %v2925
    %v6064 = vsel %vm6044, %v5867, %v2927
    %v6065 = vsel %vm6044, %v5868, %v2929
    %v6066 = vsel %vm6044, %v5869, %v2931
    %v6067 = vsel %vm6044, %v5870, %v2933
    %v6068 = vsel %vm6044, %v5871, %v2935
    %v6069 = vsel %vm6044, %v5872, %v2937
    %v6070 = vsel %vm6044, %v5873, %v2939
    %v6071 = vsel %vm6044, %v5874, %v2941
    %v6072 = vsel %vm6044, %v5875, %v2943
    %v6073 = vsel %vm6044, %v5876, %v2945
    %v6074 = vsel %vm6044, %v5877, %v2947
    %v6075 = vsel %vm6044, %v5878, %v2949
    %v6076 = vsel %vm6044, %v5879, %v2951
    %v6077 = vsel %vm6044, %v5880, %v2953
    %v6078 = vsel %vm6044, %v5881, %v2955
    %v6079 = vsel %vm6044, %v5882, %v2957
    %v6080 = vsel %vm6044, %v5883, %v2959
    %v6081 = vsel %vm6044, %v5884, %v2961
    %v6082 = vsel %vm6044, %v5885, %v2963
    %v6083 = vsel %vm6044, %v5886, %v2965
    %v6084 = vsel %vm6044, %v5887, %v2967
    %v6085 = vsel %vm6044, %v5888, %v2969
    %v6086 = vsel %vm6044, %v5889, %v2971
    %v6087 = vsel %vm6044, %v5890, %v2973
    %v6088 = vsel %vm6044, %v5891, %v2975
    %v6089 = vsel %vm6044, %v5892, %v2977
    %v6090 = vsel %vm6044, %v5893, %v2979
    %v6091 = vsel %vm6044, %v5894, %v2981
    %v6092 = vsel %vm6044, %v5895, %v2983
    %v6093 = vsel %vm6044, %v5896, %v2985
    %v6094 = vsel %vm6044, %v5897, %v2987
    %v6095 = vsel %vm6044, %v5898, %v2989
    %v6096 = vsel %vm6044, %v5899, %v2991
    %v6097 = vsel %vm6044, %v5900, %v2993
    %v6098 = vsel %vm6044, %v5901, %v2995
    %v6099 = vsel %vm6044, %v5902, %v2997
    %v6100 = vsel %vm6044, %v5903, %v2999
    %v6101 = vsel %vm6044, %v5904, %v3001
    %v6102 = vsel %vm6044, %v5905, %v3003
    %v6103 = vsel %vm6044, %v5906, %v3005
    %v6104 = vsel %vm6044, %v5907, %v3007
    %v6105 = vsel %vm6044, %v5908, %v3009
    %v6106 = vsel %vm6044, %v5909, %v3011
    %v6107 = vsel %vm6044, %v5910, %v3013
    %v6108 = vsel %vm6044, %v5911, %v3015
    %v6109 = vsel %vm6044, %v5912, %v3017
    %v6110 = vsel %vm6044, %v5913, %v3019
    %v6111 = vsel %vm6044, %v5914, %v3021
    %v6112 = vsel %vm6044, %v5915, %v3023
    %v6113 = vsel %vm6044, %v5916, %v3025
    %v6114 = vsel %vm6044, %v5917, %v3027
    %v6115 = vsel %vm6044, %v5918, %v3029
    %v6116 = vsel %vm6044, %v5919, %v3031
    %v6117 = vsel %vm6044, %v5920, %v3033
    %v6118 = vsel %vm6044, %v5921, %v3035
    %v6119 = vsel %vm6044, %v5922, %v3037
    %v6120 = vsel %vm6044, %v5923, %v3039
    %v6121 = vsel %vm6044, %v5924, %v3041
    %v6122 = vsel %vm6044, %v5925, %v3043
    %v6123 = vsel %vm6044, %v5926, %v3045
    %v6124 = vsel %vm6044, %v5927, %v3047
    %v6125 = vsel %vm6044, %v5928, %v3049
    %v6126 = vsel %vm6044, %v5929, %v3051
    %v6127 = vsel %vm6044, %v5930, %v3053
    %v6128 = vsel %vm6044, %v5931, %v3055
    %v6129 = vsel %vm6044, %v5932, %v3057
    %v6130 = vsel %vm6044, %v5933, %v3059
    %v6131 = vsel %vm6044, %v5934, %v3061
    %v6132 = vsel %vm6044, %v5935, %v3063
    %v6133 = vsel %vm6044, %v5936, %v3065
    %v6134 = vsel %vm6044, %v5937, %v3067
    %v6135 = vsel %vm6044, %v5938, %v3069
    %v6136 = vsel %vm6044, %v5939, %v3071
    %v6137 = vsel %vm6044, %v5940, %v3073
    %v6138 = vsel %vm6044, %v5941, %v3075
    %v6139 = vsel %vm6044, %v5942, %v3077
    %v6140 = vsel %vm6044, %v5943, %v3079
    %v6141 = vsel %vm6044, %v5944, %v3081
    %v6142 = vsel %vm6044, %v5945, %v3083
    %v6143 = vsel %vm6044, %v5946, %v3085
    %v6144 = vsel %vm6044, %v5947, %v3087
    %v6145 = vsel %vm6044, %v5948, %v3089
    %v6146 = vsel %vm6044, %v5949, %v3091
    %v6147 = vsel %vm6044, %v5950, %v3093
    %v6148 = vsel %vm6044, %v5951, %v3095
    %v6149 = vsel %vm6044, %v5952, %v3097
    %v6150 = vsel %vm6044, %v5953, %v3099
    %v6151 = vsel %vm6044, %v5954, %v3101
    %v6152 = vsel %vm6044, %v5955, %v3103
    %v6153 = vsel %vm6044, %v5956, %v3105
    %v6154 = vsel %vm6044, %v5957, %v3107
    %v6155 = vsel %vm6044, %v5958, %v3109
    %v6156 = vsel %vm6044, %v5959, %v3111
    %v6157 = vsel %vm6044, %v5960, %v3113
    %v6158 = vsel %vm6044, %v5961, %v3115
    %v6159 = vsel %vm6044, %v5962, %v3117
    %v6160 = vsel %vm6044, %v5963, %v3119
    %v6161 = vsel %vm6044, %v5964, %v3121
    %v6162 = vsel %vm6044, %v5965, %v3123
    %v6163 = vsel %vm6044, %v5966, %v3125
    %v6164 = vsel %vm6044, %v5967, %v3127
    %v6165 = vsel %vm6044, %v5968, %v3129
    %v6166 = vsel %vm6044, %v5969, %v3131
    %v6167 = vsel %vm6044, %v5970, %v3133
    %v6168 = vsel %vm6044, %v5971, %v3135
    %v6169 = vsel %vm6044, %v5972, %v3137
    %v6170 = vsel %vm6044, %v5973, %v3139
    %v6171 = vsel %vm6044, %v5974, %v3141
    %v6172 = vsel %vm6044, %v5975, %v3143
    %v6173 = vsel %vm6044, %v5976, %v3145
    %v6174 = vsel %vm6044, %v5977, %v3147
    %v6175 = vsel %vm6044, %v5978, %v3149
    %v6176 = vsel %vm6044, %v5979, %v3151
    %v6177 = vsel %vm6044, %v5980, %v3153
    %v6178 = vsel %vm6044, %v5981, %v3155
    %v6179 = vsel %vm6044, %v5982, %v3157
    %v6180 = vsel %vm6044, %v5983, %v3159
    %v6181 = vsel %vm6044, %v5984, %v3161
    %v6182 = vsel %vm6044, %v5985, %v3163
    %v6183 = vsel %vm6044, %v5986, %v3165
    %v6184 = vsel %vm6044, %v5987, %v3167
    %v6185 = vsel %vm6044, %v5988, %v3169
    %v6186 = vsel %vm6044, %v5989, %v3171
    %v6187 = vsel %vm6044, %v5990, %v3173
    %v6188 = vsel %vm6044, %v5991, %v3175
    %v6189 = vsel %vm6044, %v5992, %v3177
    %v6190 = vsel %vm6044, %v5993, %v3179
    %v6191 = vsel %vm6044, %v5994, %v3181
    %v6192 = vsel %vm6044, %v5995, %v3183
    %v6193 = vsel %vm6044, %v5996, %v3185
    %v6194 = vsel %vm6044, %v5997, %v3187
    %v6195 = vsel %vm6044, %v5998, %v3189
    %v6196 = vsel %vm6044, %v5999, %v3191
    %v6197 = vsel %vm6044, %v6000, %v3193
    %v6198 = vsel %vm6044, %v6001, %v3195
    %v6199 = vsel %vm6044, %v6002, %v3197
    %v6200 = vsel %vm6044, %v6003, %v3199
    %v6201 = vsel %vm6044, %v6004, %v3201
    %v6202 = vsel %vm6044, %v6005, %v3203
    %v6203 = vsel %vm6044, %v6006, %v3205
    %v6204 = vsel %vm6044, %v6007, %v3207
    %v6205 = vsel %vm6044, %v6008, %v3209
    %v6206 = vsel %vm6044, %v6009, %v3211
    %v6207 = vsel %vm6044, %v6010, %v3213
    %v6208 = vsel %vm6044, %v6011, %v3215
    %v6209 = vsel %vm6044, %v6012, %v3217
    %v6210 = vsel %vm6044, %v6013, %v3219
    %v6211 = vsel %vm6044, %v6014, %v3221
    %v6212 = vsel %vm6044, %v6015, %v3223
    %v6213 = vsel %vm6044, %v6016, %v3225
    %v6214 = vsel %vm6044, %v6017, %v3227
    %v6215 = vsel %vm6044, %v6018, %v3229
    %v6216 = vsel %vm6044, %v6019, %v3231
    %v6217 = vsel %vm6044, %v6020, %v3233
    %v6218 = vsel %vm6044, %v6021, %v3235
    %v6219 = vsel %vm6044, %v6022, %v3237
    %v6220 = vsel %vm6044, %v6023, %v3239
    %v6221 = vsel %vm6044, %v6024, %v3241
    %v6222 = vsel %vm6044, %v6025, %v3243
    %v6223 = vsel %vm6044, %v6026, %v3245
    %v6224 = vsel %vm6044, %v6027, %v3247
    %v6225 = vsel %vm6044, %v6028, %v3249
    %v6226 = vsel %vm6044, %v6029, %v3251
    %v6227 = vsel %vm6044, %v6030, %v3253
    %v6228 = vsel %vm6044, %v6031, %v3255
    %v6229 = vsel %vm6044, %v6032, %v3257
    %v6230 = vsel %vm6044, %v6033, %v3259
    %v6231 = vsel %vm6044, %v6034, %v3261
    %v6232 = vsel %vm6044, %v6035, %v3263
    %v6233 = vsel %vm6044, %v6036, %v3265
    %v6234 = vsel %vm6044, %v6037, %v3267
    %v6235 = vsel %vm6044, %v6038, %v3269
    %v6236 = vsel %vm6044, %v6039, %v3271
    %v6237 = vsel %vm6044, %v6040, %v3273
    %v6238 = vsel %vm6044, %v6041, %v3275
    %v6239 = vsel %vm6044, %v6042, %v3277
    %v6240 = vsel %vm6044, %v6043, %v3279
    %vm6241 = vcmask 392192
    %v6242 = vsel %vm6241, %v6045, %v3491
    %v6243 = vsel %vm6241, %v6046, %v3493
    %v6244 = vsel %vm6241, %v6047, %v3495
    %v6245 = vsel %vm6241, %v6048, %v3497
    %v6246 = vsel %vm6241, %v6049, %v3499
    %v6247 = vsel %vm6241, %v6050, %v3501
    %v6248 = vsel %vm6241, %v6051, %v3503
    %v6249 = vsel %vm6241, %v6052, %v3505
    %v6250 = vsel %vm6241, %v6053, %v3507
    %v6251 = vsel %vm6241, %v6054, %v3509
    %v6252 = vsel %vm6241, %v6055, %v3511
    %v6253 = vsel %vm6241, %v6056, %v3513
    %v6254 = vsel %vm6241, %v6057, %v3515
    %v6255 = vsel %vm6241, %v6058, %v3517
    %v6256 = vsel %vm6241, %v6059, %v3519
    %v6257 = vsel %vm6241, %v6060, %v3521
    %v6258 = vsel %vm6241, %v6061, %v3523
    %v6259 = vsel %vm6241, %v6062, %v3525
    %v6260 = vsel %vm6241, %v6063, %v3527
    %v6261 = vsel %vm6241, %v6064, %v3529
    %v6262 = vsel %vm6241, %v6065, %v3531
    %v6263 = vsel %vm6241, %v6066, %v3533
    %v6264 = vsel %vm6241, %v6067, %v3535
    %v6265 = vsel %vm6241, %v6068, %v3537
    %v6266 = vsel %vm6241, %v6069, %v3539
    %v6267 = vsel %vm6241, %v6070, %v3541
    %v6268 = vsel %vm6241, %v6071, %v3543
    %v6269 = vsel %vm6241, %v6072, %v3545
    %v6270 = vsel %vm6241, %v6073, %v3547
    %v6271 = vsel %vm6241, %v6074, %v3549
    %v6272 = vsel %vm6241, %v6075, %v3551
    %v6273 = vsel %vm6241, %v6076, %v3553
    %v6274 = vsel %vm6241, %v6077, %v3555
    %v6275 = vsel %vm6241, %v6078, %v3557
    %v6276 = vsel %vm6241, %v6079, %v3559
    %v6277 = vsel %vm6241, %v6080, %v3561
    %v6278 = vsel %vm6241, %v6081, %v3563
    %v6279 = vsel %vm6241, %v6082, %v3565
    %v6280 = vsel %vm6241, %v6083, %v3567
    %v6281 = vsel %vm6241, %v6084, %v3569
    %v6282 = vsel %vm6241, %v6085, %v3571
    %v6283 = vsel %vm6241, %v6086, %v3573
    %v6284 = vsel %vm6241, %v6087, %v3575
    %v6285 = vsel %vm6241, %v6088, %v3577
    %v6286 = vsel %vm6241, %v6089, %v3579
    %v6287 = vsel %vm6241, %v6090, %v3581
    %v6288 = vsel %vm6241, %v6091, %v3583
    %v6289 = vsel %vm6241, %v6092, %v3585
    %v6290 = vsel %vm6241, %v6093, %v3587
    %v6291 = vsel %vm6241, %v6094, %v3589
    %v6292 = vsel %vm6241, %v6095, %v3591
    %v6293 = vsel %vm6241, %v6096, %v3593
    %v6294 = vsel %vm6241, %v6097, %v3595
    %v6295 = vsel %vm6241, %v6098, %v3597
    %v6296 = vsel %vm6241, %v6099, %v3599
    %v6297 = vsel %vm6241, %v6100, %v3601
    %v6298 = vsel %vm6241, %v6101, %v3603
    %v6299 = vsel %vm6241, %v6102, %v3605
    %v6300 = vsel %vm6241, %v6103, %v3607
    %v6301 = vsel %vm6241, %v6104, %v3609
    %v6302 = vsel %vm6241, %v6105, %v3611
    %v6303 = vsel %vm6241, %v6106, %v3613
    %v6304 = vsel %vm6241, %v6107, %v3615
    %v6305 = vsel %vm6241, %v6108, %v3617
    %v6306 = vsel %vm6241, %v6109, %v3619
    %v6307 = vsel %vm6241, %v6110, %v3621
    %v6308 = vsel %vm6241, %v6111, %v3623
    %v6309 = vsel %vm6241, %v6112, %v3625
    %v6310 = vsel %vm6241, %v6113, %v3627
    %v6311 = vsel %vm6241, %v6114, %v3629
    %v6312 = vsel %vm6241, %v6115, %v3631
    %v6313 = vsel %vm6241, %v6116, %v3633
    %v6314 = vsel %vm6241, %v6117, %v3635
    %v6315 = vsel %vm6241, %v6118, %v3637
    %v6316 = vsel %vm6241, %v6119, %v3639
    %v6317 = vsel %vm6241, %v6120, %v3641
    %v6318 = vsel %vm6241, %v6121, %v3643
    %v6319 = vsel %vm6241, %v6122, %v3645
    %v6320 = vsel %vm6241, %v6123, %v3647
    %v6321 = vsel %vm6241, %v6124, %v3649
    %v6322 = vsel %vm6241, %v6125, %v3651
    %v6323 = vsel %vm6241, %v6126, %v3653
    %v6324 = vsel %vm6241, %v6127, %v3655
    %v6325 = vsel %vm6241, %v6128, %v3657
    %v6326 = vsel %vm6241, %v6129, %v3659
    %v6327 = vsel %vm6241, %v6130, %v3661
    %v6328 = vsel %vm6241, %v6131, %v3663
    %v6329 = vsel %vm6241, %v6132, %v3665
    %v6330 = vsel %vm6241, %v6133, %v3667
    %v6331 = vsel %vm6241, %v6134, %v3669
    %v6332 = vsel %vm6241, %v6135, %v3671
    %v6333 = vsel %vm6241, %v6136, %v3673
    %v6334 = vsel %vm6241, %v6137, %v3675
    %v6335 = vsel %vm6241, %v6138, %v3677
    %v6336 = vsel %vm6241, %v6139, %v3679
    %v6337 = vsel %vm6241, %v6140, %v3681
    %v6338 = vsel %vm6241, %v6141, %v3683
    %v6339 = vsel %vm6241, %v6142, %v3685
    %v6340 = vsel %vm6241, %v6143, %v3687
    %v6341 = vsel %vm6241, %v6144, %v3689
    %v6342 = vsel %vm6241, %v6145, %v3691
    %v6343 = vsel %vm6241, %v6146, %v3693
    %v6344 = vsel %vm6241, %v6147, %v3695
    %v6345 = vsel %vm6241, %v6148, %v3697
    %v6346 = vsel %vm6241, %v6149, %v3699
    %v6347 = vsel %vm6241, %v6150, %v3701
    %v6348 = vsel %vm6241, %v6151, %v3703
    %v6349 = vsel %vm6241, %v6152, %v3705
    %v6350 = vsel %vm6241, %v6153, %v3707
    %v6351 = vsel %vm6241, %v6154, %v3709
    %v6352 = vsel %vm6241, %v6155, %v3711
    %v6353 = vsel %vm6241, %v6156, %v3713
    %v6354 = vsel %vm6241, %v6157, %v3715
    %v6355 = vsel %vm6241, %v6158, %v3717
    %v6356 = vsel %vm6241, %v6159, %v3719
    %v6357 = vsel %vm6241, %v6160, %v3721
    %v6358 = vsel %vm6241, %v6161, %v3723
    %v6359 = vsel %vm6241, %v6162, %v3725
    %v6360 = vsel %vm6241, %v6163, %v3727
    %v6361 = vsel %vm6241, %v6164, %v3729
    %v6362 = vsel %vm6241, %v6165, %v3731
    %v6363 = vsel %vm6241, %v6166, %v3733
    %v6364 = vsel %vm6241, %v6167, %v3735
    %v6365 = vsel %vm6241, %v6168, %v3737
    %v6366 = vsel %vm6241, %v6169, %v3739
    %v6367 = vsel %vm6241, %v6170, %v3741
    %v6368 = vsel %vm6241, %v6171, %v3743
    %v6369 = vsel %vm6241, %v6172, %v3745
    %v6370 = vsel %vm6241, %v6173, %v3747
    %v6371 = vsel %vm6241, %v6174, %v3749
    %v6372 = vsel %vm6241, %v6175, %v3751
    %v6373 = vsel %vm6241, %v6176, %v3753
    %v6374 = vsel %vm6241, %v6177, %v3755
    %v6375 = vsel %vm6241, %v6178, %v3757
    %v6376 = vsel %vm6241, %v6179, %v3759
    %v6377 = vsel %vm6241, %v6180, %v3761
    %v6378 = vsel %vm6241, %v6181, %v3763
    %v6379 = vsel %vm6241, %v6182, %v3765
    %v6380 = vsel %vm6241, %v6183, %v3767
    %v6381 = vsel %vm6241, %v6184, %v3769
    %v6382 = vsel %vm6241, %v6185, %v3771
    %v6383 = vsel %vm6241, %v6186, %v3773
    %v6384 = vsel %vm6241, %v6187, %v3775
    %v6385 = vsel %vm6241, %v6188, %v3777
    %v6386 = vsel %vm6241, %v6189, %v3779
    %v6387 = vsel %vm6241, %v6190, %v3781
    %v6388 = vsel %vm6241, %v6191, %v3783
    %v6389 = vsel %vm6241, %v6192, %v3785
    %v6390 = vsel %vm6241, %v6193, %v3787
    %v6391 = vsel %vm6241, %v6194, %v3789
    %v6392 = vsel %vm6241, %v6195, %v3791
    %v6393 = vsel %vm6241, %v6196, %v3793
    %v6394 = vsel %vm6241, %v6197, %v3795
    %v6395 = vsel %vm6241, %v6198, %v3797
    %v6396 = vsel %vm6241, %v6199, %v3799
    %v6397 = vsel %vm6241, %v6200, %v3801
    %v6398 = vsel %vm6241, %v6201, %v3803
    %v6399 = vsel %vm6241, %v6202, %v3805
    %v6400 = vsel %vm6241, %v6203, %v3807
    %v6401 = vsel %vm6241, %v6204, %v3809
    %v6402 = vsel %vm6241, %v6205, %v3811
    %v6403 = vsel %vm6241, %v6206, %v3813
    %v6404 = vsel %vm6241, %v6207, %v3815
    %v6405 = vsel %vm6241, %v6208, %v3817
    %v6406 = vsel %vm6241, %v6209, %v3819
    %v6407 = vsel %vm6241, %v6210, %v3821
    %v6408 = vsel %vm6241, %v6211, %v3823
    %v6409 = vsel %vm6241, %v6212, %v3825
    %v6410 = vsel %vm6241, %v6213, %v3827
    %v6411 = vsel %vm6241, %v6214, %v3829
    %v6412 = vsel %vm6241, %v6215, %v3831
    %v6413 = vsel %vm6241, %v6216, %v3833
    %v6414 = vsel %vm6241, %v6217, %v3835
    %v6415 = vsel %vm6241, %v6218, %v3837
    %v6416 = vsel %vm6241, %v6219, %v3839
    %v6417 = vsel %vm6241, %v6220, %v3841
    %v6418 = vsel %vm6241, %v6221, %v3843
    %v6419 = vsel %vm6241, %v6222, %v3845
    %v6420 = vsel %vm6241, %v6223, %v3847
    %v6421 = vsel %vm6241, %v6224, %v3849
    %v6422 = vsel %vm6241, %v6225, %v3851
    %v6423 = vsel %vm6241, %v6226, %v3853
    %v6424 = vsel %vm6241, %v6227, %v3855
    %v6425 = vsel %vm6241, %v6228, %v3857
    %v6426 = vsel %vm6241, %v6229, %v3859
    %v6427 = vsel %vm6241, %v6230, %v3861
    %v6428 = vsel %vm6241, %v6231, %v3863
    %v6429 = vsel %vm6241, %v6232, %v3865
    %v6430 = vsel %vm6241, %v6233, %v3867
    %v6431 = vsel %vm6241, %v6234, %v3869
    %v6432 = vsel %vm6241, %v6235, %v3871
    %v6433 = vsel %vm6241, %v6236, %v3873
    %v6434 = vsel %vm6241, %v6237, %v3875
    %v6435 = vsel %vm6241, %v6238, %v3877
    %v6436 = vsel %vm6241, %v6239, %v3879
    %v6437 = vsel %vm6241, %v6240, %v3881
    %vm6438 = vcmask 457728
    %v6439 = vsel %vm6438, %v6242, %v4080
    %v6440 = vsel %vm6438, %v6243, %v4082
    %v6441 = vsel %vm6438, %v6244, %v4084
    %v6442 = vsel %vm6438, %v6245, %v4086
    %v6443 = vsel %vm6438, %v6246, %v4088
    %v6444 = vsel %vm6438, %v6247, %v4090
    %v6445 = vsel %vm6438, %v6248, %v4092
    %v6446 = vsel %vm6438, %v6249, %v4094
    %v6447 = vsel %vm6438, %v6250, %v4096
    %v6448 = vsel %vm6438, %v6251, %v4098
    %v6449 = vsel %vm6438, %v6252, %v4100
    %v6450 = vsel %vm6438, %v6253, %v4102
    %v6451 = vsel %vm6438, %v6254, %v4104
    %v6452 = vsel %vm6438, %v6255, %v4106
    %v6453 = vsel %vm6438, %v6256, %v4108
    %v6454 = vsel %vm6438, %v6257, %v4110
    %v6455 = vsel %vm6438, %v6258, %v4112
    %v6456 = vsel %vm6438, %v6259, %v4114
    %v6457 = vsel %vm6438, %v6260, %v4116
    %v6458 = vsel %vm6438, %v6261, %v4118
    %v6459 = vsel %vm6438, %v6262, %v4120
    %v6460 = vsel %vm6438, %v6263, %v4122
    %v6461 = vsel %vm6438, %v6264, %v4124
    %v6462 = vsel %vm6438, %v6265, %v4126
    %v6463 = vsel %vm6438, %v6266, %v4128
    %v6464 = vsel %vm6438, %v6267, %v4130
    %v6465 = vsel %vm6438, %v6268, %v4132
    %v6466 = vsel %vm6438, %v6269, %v4134
    %v6467 = vsel %vm6438, %v6270, %v4136
    %v6468 = vsel %vm6438, %v6271, %v4138
    %v6469 = vsel %vm6438, %v6272, %v4140
    %v6470 = vsel %vm6438, %v6273, %v4142
    %v6471 = vsel %vm6438, %v6274, %v4144
    %v6472 = vsel %vm6438, %v6275, %v4146
    %v6473 = vsel %vm6438, %v6276, %v4148
    %v6474 = vsel %vm6438, %v6277, %v4150
    %v6475 = vsel %vm6438, %v6278, %v4152
    %v6476 = vsel %vm6438, %v6279, %v4154
    %v6477 = vsel %vm6438, %v6280, %v4156
    %v6478 = vsel %vm6438, %v6281, %v4158
    %v6479 = vsel %vm6438, %v6282, %v4160
    %v6480 = vsel %vm6438, %v6283, %v4162
    %v6481 = vsel %vm6438, %v6284, %v4164
    %v6482 = vsel %vm6438, %v6285, %v4166
    %v6483 = vsel %vm6438, %v6286, %v4168
    %v6484 = vsel %vm6438, %v6287, %v4170
    %v6485 = vsel %vm6438, %v6288, %v4172
    %v6486 = vsel %vm6438, %v6289, %v4174
    %v6487 = vsel %vm6438, %v6290, %v4176
    %v6488 = vsel %vm6438, %v6291, %v4178
    %v6489 = vsel %vm6438, %v6292, %v4180
    %v6490 = vsel %vm6438, %v6293, %v4182
    %v6491 = vsel %vm6438, %v6294, %v4184
    %v6492 = vsel %vm6438, %v6295, %v4186
    %v6493 = vsel %vm6438, %v6296, %v4188
    %v6494 = vsel %vm6438, %v6297, %v4190
    %v6495 = vsel %vm6438, %v6298, %v4192
    %v6496 = vsel %vm6438, %v6299, %v4194
    %v6497 = vsel %vm6438, %v6300, %v4196
    %v6498 = vsel %vm6438, %v6301, %v4198
    %v6499 = vsel %vm6438, %v6302, %v4200
    %v6500 = vsel %vm6438, %v6303, %v4202
    %v6501 = vsel %vm6438, %v6304, %v4204
    %v6502 = vsel %vm6438, %v6305, %v4206
    %v6503 = vsel %vm6438, %v6306, %v4208
    %v6504 = vsel %vm6438, %v6307, %v4210
    %v6505 = vsel %vm6438, %v6308, %v4212
    %v6506 = vsel %vm6438, %v6309, %v4214
    %v6507 = vsel %vm6438, %v6310, %v4216
    %v6508 = vsel %vm6438, %v6311, %v4218
    %v6509 = vsel %vm6438, %v6312, %v4220
    %v6510 = vsel %vm6438, %v6313, %v4222
    %v6511 = vsel %vm6438, %v6314, %v4224
    %v6512 = vsel %vm6438, %v6315, %v4226
    %v6513 = vsel %vm6438, %v6316, %v4228
    %v6514 = vsel %vm6438, %v6317, %v4230
    %v6515 = vsel %vm6438, %v6318, %v4232
    %v6516 = vsel %vm6438, %v6319, %v4234
    %v6517 = vsel %vm6438, %v6320, %v4236
    %v6518 = vsel %vm6438, %v6321, %v4238
    %v6519 = vsel %vm6438, %v6322, %v4240
    %v6520 = vsel %vm6438, %v6323, %v4242
    %v6521 = vsel %vm6438, %v6324, %v4244
    %v6522 = vsel %vm6438, %v6325, %v4246
    %v6523 = vsel %vm6438, %v6326, %v4248
    %v6524 = vsel %vm6438, %v6327, %v4250
    %v6525 = vsel %vm6438, %v6328, %v4252
    %v6526 = vsel %vm6438, %v6329, %v4254
    %v6527 = vsel %vm6438, %v6330, %v4256
    %v6528 = vsel %vm6438, %v6331, %v4258
    %v6529 = vsel %vm6438, %v6332, %v4260
    %v6530 = vsel %vm6438, %v6333, %v4262
    %v6531 = vsel %vm6438, %v6334, %v4264
    %v6532 = vsel %vm6438, %v6335, %v4266
    %v6533 = vsel %vm6438, %v6336, %v4268
    %v6534 = vsel %vm6438, %v6337, %v4270
    %v6535 = vsel %vm6438, %v6338, %v4272
    %v6536 = vsel %vm6438, %v6339, %v4274
    %v6537 = vsel %vm6438, %v6340, %v4276
    %v6538 = vsel %vm6438, %v6341, %v4278
    %v6539 = vsel %vm6438, %v6342, %v4280
    %v6540 = vsel %vm6438, %v6343, %v4282
    %v6541 = vsel %vm6438, %v6344, %v4284
    %v6542 = vsel %vm6438, %v6345, %v4286
    %v6543 = vsel %vm6438, %v6346, %v4288
    %v6544 = vsel %vm6438, %v6347, %v4290
    %v6545 = vsel %vm6438, %v6348, %v4292
    %v6546 = vsel %vm6438, %v6349, %v4294
    %v6547 = vsel %vm6438, %v6350, %v4296
    %v6548 = vsel %vm6438, %v6351, %v4298
    %v6549 = vsel %vm6438, %v6352, %v4300
    %v6550 = vsel %vm6438, %v6353, %v4302
    %v6551 = vsel %vm6438, %v6354, %v4304
    %v6552 = vsel %vm6438, %v6355, %v4306
    %v6553 = vsel %vm6438, %v6356, %v4308
    %v6554 = vsel %vm6438, %v6357, %v4310
    %v6555 = vsel %vm6438, %v6358, %v4312
    %v6556 = vsel %vm6438, %v6359, %v4314
    %v6557 = vsel %vm6438, %v6360, %v4316
    %v6558 = vsel %vm6438, %v6361, %v4318
    %v6559 = vsel %vm6438, %v6362, %v4320
    %v6560 = vsel %vm6438, %v6363, %v4322
    %v6561 = vsel %vm6438, %v6364, %v4324
    %v6562 = vsel %vm6438, %v6365, %v4326
    %v6563 = vsel %vm6438, %v6366, %v4328
    %v6564 = vsel %vm6438, %v6367, %v4330
    %v6565 = vsel %vm6438, %v6368, %v4332
    %v6566 = vsel %vm6438, %v6369, %v4334
    %v6567 = vsel %vm6438, %v6370, %v4336
    %v6568 = vsel %vm6438, %v6371, %v4338
    %v6569 = vsel %vm6438, %v6372, %v4340
    %v6570 = vsel %vm6438, %v6373, %v4342
    %v6571 = vsel %vm6438, %v6374, %v4344
    %v6572 = vsel %vm6438, %v6375, %v4346
    %v6573 = vsel %vm6438, %v6376, %v4348
    %v6574 = vsel %vm6438, %v6377, %v4350
    %v6575 = vsel %vm6438, %v6378, %v4352
    %v6576 = vsel %vm6438, %v6379, %v4354
    %v6577 = vsel %vm6438, %v6380, %v4356
    %v6578 = vsel %vm6438, %v6381, %v4358
    %v6579 = vsel %vm6438, %v6382, %v4360
    %v6580 = vsel %vm6438, %v6383, %v4362
    %v6581 = vsel %vm6438, %v6384, %v4364
    %v6582 = vsel %vm6438, %v6385, %v4366
    %v6583 = vsel %vm6438, %v6386, %v4368
    %v6584 = vsel %vm6438, %v6387, %v4370
    %v6585 = vsel %vm6438, %v6388, %v4372
    %v6586 = vsel %vm6438, %v6389, %v4374
    %v6587 = vsel %vm6438, %v6390, %v4376
    %v6588 = vsel %vm6438, %v6391, %v4378
    %v6589 = vsel %vm6438, %v6392, %v4380
    %v6590 = vsel %vm6438, %v6393, %v4382
    %v6591 = vsel %vm6438, %v6394, %v4384
    %v6592 = vsel %vm6438, %v6395, %v4386
    %v6593 = vsel %vm6438, %v6396, %v4388
    %v6594 = vsel %vm6438, %v6397, %v4390
    %v6595 = vsel %vm6438, %v6398, %v4392
    %v6596 = vsel %vm6438, %v6399, %v4394
    %v6597 = vsel %vm6438, %v6400, %v4396
    %v6598 = vsel %vm6438, %v6401, %v4398
    %v6599 = vsel %vm6438, %v6402, %v4400
    %v6600 = vsel %vm6438, %v6403, %v4402
    %v6601 = vsel %vm6438, %v6404, %v4404
    %v6602 = vsel %vm6438, %v6405, %v4406
    %v6603 = vsel %vm6438, %v6406, %v4408
    %v6604 = vsel %vm6438, %v6407, %v4410
    %v6605 = vsel %vm6438, %v6408, %v4412
    %v6606 = vsel %vm6438, %v6409, %v4414
    %v6607 = vsel %vm6438, %v6410, %v4416
    %v6608 = vsel %vm6438, %v6411, %v4418
    %v6609 = vsel %vm6438, %v6412, %v4420
    %v6610 = vsel %vm6438, %v6413, %v4422
    %v6611 = vsel %vm6438, %v6414, %v4424
    %v6612 = vsel %vm6438, %v6415, %v4426
    %v6613 = vsel %vm6438, %v6416, %v4428
    %v6614 = vsel %vm6438, %v6417, %v4430
    %v6615 = vsel %vm6438, %v6418, %v4432
    %v6616 = vsel %vm6438, %v6419, %v4434
    %v6617 = vsel %vm6438, %v6420, %v4436
    %v6618 = vsel %vm6438, %v6421, %v4438
    %v6619 = vsel %vm6438, %v6422, %v4440
    %v6620 = vsel %vm6438, %v6423, %v4442
    %v6621 = vsel %vm6438, %v6424, %v4444
    %v6622 = vsel %vm6438, %v6425, %v4446
    %v6623 = vsel %vm6438, %v6426, %v4448
    %v6624 = vsel %vm6438, %v6427, %v4450
    %v6625 = vsel %vm6438, %v6428, %v4452
    %v6626 = vsel %vm6438, %v6429, %v4454
    %v6627 = vsel %vm6438, %v6430, %v4456
    %v6628 = vsel %vm6438, %v6431, %v4458
    %v6629 = vsel %vm6438, %v6432, %v4460
    %v6630 = vsel %vm6438, %v6433, %v4462
    %v6631 = vsel %vm6438, %v6434, %v4464
    %v6632 = vsel %vm6438, %v6435, %v4466
    %v6633 = vsel %vm6438, %v6436, %v4468
    %v6634 = vsel %vm6438, %v6437, %v4470
    %vm6635 = vcmask 523264
    %v6636 = vsel %vm6635, %v6439, %v4669
    %v6637 = vsel %vm6635, %v6440, %v4671
    %v6638 = vsel %vm6635, %v6441, %v4673
    %v6639 = vsel %vm6635, %v6442, %v4675
    %v6640 = vsel %vm6635, %v6443, %v4677
    %v6641 = vsel %vm6635, %v6444, %v4679
    %v6642 = vsel %vm6635, %v6445, %v4681
    %v6643 = vsel %vm6635, %v6446, %v4683
    %v6644 = vsel %vm6635, %v6447, %v4685
    %v6645 = vsel %vm6635, %v6448, %v4687
    %v6646 = vsel %vm6635, %v6449, %v4689
    %v6647 = vsel %vm6635, %v6450, %v4691
    %v6648 = vsel %vm6635, %v6451, %v4693
    %v6649 = vsel %vm6635, %v6452, %v4695
    %v6650 = vsel %vm6635, %v6453, %v4697
    %v6651 = vsel %vm6635, %v6454, %v4699
    %v6652 = vsel %vm6635, %v6455, %v4701
    %v6653 = vsel %vm6635, %v6456, %v4703
    %v6654 = vsel %vm6635, %v6457, %v4705
    %v6655 = vsel %vm6635, %v6458, %v4707
    %v6656 = vsel %vm6635, %v6459, %v4709
    %v6657 = vsel %vm6635, %v6460, %v4711
    %v6658 = vsel %vm6635, %v6461, %v4713
    %v6659 = vsel %vm6635, %v6462, %v4715
    %v6660 = vsel %vm6635, %v6463, %v4717
    %v6661 = vsel %vm6635, %v6464, %v4719
    %v6662 = vsel %vm6635, %v6465, %v4721
    %v6663 = vsel %vm6635, %v6466, %v4723
    %v6664 = vsel %vm6635, %v6467, %v4725
    %v6665 = vsel %vm6635, %v6468, %v4727
    %v6666 = vsel %vm6635, %v6469, %v4729
    %v6667 = vsel %vm6635, %v6470, %v4731
    %v6668 = vsel %vm6635, %v6471, %v4733
    %v6669 = vsel %vm6635, %v6472, %v4735
    %v6670 = vsel %vm6635, %v6473, %v4737
    %v6671 = vsel %vm6635, %v6474, %v4739
    %v6672 = vsel %vm6635, %v6475, %v4741
    %v6673 = vsel %vm6635, %v6476, %v4743
    %v6674 = vsel %vm6635, %v6477, %v4745
    %v6675 = vsel %vm6635, %v6478, %v4747
    %v6676 = vsel %vm6635, %v6479, %v4749
    %v6677 = vsel %vm6635, %v6480, %v4751
    %v6678 = vsel %vm6635, %v6481, %v4753
    %v6679 = vsel %vm6635, %v6482, %v4755
    %v6680 = vsel %vm6635, %v6483, %v4757
    %v6681 = vsel %vm6635, %v6484, %v4759
    %v6682 = vsel %vm6635, %v6485, %v4761
    %v6683 = vsel %vm6635, %v6486, %v4763
    %v6684 = vsel %vm6635, %v6487, %v4765
    %v6685 = vsel %vm6635, %v6488, %v4767
    %v6686 = vsel %vm6635, %v6489, %v4769
    %v6687 = vsel %vm6635, %v6490, %v4771
    %v6688 = vsel %vm6635, %v6491, %v4773
    %v6689 = vsel %vm6635, %v6492, %v4775
    %v6690 = vsel %vm6635, %v6493, %v4777
    %v6691 = vsel %vm6635, %v6494, %v4779
    %v6692 = vsel %vm6635, %v6495, %v4781
    %v6693 = vsel %vm6635, %v6496, %v4783
    %v6694 = vsel %vm6635, %v6497, %v4785
    %v6695 = vsel %vm6635, %v6498, %v4787
    %v6696 = vsel %vm6635, %v6499, %v4789
    %v6697 = vsel %vm6635, %v6500, %v4791
    %v6698 = vsel %vm6635, %v6501, %v4793
    %v6699 = vsel %vm6635, %v6502, %v4795
    %v6700 = vsel %vm6635, %v6503, %v4797
    %v6701 = vsel %vm6635, %v6504, %v4799
    %v6702 = vsel %vm6635, %v6505, %v4801
    %v6703 = vsel %vm6635, %v6506, %v4803
    %v6704 = vsel %vm6635, %v6507, %v4805
    %v6705 = vsel %vm6635, %v6508, %v4807
    %v6706 = vsel %vm6635, %v6509, %v4809
    %v6707 = vsel %vm6635, %v6510, %v4811
    %v6708 = vsel %vm6635, %v6511, %v4813
    %v6709 = vsel %vm6635, %v6512, %v4815
    %v6710 = vsel %vm6635, %v6513, %v4817
    %v6711 = vsel %vm6635, %v6514, %v4819
    %v6712 = vsel %vm6635, %v6515, %v4821
    %v6713 = vsel %vm6635, %v6516, %v4823
    %v6714 = vsel %vm6635, %v6517, %v4825
    %v6715 = vsel %vm6635, %v6518, %v4827
    %v6716 = vsel %vm6635, %v6519, %v4829
    %v6717 = vsel %vm6635, %v6520, %v4831
    %v6718 = vsel %vm6635, %v6521, %v4833
    %v6719 = vsel %vm6635, %v6522, %v4835
    %v6720 = vsel %vm6635, %v6523, %v4837
    %v6721 = vsel %vm6635, %v6524, %v4839
    %v6722 = vsel %vm6635, %v6525, %v4841
    %v6723 = vsel %vm6635, %v6526, %v4843
    %v6724 = vsel %vm6635, %v6527, %v4845
    %v6725 = vsel %vm6635, %v6528, %v4847
    %v6726 = vsel %vm6635, %v6529, %v4849
    %v6727 = vsel %vm6635, %v6530, %v4851
    %v6728 = vsel %vm6635, %v6531, %v4853
    %v6729 = vsel %vm6635, %v6532, %v4855
    %v6730 = vsel %vm6635, %v6533, %v4857
    %v6731 = vsel %vm6635, %v6534, %v4859
    %v6732 = vsel %vm6635, %v6535, %v4861
    %v6733 = vsel %vm6635, %v6536, %v4863
    %v6734 = vsel %vm6635, %v6537, %v4865
    %v6735 = vsel %vm6635, %v6538, %v4867
    %v6736 = vsel %vm6635, %v6539, %v4869
    %v6737 = vsel %vm6635, %v6540, %v4871
    %v6738 = vsel %vm6635, %v6541, %v4873
    %v6739 = vsel %vm6635, %v6542, %v4875
    %v6740 = vsel %vm6635, %v6543, %v4877
    %v6741 = vsel %vm6635, %v6544, %v4879
    %v6742 = vsel %vm6635, %v6545, %v4881
    %v6743 = vsel %vm6635, %v6546, %v4883
    %v6744 = vsel %vm6635, %v6547, %v4885
    %v6745 = vsel %vm6635, %v6548, %v4887
    %v6746 = vsel %vm6635, %v6549, %v4889
    %v6747 = vsel %vm6635, %v6550, %v4891
    %v6748 = vsel %vm6635, %v6551, %v4893
    %v6749 = vsel %vm6635, %v6552, %v4895
    %v6750 = vsel %vm6635, %v6553, %v4897
    %v6751 = vsel %vm6635, %v6554, %v4899
    %v6752 = vsel %vm6635, %v6555, %v4901
    %v6753 = vsel %vm6635, %v6556, %v4903
    %v6754 = vsel %vm6635, %v6557, %v4905
    %v6755 = vsel %vm6635, %v6558, %v4907
    %v6756 = vsel %vm6635, %v6559, %v4909
    %v6757 = vsel %vm6635, %v6560, %v4911
    %v6758 = vsel %vm6635, %v6561, %v4913
    %v6759 = vsel %vm6635, %v6562, %v4915
    %v6760 = vsel %vm6635, %v6563, %v4917
    %v6761 = vsel %vm6635, %v6564, %v4919
    %v6762 = vsel %vm6635, %v6565, %v4921
    %v6763 = vsel %vm6635, %v6566, %v4923
    %v6764 = vsel %vm6635, %v6567, %v4925
    %v6765 = vsel %vm6635, %v6568, %v4927
    %v6766 = vsel %vm6635, %v6569, %v4929
    %v6767 = vsel %vm6635, %v6570, %v4931
    %v6768 = vsel %vm6635, %v6571, %v4933
    %v6769 = vsel %vm6635, %v6572, %v4935
    %v6770 = vsel %vm6635, %v6573, %v4937
    %v6771 = vsel %vm6635, %v6574, %v4939
    %v6772 = vsel %vm6635, %v6575, %v4941
    %v6773 = vsel %vm6635, %v6576, %v4943
    %v6774 = vsel %vm6635, %v6577, %v4945
    %v6775 = vsel %vm6635, %v6578, %v4947
    %v6776 = vsel %vm6635, %v6579, %v4949
    %v6777 = vsel %vm6635, %v6580, %v4951
    %v6778 = vsel %vm6635, %v6581, %v4953
    %v6779 = vsel %vm6635, %v6582, %v4955
    %v6780 = vsel %vm6635, %v6583, %v4957
    %v6781 = vsel %vm6635, %v6584, %v4959
    %v6782 = vsel %vm6635, %v6585, %v4961
    %v6783 = vsel %vm6635, %v6586, %v4963
    %v6784 = vsel %vm6635, %v6587, %v4965
    %v6785 = vsel %vm6635, %v6588, %v4967
    %v6786 = vsel %vm6635, %v6589, %v4969
    %v6787 = vsel %vm6635, %v6590, %v4971
    %v6788 = vsel %vm6635, %v6591, %v4973
    %v6789 = vsel %vm6635, %v6592, %v4975
    %v6790 = vsel %vm6635, %v6593, %v4977
    %v6791 = vsel %vm6635, %v6594, %v4979
    %v6792 = vsel %vm6635, %v6595, %v4981
    %v6793 = vsel %vm6635, %v6596, %v4983
    %v6794 = vsel %vm6635, %v6597, %v4985
    %v6795 = vsel %vm6635, %v6598, %v4987
    %v6796 = vsel %vm6635, %v6599, %v4989
    %v6797 = vsel %vm6635, %v6600, %v4991
    %v6798 = vsel %vm6635, %v6601, %v4993
    %v6799 = vsel %vm6635, %v6602, %v4995
    %v6800 = vsel %vm6635, %v6603, %v4997
    %v6801 = vsel %vm6635, %v6604, %v4999
    %v6802 = vsel %vm6635, %v6605, %v5001
    %v6803 = vsel %vm6635, %v6606, %v5003
    %v6804 = vsel %vm6635, %v6607, %v5005
    %v6805 = vsel %vm6635, %v6608, %v5007
    %v6806 = vsel %vm6635, %v6609, %v5009
    %v6807 = vsel %vm6635, %v6610, %v5011
    %v6808 = vsel %vm6635, %v6611, %v5013
    %v6809 = vsel %vm6635, %v6612, %v5015
    %v6810 = vsel %vm6635, %v6613, %v5017
    %v6811 = vsel %vm6635, %v6614, %v5019
    %v6812 = vsel %vm6635, %v6615, %v5021
    %v6813 = vsel %vm6635, %v6616, %v5023
    %v6814 = vsel %vm6635, %v6617, %v5025
    %v6815 = vsel %vm6635, %v6618, %v5027
    %v6816 = vsel %vm6635, %v6619, %v5029
    %v6817 = vsel %vm6635, %v6620, %v5031
    %v6818 = vsel %vm6635, %v6621, %v5033
    %v6819 = vsel %vm6635, %v6622, %v5035
    %v6820 = vsel %vm6635, %v6623, %v5037
    %v6821 = vsel %vm6635, %v6624, %v5039
    %v6822 = vsel %vm6635, %v6625, %v5041
    %v6823 = vsel %vm6635, %v6626, %v5043
    %v6824 = vsel %vm6635, %v6627, %v5045
    %v6825 = vsel %vm6635, %v6628, %v5047
    %v6826 = vsel %vm6635, %v6629, %v5049
    %v6827 = vsel %vm6635, %v6630, %v5051
    %v6828 = vsel %vm6635, %v6631, %v5053
    %v6829 = vsel %vm6635, %v6632, %v5055
    %v6830 = vsel %vm6635, %v6633, %v5057
    %v6831 = vsel %vm6635, %v6634, %v5059
    %v6832 = vld [vmem:[%s1] sm:$0xff]
    %v6833 = vld [vmem:[%s1 + $0x8] sm:$0xff]
    %v6834 = vld [vmem:[%s1 + $0x10] sm:$0xff]
    %v6835 = vld [vmem:[%s1 + $0x18] sm:$0xff]
    %v6836 = vld [vmem:[%s1 + $0x20] sm:$0xff]
    %v6837 = vld [vmem:[%s1 + $0x28] sm:$0xff]
    %v6838 = vld [vmem:[%s1 + $0x30] sm:$0xff]
    %v6839 = vld [vmem:[%s1 + $0x38] sm:$0xff]
    %v6840 = vld [vmem:[%s1 + $0x40] sm:$0xff]
    %vm6841 = vcmask 588800
    %v6843 = vsel %vm6841, %v6636, 0
    %v6846 = vsel %vm6841, %v6637, 0
    %v6849 = vsel %vm6841, %v6638, 0
    %v6852 = vsel %vm6841, %v6639, 0
    %v6855 = vsel %vm6841, %v6640, 0
    %v6858 = vsel %vm6841, %v6641, 0
    %v6861 = vsel %vm6841, %v6642, 0
    %v6864 = vsel %vm6841, %v6643, 0
    %v6867 = vsel %vm6841, %v6644, 0
    %v6870 = vsel %vm6841, %v6645, 0
    %v6873 = vsel %vm6841, %v6646, 0
    %v6876 = vsel %vm6841, %v6647, 0
    %v6879 = vsel %vm6841, %v6648, 0
    %v6882 = vsel %vm6841, %v6649, 0
    %v6885 = vsel %vm6841, %v6650, 0
    %v6888 = vsel %vm6841, %v6651, 0
    %v6891 = vsel %vm6841, %v6652, 0
    %v6894 = vsel %vm6841, %v6653, 0
    %v6897 = vsel %vm6841, %v6654, 0
    %v6900 = vsel %vm6841, %v6655, 0
    %v6903 = vsel %vm6841, %v6656, 0
    %v6906 = vsel %vm6841, %v6657, 0
    %v6909 = vsel %vm6841, %v6658, 0
    %v6912 = vsel %vm6841, %v6659, 0
    %v6915 = vsel %vm6841, %v6660, 0
    %v6918 = vsel %vm6841, %v6661, 0
    %v6921 = vsel %vm6841, %v6662, 0
    %v6924 = vsel %vm6841, %v6663, 0
    %v6927 = vsel %vm6841, %v6664, 0
    %v6930 = vsel %vm6841, %v6665, 0
    %v6933 = vsel %vm6841, %v6666, 0
    %v6936 = vsel %vm6841, %v6667, 0
    %v6939 = vsel %vm6841, %v6668, 0
    %v6942 = vsel %vm6841, %v6669, 0
    %v6945 = vsel %vm6841, %v6670, 0
    %v6948 = vsel %vm6841, %v6671, 0
    %v6951 = vsel %vm6841, %v6672, 0
    %v6954 = vsel %vm6841, %v6673, 0
    %v6957 = vsel %vm6841, %v6674, 0
    %v6960 = vsel %vm6841, %v6675, 0
    %v6963 = vsel %vm6841, %v6676, 0
    %v6966 = vsel %vm6841, %v6677, 0
    %v6969 = vsel %vm6841, %v6678, 0
    %v6972 = vsel %vm6841, %v6679, 0
    %v6975 = vsel %vm6841, %v6680, 0
    %v6978 = vsel %vm6841, %v6681, 0
    %v6981 = vsel %vm6841, %v6682, 0
    %v6984 = vsel %vm6841, %v6683, 0
    %v6987 = vsel %vm6841, %v6684, 0
    %v6990 = vsel %vm6841, %v6685, 0
    %v6993 = vsel %vm6841, %v6686, 0
    %v6996 = vsel %vm6841, %v6687, 0
    %v6999 = vsel %vm6841, %v6688, 0
    %v7002 = vsel %vm6841, %v6689, 0
    %v7005 = vsel %vm6841, %v6690, 0
    %v7008 = vsel %vm6841, %v6691, 0
    %v7011 = vsel %vm6841, %v6692, 0
    %v7014 = vsel %vm6841, %v6693, 0
    %v7017 = vsel %vm6841, %v6694, 0
    %v7020 = vsel %vm6841, %v6695, 0
    %v7023 = vsel %vm6841, %v6696, 0
    %v7026 = vsel %vm6841, %v6697, 0
    %v7029 = vsel %vm6841, %v6698, 0
    %v7032 = vsel %vm6841, %v6699, 0
    %v7035 = vsel %vm6841, %v6700, 0
    %v7038 = vsel %vm6841, %v6701, 0
    %v7041 = vsel %vm6841, %v6702, 0
    %v7044 = vsel %vm6841, %v6703, 0
    %v7047 = vsel %vm6841, %v6704, 0
    %v7050 = vsel %vm6841, %v6705, 0
    %v7053 = vsel %vm6841, %v6706, 0
    %v7056 = vsel %vm6841, %v6707, 0
    %v7059 = vsel %vm6841, %v6708, 0
    %v7062 = vsel %vm6841, %v6709, 0
    %v7065 = vsel %vm6841, %v6710, 0
    %v7068 = vsel %vm6841, %v6711, 0
    %v7071 = vsel %vm6841, %v6712, 0
    %v7074 = vsel %vm6841, %v6713, 0
    %v7077 = vsel %vm6841, %v6714, 0
    %v7080 = vsel %vm6841, %v6715, 0
    %v7083 = vsel %vm6841, %v6716, 0
    %v7086 = vsel %vm6841, %v6717, 0
    %v7089 = vsel %vm6841, %v6718, 0
    %v7092 = vsel %vm6841, %v6719, 0
    %v7095 = vsel %vm6841, %v6720, 0
    %v7098 = vsel %vm6841, %v6721, 0
    %v7101 = vsel %vm6841, %v6722, 0
    %v7104 = vsel %vm6841, %v6723, 0
    %v7107 = vsel %vm6841, %v6724, 0
    %v7110 = vsel %vm6841, %v6725, 0
    %v7113 = vsel %vm6841, %v6726, 0
    %v7116 = vsel %vm6841, %v6727, 0
    %v7119 = vsel %vm6841, %v6728, 0
    %v7122 = vsel %vm6841, %v6729, 0
    %v7125 = vsel %vm6841, %v6730, 0
    %v7128 = vsel %vm6841, %v6731, 0
    %v7131 = vsel %vm6841, %v6732, 0
    %v7134 = vsel %vm6841, %v6733, 0
    %v7137 = vsel %vm6841, %v6734, 0
    %v7140 = vsel %vm6841, %v6735, 0
    %v7143 = vsel %vm6841, %v6736, 0
    %v7146 = vsel %vm6841, %v6737, 0
    %v7149 = vsel %vm6841, %v6738, 0
    %v7152 = vsel %vm6841, %v6739, 0
    %v7155 = vsel %vm6841, %v6740, 0
    %v7158 = vsel %vm6841, %v6741, 0
    %v7161 = vsel %vm6841, %v6742, 0
    %v7164 = vsel %vm6841, %v6743, 0
    %v7167 = vsel %vm6841, %v6744, 0
    %v7170 = vsel %vm6841, %v6745, 0
    %v7173 = vsel %vm6841, %v6746, 0
    %v7176 = vsel %vm6841, %v6747, 0
    %v7179 = vsel %vm6841, %v6748, 0
    %v7182 = vsel %vm6841, %v6749, 0
    %v7185 = vsel %vm6841, %v6750, 0
    %v7188 = vsel %vm6841, %v6751, 0
    %v7191 = vsel %vm6841, %v6752, 0
    %v7194 = vsel %vm6841, %v6753, 0
    %v7197 = vsel %vm6841, %v6754, 0
    %v7200 = vsel %vm6841, %v6755, 0
    %v7203 = vsel %vm6841, %v6756, 0
    %v7206 = vsel %vm6841, %v6757, 0
    %v7209 = vsel %vm6841, %v6758, 0
    %v7212 = vsel %vm6841, %v6759, 0
    %v7215 = vsel %vm6841, %v6760, 0
    %v7218 = vsel %vm6841, %v6761, 0
    %v7221 = vsel %vm6841, %v6762, 0
    %v7224 = vsel %vm6841, %v6763, 0
    %v7227 = vsel %vm6841, %v6764, 0
    %v7230 = vsel %vm6841, %v6765, 0
    %v7233 = vsel %vm6841, %v6766, 0
    %v7236 = vsel %vm6841, %v6767, 0
    %v7239 = vsel %vm6841, %v6768, 0
    %v7242 = vsel %vm6841, %v6769, 0
    %v7245 = vsel %vm6841, %v6770, 0
    %v7248 = vsel %vm6841, %v6771, 0
    %v7251 = vsel %vm6841, %v6772, 0
    %v7254 = vsel %vm6841, %v6773, 0
    %v7257 = vsel %vm6841, %v6774, 0
    %v7260 = vsel %vm6841, %v6775, 0
    %v7263 = vsel %vm6841, %v6776, 0
    %v7266 = vsel %vm6841, %v6777, 0
    %v7269 = vsel %vm6841, %v6778, 0
    %v7272 = vsel %vm6841, %v6779, 0
    %v7275 = vsel %vm6841, %v6780, 0
    %v7278 = vsel %vm6841, %v6781, 0
    %v7281 = vsel %vm6841, %v6782, 0
    %v7284 = vsel %vm6841, %v6783, 0
    %v7287 = vsel %vm6841, %v6784, 0
    %v7290 = vsel %vm6841, %v6785, 0
    %v7293 = vsel %vm6841, %v6786, 0
    %v7296 = vsel %vm6841, %v6787, 0
    %v7299 = vsel %vm6841, %v6788, 0
    %v7302 = vsel %vm6841, %v6789, 0
    %v7305 = vsel %vm6841, %v6790, 0
    %v7308 = vsel %vm6841, %v6791, 0
    %v7311 = vsel %vm6841, %v6792, 0
    %v7314 = vsel %vm6841, %v6793, 0
    %v7317 = vsel %vm6841, %v6794, 0
    %v7320 = vsel %vm6841, %v6795, 0
    %v7323 = vsel %vm6841, %v6796, 0
    %v7326 = vsel %vm6841, %v6797, 0
    %v7329 = vsel %vm6841, %v6798, 0
    %v7332 = vsel %vm6841, %v6799, 0
    %v7335 = vsel %vm6841, %v6800, 0
    %v7338 = vsel %vm6841, %v6801, 0
    %v7341 = vsel %vm6841, %v6802, 0
    %v7344 = vsel %vm6841, %v6803, 0
    %v7347 = vsel %vm6841, %v6804, 0
    %v7350 = vsel %vm6841, %v6805, 0
    %v7353 = vsel %vm6841, %v6806, 0
    %v7356 = vsel %vm6841, %v6807, 0
    %v7359 = vsel %vm6841, %v6808, 0
    %v7362 = vsel %vm6841, %v6809, 0
    %v7365 = vsel %vm6841, %v6810, 0
    %v7368 = vsel %vm6841, %v6811, 0
    %v7371 = vsel %vm6841, %v6812, 0
    %v7374 = vsel %vm6841, %v6813, 0
    %v7377 = vsel %vm6841, %v6814, 0
    %v7380 = vsel %vm6841, %v6815, 0
    %v7383 = vsel %vm6841, %v6816, 0
    %v7386 = vsel %vm6841, %v6817, 0
    %v7389 = vsel %vm6841, %v6818, 0
    %v7392 = vsel %vm6841, %v6819, 0
    %v7395 = vsel %vm6841, %v6820, 0
    %v7398 = vsel %vm6841, %v6821, 0
    %v7401 = vsel %vm6841, %v6822, 0
    %v7404 = vsel %vm6841, %v6823, 0
    %v7407 = vsel %vm6841, %v6824, 0
    %v7410 = vsel %vm6841, %v6825, 0
    %v7413 = vsel %vm6841, %v6826, 0
    %v7416 = vsel %vm6841, %v6827, 0
    %v7419 = vsel %vm6841, %v6828, 0
    %v7422 = vsel %vm6841, %v6829, 0
    %v7425 = vsel %vm6841, %v6830, 0
    %v7428 = vsel %vm6841, %v6831, 0
    %7430 = vmatprep.subr.mxu0 0.0
    %7431 = vmatpush1.msra.mxu0 %v6832
    %7432 = vmatprep.subr.mxu0 0.0
    %7433 = vmatpush1.msra.mxu0 %v6833
    %7434 = vmatprep.subr.mxu0 0.0
    %7435 = vmatpush1.msra.mxu0 %v6834
    %7436 = vmatprep.subr.mxu0 0.0
    %7437 = vmatpush1.msra.mxu0 %v6835
    %7438 = vmatprep.subr.mxu0 0.0
    %7439 = vmatpush1.msra.mxu0 %v6836
    %7440 = vmatprep.subr.mxu0 0.0
    %7441 = vmatpush1.msra.mxu0 %v6837
    %7442 = vmatprep.subr.mxu0 0.0
    %7443 = vmatpush1.msra.mxu0 %v6838
    %7444 = vmatprep.subr.mxu0 0.0
    %7445 = vmatpush1.msra.mxu0 %v6839
    %7446 = vmatprep.subr.mxu0 0.0
    %7447 = vmatpush1.msra.mxu0 %v6840
    %7448 = vmatprep.subr.mxu0 0.0
    %7449 = vmatpush1.msra.mxu0 0.0
    %7450 = vmatprep.subr.mxu0 0.0
    %7451 = vmatpush1.msra.mxu0 0.0
    %7452 = vmatprep.subr.mxu0 0.0
    %7453 = vmatpush1.msra.mxu0 0.0
    %7454 = vmatprep.subr.mxu0 0.0
    %7455 = vmatpush1.msra.mxu0 0.0
    %7456 = vmatprep.subr.mxu0 0.0
    %7457 = vmatpush1.msra.mxu0 0.0
    %7458 = vmatprep.subr.mxu0 0.0
    %7459 = vmatpush1.msra.mxu0 0.0
    %7460 = vmatprep.subr.mxu0 0.0
    %7461 = vmatpush1.msra.mxu0 0.0
    %7462 = vmatprep.subr.mxu0 0.0
    %7463 = vmatpush1.msra.mxu0 0.0
    %7464 = vmatprep.subr.mxu0 0.0
    %7465 = vmatpush1.msra.mxu0 0.0
    %7466 = vmatprep.subr.mxu0 0.0
    %7467 = vmatpush1.msra.mxu0 0.0
    %7468 = vmatprep.subr.mxu0 0.0
    %7469 = vmatpush1.msra.mxu0 0.0
    %7470 = vmatprep.subr.mxu0 0.0
    %7471 = vmatpush1.msra.mxu0 0.0
    %7472 = vmatprep.subr.mxu0 0.0
    %7473 = vmatpush1.msra.mxu0 0.0
    %7474 = vmatprep.subr.mxu0 0.0
    %7475 = vmatpush1.msra.mxu0 0.0
    %7476 = vmatprep.subr.mxu0 0.0
    %7477 = vmatpush1.msra.mxu0 0.0
    %7478 = vmatprep.subr.mxu0 0.0
    %7479 = vmatpush1.msra.mxu0 0.0
    %7480 = vmatprep.subr.mxu0 0.0
    %7481 = vmatpush1.msra.mxu0 0.0
    %7482 = vmatprep.subr.mxu0 0.0
    %7483 = vmatpush1.msra.mxu0 0.0
    %7484 = vmatprep.subr.mxu0 0.0
    %7485 = vmatpush1.msra.mxu0 0.0
    %7486 = vmatprep.subr.mxu0 0.0
    %7487 = vmatpush1.msra.mxu0 0.0
    %7488 = vmatprep.subr.mxu0 0.0
    %7489 = vmatpush1.msra.mxu0 0.0
    %7490 = vmatprep.subr.mxu0 0.0
    %7491 = vmatpush1.msra.mxu0 0.0
    %7492 = vmatprep.subr.mxu0 0.0
    %7493 = vmatpush1.msra.mxu0 0.0
    %7494 = vmatprep.mubr.f32.mxu0 0.0
    %7495 = vmatmul.mubr.f32.gmra.mrb[0].mxu0 %v6843
    %v7496 = vpop.f32.mrb[0].mxu0
    %v7497 = vadd.f32 0.0, %v7496
    %v7498 = vpop.f32.mrb[0].mxu0
    %7499 = vmatprep.mubr.f32.mxu0 0.0
    %7500 = vmatmul.mubr.f32.gmra.mrb[0].mxu0 %v6846
    %v7501 = vpop.f32.mrb[0].mxu0
    %v7502 = vadd.f32 0.0, %v7501
    %v7503 = vpop.f32.mrb[0].mxu0
    %7504 = vmatprep.mubr.f32.mxu0 0.0
    %7505 = vmatmul.mubr.f32.gmra.mrb[0].mxu0 %v6849
    %v7506 = vpop.f32.mrb[0].mxu0
    %v7507 = vadd.f32 0.0, %v7506
    %v7508 = vpop.f32.mrb[0].mxu0
    %7509 = vmatprep.mubr.f32.mxu0 0.0
    %7510 = vmatmul.mubr.f32.gmra.mrb[0].mxu0 %v6852
    %v7511 = vpop.f32.mrb[0].mxu0
    %v7512 = vadd.f32 0.0, %v7511
    %v7513 = vpop.f32.mrb[0].mxu0
    %7514 = vmatprep.mubr.f32.mxu0 0.0
    %7515 = vmatmul.mubr.f32.gmra.mrb[0].mxu0 %v6855
    %v7516 = vpop.f32.mrb[0].mxu0
    %v7517 = vadd.f32 0.0, %v7516
    %v7518 = vpop.f32.mrb[0].mxu0
    %7519 = vmatprep.mubr.f32.mxu0 0.0
    %7520 = vmatmul.mubr.f32.gmra.mrb[0].mxu0 %v6858
    %v7521 = vpop.f32.mrb[0].mxu0
    %v7522 = vadd.f32 0.0, %v7521
    %v7523 = vpop.f32.mrb[0].mxu0
    %7524 = vmatprep.mubr.f32.mxu0 0.0
    %7525 = vmatmul.mubr.f32.gmra.mrb[0].mxu0 %v6861
    %v7526 = vpop.f32.mrb[0].mxu0
    %v7527 = vadd.f32 0.0, %v7526
    %v7528 = vpop.f32.mrb[0].mxu0
    %7529 = vmatprep.mubr.f32.mxu0 0.0
    %7530 = vmatmul.mubr.f32.gmra.mrb[0].mxu0 %v6864
    %v7531 = vpop.f32.mrb[0].mxu0
    %v7532 = vadd.f32 0.0, %v7531
    %v7533 = vpop.f32.mrb[0].mxu0
    %7534 = vmatprep.mubr.f32.mxu0 0.0
    %7535 = vmatmul.mubr.f32.gmra.mrb[0].mxu0 %v6867
    %v7536 = vpop.f32.mrb[0].mxu0
    %v7537 = vadd.f32 0.0, %v7536
    %v7538 = vpop.f32.mrb[0].mxu0
    %7539 = vmatprep.mubr.f32.mxu0 0.0
    %7540 = vmatmul.mubr.f32.gmra.mrb[0].mxu0 %v6870
    %v7541 = vpop.f32.mrb[0].mxu0
    %v7542 = vadd.f32 0.0, %v7541
    %v7543 = vpop.f32.mrb[0].mxu0
    %7544 = vmatprep.mubr.f32.mxu0 0.0
    %7545 = vmatmul.mubr.f32.gmra.mrb[0].mxu0 %v6873
    %v7546 = vpop.f32.mrb[0].mxu0
    %v7547 = vadd.f32 0.0, %v7546
    %v7548 = vpop.f32.mrb[0].mxu0
    %7549 = vmatprep.mubr.f32.mxu0 0.0
    %7550 = vmatmul.mubr.f32.gmra.mrb[0].mxu0 %v6876
    %v7551 = vpop.f32.mrb[0].mxu0
    %v7552 = vadd.f32 0.0, %v7551
    %v7553 = vpop.f32.mrb[0].mxu0
    %7554 = vmatprep.mubr.f32.mxu0 0.0
    %7555 = vmatmul.mubr.f32.gmra.mrb[0].mxu0 %v6879
    %v7556 = vpop.f32.mrb[0].mxu0
    %v7557 = vadd.f32 0.0, %v7556
    %v7558 = vpop.f32.mrb[0].mxu0
    %7559 = vmatprep.mubr.f32.mxu0 0.0
    %7560 = vmatmul.mubr.f32.gmra.mrb[0].mxu0 %v6882
    %v7561 = vpop.f32.mrb[0].mxu0
    %v7562 = vadd.f32 0.0, %v7561
    %v7563 = vpop.f32.mrb[0].mxu0
    %7564 = vmatprep.mubr.f32.mxu0 0.0
    %7565 = vmatmul.mubr.f32.gmra.mrb[0].mxu0 %v6885
    %v7566 = vpop.f32.mrb[0].mxu0
    %v7567 = vadd.f32 0.0, %v7566
    %v7568 = vpop.f32.mrb[0].mxu0
    %7569 = vmatprep.mubr.f32.mxu0 0.0
    %7570 = vmatmul.mubr.f32.gmra.mrb[0].mxu0 %v6888
    %v7571 = vpop.f32.mrb[0].mxu0
    %v7572 = vadd.f32 0.0, %v7571
    %v7573 = vpop.f32.mrb[0].mxu0
    %7574 = vmatprep.mubr.f32.mxu0 0.0
    %7575 = vmatmul.mubr.f32.gmra.mrb[0].mxu0 %v6891
    %v7576 = vpop.f32.mrb[0].mxu0
    %v7577 = vadd.f32 0.0, %v7576
    %v7578 = vpop.f32.mrb[0].mxu0
    %7579 = vmatprep.mubr.f32.mxu0 0.0
    %7580 = vmatmul.mubr.f32.gmra.mrb[0].mxu0 %v6894
    %v7581 = vpop.f32.mrb[0].mxu0
    %v7582 = vadd.f32 0.0, %v7581
    %v7583 = vpop.f32.mrb[0].mxu0
    %7584 = vmatprep.mubr.f32.mxu0 0.0
    %7585 = vmatmul.mubr.f32.gmra.mrb[0].mxu0 %v6897
    %v7586 = vpop.f32.mrb[0].mxu0
    %v7587 = vadd.f32 0.0, %v7586
    %v7588 = vpop.f32.mrb[0].mxu0
    %7589 = vmatprep.mubr.f32.mxu0 0.0
    %7590 = vmatmul.mubr.f32.gmra.mrb[0].mxu0 %v6900
    %v7591 = vpop.f32.mrb[0].mxu0
    %v7592 = vadd.f32 0.0, %v7591
    %v7593 = vpop.f32.mrb[0].mxu0
    %7594 = vmatprep.mubr.f32.mxu0 0.0
    %7595 = vmatmul.mubr.f32.gmra.mrb[0].mxu0 %v6903
    %v7596 = vpop.f32.mrb[0].mxu0
    %v7597 = vadd.f32 0.0, %v7596
    %v7598 = vpop.f32.mrb[0].mxu0
    %7599 = vmatprep.mubr.f32.mxu0 0.0
    %7600 = vmatmul.mubr.f32.gmra.mrb[0].mxu0 %v6906
    %v7601 = vpop.f32.mrb[0].mxu0
    %v7602 = vadd.f32 0.0, %v7601
    %v7603 = vpop.f32.mrb[0].mxu0
    %7604 = vmatprep.mubr.f32.mxu0 0.0
    %7605 = vmatmul.mubr.f32.gmra.mrb[0].mxu0 %v6909
    %v7606 = vpop.f32.mrb[0].mxu0
    %v7607 = vadd.f32 0.0, %v7606
    %v7608 = vpop.f32.mrb[0].mxu0
    %7609 = vmatprep.mubr.f32.mxu0 0.0
    %7610 = vmatmul.mubr.f32.gmra.mrb[0].mxu0 %v6912
    %v7611 = vpop.f32.mrb[0].mxu0
    %v7612 = vadd.f32 0.0, %v7611
    %v7613 = vpop.f32.mrb[0].mxu0
    %7614 = vmatprep.mubr.f32.mxu0 0.0
    %7615 = vmatmul.mubr.f32.gmra.mrb[0].mxu0 %v6915
    %v7616 = vpop.f32.mrb[0].mxu0
    %v7617 = vadd.f32 0.0, %v7616
    %v7618 = vpop.f32.mrb[0].mxu0
    %7619 = vmatprep.mubr.f32.mxu0 0.0
    %7620 = vmatmul.mubr.f32.gmra.mrb[0].mxu0 %v6918
    %v7621 = vpop.f32.mrb[0].mxu0
    %v7622 = vadd.f32 0.0, %v7621
    %v7623 = vpop.f32.mrb[0].mxu0
    %7624 = vmatprep.mubr.f32.mxu0 0.0
    %7625 = vmatmul.mubr.f32.gmra.mrb[0].mxu0 %v6921
    %v7626 = vpop.f32.mrb[0].mxu0
    %v7627 = vadd.f32 0.0, %v7626
    %v7628 = vpop.f32.mrb[0].mxu0
    %7629 = vmatprep.mubr.f32.mxu0 0.0
    %7630 = vmatmul.mubr.f32.gmra.mrb[0].mxu0 %v6924
    %v7631 = vpop.f32.mrb[0].mxu0
    %v7632 = vadd.f32 0.0, %v7631
    %v7633 = vpop.f32.mrb[0].mxu0
    %7634 = vmatprep.mubr.f32.mxu0 0.0
    %7635 = vmatmul.mubr.f32.gmra.mrb[0].mxu0 %v6927
    %v7636 = vpop.f32.mrb[0].mxu0
    %v7637 = vadd.f32 0.0, %v7636
    %v7638 = vpop.f32.mrb[0].mxu0
    %7639 = vmatprep.mubr.f32.mxu0 0.0
    %7640 = vmatmul.mubr.f32.gmra.mrb[0].mxu0 %v6930
    %v7641 = vpop.f32.mrb[0].mxu0
    %v7642 = vadd.f32 0.0, %v7641
    %v7643 = vpop.f32.mrb[0].mxu0
    %7644 = vmatprep.mubr.f32.mxu0 0.0
    %7645 = vmatmul.mubr.f32.gmra.mrb[0].mxu0 %v6933
    %v7646 = vpop.f32.mrb[0].mxu0
    %v7647 = vadd.f32 0.0, %v7646
    %v7648 = vpop.f32.mrb[0].mxu0
    %7649 = vmatprep.mubr.f32.mxu0 0.0
    %7650 = vmatmul.mubr.f32.gmra.mrb[0].mxu0 %v6936
    %v7651 = vpop.f32.mrb[0].mxu0
    %v7652 = vadd.f32 0.0, %v7651
    %v7653 = vpop.f32.mrb[0].mxu0
    %7654 = vmatprep.mubr.f32.mxu0 0.0
    %7655 = vmatmul.mubr.f32.gmra.mrb[0].mxu0 %v6939
    %v7656 = vpop.f32.mrb[0].mxu0
    %v7657 = vadd.f32 0.0, %v7656
    %v7658 = vpop.f32.mrb[0].mxu0
    %7659 = vmatprep.mubr.f32.mxu0 0.0
    %7660 = vmatmul.mubr.f32.gmra.mrb[0].mxu0 %v6942
    %v7661 = vpop.f32.mrb[0].mxu0
    %v7662 = vadd.f32 0.0, %v7661
    %v7663 = vpop.f32.mrb[0].mxu0
    %7664 = vmatprep.mubr.f32.mxu0 0.0
    %7665 = vmatmul.mubr.f32.gmra.mrb[0].mxu0 %v6945
    %v7666 = vpop.f32.mrb[0].mxu0
    %v7667 = vadd.f32 0.0, %v7666
    %v7668 = vpop.f32.mrb[0].mxu0
    %7669 = vmatprep.mubr.f32.mxu0 0.0
    %7670 = vmatmul.mubr.f32.gmra.mrb[0].mxu0 %v6948
    %v7671 = vpop.f32.mrb[0].mxu0
    %v7672 = vadd.f32 0.0, %v7671
    %v7673 = vpop.f32.mrb[0].mxu0
    %7674 = vmatprep.mubr.f32.mxu0 0.0
    %7675 = vmatmul.mubr.f32.gmra.mrb[0].mxu0 %v6951
    %v7676 = vpop.f32.mrb[0].mxu0
    %v7677 = vadd.f32 0.0, %v7676
    %v7678 = vpop.f32.mrb[0].mxu0
    %7679 = vmatprep.mubr.f32.mxu0 0.0
    %7680 = vmatmul.mubr.f32.gmra.mrb[0].mxu0 %v6954
    %v7681 = vpop.f32.mrb[0].mxu0
    %v7682 = vadd.f32 0.0, %v7681
    %v7683 = vpop.f32.mrb[0].mxu0
    %7684 = vmatprep.mubr.f32.mxu0 0.0
    %7685 = vmatmul.mubr.f32.gmra.mrb[0].mxu0 %v6957
    %v7686 = vpop.f32.mrb[0].mxu0
    %v7687 = vadd.f32 0.0, %v7686
    %v7688 = vpop.f32.mrb[0].mxu0
    %7689 = vmatprep.mubr.f32.mxu0 0.0
    %7690 = vmatmul.mubr.f32.gmra.mrb[0].mxu0 %v6960
    %v7691 = vpop.f32.mrb[0].mxu0
    %v7692 = vadd.f32 0.0, %v7691
    %v7693 = vpop.f32.mrb[0].mxu0
    %7694 = vmatprep.mubr.f32.mxu0 0.0
    %7695 = vmatmul.mubr.f32.gmra.mrb[0].mxu0 %v6963
    %v7696 = vpop.f32.mrb[0].mxu0
    %v7697 = vadd.f32 0.0, %v7696
    %v7698 = vpop.f32.mrb[0].mxu0
    %7699 = vmatprep.mubr.f32.mxu0 0.0
    %7700 = vmatmul.mubr.f32.gmra.mrb[0].mxu0 %v6966
    %v7701 = vpop.f32.mrb[0].mxu0
    %v7702 = vadd.f32 0.0, %v7701
    %v7703 = vpop.f32.mrb[0].mxu0
    %7704 = vmatprep.mubr.f32.mxu0 0.0
    %7705 = vmatmul.mubr.f32.gmra.mrb[0].mxu0 %v6969
    %v7706 = vpop.f32.mrb[0].mxu0
    %v7707 = vadd.f32 0.0, %v7706
    %v7708 = vpop.f32.mrb[0].mxu0
    %7709 = vmatprep.mubr.f32.mxu0 0.0
    %7710 = vmatmul.mubr.f32.gmra.mrb[0].mxu0 %v6972
    %v7711 = vpop.f32.mrb[0].mxu0
    %v7712 = vadd.f32 0.0, %v7711
    %v7713 = vpop.f32.mrb[0].mxu0
    %7714 = vmatprep.mubr.f32.mxu0 0.0
    %7715 = vmatmul.mubr.f32.gmra.mrb[0].mxu0 %v6975
    %v7716 = vpop.f32.mrb[0].mxu0
    %v7717 = vadd.f32 0.0, %v7716
    %v7718 = vpop.f32.mrb[0].mxu0
    %7719 = vmatprep.mubr.f32.mxu0 0.0
    %7720 = vmatmul.mubr.f32.gmra.mrb[0].mxu0 %v6978
    %v7721 = vpop.f32.mrb[0].mxu0
    %v7722 = vadd.f32 0.0, %v7721
    %v7723 = vpop.f32.mrb[0].mxu0
    %7724 = vmatprep.mubr.f32.mxu0 0.0
    %7725 = vmatmul.mubr.f32.gmra.mrb[0].mxu0 %v6981
    %v7726 = vpop.f32.mrb[0].mxu0
    %v7727 = vadd.f32 0.0, %v7726
    %v7728 = vpop.f32.mrb[0].mxu0
    %7729 = vmatprep.mubr.f32.mxu0 0.0
    %7730 = vmatmul.mubr.f32.gmra.mrb[0].mxu0 %v6984
    %v7731 = vpop.f32.mrb[0].mxu0
    %v7732 = vadd.f32 0.0, %v7731
    %v7733 = vpop.f32.mrb[0].mxu0
    %7734 = vmatprep.mubr.f32.mxu0 0.0
    %7735 = vmatmul.mubr.f32.gmra.mrb[0].mxu0 %v6987
    %v7736 = vpop.f32.mrb[0].mxu0
    %v7737 = vadd.f32 0.0, %v7736
    %v7738 = vpop.f32.mrb[0].mxu0
    %7739 = vmatprep.mubr.f32.mxu0 0.0
    %7740 = vmatmul.mubr.f32.gmra.mrb[0].mxu0 %v6990
    %v7741 = vpop.f32.mrb[0].mxu0
    %v7742 = vadd.f32 0.0, %v7741
    %v7743 = vpop.f32.mrb[0].mxu0
    %7744 = vmatprep.mubr.f32.mxu0 0.0
    %7745 = vmatmul.mubr.f32.gmra.mrb[0].mxu0 %v6993
    %v7746 = vpop.f32.mrb[0].mxu0
    %v7747 = vadd.f32 0.0, %v7746
    %v7748 = vpop.f32.mrb[0].mxu0
    %7749 = vmatprep.mubr.f32.mxu0 0.0
    %7750 = vmatmul.mubr.f32.gmra.mrb[0].mxu0 %v6996
    %v7751 = vpop.f32.mrb[0].mxu0
    %v7752 = vadd.f32 0.0, %v7751
    %v7753 = vpop.f32.mrb[0].mxu0
    %7754 = vmatprep.mubr.f32.mxu0 0.0
    %7755 = vmatmul.mubr.f32.gmra.mrb[0].mxu0 %v6999
    %v7756 = vpop.f32.mrb[0].mxu0
    %v7757 = vadd.f32 0.0, %v7756
    %v7758 = vpop.f32.mrb[0].mxu0
    %7759 = vmatprep.mubr.f32.mxu0 0.0
    %7760 = vmatmul.mubr.f32.gmra.mrb[0].mxu0 %v7002
    %v7761 = vpop.f32.mrb[0].mxu0
    %v7762 = vadd.f32 0.0, %v7761
    %v7763 = vpop.f32.mrb[0].mxu0
    %7764 = vmatprep.mubr.f32.mxu0 0.0
    %7765 = vmatmul.mubr.f32.gmra.mrb[0].mxu0 %v7005
    %v7766 = vpop.f32.mrb[0].mxu0
    %v7767 = vadd.f32 0.0, %v7766
    %v7768 = vpop.f32.mrb[0].mxu0
    %7769 = vmatprep.mubr.f32.mxu0 0.0
    %7770 = vmatmul.mubr.f32.gmra.mrb[0].mxu0 %v7008
    %v7771 = vpop.f32.mrb[0].mxu0
    %v7772 = vadd.f32 0.0, %v7771
    %v7773 = vpop.f32.mrb[0].mxu0
    %7774 = vmatprep.mubr.f32.mxu0 0.0
    %7775 = vmatmul.mubr.f32.gmra.mrb[0].mxu0 %v7011
    %v7776 = vpop.f32.mrb[0].mxu0
    %v7777 = vadd.f32 0.0, %v7776
    %v7778 = vpop.f32.mrb[0].mxu0
    %7779 = vmatprep.mubr.f32.mxu0 0.0
    %7780 = vmatmul.mubr.f32.gmra.mrb[0].mxu0 %v7014
    %v7781 = vpop.f32.mrb[0].mxu0
    %v7782 = vadd.f32 0.0, %v7781
    %v7783 = vpop.f32.mrb[0].mxu0
    %7784 = vmatprep.mubr.f32.mxu0 0.0
    %7785 = vmatmul.mubr.f32.gmra.mrb[0].mxu0 %v7017
    %v7786 = vpop.f32.mrb[0].mxu0
    %v7787 = vadd.f32 0.0, %v7786
    %v7788 = vpop.f32.mrb[0].mxu0
    %7789 = vmatprep.mubr.f32.mxu0 0.0
    %7790 = vmatmul.mubr.f32.gmra.mrb[0].mxu0 %v7020
    %v7791 = vpop.f32.mrb[0].mxu0
    %v7792 = vadd.f32 0.0, %v7791
    %v7793 = vpop.f32.mrb[0].mxu0
    %7794 = vmatprep.mubr.f32.mxu0 0.0
    %7795 = vmatmul.mubr.f32.gmra.mrb[0].mxu0 %v7023
    %v7796 = vpop.f32.mrb[0].mxu0
    %v7797 = vadd.f32 0.0, %v7796
    %v7798 = vpop.f32.mrb[0].mxu0
    %7799 = vmatprep.mubr.f32.mxu0 0.0
    %7800 = vmatmul.mubr.f32.gmra.mrb[0].mxu0 %v7026
    %v7801 = vpop.f32.mrb[0].mxu0
    %v7802 = vadd.f32 0.0, %v7801
    %v7803 = vpop.f32.mrb[0].mxu0
    %7804 = vmatprep.mubr.f32.mxu0 0.0
    %7805 = vmatmul.mubr.f32.gmra.mrb[0].mxu0 %v7029
    %v7806 = vpop.f32.mrb[0].mxu0
    %v7807 = vadd.f32 0.0, %v7806
    %v7808 = vpop.f32.mrb[0].mxu0
    %7809 = vmatprep.mubr.f32.mxu0 0.0
    %7810 = vmatmul.mubr.f32.gmra.mrb[0].mxu0 %v7032
    %v7811 = vpop.f32.mrb[0].mxu0
    %v7812 = vadd.f32 0.0, %v7811
    %v7813 = vpop.f32.mrb[0].mxu0
    %7814 = vmatprep.mubr.f32.mxu0 0.0
    %7815 = vmatmul.mubr.f32.gmra.mrb[0].mxu0 %v7035
    %v7816 = vpop.f32.mrb[0].mxu0
    %v7817 = vadd.f32 0.0, %v7816
    %v7818 = vpop.f32.mrb[0].mxu0
    %7819 = vmatprep.mubr.f32.mxu0 0.0
    %7820 = vmatmul.mubr.f32.gmra.mrb[0].mxu0 %v7038
    %v7821 = vpop.f32.mrb[0].mxu0
    %v7822 = vadd.f32 0.0, %v7821
    %v7823 = vpop.f32.mrb[0].mxu0
    %7824 = vmatprep.mubr.f32.mxu0 0.0
    %7825 = vmatmul.mubr.f32.gmra.mrb[0].mxu0 %v7041
    %v7826 = vpop.f32.mrb[0].mxu0
    %v7827 = vadd.f32 0.0, %v7826
    %v7828 = vpop.f32.mrb[0].mxu0
    %7829 = vmatprep.mubr.f32.mxu0 0.0
    %7830 = vmatmul.mubr.f32.gmra.mrb[0].mxu0 %v7044
    %v7831 = vpop.f32.mrb[0].mxu0
    %v7832 = vadd.f32 0.0, %v7831
    %v7833 = vpop.f32.mrb[0].mxu0
    %7834 = vmatprep.mubr.f32.mxu0 0.0
    %7835 = vmatmul.mubr.f32.gmra.mrb[0].mxu0 %v7047
    %v7836 = vpop.f32.mrb[0].mxu0
    %v7837 = vadd.f32 0.0, %v7836
    %v7838 = vpop.f32.mrb[0].mxu0
    %7839 = vmatprep.mubr.f32.mxu0 0.0
    %7840 = vmatmul.mubr.f32.gmra.mrb[0].mxu0 %v7050
    %v7841 = vpop.f32.mrb[0].mxu0
    %v7842 = vadd.f32 0.0, %v7841
    %v7843 = vpop.f32.mrb[0].mxu0
    %7844 = vmatprep.mubr.f32.mxu0 0.0
    %7845 = vmatmul.mubr.f32.gmra.mrb[0].mxu0 %v7053
    %v7846 = vpop.f32.mrb[0].mxu0
    %v7847 = vadd.f32 0.0, %v7846
    %v7848 = vpop.f32.mrb[0].mxu0
    %7849 = vmatprep.mubr.f32.mxu0 0.0
    %7850 = vmatmul.mubr.f32.gmra.mrb[0].mxu0 %v7056
    %v7851 = vpop.f32.mrb[0].mxu0
    %v7852 = vadd.f32 0.0, %v7851
    %v7853 = vpop.f32.mrb[0].mxu0
    %7854 = vmatprep.mubr.f32.mxu0 0.0
    %7855 = vmatmul.mubr.f32.gmra.mrb[0].mxu0 %v7059
    %v7856 = vpop.f32.mrb[0].mxu0
    %v7857 = vadd.f32 0.0, %v7856
    %v7858 = vpop.f32.mrb[0].mxu0
    %7859 = vmatprep.mubr.f32.mxu0 0.0
    %7860 = vmatmul.mubr.f32.gmra.mrb[0].mxu0 %v7062
    %v7861 = vpop.f32.mrb[0].mxu0
    %v7862 = vadd.f32 0.0, %v7861
    %v7863 = vpop.f32.mrb[0].mxu0
    %7864 = vmatprep.mubr.f32.mxu0 0.0
    %7865 = vmatmul.mubr.f32.gmra.mrb[0].mxu0 %v7065
    %v7866 = vpop.f32.mrb[0].mxu0
    %v7867 = vadd.f32 0.0, %v7866
    %v7868 = vpop.f32.mrb[0].mxu0
    %7869 = vmatprep.mubr.f32.mxu0 0.0
    %7870 = vmatmul.mubr.f32.gmra.mrb[0].mxu0 %v7068
    %v7871 = vpop.f32.mrb[0].mxu0
    %v7872 = vadd.f32 0.0, %v7871
    %v7873 = vpop.f32.mrb[0].mxu0
    %7874 = vmatprep.mubr.f32.mxu0 0.0
    %7875 = vmatmul.mubr.f32.gmra.mrb[0].mxu0 %v7071
    %v7876 = vpop.f32.mrb[0].mxu0
    %v7877 = vadd.f32 0.0, %v7876
    %v7878 = vpop.f32.mrb[0].mxu0
    %7879 = vmatprep.mubr.f32.mxu0 0.0
    %7880 = vmatmul.mubr.f32.gmra.mrb[0].mxu0 %v7074
    %v7881 = vpop.f32.mrb[0].mxu0
    %v7882 = vadd.f32 0.0, %v7881
    %v7883 = vpop.f32.mrb[0].mxu0
    %7884 = vmatprep.mubr.f32.mxu0 0.0
    %7885 = vmatmul.mubr.f32.gmra.mrb[0].mxu0 %v7077
    %v7886 = vpop.f32.mrb[0].mxu0
    %v7887 = vadd.f32 0.0, %v7886
    %v7888 = vpop.f32.mrb[0].mxu0
    %7889 = vmatprep.mubr.f32.mxu0 0.0
    %7890 = vmatmul.mubr.f32.gmra.mrb[0].mxu0 %v7080
    %v7891 = vpop.f32.mrb[0].mxu0
    %v7892 = vadd.f32 0.0, %v7891
    %v7893 = vpop.f32.mrb[0].mxu0
    %7894 = vmatprep.mubr.f32.mxu0 0.0
    %7895 = vmatmul.mubr.f32.gmra.mrb[0].mxu0 %v7083
    %v7896 = vpop.f32.mrb[0].mxu0
    %v7897 = vadd.f32 0.0, %v7896
    %v7898 = vpop.f32.mrb[0].mxu0
    %7899 = vmatprep.mubr.f32.mxu0 0.0
    %7900 = vmatmul.mubr.f32.gmra.mrb[0].mxu0 %v7086
    %v7901 = vpop.f32.mrb[0].mxu0
    %v7902 = vadd.f32 0.0, %v7901
    %v7903 = vpop.f32.mrb[0].mxu0
    %7904 = vmatprep.mubr.f32.mxu0 0.0
    %7905 = vmatmul.mubr.f32.gmra.mrb[0].mxu0 %v7089
    %v7906 = vpop.f32.mrb[0].mxu0
    %v7907 = vadd.f32 0.0, %v7906
    %v7908 = vpop.f32.mrb[0].mxu0
    %7909 = vmatprep.mubr.f32.mxu0 0.0
    %7910 = vmatmul.mubr.f32.gmra.mrb[0].mxu0 %v7092
    %v7911 = vpop.f32.mrb[0].mxu0
    %v7912 = vadd.f32 0.0, %v7911
    %v7913 = vpop.f32.mrb[0].mxu0
    %7914 = vmatprep.mubr.f32.mxu0 0.0
    %7915 = vmatmul.mubr.f32.gmra.mrb[0].mxu0 %v7095
    %v7916 = vpop.f32.mrb[0].mxu0
    %v7917 = vadd.f32 0.0, %v7916
    %v7918 = vpop.f32.mrb[0].mxu0
    %7919 = vmatprep.mubr.f32.mxu0 0.0
    %7920 = vmatmul.mubr.f32.gmra.mrb[0].mxu0 %v7098
    %v7921 = vpop.f32.mrb[0].mxu0
    %v7922 = vadd.f32 0.0, %v7921
    %v7923 = vpop.f32.mrb[0].mxu0
    %7924 = vmatprep.mubr.f32.mxu0 0.0
    %7925 = vmatmul.mubr.f32.gmra.mrb[0].mxu0 %v7101
    %v7926 = vpop.f32.mrb[0].mxu0
    %v7927 = vadd.f32 0.0, %v7926
    %v7928 = vpop.f32.mrb[0].mxu0
    %7929 = vmatprep.mubr.f32.mxu0 0.0
    %7930 = vmatmul.mubr.f32.gmra.mrb[0].mxu0 %v7104
    %v7931 = vpop.f32.mrb[0].mxu0
    %v7932 = vadd.f32 0.0, %v7931
    %v7933 = vpop.f32.mrb[0].mxu0
    %7934 = vmatprep.mubr.f32.mxu0 0.0
    %7935 = vmatmul.mubr.f32.gmra.mrb[0].mxu0 %v7107
    %v7936 = vpop.f32.mrb[0].mxu0
    %v7937 = vadd.f32 0.0, %v7936
    %v7938 = vpop.f32.mrb[0].mxu0
    %7939 = vmatprep.mubr.f32.mxu0 0.0
    %7940 = vmatmul.mubr.f32.gmra.mrb[0].mxu0 %v7110
    %v7941 = vpop.f32.mrb[0].mxu0
    %v7942 = vadd.f32 0.0, %v7941
    %v7943 = vpop.f32.mrb[0].mxu0
    %7944 = vmatprep.mubr.f32.mxu0 0.0
    %7945 = vmatmul.mubr.f32.gmra.mrb[0].mxu0 %v7113
    %v7946 = vpop.f32.mrb[0].mxu0
    %v7947 = vadd.f32 0.0, %v7946
    %v7948 = vpop.f32.mrb[0].mxu0
    %7949 = vmatprep.mubr.f32.mxu0 0.0
    %7950 = vmatmul.mubr.f32.gmra.mrb[0].mxu0 %v7116
    %v7951 = vpop.f32.mrb[0].mxu0
    %v7952 = vadd.f32 0.0, %v7951
    %v7953 = vpop.f32.mrb[0].mxu0
    %7954 = vmatprep.mubr.f32.mxu0 0.0
    %7955 = vmatmul.mubr.f32.gmra.mrb[0].mxu0 %v7119
    %v7956 = vpop.f32.mrb[0].mxu0
    %v7957 = vadd.f32 0.0, %v7956
    %v7958 = vpop.f32.mrb[0].mxu0
    %7959 = vmatprep.mubr.f32.mxu0 0.0
    %7960 = vmatmul.mubr.f32.gmra.mrb[0].mxu0 %v7122
    %v7961 = vpop.f32.mrb[0].mxu0
    %v7962 = vadd.f32 0.0, %v7961
    %v7963 = vpop.f32.mrb[0].mxu0
    %7964 = vmatprep.mubr.f32.mxu0 0.0
    %7965 = vmatmul.mubr.f32.gmra.mrb[0].mxu0 %v7125
    %v7966 = vpop.f32.mrb[0].mxu0
    %v7967 = vadd.f32 0.0, %v7966
    %v7968 = vpop.f32.mrb[0].mxu0
    %7969 = vmatprep.mubr.f32.mxu0 0.0
    %7970 = vmatmul.mubr.f32.gmra.mrb[0].mxu0 %v7128
    %v7971 = vpop.f32.mrb[0].mxu0
    %v7972 = vadd.f32 0.0, %v7971
    %v7973 = vpop.f32.mrb[0].mxu0
    %7974 = vmatprep.mubr.f32.mxu0 0.0
    %7975 = vmatmul.mubr.f32.gmra.mrb[0].mxu0 %v7131
    %v7976 = vpop.f32.mrb[0].mxu0
    %v7977 = vadd.f32 0.0, %v7976
    %v7978 = vpop.f32.mrb[0].mxu0
    %7979 = vmatprep.mubr.f32.mxu0 0.0
    %7980 = vmatmul.mubr.f32.gmra.mrb[0].mxu0 %v7134
    %v7981 = vpop.f32.mrb[0].mxu0
    %v7982 = vadd.f32 0.0, %v7981
    %v7983 = vpop.f32.mrb[0].mxu0
    %7984 = vmatprep.mubr.f32.mxu0 0.0
    %7985 = vmatmul.mubr.f32.gmra.mrb[0].mxu0 %v7137
    %v7986 = vpop.f32.mrb[0].mxu0
    %v7987 = vadd.f32 0.0, %v7986
    %v7988 = vpop.f32.mrb[0].mxu0
    %7989 = vmatprep.mubr.f32.mxu0 0.0
    %7990 = vmatmul.mubr.f32.gmra.mrb[0].mxu0 %v7140
    %v7991 = vpop.f32.mrb[0].mxu0
    %v7992 = vadd.f32 0.0, %v7991
    %v7993 = vpop.f32.mrb[0].mxu0
    %7994 = vmatprep.mubr.f32.mxu0 0.0
    %7995 = vmatmul.mubr.f32.gmra.mrb[0].mxu0 %v7143
    %v7996 = vpop.f32.mrb[0].mxu0
    %v7997 = vadd.f32 0.0, %v7996
    %v7998 = vpop.f32.mrb[0].mxu0
    %7999 = vmatprep.mubr.f32.mxu0 0.0
    %8000 = vmatmul.mubr.f32.gmra.mrb[0].mxu0 %v7146
    %v8001 = vpop.f32.mrb[0].mxu0
    %v8002 = vadd.f32 0.0, %v8001
    %v8003 = vpop.f32.mrb[0].mxu0
    %8004 = vmatprep.mubr.f32.mxu0 0.0
    %8005 = vmatmul.mubr.f32.gmra.mrb[0].mxu0 %v7149
    %v8006 = vpop.f32.mrb[0].mxu0
    %v8007 = vadd.f32 0.0, %v8006
    %v8008 = vpop.f32.mrb[0].mxu0
    %8009 = vmatprep.mubr.f32.mxu0 0.0
    %8010 = vmatmul.mubr.f32.gmra.mrb[0].mxu0 %v7152
    %v8011 = vpop.f32.mrb[0].mxu0
    %v8012 = vadd.f32 0.0, %v8011
    %v8013 = vpop.f32.mrb[0].mxu0
    %8014 = vmatprep.mubr.f32.mxu0 0.0
    %8015 = vmatmul.mubr.f32.gmra.mrb[0].mxu0 %v7155
    %v8016 = vpop.f32.mrb[0].mxu0
    %v8017 = vadd.f32 0.0, %v8016
    %v8018 = vpop.f32.mrb[0].mxu0
    %8019 = vmatprep.mubr.f32.mxu0 0.0
    %8020 = vmatmul.mubr.f32.gmra.mrb[0].mxu0 %v7158
    %v8021 = vpop.f32.mrb[0].mxu0
    %v8022 = vadd.f32 0.0, %v8021
    %v8023 = vpop.f32.mrb[0].mxu0
    %8024 = vmatprep.mubr.f32.mxu0 0.0
    %8025 = vmatmul.mubr.f32.gmra.mrb[0].mxu0 %v7161
    %v8026 = vpop.f32.mrb[0].mxu0
    %v8027 = vadd.f32 0.0, %v8026
    %v8028 = vpop.f32.mrb[0].mxu0
    %8029 = vmatprep.mubr.f32.mxu0 0.0
    %8030 = vmatmul.mubr.f32.gmra.mrb[0].mxu0 %v7164
    %v8031 = vpop.f32.mrb[0].mxu0
    %v8032 = vadd.f32 0.0, %v8031
    %v8033 = vpop.f32.mrb[0].mxu0
    %8034 = vmatprep.mubr.f32.mxu0 0.0
    %8035 = vmatmul.mubr.f32.gmra.mrb[0].mxu0 %v7167
    %v8036 = vpop.f32.mrb[0].mxu0
    %v8037 = vadd.f32 0.0, %v8036
    %v8038 = vpop.f32.mrb[0].mxu0
    %8039 = vmatprep.mubr.f32.mxu0 0.0
    %8040 = vmatmul.mubr.f32.gmra.mrb[0].mxu0 %v7170
    %v8041 = vpop.f32.mrb[0].mxu0
    %v8042 = vadd.f32 0.0, %v8041
    %v8043 = vpop.f32.mrb[0].mxu0
    %8044 = vmatprep.mubr.f32.mxu0 0.0
    %8045 = vmatmul.mubr.f32.gmra.mrb[0].mxu0 %v7173
    %v8046 = vpop.f32.mrb[0].mxu0
    %v8047 = vadd.f32 0.0, %v8046
    %v8048 = vpop.f32.mrb[0].mxu0
    %8049 = vmatprep.mubr.f32.mxu0 0.0
    %8050 = vmatmul.mubr.f32.gmra.mrb[0].mxu0 %v7176
    %v8051 = vpop.f32.mrb[0].mxu0
    %v8052 = vadd.f32 0.0, %v8051
    %v8053 = vpop.f32.mrb[0].mxu0
    %8054 = vmatprep.mubr.f32.mxu0 0.0
    %8055 = vmatmul.mubr.f32.gmra.mrb[0].mxu0 %v7179
    %v8056 = vpop.f32.mrb[0].mxu0
    %v8057 = vadd.f32 0.0, %v8056
    %v8058 = vpop.f32.mrb[0].mxu0
    %8059 = vmatprep.mubr.f32.mxu0 0.0
    %8060 = vmatmul.mubr.f32.gmra.mrb[0].mxu0 %v7182
    %v8061 = vpop.f32.mrb[0].mxu0
    %v8062 = vadd.f32 0.0, %v8061
    %v8063 = vpop.f32.mrb[0].mxu0
    %8064 = vmatprep.mubr.f32.mxu0 0.0
    %8065 = vmatmul.mubr.f32.gmra.mrb[0].mxu0 %v7185
    %v8066 = vpop.f32.mrb[0].mxu0
    %v8067 = vadd.f32 0.0, %v8066
    %v8068 = vpop.f32.mrb[0].mxu0
    %8069 = vmatprep.mubr.f32.mxu0 0.0
    %8070 = vmatmul.mubr.f32.gmra.mrb[0].mxu0 %v7188
    %v8071 = vpop.f32.mrb[0].mxu0
    %v8072 = vadd.f32 0.0, %v8071
    %v8073 = vpop.f32.mrb[0].mxu0
    %8074 = vmatprep.mubr.f32.mxu0 0.0
    %8075 = vmatmul.mubr.f32.gmra.mrb[0].mxu0 %v7191
    %v8076 = vpop.f32.mrb[0].mxu0
    %v8077 = vadd.f32 0.0, %v8076
    %v8078 = vpop.f32.mrb[0].mxu0
    %8079 = vmatprep.mubr.f32.mxu0 0.0
    %8080 = vmatmul.mubr.f32.gmra.mrb[0].mxu0 %v7194
    %v8081 = vpop.f32.mrb[0].mxu0
    %v8082 = vadd.f32 0.0, %v8081
    %v8083 = vpop.f32.mrb[0].mxu0
    %8084 = vmatprep.mubr.f32.mxu0 0.0
    %8085 = vmatmul.mubr.f32.gmra.mrb[0].mxu0 %v7197
    %v8086 = vpop.f32.mrb[0].mxu0
    %v8087 = vadd.f32 0.0, %v8086
    %v8088 = vpop.f32.mrb[0].mxu0
    %8089 = vmatprep.mubr.f32.mxu0 0.0
    %8090 = vmatmul.mubr.f32.gmra.mrb[0].mxu0 %v7200
    %v8091 = vpop.f32.mrb[0].mxu0
    %v8092 = vadd.f32 0.0, %v8091
    %v8093 = vpop.f32.mrb[0].mxu0
    %8094 = vmatprep.mubr.f32.mxu0 0.0
    %8095 = vmatmul.mubr.f32.gmra.mrb[0].mxu0 %v7203
    %v8096 = vpop.f32.mrb[0].mxu0
    %v8097 = vadd.f32 0.0, %v8096
    %v8098 = vpop.f32.mrb[0].mxu0
    %8099 = vmatprep.mubr.f32.mxu0 0.0
    %8100 = vmatmul.mubr.f32.gmra.mrb[0].mxu0 %v7206
    %v8101 = vpop.f32.mrb[0].mxu0
    %v8102 = vadd.f32 0.0, %v8101
    %v8103 = vpop.f32.mrb[0].mxu0
    %8104 = vmatprep.mubr.f32.mxu0 0.0
    %8105 = vmatmul.mubr.f32.gmra.mrb[0].mxu0 %v7209
    %v8106 = vpop.f32.mrb[0].mxu0
    %v8107 = vadd.f32 0.0, %v8106
    %v8108 = vpop.f32.mrb[0].mxu0
    %8109 = vmatprep.mubr.f32.mxu0 0.0
    %8110 = vmatmul.mubr.f32.gmra.mrb[0].mxu0 %v7212
    %v8111 = vpop.f32.mrb[0].mxu0
    %v8112 = vadd.f32 0.0, %v8111
    %v8113 = vpop.f32.mrb[0].mxu0
    %8114 = vmatprep.mubr.f32.mxu0 0.0
    %8115 = vmatmul.mubr.f32.gmra.mrb[0].mxu0 %v7215
    %v8116 = vpop.f32.mrb[0].mxu0
    %v8117 = vadd.f32 0.0, %v8116
    %v8118 = vpop.f32.mrb[0].mxu0
    %8119 = vmatprep.mubr.f32.mxu0 0.0
    %8120 = vmatmul.mubr.f32.gmra.mrb[0].mxu0 %v7218
    %v8121 = vpop.f32.mrb[0].mxu0
    %v8122 = vadd.f32 0.0, %v8121
    %v8123 = vpop.f32.mrb[0].mxu0
    %8124 = vmatprep.mubr.f32.mxu0 0.0
    %8125 = vmatmul.mubr.f32.gmra.mrb[0].mxu0 %v7221
    %v8126 = vpop.f32.mrb[0].mxu0
    %v8127 = vadd.f32 0.0, %v8126
    %v8128 = vpop.f32.mrb[0].mxu0
    %8129 = vmatprep.mubr.f32.mxu0 0.0
    %8130 = vmatmul.mubr.f32.gmra.mrb[0].mxu0 %v7224
    %v8131 = vpop.f32.mrb[0].mxu0
    %v8132 = vadd.f32 0.0, %v8131
    %v8133 = vpop.f32.mrb[0].mxu0
    %8134 = vmatprep.mubr.f32.mxu0 0.0
    %8135 = vmatmul.mubr.f32.gmra.mrb[0].mxu0 %v7227
    %v8136 = vpop.f32.mrb[0].mxu0
    %v8137 = vadd.f32 0.0, %v8136
    %v8138 = vpop.f32.mrb[0].mxu0
    %8139 = vmatprep.mubr.f32.mxu0 0.0
    %8140 = vmatmul.mubr.f32.gmra.mrb[0].mxu0 %v7230
    %v8141 = vpop.f32.mrb[0].mxu0
    %v8142 = vadd.f32 0.0, %v8141
    %v8143 = vpop.f32.mrb[0].mxu0
    %8144 = vmatprep.mubr.f32.mxu0 0.0
    %8145 = vmatmul.mubr.f32.gmra.mrb[0].mxu0 %v7233
    %v8146 = vpop.f32.mrb[0].mxu0
    %v8147 = vadd.f32 0.0, %v8146
    %v8148 = vpop.f32.mrb[0].mxu0
    %8149 = vmatprep.mubr.f32.mxu0 0.0
    %8150 = vmatmul.mubr.f32.gmra.mrb[0].mxu0 %v7236
    %v8151 = vpop.f32.mrb[0].mxu0
    %v8152 = vadd.f32 0.0, %v8151
    %v8153 = vpop.f32.mrb[0].mxu0
    %8154 = vmatprep.mubr.f32.mxu0 0.0
    %8155 = vmatmul.mubr.f32.gmra.mrb[0].mxu0 %v7239
    %v8156 = vpop.f32.mrb[0].mxu0
    %v8157 = vadd.f32 0.0, %v8156
    %v8158 = vpop.f32.mrb[0].mxu0
    %8159 = vmatprep.mubr.f32.mxu0 0.0
    %8160 = vmatmul.mubr.f32.gmra.mrb[0].mxu0 %v7242
    %v8161 = vpop.f32.mrb[0].mxu0
    %v8162 = vadd.f32 0.0, %v8161
    %v8163 = vpop.f32.mrb[0].mxu0
    %8164 = vmatprep.mubr.f32.mxu0 0.0
    %8165 = vmatmul.mubr.f32.gmra.mrb[0].mxu0 %v7245
    %v8166 = vpop.f32.mrb[0].mxu0
    %v8167 = vadd.f32 0.0, %v8166
    %v8168 = vpop.f32.mrb[0].mxu0
    %8169 = vmatprep.mubr.f32.mxu0 0.0
    %8170 = vmatmul.mubr.f32.gmra.mrb[0].mxu0 %v7248
    %v8171 = vpop.f32.mrb[0].mxu0
    %v8172 = vadd.f32 0.0, %v8171
    %v8173 = vpop.f32.mrb[0].mxu0
    %8174 = vmatprep.mubr.f32.mxu0 0.0
    %8175 = vmatmul.mubr.f32.gmra.mrb[0].mxu0 %v7251
    %v8176 = vpop.f32.mrb[0].mxu0
    %v8177 = vadd.f32 0.0, %v8176
    %v8178 = vpop.f32.mrb[0].mxu0
    %8179 = vmatprep.mubr.f32.mxu0 0.0
    %8180 = vmatmul.mubr.f32.gmra.mrb[0].mxu0 %v7254
    %v8181 = vpop.f32.mrb[0].mxu0
    %v8182 = vadd.f32 0.0, %v8181
    %v8183 = vpop.f32.mrb[0].mxu0
    %8184 = vmatprep.mubr.f32.mxu0 0.0
    %8185 = vmatmul.mubr.f32.gmra.mrb[0].mxu0 %v7257
    %v8186 = vpop.f32.mrb[0].mxu0
    %v8187 = vadd.f32 0.0, %v8186
    %v8188 = vpop.f32.mrb[0].mxu0
    %8189 = vmatprep.mubr.f32.mxu0 0.0
    %8190 = vmatmul.mubr.f32.gmra.mrb[0].mxu0 %v7260
    %v8191 = vpop.f32.mrb[0].mxu0
    %v8192 = vadd.f32 0.0, %v8191
    %v8193 = vpop.f32.mrb[0].mxu0
    %8194 = vmatprep.mubr.f32.mxu0 0.0
    %8195 = vmatmul.mubr.f32.gmra.mrb[0].mxu0 %v7263
    %v8196 = vpop.f32.mrb[0].mxu0
    %v8197 = vadd.f32 0.0, %v8196
    %v8198 = vpop.f32.mrb[0].mxu0
    %8199 = vmatprep.mubr.f32.mxu0 0.0
    %8200 = vmatmul.mubr.f32.gmra.mrb[0].mxu0 %v7266
    %v8201 = vpop.f32.mrb[0].mxu0
    %v8202 = vadd.f32 0.0, %v8201
    %v8203 = vpop.f32.mrb[0].mxu0
    %8204 = vmatprep.mubr.f32.mxu0 0.0
    %8205 = vmatmul.mubr.f32.gmra.mrb[0].mxu0 %v7269
    %v8206 = vpop.f32.mrb[0].mxu0
    %v8207 = vadd.f32 0.0, %v8206
    %v8208 = vpop.f32.mrb[0].mxu0
    %8209 = vmatprep.mubr.f32.mxu0 0.0
    %8210 = vmatmul.mubr.f32.gmra.mrb[0].mxu0 %v7272
    %v8211 = vpop.f32.mrb[0].mxu0
    %v8212 = vadd.f32 0.0, %v8211
    %v8213 = vpop.f32.mrb[0].mxu0
    %8214 = vmatprep.mubr.f32.mxu0 0.0
    %8215 = vmatmul.mubr.f32.gmra.mrb[0].mxu0 %v7275
    %v8216 = vpop.f32.mrb[0].mxu0
    %v8217 = vadd.f32 0.0, %v8216
    %v8218 = vpop.f32.mrb[0].mxu0
    %8219 = vmatprep.mubr.f32.mxu0 0.0
    %8220 = vmatmul.mubr.f32.gmra.mrb[0].mxu0 %v7278
    %v8221 = vpop.f32.mrb[0].mxu0
    %v8222 = vadd.f32 0.0, %v8221
    %v8223 = vpop.f32.mrb[0].mxu0
    %8224 = vmatprep.mubr.f32.mxu0 0.0
    %8225 = vmatmul.mubr.f32.gmra.mrb[0].mxu0 %v7281
    %v8226 = vpop.f32.mrb[0].mxu0
    %v8227 = vadd.f32 0.0, %v8226
    %v8228 = vpop.f32.mrb[0].mxu0
    %8229 = vmatprep.mubr.f32.mxu0 0.0
    %8230 = vmatmul.mubr.f32.gmra.mrb[0].mxu0 %v7284
    %v8231 = vpop.f32.mrb[0].mxu0
    %v8232 = vadd.f32 0.0, %v8231
    %v8233 = vpop.f32.mrb[0].mxu0
    %8234 = vmatprep.mubr.f32.mxu0 0.0
    %8235 = vmatmul.mubr.f32.gmra.mrb[0].mxu0 %v7287
    %v8236 = vpop.f32.mrb[0].mxu0
    %v8237 = vadd.f32 0.0, %v8236
    %v8238 = vpop.f32.mrb[0].mxu0
    %8239 = vmatprep.mubr.f32.mxu0 0.0
    %8240 = vmatmul.mubr.f32.gmra.mrb[0].mxu0 %v7290
    %v8241 = vpop.f32.mrb[0].mxu0
    %v8242 = vadd.f32 0.0, %v8241
    %v8243 = vpop.f32.mrb[0].mxu0
    %8244 = vmatprep.mubr.f32.mxu0 0.0
    %8245 = vmatmul.mubr.f32.gmra.mrb[0].mxu0 %v7293
    %v8246 = vpop.f32.mrb[0].mxu0
    %v8247 = vadd.f32 0.0, %v8246
    %v8248 = vpop.f32.mrb[0].mxu0
    %8249 = vmatprep.mubr.f32.mxu0 0.0
    %8250 = vmatmul.mubr.f32.gmra.mrb[0].mxu0 %v7296
    %v8251 = vpop.f32.mrb[0].mxu0
    %v8252 = vadd.f32 0.0, %v8251
    %v8253 = vpop.f32.mrb[0].mxu0
    %8254 = vmatprep.mubr.f32.mxu0 0.0
    %8255 = vmatmul.mubr.f32.gmra.mrb[0].mxu0 %v7299
    %v8256 = vpop.f32.mrb[0].mxu0
    %v8257 = vadd.f32 0.0, %v8256
    %v8258 = vpop.f32.mrb[0].mxu0
    %8259 = vmatprep.mubr.f32.mxu0 0.0
    %8260 = vmatmul.mubr.f32.gmra.mrb[0].mxu0 %v7302
    %v8261 = vpop.f32.mrb[0].mxu0
    %v8262 = vadd.f32 0.0, %v8261
    %v8263 = vpop.f32.mrb[0].mxu0
    %8264 = vmatprep.mubr.f32.mxu0 0.0
    %8265 = vmatmul.mubr.f32.gmra.mrb[0].mxu0 %v7305
    %v8266 = vpop.f32.mrb[0].mxu0
    %v8267 = vadd.f32 0.0, %v8266
    %v8268 = vpop.f32.mrb[0].mxu0
    %8269 = vmatprep.mubr.f32.mxu0 0.0
    %8270 = vmatmul.mubr.f32.gmra.mrb[0].mxu0 %v7308
    %v8271 = vpop.f32.mrb[0].mxu0
    %v8272 = vadd.f32 0.0, %v8271
    %v8273 = vpop.f32.mrb[0].mxu0
    %8274 = vmatprep.mubr.f32.mxu0 0.0
    %8275 = vmatmul.mubr.f32.gmra.mrb[0].mxu0 %v7311
    %v8276 = vpop.f32.mrb[0].mxu0
    %v8277 = vadd.f32 0.0, %v8276
    %v8278 = vpop.f32.mrb[0].mxu0
    %8279 = vmatprep.mubr.f32.mxu0 0.0
    %8280 = vmatmul.mubr.f32.gmra.mrb[0].mxu0 %v7314
    %v8281 = vpop.f32.mrb[0].mxu0
    %v8282 = vadd.f32 0.0, %v8281
    %v8283 = vpop.f32.mrb[0].mxu0
    %8284 = vmatprep.mubr.f32.mxu0 0.0
    %8285 = vmatmul.mubr.f32.gmra.mrb[0].mxu0 %v7317
    %v8286 = vpop.f32.mrb[0].mxu0
    %v8287 = vadd.f32 0.0, %v8286
    %v8288 = vpop.f32.mrb[0].mxu0
    %8289 = vmatprep.mubr.f32.mxu0 0.0
    %8290 = vmatmul.mubr.f32.gmra.mrb[0].mxu0 %v7320
    %v8291 = vpop.f32.mrb[0].mxu0
    %v8292 = vadd.f32 0.0, %v8291
    %v8293 = vpop.f32.mrb[0].mxu0
    %8294 = vmatprep.mubr.f32.mxu0 0.0
    %8295 = vmatmul.mubr.f32.gmra.mrb[0].mxu0 %v7323
    %v8296 = vpop.f32.mrb[0].mxu0
    %v8297 = vadd.f32 0.0, %v8296
    %v8298 = vpop.f32.mrb[0].mxu0
    %8299 = vmatprep.mubr.f32.mxu0 0.0
    %8300 = vmatmul.mubr.f32.gmra.mrb[0].mxu0 %v7326
    %v8301 = vpop.f32.mrb[0].mxu0
    %v8302 = vadd.f32 0.0, %v8301
    %v8303 = vpop.f32.mrb[0].mxu0
    %8304 = vmatprep.mubr.f32.mxu0 0.0
    %8305 = vmatmul.mubr.f32.gmra.mrb[0].mxu0 %v7329
    %v8306 = vpop.f32.mrb[0].mxu0
    %v8307 = vadd.f32 0.0, %v8306
    %v8308 = vpop.f32.mrb[0].mxu0
    %8309 = vmatprep.mubr.f32.mxu0 0.0
    %8310 = vmatmul.mubr.f32.gmra.mrb[0].mxu0 %v7332
    %v8311 = vpop.f32.mrb[0].mxu0
    %v8312 = vadd.f32 0.0, %v8311
    %v8313 = vpop.f32.mrb[0].mxu0
    %8314 = vmatprep.mubr.f32.mxu0 0.0
    %8315 = vmatmul.mubr.f32.gmra.mrb[0].mxu0 %v7335
    %v8316 = vpop.f32.mrb[0].mxu0
    %v8317 = vadd.f32 0.0, %v8316
    %v8318 = vpop.f32.mrb[0].mxu0
    %8319 = vmatprep.mubr.f32.mxu0 0.0
    %8320 = vmatmul.mubr.f32.gmra.mrb[0].mxu0 %v7338
    %v8321 = vpop.f32.mrb[0].mxu0
    %v8322 = vadd.f32 0.0, %v8321
    %v8323 = vpop.f32.mrb[0].mxu0
    %8324 = vmatprep.mubr.f32.mxu0 0.0
    %8325 = vmatmul.mubr.f32.gmra.mrb[0].mxu0 %v7341
    %v8326 = vpop.f32.mrb[0].mxu0
    %v8327 = vadd.f32 0.0, %v8326
    %v8328 = vpop.f32.mrb[0].mxu0
    %8329 = vmatprep.mubr.f32.mxu0 0.0
    %8330 = vmatmul.mubr.f32.gmra.mrb[0].mxu0 %v7344
    %v8331 = vpop.f32.mrb[0].mxu0
    %v8332 = vadd.f32 0.0, %v8331
    %v8333 = vpop.f32.mrb[0].mxu0
    %8334 = vmatprep.mubr.f32.mxu0 0.0
    %8335 = vmatmul.mubr.f32.gmra.mrb[0].mxu0 %v7347
    %v8336 = vpop.f32.mrb[0].mxu0
    %v8337 = vadd.f32 0.0, %v8336
    %v8338 = vpop.f32.mrb[0].mxu0
    %8339 = vmatprep.mubr.f32.mxu0 0.0
    %8340 = vmatmul.mubr.f32.gmra.mrb[0].mxu0 %v7350
    %v8341 = vpop.f32.mrb[0].mxu0
    %v8342 = vadd.f32 0.0, %v8341
    %v8343 = vpop.f32.mrb[0].mxu0
    %8344 = vmatprep.mubr.f32.mxu0 0.0
    %8345 = vmatmul.mubr.f32.gmra.mrb[0].mxu0 %v7353
    %v8346 = vpop.f32.mrb[0].mxu0
    %v8347 = vadd.f32 0.0, %v8346
    %v8348 = vpop.f32.mrb[0].mxu0
    %8349 = vmatprep.mubr.f32.mxu0 0.0
    %8350 = vmatmul.mubr.f32.gmra.mrb[0].mxu0 %v7356
    %v8351 = vpop.f32.mrb[0].mxu0
    %v8352 = vadd.f32 0.0, %v8351
    %v8353 = vpop.f32.mrb[0].mxu0
    %8354 = vmatprep.mubr.f32.mxu0 0.0
    %8355 = vmatmul.mubr.f32.gmra.mrb[0].mxu0 %v7359
    %v8356 = vpop.f32.mrb[0].mxu0
    %v8357 = vadd.f32 0.0, %v8356
    %v8358 = vpop.f32.mrb[0].mxu0
    %8359 = vmatprep.mubr.f32.mxu0 0.0
    %8360 = vmatmul.mubr.f32.gmra.mrb[0].mxu0 %v7362
    %v8361 = vpop.f32.mrb[0].mxu0
    %v8362 = vadd.f32 0.0, %v8361
    %v8363 = vpop.f32.mrb[0].mxu0
    %8364 = vmatprep.mubr.f32.mxu0 0.0
    %8365 = vmatmul.mubr.f32.gmra.mrb[0].mxu0 %v7365
    %v8366 = vpop.f32.mrb[0].mxu0
    %v8367 = vadd.f32 0.0, %v8366
    %v8368 = vpop.f32.mrb[0].mxu0
    %8369 = vmatprep.mubr.f32.mxu0 0.0
    %8370 = vmatmul.mubr.f32.gmra.mrb[0].mxu0 %v7368
    %v8371 = vpop.f32.mrb[0].mxu0
    %v8372 = vadd.f32 0.0, %v8371
    %v8373 = vpop.f32.mrb[0].mxu0
    %8374 = vmatprep.mubr.f32.mxu0 0.0
    %8375 = vmatmul.mubr.f32.gmra.mrb[0].mxu0 %v7371
    %v8376 = vpop.f32.mrb[0].mxu0
    %v8377 = vadd.f32 0.0, %v8376
    %v8378 = vpop.f32.mrb[0].mxu0
    %8379 = vmatprep.mubr.f32.mxu0 0.0
    %8380 = vmatmul.mubr.f32.gmra.mrb[0].mxu0 %v7374
    %v8381 = vpop.f32.mrb[0].mxu0
    %v8382 = vadd.f32 0.0, %v8381
    %v8383 = vpop.f32.mrb[0].mxu0
    %8384 = vmatprep.mubr.f32.mxu0 0.0
    %8385 = vmatmul.mubr.f32.gmra.mrb[0].mxu0 %v7377
    %v8386 = vpop.f32.mrb[0].mxu0
    %v8387 = vadd.f32 0.0, %v8386
    %v8388 = vpop.f32.mrb[0].mxu0
    %8389 = vmatprep.mubr.f32.mxu0 0.0
    %8390 = vmatmul.mubr.f32.gmra.mrb[0].mxu0 %v7380
    %v8391 = vpop.f32.mrb[0].mxu0
    %v8392 = vadd.f32 0.0, %v8391
    %v8393 = vpop.f32.mrb[0].mxu0
    %8394 = vmatprep.mubr.f32.mxu0 0.0
    %8395 = vmatmul.mubr.f32.gmra.mrb[0].mxu0 %v7383
    %v8396 = vpop.f32.mrb[0].mxu0
    %v8397 = vadd.f32 0.0, %v8396
    %v8398 = vpop.f32.mrb[0].mxu0
    %8399 = vmatprep.mubr.f32.mxu0 0.0
    %8400 = vmatmul.mubr.f32.gmra.mrb[0].mxu0 %v7386
    %v8401 = vpop.f32.mrb[0].mxu0
    %v8402 = vadd.f32 0.0, %v8401
    %v8403 = vpop.f32.mrb[0].mxu0
    %8404 = vmatprep.mubr.f32.mxu0 0.0
    %8405 = vmatmul.mubr.f32.gmra.mrb[0].mxu0 %v7389
    %v8406 = vpop.f32.mrb[0].mxu0
    %v8407 = vadd.f32 0.0, %v8406
    %v8408 = vpop.f32.mrb[0].mxu0
    %8409 = vmatprep.mubr.f32.mxu0 0.0
    %8410 = vmatmul.mubr.f32.gmra.mrb[0].mxu0 %v7392
    %v8411 = vpop.f32.mrb[0].mxu0
    %v8412 = vadd.f32 0.0, %v8411
    %v8413 = vpop.f32.mrb[0].mxu0
    %8414 = vmatprep.mubr.f32.mxu0 0.0
    %8415 = vmatmul.mubr.f32.gmra.mrb[0].mxu0 %v7395
    %v8416 = vpop.f32.mrb[0].mxu0
    %v8417 = vadd.f32 0.0, %v8416
    %v8418 = vpop.f32.mrb[0].mxu0
    %8419 = vmatprep.mubr.f32.mxu0 0.0
    %8420 = vmatmul.mubr.f32.gmra.mrb[0].mxu0 %v7398
    %v8421 = vpop.f32.mrb[0].mxu0
    %v8422 = vadd.f32 0.0, %v8421
    %v8423 = vpop.f32.mrb[0].mxu0
    %8424 = vmatprep.mubr.f32.mxu0 0.0
    %8425 = vmatmul.mubr.f32.gmra.mrb[0].mxu0 %v7401
    %v8426 = vpop.f32.mrb[0].mxu0
    %v8427 = vadd.f32 0.0, %v8426
    %v8428 = vpop.f32.mrb[0].mxu0
    %8429 = vmatprep.mubr.f32.mxu0 0.0
    %8430 = vmatmul.mubr.f32.gmra.mrb[0].mxu0 %v7404
    %v8431 = vpop.f32.mrb[0].mxu0
    %v8432 = vadd.f32 0.0, %v8431
    %v8433 = vpop.f32.mrb[0].mxu0
    %8434 = vmatprep.mubr.f32.mxu0 0.0
    %8435 = vmatmul.mubr.f32.gmra.mrb[0].mxu0 %v7407
    %v8436 = vpop.f32.mrb[0].mxu0
    %v8437 = vadd.f32 0.0, %v8436
    %v8438 = vpop.f32.mrb[0].mxu0
    %8439 = vmatprep.mubr.f32.mxu0 0.0
    %8440 = vmatmul.mubr.f32.gmra.mrb[0].mxu0 %v7410
    %v8441 = vpop.f32.mrb[0].mxu0
    %v8442 = vadd.f32 0.0, %v8441
    %v8443 = vpop.f32.mrb[0].mxu0
    %8444 = vmatprep.mubr.f32.mxu0 0.0
    %8445 = vmatmul.mubr.f32.gmra.mrb[0].mxu0 %v7413
    %v8446 = vpop.f32.mrb[0].mxu0
    %v8447 = vadd.f32 0.0, %v8446
    %v8448 = vpop.f32.mrb[0].mxu0
    %8449 = vmatprep.mubr.f32.mxu0 0.0
    %8450 = vmatmul.mubr.f32.gmra.mrb[0].mxu0 %v7416
    %v8451 = vpop.f32.mrb[0].mxu0
    %v8452 = vadd.f32 0.0, %v8451
    %v8453 = vpop.f32.mrb[0].mxu0
    %8454 = vmatprep.mubr.f32.mxu0 0.0
    %8455 = vmatmul.mubr.f32.gmra.mrb[0].mxu0 %v7419
    %v8456 = vpop.f32.mrb[0].mxu0
    %v8457 = vadd.f32 0.0, %v8456
    %v8458 = vpop.f32.mrb[0].mxu0
    %8459 = vmatprep.mubr.f32.mxu0 0.0
    %8460 = vmatmul.mubr.f32.gmra.mrb[0].mxu0 %v7422
    %v8461 = vpop.f32.mrb[0].mxu0
    %v8462 = vadd.f32 0.0, %v8461
    %v8463 = vpop.f32.mrb[0].mxu0
    %8464 = vmatprep.mubr.f32.mxu0 0.0
    %8465 = vmatmul.mubr.f32.gmra.mrb[0].mxu0 %v7425
    %v8466 = vpop.f32.mrb[0].mxu0
    %v8467 = vadd.f32 0.0, %v8466
    %v8468 = vpop.f32.mrb[0].mxu0
    %8469 = vmatprep.mubr.f32.mxu0 0.0
    %8470 = vmatmul.mubr.f32.gmra.mrb[0].mxu0 %v7428
    %v8471 = vpop.f32.mrb[0].mxu0
    %v8472 = vadd.f32 0.0, %v8471
    %v8473 = vpop.f32.mrb[0].mxu0
    %8474 = vdwg.mxu0
    %v8475 = vld [vmem:[%s2] sm:$0x1]
    %v8477 = vlaneseq
    %v8478 = vshrl.u32 %v8477, 7
    %v8479 = vsub.s32 0, %v8478
    %v8480 = vrot.slane %v8475, %v8479
    %v8482 = vmul.f32 %v7497, %v8480
    %v8483 = vmul.f32 %v7502, %v8480
    %v8484 = vmul.f32 %v7507, %v8480
    %v8485 = vmul.f32 %v7512, %v8480
    %v8486 = vmul.f32 %v7517, %v8480
    %v8487 = vmul.f32 %v7522, %v8480
    %v8488 = vmul.f32 %v7527, %v8480
    %v8489 = vmul.f32 %v7532, %v8480
    %v8490 = vmul.f32 %v7537, %v8480
    %v8491 = vmul.f32 %v7542, %v8480
    %v8492 = vmul.f32 %v7547, %v8480
    %v8493 = vmul.f32 %v7552, %v8480
    %v8494 = vmul.f32 %v7557, %v8480
    %v8495 = vmul.f32 %v7562, %v8480
    %v8496 = vmul.f32 %v7567, %v8480
    %v8497 = vmul.f32 %v7572, %v8480
    %v8498 = vmul.f32 %v7577, %v8480
    %v8499 = vmul.f32 %v7582, %v8480
    %v8500 = vmul.f32 %v7587, %v8480
    %v8501 = vmul.f32 %v7592, %v8480
    %v8502 = vmul.f32 %v7597, %v8480
    %v8503 = vmul.f32 %v7602, %v8480
    %v8504 = vmul.f32 %v7607, %v8480
    %v8505 = vmul.f32 %v7612, %v8480
    %v8506 = vmul.f32 %v7617, %v8480
    %v8507 = vmul.f32 %v7622, %v8480
    %v8508 = vmul.f32 %v7627, %v8480
    %v8509 = vmul.f32 %v7632, %v8480
    %v8510 = vmul.f32 %v7637, %v8480
    %v8511 = vmul.f32 %v7642, %v8480
    %v8512 = vmul.f32 %v7647, %v8480
    %v8513 = vmul.f32 %v7652, %v8480
    %v8514 = vmul.f32 %v7657, %v8480
    %v8515 = vmul.f32 %v7662, %v8480
    %v8516 = vmul.f32 %v7667, %v8480
    %v8517 = vmul.f32 %v7672, %v8480
    %v8518 = vmul.f32 %v7677, %v8480
    %v8519 = vmul.f32 %v7682, %v8480
    %v8520 = vmul.f32 %v7687, %v8480
    %v8521 = vmul.f32 %v7692, %v8480
    %v8522 = vmul.f32 %v7697, %v8480
    %v8523 = vmul.f32 %v7702, %v8480
    %v8524 = vmul.f32 %v7707, %v8480
    %v8525 = vmul.f32 %v7712, %v8480
    %v8526 = vmul.f32 %v7717, %v8480
    %v8527 = vmul.f32 %v7722, %v8480
    %v8528 = vmul.f32 %v7727, %v8480
    %v8529 = vmul.f32 %v7732, %v8480
    %v8530 = vmul.f32 %v7737, %v8480
    %v8531 = vmul.f32 %v7742, %v8480
    %v8532 = vmul.f32 %v7747, %v8480
    %v8533 = vmul.f32 %v7752, %v8480
    %v8534 = vmul.f32 %v7757, %v8480
    %v8535 = vmul.f32 %v7762, %v8480
    %v8536 = vmul.f32 %v7767, %v8480
    %v8537 = vmul.f32 %v7772, %v8480
    %v8538 = vmul.f32 %v7777, %v8480
    %v8539 = vmul.f32 %v7782, %v8480
    %v8540 = vmul.f32 %v7787, %v8480
    %v8541 = vmul.f32 %v7792, %v8480
    %v8542 = vmul.f32 %v7797, %v8480
    %v8543 = vmul.f32 %v7802, %v8480
    %v8544 = vmul.f32 %v7807, %v8480
    %v8545 = vmul.f32 %v7812, %v8480
    %v8546 = vmul.f32 %v7817, %v8480
    %v8547 = vmul.f32 %v7822, %v8480
    %v8548 = vmul.f32 %v7827, %v8480
    %v8549 = vmul.f32 %v7832, %v8480
    %v8550 = vmul.f32 %v7837, %v8480
    %v8551 = vmul.f32 %v7842, %v8480
    %v8552 = vmul.f32 %v7847, %v8480
    %v8553 = vmul.f32 %v7852, %v8480
    %v8554 = vmul.f32 %v7857, %v8480
    %v8555 = vmul.f32 %v7862, %v8480
    %v8556 = vmul.f32 %v7867, %v8480
    %v8557 = vmul.f32 %v7872, %v8480
    %v8558 = vmul.f32 %v7877, %v8480
    %v8559 = vmul.f32 %v7882, %v8480
    %v8560 = vmul.f32 %v7887, %v8480
    %v8561 = vmul.f32 %v7892, %v8480
    %v8562 = vmul.f32 %v7897, %v8480
    %v8563 = vmul.f32 %v7902, %v8480
    %v8564 = vmul.f32 %v7907, %v8480
    %v8565 = vmul.f32 %v7912, %v8480
    %v8566 = vmul.f32 %v7917, %v8480
    %v8567 = vmul.f32 %v7922, %v8480
    %v8568 = vmul.f32 %v7927, %v8480
    %v8569 = vmul.f32 %v7932, %v8480
    %v8570 = vmul.f32 %v7937, %v8480
    %v8571 = vmul.f32 %v7942, %v8480
    %v8572 = vmul.f32 %v7947, %v8480
    %v8573 = vmul.f32 %v7952, %v8480
    %v8574 = vmul.f32 %v7957, %v8480
    %v8575 = vmul.f32 %v7962, %v8480
    %v8576 = vmul.f32 %v7967, %v8480
    %v8577 = vmul.f32 %v7972, %v8480
    %v8578 = vmul.f32 %v7977, %v8480
    %v8579 = vmul.f32 %v7982, %v8480
    %v8580 = vmul.f32 %v7987, %v8480
    %v8581 = vmul.f32 %v7992, %v8480
    %v8582 = vmul.f32 %v7997, %v8480
    %v8583 = vmul.f32 %v8002, %v8480
    %v8584 = vmul.f32 %v8007, %v8480
    %v8585 = vmul.f32 %v8012, %v8480
    %v8586 = vmul.f32 %v8017, %v8480
    %v8587 = vmul.f32 %v8022, %v8480
    %v8588 = vmul.f32 %v8027, %v8480
    %v8589 = vmul.f32 %v8032, %v8480
    %v8590 = vmul.f32 %v8037, %v8480
    %v8591 = vmul.f32 %v8042, %v8480
    %v8592 = vmul.f32 %v8047, %v8480
    %v8593 = vmul.f32 %v8052, %v8480
    %v8594 = vmul.f32 %v8057, %v8480
    %v8595 = vmul.f32 %v8062, %v8480
    %v8596 = vmul.f32 %v8067, %v8480
    %v8597 = vmul.f32 %v8072, %v8480
    %v8598 = vmul.f32 %v8077, %v8480
    %v8599 = vmul.f32 %v8082, %v8480
    %v8600 = vmul.f32 %v8087, %v8480
    %v8601 = vmul.f32 %v8092, %v8480
    %v8602 = vmul.f32 %v8097, %v8480
    %v8603 = vmul.f32 %v8102, %v8480
    %v8604 = vmul.f32 %v8107, %v8480
    %v8605 = vmul.f32 %v8112, %v8480
    %v8606 = vmul.f32 %v8117, %v8480
    %v8607 = vmul.f32 %v8122, %v8480
    %v8608 = vmul.f32 %v8127, %v8480
    %v8609 = vmul.f32 %v8132, %v8480
    %v8610 = vmul.f32 %v8137, %v8480
    %v8611 = vmul.f32 %v8142, %v8480
    %v8612 = vmul.f32 %v8147, %v8480
    %v8613 = vmul.f32 %v8152, %v8480
    %v8614 = vmul.f32 %v8157, %v8480
    %v8615 = vmul.f32 %v8162, %v8480
    %v8616 = vmul.f32 %v8167, %v8480
    %v8617 = vmul.f32 %v8172, %v8480
    %v8618 = vmul.f32 %v8177, %v8480
    %v8619 = vmul.f32 %v8182, %v8480
    %v8620 = vmul.f32 %v8187, %v8480
    %v8621 = vmul.f32 %v8192, %v8480
    %v8622 = vmul.f32 %v8197, %v8480
    %v8623 = vmul.f32 %v8202, %v8480
    %v8624 = vmul.f32 %v8207, %v8480
    %v8625 = vmul.f32 %v8212, %v8480
    %v8626 = vmul.f32 %v8217, %v8480
    %v8627 = vmul.f32 %v8222, %v8480
    %v8628 = vmul.f32 %v8227, %v8480
    %v8629 = vmul.f32 %v8232, %v8480
    %v8630 = vmul.f32 %v8237, %v8480
    %v8631 = vmul.f32 %v8242, %v8480
    %v8632 = vmul.f32 %v8247, %v8480
    %v8633 = vmul.f32 %v8252, %v8480
    %v8634 = vmul.f32 %v8257, %v8480
    %v8635 = vmul.f32 %v8262, %v8480
    %v8636 = vmul.f32 %v8267, %v8480
    %v8637 = vmul.f32 %v8272, %v8480
    %v8638 = vmul.f32 %v8277, %v8480
    %v8639 = vmul.f32 %v8282, %v8480
    %v8640 = vmul.f32 %v8287, %v8480
    %v8641 = vmul.f32 %v8292, %v8480
    %v8642 = vmul.f32 %v8297, %v8480
    %v8643 = vmul.f32 %v8302, %v8480
    %v8644 = vmul.f32 %v8307, %v8480
    %v8645 = vmul.f32 %v8312, %v8480
    %v8646 = vmul.f32 %v8317, %v8480
    %v8647 = vmul.f32 %v8322, %v8480
    %v8648 = vmul.f32 %v8327, %v8480
    %v8649 = vmul.f32 %v8332, %v8480
    %v8650 = vmul.f32 %v8337, %v8480
    %v8651 = vmul.f32 %v8342, %v8480
    %v8652 = vmul.f32 %v8347, %v8480
    %v8653 = vmul.f32 %v8352, %v8480
    %v8654 = vmul.f32 %v8357, %v8480
    %v8655 = vmul.f32 %v8362, %v8480
    %v8656 = vmul.f32 %v8367, %v8480
    %v8657 = vmul.f32 %v8372, %v8480
    %v8658 = vmul.f32 %v8377, %v8480
    %v8659 = vmul.f32 %v8382, %v8480
    %v8660 = vmul.f32 %v8387, %v8480
    %v8661 = vmul.f32 %v8392, %v8480
    %v8662 = vmul.f32 %v8397, %v8480
    %v8663 = vmul.f32 %v8402, %v8480
    %v8664 = vmul.f32 %v8407, %v8480
    %v8665 = vmul.f32 %v8412, %v8480
    %v8666 = vmul.f32 %v8417, %v8480
    %v8667 = vmul.f32 %v8422, %v8480
    %v8668 = vmul.f32 %v8427, %v8480
    %v8669 = vmul.f32 %v8432, %v8480
    %v8670 = vmul.f32 %v8437, %v8480
    %v8671 = vmul.f32 %v8442, %v8480
    %v8672 = vmul.f32 %v8447, %v8480
    %v8673 = vmul.f32 %v8452, %v8480
    %v8674 = vmul.f32 %v8457, %v8480
    %v8675 = vmul.f32 %v8462, %v8480
    %v8676 = vmul.f32 %v8467, %v8480
    %v8677 = vmul.f32 %v8472, %v8480
    %v8678 = vld [vmem:[%s3] sm:$0x1]
    %v8680 = vlaneseq
    %v8681 = vshrl.u32 %v8680, 7
    %v8682 = vsub.s32 0, %v8681
    %v8683 = vrot.slane %v8678, %v8682
    %v8685 = vadd.f32 %v8482, %v8683
    %v8686 = vadd.f32 %v8483, %v8683
    %v8687 = vadd.f32 %v8484, %v8683
    %v8688 = vadd.f32 %v8485, %v8683
    %v8689 = vadd.f32 %v8486, %v8683
    %v8690 = vadd.f32 %v8487, %v8683
    %v8691 = vadd.f32 %v8488, %v8683
    %v8692 = vadd.f32 %v8489, %v8683
    %v8693 = vadd.f32 %v8490, %v8683
    %v8694 = vadd.f32 %v8491, %v8683
    %v8695 = vadd.f32 %v8492, %v8683
    %v8696 = vadd.f32 %v8493, %v8683
    %v8697 = vadd.f32 %v8494, %v8683
    %v8698 = vadd.f32 %v8495, %v8683
    %v8699 = vadd.f32 %v8496, %v8683
    %v8700 = vadd.f32 %v8497, %v8683
    %v8701 = vadd.f32 %v8498, %v8683
    %v8702 = vadd.f32 %v8499, %v8683
    %v8703 = vadd.f32 %v8500, %v8683
    %v8704 = vadd.f32 %v8501, %v8683
    %v8705 = vadd.f32 %v8502, %v8683
    %v8706 = vadd.f32 %v8503, %v8683
    %v8707 = vadd.f32 %v8504, %v8683
    %v8708 = vadd.f32 %v8505, %v8683
    %v8709 = vadd.f32 %v8506, %v8683
    %v8710 = vadd.f32 %v8507, %v8683
    %v8711 = vadd.f32 %v8508, %v8683
    %v8712 = vadd.f32 %v8509, %v8683
    %v8713 = vadd.f32 %v8510, %v8683
    %v8714 = vadd.f32 %v8511, %v8683
    %v8715 = vadd.f32 %v8512, %v8683
    %v8716 = vadd.f32 %v8513, %v8683
    %v8717 = vadd.f32 %v8514, %v8683
    %v8718 = vadd.f32 %v8515, %v8683
    %v8719 = vadd.f32 %v8516, %v8683
    %v8720 = vadd.f32 %v8517, %v8683
    %v8721 = vadd.f32 %v8518, %v8683
    %v8722 = vadd.f32 %v8519, %v8683
    %v8723 = vadd.f32 %v8520, %v8683
    %v8724 = vadd.f32 %v8521, %v8683
    %v8725 = vadd.f32 %v8522, %v8683
    %v8726 = vadd.f32 %v8523, %v8683
    %v8727 = vadd.f32 %v8524, %v8683
    %v8728 = vadd.f32 %v8525, %v8683
    %v8729 = vadd.f32 %v8526, %v8683
    %v8730 = vadd.f32 %v8527, %v8683
    %v8731 = vadd.f32 %v8528, %v8683
    %v8732 = vadd.f32 %v8529, %v8683
    %v8733 = vadd.f32 %v8530, %v8683
    %v8734 = vadd.f32 %v8531, %v8683
    %v8735 = vadd.f32 %v8532, %v8683
    %v8736 = vadd.f32 %v8533, %v8683
    %v8737 = vadd.f32 %v8534, %v8683
    %v8738 = vadd.f32 %v8535, %v8683
    %v8739 = vadd.f32 %v8536, %v8683
    %v8740 = vadd.f32 %v8537, %v8683
    %v8741 = vadd.f32 %v8538, %v8683
    %v8742 = vadd.f32 %v8539, %v8683
    %v8743 = vadd.f32 %v8540, %v8683
    %v8744 = vadd.f32 %v8541, %v8683
    %v8745 = vadd.f32 %v8542, %v8683
    %v8746 = vadd.f32 %v8543, %v8683
    %v8747 = vadd.f32 %v8544, %v8683
    %v8748 = vadd.f32 %v8545, %v8683
    %v8749 = vadd.f32 %v8546, %v8683
    %v8750 = vadd.f32 %v8547, %v8683
    %v8751 = vadd.f32 %v8548, %v8683
    %v8752 = vadd.f32 %v8549, %v8683
    %v8753 = vadd.f32 %v8550, %v8683
    %v8754 = vadd.f32 %v8551, %v8683
    %v8755 = vadd.f32 %v8552, %v8683
    %v8756 = vadd.f32 %v8553, %v8683
    %v8757 = vadd.f32 %v8554, %v8683
    %v8758 = vadd.f32 %v8555, %v8683
    %v8759 = vadd.f32 %v8556, %v8683
    %v8760 = vadd.f32 %v8557, %v8683
    %v8761 = vadd.f32 %v8558, %v8683
    %v8762 = vadd.f32 %v8559, %v8683
    %v8763 = vadd.f32 %v8560, %v8683
    %v8764 = vadd.f32 %v8561, %v8683
    %v8765 = vadd.f32 %v8562, %v8683
    %v8766 = vadd.f32 %v8563, %v8683
    %v8767 = vadd.f32 %v8564, %v8683
    %v8768 = vadd.f32 %v8565, %v8683
    %v8769 = vadd.f32 %v8566, %v8683
    %v8770 = vadd.f32 %v8567, %v8683
    %v8771 = vadd.f32 %v8568, %v8683
    %v8772 = vadd.f32 %v8569, %v8683
    %v8773 = vadd.f32 %v8570, %v8683
    %v8774 = vadd.f32 %v8571, %v8683
    %v8775 = vadd.f32 %v8572, %v8683
    %v8776 = vadd.f32 %v8573, %v8683
    %v8777 = vadd.f32 %v8574, %v8683
    %v8778 = vadd.f32 %v8575, %v8683
    %v8779 = vadd.f32 %v8576, %v8683
    %v8780 = vadd.f32 %v8577, %v8683
    %v8781 = vadd.f32 %v8578, %v8683
    %v8782 = vadd.f32 %v8579, %v8683
    %v8783 = vadd.f32 %v8580, %v8683
    %v8784 = vadd.f32 %v8581, %v8683
    %v8785 = vadd.f32 %v8582, %v8683
    %v8786 = vadd.f32 %v8583, %v8683
    %v8787 = vadd.f32 %v8584, %v8683
    %v8788 = vadd.f32 %v8585, %v8683
    %v8789 = vadd.f32 %v8586, %v8683
    %v8790 = vadd.f32 %v8587, %v8683
    %v8791 = vadd.f32 %v8588, %v8683
    %v8792 = vadd.f32 %v8589, %v8683
    %v8793 = vadd.f32 %v8590, %v8683
    %v8794 = vadd.f32 %v8591, %v8683
    %v8795 = vadd.f32 %v8592, %v8683
    %v8796 = vadd.f32 %v8593, %v8683
    %v8797 = vadd.f32 %v8594, %v8683
    %v8798 = vadd.f32 %v8595, %v8683
    %v8799 = vadd.f32 %v8596, %v8683
    %v8800 = vadd.f32 %v8597, %v8683
    %v8801 = vadd.f32 %v8598, %v8683
    %v8802 = vadd.f32 %v8599, %v8683
    %v8803 = vadd.f32 %v8600, %v8683
    %v8804 = vadd.f32 %v8601, %v8683
    %v8805 = vadd.f32 %v8602, %v8683
    %v8806 = vadd.f32 %v8603, %v8683
    %v8807 = vadd.f32 %v8604, %v8683
    %v8808 = vadd.f32 %v8605, %v8683
    %v8809 = vadd.f32 %v8606, %v8683
    %v8810 = vadd.f32 %v8607, %v8683
    %v8811 = vadd.f32 %v8608, %v8683
    %v8812 = vadd.f32 %v8609, %v8683
    %v8813 = vadd.f32 %v8610, %v8683
    %v8814 = vadd.f32 %v8611, %v8683
    %v8815 = vadd.f32 %v8612, %v8683
    %v8816 = vadd.f32 %v8613, %v8683
    %v8817 = vadd.f32 %v8614, %v8683
    %v8818 = vadd.f32 %v8615, %v8683
    %v8819 = vadd.f32 %v8616, %v8683
    %v8820 = vadd.f32 %v8617, %v8683
    %v8821 = vadd.f32 %v8618, %v8683
    %v8822 = vadd.f32 %v8619, %v8683
    %v8823 = vadd.f32 %v8620, %v8683
    %v8824 = vadd.f32 %v8621, %v8683
    %v8825 = vadd.f32 %v8622, %v8683
    %v8826 = vadd.f32 %v8623, %v8683
    %v8827 = vadd.f32 %v8624, %v8683
    %v8828 = vadd.f32 %v8625, %v8683
    %v8829 = vadd.f32 %v8626, %v8683
    %v8830 = vadd.f32 %v8627, %v8683
    %v8831 = vadd.f32 %v8628, %v8683
    %v8832 = vadd.f32 %v8629, %v8683
    %v8833 = vadd.f32 %v8630, %v8683
    %v8834 = vadd.f32 %v8631, %v8683
    %v8835 = vadd.f32 %v8632, %v8683
    %v8836 = vadd.f32 %v8633, %v8683
    %v8837 = vadd.f32 %v8634, %v8683
    %v8838 = vadd.f32 %v8635, %v8683
    %v8839 = vadd.f32 %v8636, %v8683
    %v8840 = vadd.f32 %v8637, %v8683
    %v8841 = vadd.f32 %v8638, %v8683
    %v8842 = vadd.f32 %v8639, %v8683
    %v8843 = vadd.f32 %v8640, %v8683
    %v8844 = vadd.f32 %v8641, %v8683
    %v8845 = vadd.f32 %v8642, %v8683
    %v8846 = vadd.f32 %v8643, %v8683
    %v8847 = vadd.f32 %v8644, %v8683
    %v8848 = vadd.f32 %v8645, %v8683
    %v8849 = vadd.f32 %v8646, %v8683
    %v8850 = vadd.f32 %v8647, %v8683
    %v8851 = vadd.f32 %v8648, %v8683
    %v8852 = vadd.f32 %v8649, %v8683
    %v8853 = vadd.f32 %v8650, %v8683
    %v8854 = vadd.f32 %v8651, %v8683
    %v8855 = vadd.f32 %v8652, %v8683
    %v8856 = vadd.f32 %v8653, %v8683
    %v8857 = vadd.f32 %v8654, %v8683
    %v8858 = vadd.f32 %v8655, %v8683
    %v8859 = vadd.f32 %v8656, %v8683
    %v8860 = vadd.f32 %v8657, %v8683
    %v8861 = vadd.f32 %v8658, %v8683
    %v8862 = vadd.f32 %v8659, %v8683
    %v8863 = vadd.f32 %v8660, %v8683
    %v8864 = vadd.f32 %v8661, %v8683
    %v8865 = vadd.f32 %v8662, %v8683
    %v8866 = vadd.f32 %v8663, %v8683
    %v8867 = vadd.f32 %v8664, %v8683
    %v8868 = vadd.f32 %v8665, %v8683
    %v8869 = vadd.f32 %v8666, %v8683
    %v8870 = vadd.f32 %v8667, %v8683
    %v8871 = vadd.f32 %v8668, %v8683
    %v8872 = vadd.f32 %v8669, %v8683
    %v8873 = vadd.f32 %v8670, %v8683
    %v8874 = vadd.f32 %v8671, %v8683
    %v8875 = vadd.f32 %v8672, %v8683
    %v8876 = vadd.f32 %v8673, %v8683
    %v8877 = vadd.f32 %v8674, %v8683
    %v8878 = vadd.f32 %v8675, %v8683
    %v8879 = vadd.f32 %v8676, %v8683
    %v8880 = vadd.f32 %v8677, %v8683
    %v8881 = vmax.f32 %v8685, 0.0
    %v8882 = vmax.f32 %v8686, 0.0
    %v8883 = vmax.f32 %v8687, 0.0
    %v8884 = vmax.f32 %v8688, 0.0
    %v8885 = vmax.f32 %v8689, 0.0
    %v8886 = vmax.f32 %v8690, 0.0
    %v8887 = vmax.f32 %v8691, 0.0
    %v8888 = vmax.f32 %v8692, 0.0
    %v8889 = vmax.f32 %v8693, 0.0
    %v8890 = vmax.f32 %v8694, 0.0
    %v8891 = vmax.f32 %v8695, 0.0
    %v8892 = vmax.f32 %v8696, 0.0
    %v8893 = vmax.f32 %v8697, 0.0
    %v8894 = vmax.f32 %v8698, 0.0
    %v8895 = vmax.f32 %v8699, 0.0
    %v8896 = vmax.f32 %v8700, 0.0
    %v8897 = vmax.f32 %v8701, 0.0
    %v8898 = vmax.f32 %v8702, 0.0
    %v8899 = vmax.f32 %v8703, 0.0
    %v8900 = vmax.f32 %v8704, 0.0
    %v8901 = vmax.f32 %v8705, 0.0
    %v8902 = vmax.f32 %v8706, 0.0
    %v8903 = vmax.f32 %v8707, 0.0
    %v8904 = vmax.f32 %v8708, 0.0
    %v8905 = vmax.f32 %v8709, 0.0
    %v8906 = vmax.f32 %v8710, 0.0
    %v8907 = vmax.f32 %v8711, 0.0
    %v8908 = vmax.f32 %v8712, 0.0
    %v8909 = vmax.f32 %v8713, 0.0
    %v8910 = vmax.f32 %v8714, 0.0
    %v8911 = vmax.f32 %v8715, 0.0
    %v8912 = vmax.f32 %v8716, 0.0
    %v8913 = vmax.f32 %v8717, 0.0
    %v8914 = vmax.f32 %v8718, 0.0
    %v8915 = vmax.f32 %v8719, 0.0
    %v8916 = vmax.f32 %v8720, 0.0
    %v8917 = vmax.f32 %v8721, 0.0
    %v8918 = vmax.f32 %v8722, 0.0
    %v8919 = vmax.f32 %v8723, 0.0
    %v8920 = vmax.f32 %v8724, 0.0
    %v8921 = vmax.f32 %v8725, 0.0
    %v8922 = vmax.f32 %v8726, 0.0
    %v8923 = vmax.f32 %v8727, 0.0
    %v8924 = vmax.f32 %v8728, 0.0
    %v8925 = vmax.f32 %v8729, 0.0
    %v8926 = vmax.f32 %v8730, 0.0
    %v8927 = vmax.f32 %v8731, 0.0
    %v8928 = vmax.f32 %v8732, 0.0
    %v8929 = vmax.f32 %v8733, 0.0
    %v8930 = vmax.f32 %v8734, 0.0
    %v8931 = vmax.f32 %v8735, 0.0
    %v8932 = vmax.f32 %v8736, 0.0
    %v8933 = vmax.f32 %v8737, 0.0
    %v8934 = vmax.f32 %v8738, 0.0
    %v8935 = vmax.f32 %v8739, 0.0
    %v8936 = vmax.f32 %v8740, 0.0
    %v8937 = vmax.f32 %v8741, 0.0
    %v8938 = vmax.f32 %v8742, 0.0
    %v8939 = vmax.f32 %v8743, 0.0
    %v8940 = vmax.f32 %v8744, 0.0
    %v8941 = vmax.f32 %v8745, 0.0
    %v8942 = vmax.f32 %v8746, 0.0
    %v8943 = vmax.f32 %v8747, 0.0
    %v8944 = vmax.f32 %v8748, 0.0
    %v8945 = vmax.f32 %v8749, 0.0
    %v8946 = vmax.f32 %v8750, 0.0
    %v8947 = vmax.f32 %v8751, 0.0
    %v8948 = vmax.f32 %v8752, 0.0
    %v8949 = vmax.f32 %v8753, 0.0
    %v8950 = vmax.f32 %v8754, 0.0
    %v8951 = vmax.f32 %v8755, 0.0
    %v8952 = vmax.f32 %v8756, 0.0
    %v8953 = vmax.f32 %v8757, 0.0
    %v8954 = vmax.f32 %v8758, 0.0
    %v8955 = vmax.f32 %v8759, 0.0
    %v8956 = vmax.f32 %v8760, 0.0
    %v8957 = vmax.f32 %v8761, 0.0
    %v8958 = vmax.f32 %v8762, 0.0
    %v8959 = vmax.f32 %v8763, 0.0
    %v8960 = vmax.f32 %v8764, 0.0
    %v8961 = vmax.f32 %v8765, 0.0
    %v8962 = vmax.f32 %v8766, 0.0
    %v8963 = vmax.f32 %v8767, 0.0
    %v8964 = vmax.f32 %v8768, 0.0
    %v8965 = vmax.f32 %v8769, 0.0
    %v8966 = vmax.f32 %v8770, 0.0
    %v8967 = vmax.f32 %v8771, 0.0
    %v8968 = vmax.f32 %v8772, 0.0
    %v8969 = vmax.f32 %v8773, 0.0
    %v8970 = vmax.f32 %v8774, 0.0
    %v8971 = vmax.f32 %v8775, 0.0
    %v8972 = vmax.f32 %v8776, 0.0
    %v8973 = vmax.f32 %v8777, 0.0
    %v8974 = vmax.f32 %v8778, 0.0
    %v8975 = vmax.f32 %v8779, 0.0
    %v8976 = vmax.f32 %v8780, 0.0
    %v8977 = vmax.f32 %v8781, 0.0
    %v8978 = vmax.f32 %v8782, 0.0
    %v8979 = vmax.f32 %v8783, 0.0
    %v8980 = vmax.f32 %v8784, 0.0
    %v8981 = vmax.f32 %v8785, 0.0
    %v8982 = vmax.f32 %v8786, 0.0
    %v8983 = vmax.f32 %v8787, 0.0
    %v8984 = vmax.f32 %v8788, 0.0
    %v8985 = vmax.f32 %v8789, 0.0
    %v8986 = vmax.f32 %v8790, 0.0
    %v8987 = vmax.f32 %v8791, 0.0
    %v8988 = vmax.f32 %v8792, 0.0
    %v8989 = vmax.f32 %v8793, 0.0
    %v8990 = vmax.f32 %v8794, 0.0
    %v8991 = vmax.f32 %v8795, 0.0
    %v8992 = vmax.f32 %v8796, 0.0
    %v8993 = vmax.f32 %v8797, 0.0
    %v8994 = vmax.f32 %v8798, 0.0
    %v8995 = vmax.f32 %v8799, 0.0
    %v8996 = vmax.f32 %v8800, 0.0
    %v8997 = vmax.f32 %v8801, 0.0
    %v8998 = vmax.f32 %v8802, 0.0
    %v8999 = vmax.f32 %v8803, 0.0
    %v9000 = vmax.f32 %v8804, 0.0
    %v9001 = vmax.f32 %v8805, 0.0
    %v9002 = vmax.f32 %v8806, 0.0
    %v9003 = vmax.f32 %v8807, 0.0
    %v9004 = vmax.f32 %v8808, 0.0
    %v9005 = vmax.f32 %v8809, 0.0
    %v9006 = vmax.f32 %v8810, 0.0
    %v9007 = vmax.f32 %v8811, 0.0
    %v9008 = vmax.f32 %v8812, 0.0
    %v9009 = vmax.f32 %v8813, 0.0
    %v9010 = vmax.f32 %v8814, 0.0
    %v9011 = vmax.f32 %v8815, 0.0
    %v9012 = vmax.f32 %v8816, 0.0
    %v9013 = vmax.f32 %v8817, 0.0
    %v9014 = vmax.f32 %v8818, 0.0
    %v9015 = vmax.f32 %v8819, 0.0
    %v9016 = vmax.f32 %v8820, 0.0
    %v9017 = vmax.f32 %v8821, 0.0
    %v9018 = vmax.f32 %v8822, 0.0
    %v9019 = vmax.f32 %v8823, 0.0
    %v9020 = vmax.f32 %v8824, 0.0
    %v9021 = vmax.f32 %v8825, 0.0
    %v9022 = vmax.f32 %v8826, 0.0
    %v9023 = vmax.f32 %v8827, 0.0
    %v9024 = vmax.f32 %v8828, 0.0
    %v9025 = vmax.f32 %v8829, 0.0
    %v9026 = vmax.f32 %v8830, 0.0
    %v9027 = vmax.f32 %v8831, 0.0
    %v9028 = vmax.f32 %v8832, 0.0
    %v9029 = vmax.f32 %v8833, 0.0
    %v9030 = vmax.f32 %v8834, 0.0
    %v9031 = vmax.f32 %v8835, 0.0
    %v9032 = vmax.f32 %v8836, 0.0
    %v9033 = vmax.f32 %v8837, 0.0
    %v9034 = vmax.f32 %v8838, 0.0
    %v9035 = vmax.f32 %v8839, 0.0
    %v9036 = vmax.f32 %v8840, 0.0
    %v9037 = vmax.f32 %v8841, 0.0
    %v9038 = vmax.f32 %v8842, 0.0
    %v9039 = vmax.f32 %v8843, 0.0
    %v9040 = vmax.f32 %v8844, 0.0
    %v9041 = vmax.f32 %v8845, 0.0
    %v9042 = vmax.f32 %v8846, 0.0
    %v9043 = vmax.f32 %v8847, 0.0
    %v9044 = vmax.f32 %v8848, 0.0
    %v9045 = vmax.f32 %v8849, 0.0
    %v9046 = vmax.f32 %v8850, 0.0
    %v9047 = vmax.f32 %v8851, 0.0
    %v9048 = vmax.f32 %v8852, 0.0
    %v9049 = vmax.f32 %v8853, 0.0
    %v9050 = vmax.f32 %v8854, 0.0
    %v9051 = vmax.f32 %v8855, 0.0
    %v9052 = vmax.f32 %v8856, 0.0
    %v9053 = vmax.f32 %v8857, 0.0
    %v9054 = vmax.f32 %v8858, 0.0
    %v9055 = vmax.f32 %v8859, 0.0
    %v9056 = vmax.f32 %v8860, 0.0
    %v9057 = vmax.f32 %v8861, 0.0
    %v9058 = vmax.f32 %v8862, 0.0
    %v9059 = vmax.f32 %v8863, 0.0
    %v9060 = vmax.f32 %v8864, 0.0
    %v9061 = vmax.f32 %v8865, 0.0
    %v9062 = vmax.f32 %v8866, 0.0
    %v9063 = vmax.f32 %v8867, 0.0
    %v9064 = vmax.f32 %v8868, 0.0
    %v9065 = vmax.f32 %v8869, 0.0
    %v9066 = vmax.f32 %v8870, 0.0
    %v9067 = vmax.f32 %v8871, 0.0
    %v9068 = vmax.f32 %v8872, 0.0
    %v9069 = vmax.f32 %v8873, 0.0
    %v9070 = vmax.f32 %v8874, 0.0
    %v9071 = vmax.f32 %v8875, 0.0
    %v9072 = vmax.f32 %v8876, 0.0
    %v9073 = vmax.f32 %v8877, 0.0
    %v9074 = vmax.f32 %v8878, 0.0
    %v9075 = vmax.f32 %v8879, 0.0
    %v9076 = vmax.f32 %v8880, 0.0
    %v9077 = vmax.f32 %v8881, %v8895
    %v9078 = vmax.f32 %v8882, %v8896
    %v9079 = vmax.f32 %v8883, %v8897
    %v9080 = vmax.f32 %v8884, %v8898
    %v9081 = vmax.f32 %v8885, %v8899
    %v9082 = vmax.f32 %v8886, %v8900
    %v9083 = vmax.f32 %v8887, %v8901
    %v9084 = vmax.f32 %v8888, %v8902
    %v9085 = vmax.f32 %v8889, %v8903
    %v9086 = vmax.f32 %v8890, %v8904
    %v9087 = vmax.f32 %v8891, %v8905
    %v9088 = vmax.f32 %v8892, %v8906
    %v9089 = vmax.f32 %v8893, %v8907
    %v9090 = vmax.f32 %v8894, %v8908
    %v9091 = vmax.f32 %v8909, %v8923
    %v9092 = vmax.f32 %v8910, %v8924
    %v9093 = vmax.f32 %v8911, %v8925
    %v9094 = vmax.f32 %v8912, %v8926
    %v9095 = vmax.f32 %v8913, %v8927
    %v9096 = vmax.f32 %v8914, %v8928
    %v9097 = vmax.f32 %v8915, %v8929
    %v9098 = vmax.f32 %v8916, %v8930
    %v9099 = vmax.f32 %v8917, %v8931
    %v9100 = vmax.f32 %v8918, %v8932
    %v9101 = vmax.f32 %v8919, %v8933
    %v9102 = vmax.f32 %v8920, %v8934
    %v9103 = vmax.f32 %v8921, %v8935
    %v9104 = vmax.f32 %v8922, %v8936
    %v9105 = vmax.f32 %v8937, %v8951
    %v9106 = vmax.f32 %v8938, %v8952
    %v9107 = vmax.f32 %v8939, %v8953
    %v9108 = vmax.f32 %v8940, %v8954
    %v9109 = vmax.f32 %v8941, %v8955
    %v9110 = vmax.f32 %v8942, %v8956
    %v9111 = vmax.f32 %v8943, %v8957
    %v9112 = vmax.f32 %v8944, %v8958
    %v9113 = vmax.f32 %v8945, %v8959
    %v9114 = vmax.f32 %v8946, %v8960
    %v9115 = vmax.f32 %v8947, %v8961
    %v9116 = vmax.f32 %v8948, %v8962
    %v9117 = vmax.f32 %v8949, %v8963
    %v9118 = vmax.f32 %v8950, %v8964
    %v9119 = vmax.f32 %v8965, %v8979
    %v9120 = vmax.f32 %v8966, %v8980
    %v9121 = vmax.f32 %v8967, %v8981
    %v9122 = vmax.f32 %v8968, %v8982
    %v9123 = vmax.f32 %v8969, %v8983
    %v9124 = vmax.f32 %v8970, %v8984
    %v9125 = vmax.f32 %v8971, %v8985
    %v9126 = vmax.f32 %v8972, %v8986
    %v9127 = vmax.f32 %v8973, %v8987
    %v9128 = vmax.f32 %v8974, %v8988
    %v9129 = vmax.f32 %v8975, %v8989
    %v9130 = vmax.f32 %v8976, %v8990
    %v9131 = vmax.f32 %v8977, %v8991
    %v9132 = vmax.f32 %v8978, %v8992
    %v9133 = vmax.f32 %v8993, %v9007
    %v9134 = vmax.f32 %v8994, %v9008
    %v9135 = vmax.f32 %v8995, %v9009
    %v9136 = vmax.f32 %v8996, %v9010
    %v9137 = vmax.f32 %v8997, %v9011
    %v9138 = vmax.f32 %v8998, %v9012
    %v9139 = vmax.f32 %v8999, %v9013
    %v9140 = vmax.f32 %v9000, %v9014
    %v9141 = vmax.f32 %v9001, %v9015
    %v9142 = vmax.f32 %v9002, %v9016
    %v9143 = vmax.f32 %v9003, %v9017
    %v9144 = vmax.f32 %v9004, %v9018
    %v9145 = vmax.f32 %v9005, %v9019
    %v9146 = vmax.f32 %v9006, %v9020
    %v9147 = vmax.f32 %v9021, %v9035
    %v9148 = vmax.f32 %v9022, %v9036
    %v9149 = vmax.f32 %v9023, %v9037
    %v9150 = vmax.f32 %v9024, %v9038
    %v9151 = vmax.f32 %v9025, %v9039
    %v9152 = vmax.f32 %v9026, %v9040
    %v9153 = vmax.f32 %v9027, %v9041
    %v9154 = vmax.f32 %v9028, %v9042
    %v9155 = vmax.f32 %v9029, %v9043
    %v9156 = vmax.f32 %v9030, %v9044
    %v9157 = vmax.f32 %v9031, %v9045
    %v9158 = vmax.f32 %v9032, %v9046
    %v9159 = vmax.f32 %v9033, %v9047
    %v9160 = vmax.f32 %v9034, %v9048
    %v9161 = vmax.f32 %v9049, %v9063
    %v9162 = vmax.f32 %v9050, %v9064
    %v9163 = vmax.f32 %v9051, %v9065
    %v9164 = vmax.f32 %v9052, %v9066
    %v9165 = vmax.f32 %v9053, %v9067
    %v9166 = vmax.f32 %v9054, %v9068
    %v9167 = vmax.f32 %v9055, %v9069
    %v9168 = vmax.f32 %v9056, %v9070
    %v9169 = vmax.f32 %v9057, %v9071
    %v9170 = vmax.f32 %v9058, %v9072
    %v9171 = vmax.f32 %v9059, %v9073
    %v9172 = vmax.f32 %v9060, %v9074
    %v9173 = vmax.f32 %v9061, %v9075
    %v9174 = vmax.f32 %v9062, %v9076
    %v9175 = vmax.f32 %v9077, %v9078
    %v9176 = vmax.f32 %v9079, %v9080
    %v9177 = vmax.f32 %v9081, %v9082
    %v9178 = vmax.f32 %v9083, %v9084
    %v9179 = vmax.f32 %v9085, %v9086
    %v9180 = vmax.f32 %v9087, %v9088
    %v9181 = vmax.f32 %v9089, %v9090
    %v9182 = vmax.f32 %v9091, %v9092
    %v9183 = vmax.f32 %v9093, %v9094
    %v9184 = vmax.f32 %v9095, %v9096
    %v9185 = vmax.f32 %v9097, %v9098
    %v9186 = vmax.f32 %v9099, %v9100
    %v9187 = vmax.f32 %v9101, %v9102
    %v9188 = vmax.f32 %v9103, %v9104
    %v9189 = vmax.f32 %v9105, %v9106
    %v9190 = vmax.f32 %v9107, %v9108
    %v9191 = vmax.f32 %v9109, %v9110
    %v9192 = vmax.f32 %v9111, %v9112
    %v9193 = vmax.f32 %v9113, %v9114
    %v9194 = vmax.f32 %v9115, %v9116
    %v9195 = vmax.f32 %v9117, %v9118
    %v9196 = vmax.f32 %v9119, %v9120
    %v9197 = vmax.f32 %v9121, %v9122
    %v9198 = vmax.f32 %v9123, %v9124
    %v9199 = vmax.f32 %v9125, %v9126
    %v9200 = vmax.f32 %v9127, %v9128
    %v9201 = vmax.f32 %v9129, %v9130
    %v9202 = vmax.f32 %v9131, %v9132
    %v9203 = vmax.f32 %v9133, %v9134
    %v9204 = vmax.f32 %v9135, %v9136
    %v9205 = vmax.f32 %v9137, %v9138
    %v9206 = vmax.f32 %v9139, %v9140
    %v9207 = vmax.f32 %v9141, %v9142
    %v9208 = vmax.f32 %v9143, %v9144
    %v9209 = vmax.f32 %v9145, %v9146
    %v9210 = vmax.f32 %v9147, %v9148
    %v9211 = vmax.f32 %v9149, %v9150
    %v9212 = vmax.f32 %v9151, %v9152
    %v9213 = vmax.f32 %v9153, %v9154
    %v9214 = vmax.f32 %v9155, %v9156
    %v9215 = vmax.f32 %v9157, %v9158
    %v9216 = vmax.f32 %v9159, %v9160
    %v9217 = vmax.f32 %v9161, %v9162
    %v9218 = vmax.f32 %v9163, %v9164
    %v9219 = vmax.f32 %v9165, %v9166
    %v9220 = vmax.f32 %v9167, %v9168
    %v9221 = vmax.f32 %v9169, %v9170
    %v9222 = vmax.f32 %v9171, %v9172
    %v9223 = vmax.f32 %v9173, %v9174
    %9249 = vrot.lane.b32.xlu0 %v9176, 4
    %v9250 = vpop.permute.xlu0 %9249
    %9251 = vrot.lane.b32.xlu0 %v9177, 4
    %v9252 = vpop.permute.xlu0 %9251
    %9253 = vrot.lane.b32.xlu0 %v9178, 4
    %v9254 = vpop.permute.xlu0 %9253
    %9255 = vrot.lane.b32.xlu0 %v9179, 4
    %v9256 = vpop.permute.xlu0 %9255
    %9257 = vrot.lane.b32.xlu0 %v9180, 4
    %v9258 = vpop.permute.xlu0 %9257
    %9259 = vrot.lane.b32.xlu0 %v9183, 4
    %v9260 = vpop.permute.xlu0 %9259
    %9261 = vrot.lane.b32.xlu0 %v9184, 4
    %v9262 = vpop.permute.xlu0 %9261
    %9263 = vrot.lane.b32.xlu0 %v9185, 4
    %v9264 = vpop.permute.xlu0 %9263
    %9265 = vrot.lane.b32.xlu0 %v9186, 4
    %v9266 = vpop.permute.xlu0 %9265
    %9267 = vrot.lane.b32.xlu0 %v9187, 4
    %v9268 = vpop.permute.xlu0 %9267
    %9269 = vrot.lane.b32.xlu0 %v9190, 4
    %v9270 = vpop.permute.xlu0 %9269
    %9271 = vrot.lane.b32.xlu0 %v9191, 4
    %v9272 = vpop.permute.xlu0 %9271
    %9273 = vrot.lane.b32.xlu0 %v9192, 4
    %v9274 = vpop.permute.xlu0 %9273
    %9275 = vrot.lane.b32.xlu0 %v9193, 4
    %v9276 = vpop.permute.xlu0 %9275
    %9277 = vrot.lane.b32.xlu0 %v9194, 4
    %v9278 = vpop.permute.xlu0 %9277
    %9279 = vrot.lane.b32.xlu0 %v9197, 4
    %v9280 = vpop.permute.xlu0 %9279
    %9281 = vrot.lane.b32.xlu0 %v9198, 4
    %v9282 = vpop.permute.xlu0 %9281
    %9283 = vrot.lane.b32.xlu0 %v9199, 4
    %v9284 = vpop.permute.xlu0 %9283
    %9285 = vrot.lane.b32.xlu0 %v9200, 4
    %v9286 = vpop.permute.xlu0 %9285
    %9287 = vrot.lane.b32.xlu0 %v9201, 4
    %v9288 = vpop.permute.xlu0 %9287
    %9289 = vrot.lane.b32.xlu0 %v9204, 4
    %v9290 = vpop.permute.xlu0 %9289
    %9291 = vrot.lane.b32.xlu0 %v9205, 4
    %v9292 = vpop.permute.xlu0 %9291
    %9293 = vrot.lane.b32.xlu0 %v9206, 4
    %v9294 = vpop.permute.xlu0 %9293
    %9295 = vrot.lane.b32.xlu0 %v9207, 4
    %v9296 = vpop.permute.xlu0 %9295
    %9297 = vrot.lane.b32.xlu0 %v9208, 4
    %v9298 = vpop.permute.xlu0 %9297
    %9329 = vrot.lane.b32.xlu0 %v9177, 8
    %v9330 = vpop.permute.xlu0 %9329
    %9331 = vrot.lane.b32.xlu0 %v9178, 8
    %v9332 = vpop.permute.xlu0 %9331
    %9333 = vrot.lane.b32.xlu0 %v9179, 8
    %v9334 = vpop.permute.xlu0 %9333
    %9335 = vrot.lane.b32.xlu0 %v9180, 8
    %v9336 = vpop.permute.xlu0 %9335
    %9337 = vrot.lane.b32.xlu0 %v9181, 8
    %v9338 = vpop.permute.xlu0 %9337
    %9339 = vrot.lane.b32.xlu0 %v9184, 8
    %v9340 = vpop.permute.xlu0 %9339
    %9341 = vrot.lane.b32.xlu0 %v9185, 8
    %v9342 = vpop.permute.xlu0 %9341
    %9343 = vrot.lane.b32.xlu0 %v9186, 8
    %v9344 = vpop.permute.xlu0 %9343
    %9345 = vrot.lane.b32.xlu0 %v9187, 8
    %v9346 = vpop.permute.xlu0 %9345
    %9347 = vrot.lane.b32.xlu0 %v9188, 8
    %v9348 = vpop.permute.xlu0 %9347
    %9349 = vrot.lane.b32.xlu0 %v9191, 8
    %v9350 = vpop.permute.xlu0 %9349
    %9351 = vrot.lane.b32.xlu0 %v9192, 8
    %v9352 = vpop.permute.xlu0 %9351
    %9353 = vrot.lane.b32.xlu0 %v9193, 8
    %v9354 = vpop.permute.xlu0 %9353
    %9355 = vrot.lane.b32.xlu0 %v9194, 8
    %v9356 = vpop.permute.xlu0 %9355
    %9357 = vrot.lane.b32.xlu0 %v9195, 8
    %v9358 = vpop.permute.xlu0 %9357
    %9359 = vrot.lane.b32.xlu0 %v9198, 8
    %v9360 = vpop.permute.xlu0 %9359
    %9361 = vrot.lane.b32.xlu0 %v9199, 8
    %v9362 = vpop.permute.xlu0 %9361
    %9363 = vrot.lane.b32.xlu0 %v9200, 8
    %v9364 = vpop.permute.xlu0 %9363
    %9365 = vrot.lane.b32.xlu0 %v9201, 8
    %v9366 = vpop.permute.xlu0 %9365
    %9367 = vrot.lane.b32.xlu0 %v9202, 8
    %v9368 = vpop.permute.xlu0 %9367
    %9369 = vrot.lane.b32.xlu0 %v9205, 8
    %v9370 = vpop.permute.xlu0 %9369
    %9371 = vrot.lane.b32.xlu0 %v9206, 8
    %v9372 = vpop.permute.xlu0 %9371
    %9373 = vrot.lane.b32.xlu0 %v9207, 8
    %v9374 = vpop.permute.xlu0 %9373
    %9375 = vrot.lane.b32.xlu0 %v9208, 8
    %v9376 = vpop.permute.xlu0 %9375
    %9377 = vrot.lane.b32.xlu0 %v9209, 8
    %v9378 = vpop.permute.xlu0 %9377
    %9413 = vrot.lane.b32.xlu0 %v9182, 12
    %v9414 = vpop.permute.xlu0 %9413
    %9415 = vrot.lane.b32.xlu0 %v9183, 12
    %v9416 = vpop.permute.xlu0 %9415
    %9417 = vrot.lane.b32.xlu0 %v9184, 12
    %v9418 = vpop.permute.xlu0 %9417
    %9419 = vrot.lane.b32.xlu0 %v9185, 12
    %v9420 = vpop.permute.xlu0 %9419
    %9421 = vrot.lane.b32.xlu0 %v9186, 12
    %v9422 = vpop.permute.xlu0 %9421
    %9423 = vrot.lane.b32.xlu0 %v9189, 12
    %v9424 = vpop.permute.xlu0 %9423
    %9425 = vrot.lane.b32.xlu0 %v9190, 12
    %v9426 = vpop.permute.xlu0 %9425
    %9427 = vrot.lane.b32.xlu0 %v9191, 12
    %v9428 = vpop.permute.xlu0 %9427
    %9429 = vrot.lane.b32.xlu0 %v9192, 12
    %v9430 = vpop.permute.xlu0 %9429
    %9431 = vrot.lane.b32.xlu0 %v9193, 12
    %v9432 = vpop.permute.xlu0 %9431
    %9433 = vrot.lane.b32.xlu0 %v9196, 12
    %v9434 = vpop.permute.xlu0 %9433
    %9435 = vrot.lane.b32.xlu0 %v9197, 12
    %v9436 = vpop.permute.xlu0 %9435
    %9437 = vrot.lane.b32.xlu0 %v9198, 12
    %v9438 = vpop.permute.xlu0 %9437
    %9439 = vrot.lane.b32.xlu0 %v9199, 12
    %v9440 = vpop.permute.xlu0 %9439
    %9441 = vrot.lane.b32.xlu0 %v9200, 12
    %v9442 = vpop.permute.xlu0 %9441
    %9443 = vrot.lane.b32.xlu0 %v9203, 12
    %v9444 = vpop.permute.xlu0 %9443
    %9445 = vrot.lane.b32.xlu0 %v9204, 12
    %v9446 = vpop.permute.xlu0 %9445
    %9447 = vrot.lane.b32.xlu0 %v9205, 12
    %v9448 = vpop.permute.xlu0 %9447
    %9449 = vrot.lane.b32.xlu0 %v9206, 12
    %v9450 = vpop.permute.xlu0 %9449
    %9451 = vrot.lane.b32.xlu0 %v9207, 12
    %v9452 = vpop.permute.xlu0 %9451
    %9453 = vrot.lane.b32.xlu0 %v9210, 12
    %v9454 = vpop.permute.xlu0 %9453
    %9455 = vrot.lane.b32.xlu0 %v9211, 12
    %v9456 = vpop.permute.xlu0 %9455
    %9457 = vrot.lane.b32.xlu0 %v9212, 12
    %v9458 = vpop.permute.xlu0 %9457
    %9459 = vrot.lane.b32.xlu0 %v9213, 12
    %v9460 = vpop.permute.xlu0 %9459
    %9461 = vrot.lane.b32.xlu0 %v9214, 12
    %v9462 = vpop.permute.xlu0 %9461
    %9489 = vrot.lane.b32.xlu0 %v9183, 16
    %v9490 = vpop.permute.xlu0 %9489
    %9491 = vrot.lane.b32.xlu0 %v9184, 16
    %v9492 = vpop.permute.xlu0 %9491
    %9493 = vrot.lane.b32.xlu0 %v9185, 16
    %v9494 = vpop.permute.xlu0 %9493
    %9495 = vrot.lane.b32.xlu0 %v9186, 16
    %v9496 = vpop.permute.xlu0 %9495
    %9497 = vrot.lane.b32.xlu0 %v9187, 16
    %v9498 = vpop.permute.xlu0 %9497
    %9499 = vrot.lane.b32.xlu0 %v9190, 16
    %v9500 = vpop.permute.xlu0 %9499
    %9501 = vrot.lane.b32.xlu0 %v9191, 16
    %v9502 = vpop.permute.xlu0 %9501
    %9503 = vrot.lane.b32.xlu0 %v9192, 16
    %v9504 = vpop.permute.xlu0 %9503
    %9505 = vrot.lane.b32.xlu0 %v9193, 16
    %v9506 = vpop.permute.xlu0 %9505
    %9507 = vrot.lane.b32.xlu0 %v9194, 16
    %v9508 = vpop.permute.xlu0 %9507
    %9509 = vrot.lane.b32.xlu0 %v9197, 16
    %v9510 = vpop.permute.xlu0 %9509
    %9511 = vrot.lane.b32.xlu0 %v9198, 16
    %v9512 = vpop.permute.xlu0 %9511
    %9513 = vrot.lane.b32.xlu0 %v9199, 16
    %v9514 = vpop.permute.xlu0 %9513
    %9515 = vrot.lane.b32.xlu0 %v9200, 16
    %v9516 = vpop.permute.xlu0 %9515
    %9517 = vrot.lane.b32.xlu0 %v9201, 16
    %v9518 = vpop.permute.xlu0 %9517
    %9519 = vrot.lane.b32.xlu0 %v9204, 16
    %v9520 = vpop.permute.xlu0 %9519
    %9521 = vrot.lane.b32.xlu0 %v9205, 16
    %v9522 = vpop.permute.xlu0 %9521
    %9523 = vrot.lane.b32.xlu0 %v9206, 16
    %v9524 = vpop.permute.xlu0 %9523
    %9525 = vrot.lane.b32.xlu0 %v9207, 16
    %v9526 = vpop.permute.xlu0 %9525
    %9527 = vrot.lane.b32.xlu0 %v9208, 16
    %v9528 = vpop.permute.xlu0 %9527
    %9529 = vrot.lane.b32.xlu0 %v9211, 16
    %v9530 = vpop.permute.xlu0 %9529
    %9531 = vrot.lane.b32.xlu0 %v9212, 16
    %v9532 = vpop.permute.xlu0 %9531
    %9533 = vrot.lane.b32.xlu0 %v9213, 16
    %v9534 = vpop.permute.xlu0 %9533
    %9535 = vrot.lane.b32.xlu0 %v9214, 16
    %v9536 = vpop.permute.xlu0 %9535
    %9537 = vrot.lane.b32.xlu0 %v9215, 16
    %v9538 = vpop.permute.xlu0 %9537
    %9565 = vrot.lane.b32.xlu0 %v9184, 20
    %v9566 = vpop.permute.xlu0 %9565
    %9567 = vrot.lane.b32.xlu0 %v9185, 20
    %v9568 = vpop.permute.xlu0 %9567
    %9569 = vrot.lane.b32.xlu0 %v9186, 20
    %v9570 = vpop.permute.xlu0 %9569
    %9571 = vrot.lane.b32.xlu0 %v9187, 20
    %v9572 = vpop.permute.xlu0 %9571
    %9573 = vrot.lane.b32.xlu0 %v9188, 20
    %v9574 = vpop.permute.xlu0 %9573
    %9575 = vrot.lane.b32.xlu0 %v9191, 20
    %v9576 = vpop.permute.xlu0 %9575
    %9577 = vrot.lane.b32.xlu0 %v9192, 20
    %v9578 = vpop.permute.xlu0 %9577
    %9579 = vrot.lane.b32.xlu0 %v9193, 20
    %v9580 = vpop.permute.xlu0 %9579
    %9581 = vrot.lane.b32.xlu0 %v9194, 20
    %v9582 = vpop.permute.xlu0 %9581
    %9583 = vrot.lane.b32.xlu0 %v9195, 20
    %v9584 = vpop.permute.xlu0 %9583
    %9585 = vrot.lane.b32.xlu0 %v9198, 20
    %v9586 = vpop.permute.xlu0 %9585
    %9587 = vrot.lane.b32.xlu0 %v9199, 20
    %v9588 = vpop.permute.xlu0 %9587
    %9589 = vrot.lane.b32.xlu0 %v9200, 20
    %v9590 = vpop.permute.xlu0 %9589
    %9591 = vrot.lane.b32.xlu0 %v9201, 20
    %v9592 = vpop.permute.xlu0 %9591
    %9593 = vrot.lane.b32.xlu0 %v9202, 20
    %v9594 = vpop.permute.xlu0 %9593
    %9595 = vrot.lane.b32.xlu0 %v9205, 20
    %v9596 = vpop.permute.xlu0 %9595
    %9597 = vrot.lane.b32.xlu0 %v9206, 20
    %v9598 = vpop.permute.xlu0 %9597
    %9599 = vrot.lane.b32.xlu0 %v9207, 20
    %v9600 = vpop.permute.xlu0 %9599
    %9601 = vrot.lane.b32.xlu0 %v9208, 20
    %v9602 = vpop.permute.xlu0 %9601
    %9603 = vrot.lane.b32.xlu0 %v9209, 20
    %v9604 = vpop.permute.xlu0 %9603
    %9605 = vrot.lane.b32.xlu0 %v9212, 20
    %v9606 = vpop.permute.xlu0 %9605
    %9607 = vrot.lane.b32.xlu0 %v9213, 20
    %v9608 = vpop.permute.xlu0 %9607
    %9609 = vrot.lane.b32.xlu0 %v9214, 20
    %v9610 = vpop.permute.xlu0 %9609
    %9611 = vrot.lane.b32.xlu0 %v9215, 20
    %v9612 = vpop.permute.xlu0 %9611
    %9613 = vrot.lane.b32.xlu0 %v9216, 20
    %v9614 = vpop.permute.xlu0 %9613
    %9645 = vrot.lane.b32.xlu0 %v9189, 24
    %v9646 = vpop.permute.xlu0 %9645
    %9647 = vrot.lane.b32.xlu0 %v9190, 24
    %v9648 = vpop.permute.xlu0 %9647
    %9649 = vrot.lane.b32.xlu0 %v9191, 24
    %v9650 = vpop.permute.xlu0 %9649
    %9651 = vrot.lane.b32.xlu0 %v9192, 24
    %v9652 = vpop.permute.xlu0 %9651
    %9653 = vrot.lane.b32.xlu0 %v9193, 24
    %v9654 = vpop.permute.xlu0 %9653
    %9655 = vrot.lane.b32.xlu0 %v9196, 24
    %v9656 = vpop.permute.xlu0 %9655
    %9657 = vrot.lane.b32.xlu0 %v9197, 24
    %v9658 = vpop.permute.xlu0 %9657
    %9659 = vrot.lane.b32.xlu0 %v9198, 24
    %v9660 = vpop.permute.xlu0 %9659
    %9661 = vrot.lane.b32.xlu0 %v9199, 24
    %v9662 = vpop.permute.xlu0 %9661
    %9663 = vrot.lane.b32.xlu0 %v9200, 24
    %v9664 = vpop.permute.xlu0 %9663
    %9665 = vrot.lane.b32.xlu0 %v9203, 24
    %v9666 = vpop.permute.xlu0 %9665
    %9667 = vrot.lane.b32.xlu0 %v9204, 24
    %v9668 = vpop.permute.xlu0 %9667
    %9669 = vrot.lane.b32.xlu0 %v9205, 24
    %v9670 = vpop.permute.xlu0 %9669
    %9671 = vrot.lane.b32.xlu0 %v9206, 24
    %v9672 = vpop.permute.xlu0 %9671
    %9673 = vrot.lane.b32.xlu0 %v9207, 24
    %v9674 = vpop.permute.xlu0 %9673
    %9675 = vrot.lane.b32.xlu0 %v9210, 24
    %v9676 = vpop.permute.xlu0 %9675
    %9677 = vrot.lane.b32.xlu0 %v9211, 24
    %v9678 = vpop.permute.xlu0 %9677
    %9679 = vrot.lane.b32.xlu0 %v9212, 24
    %v9680 = vpop.permute.xlu0 %9679
    %9681 = vrot.lane.b32.xlu0 %v9213, 24
    %v9682 = vpop.permute.xlu0 %9681
    %9683 = vrot.lane.b32.xlu0 %v9214, 24
    %v9684 = vpop.permute.xlu0 %9683
    %9685 = vrot.lane.b32.xlu0 %v9217, 24
    %v9686 = vpop.permute.xlu0 %9685
    %9687 = vrot.lane.b32.xlu0 %v9218, 24
    %v9688 = vpop.permute.xlu0 %9687
    %9689 = vrot.lane.b32.xlu0 %v9219, 24
    %v9690 = vpop.permute.xlu0 %9689
    %9691 = vrot.lane.b32.xlu0 %v9220, 24
    %v9692 = vpop.permute.xlu0 %9691
    %9693 = vrot.lane.b32.xlu0 %v9221, 24
    %v9694 = vpop.permute.xlu0 %9693
    %9721 = vrot.lane.b32.xlu0 %v9190, 28
    %v9722 = vpop.permute.xlu0 %9721
    %9723 = vrot.lane.b32.xlu0 %v9191, 28
    %v9724 = vpop.permute.xlu0 %9723
    %9725 = vrot.lane.b32.xlu0 %v9192, 28
    %v9726 = vpop.permute.xlu0 %9725
    %9727 = vrot.lane.b32.xlu0 %v9193, 28
    %v9728 = vpop.permute.xlu0 %9727
    %9729 = vrot.lane.b32.xlu0 %v9194, 28
    %v9730 = vpop.permute.xlu0 %9729
    %9731 = vrot.lane.b32.xlu0 %v9197, 28
    %v9732 = vpop.permute.xlu0 %9731
    %9733 = vrot.lane.b32.xlu0 %v9198, 28
    %v9734 = vpop.permute.xlu0 %9733
    %9735 = vrot.lane.b32.xlu0 %v9199, 28
    %v9736 = vpop.permute.xlu0 %9735
    %9737 = vrot.lane.b32.xlu0 %v9200, 28
    %v9738 = vpop.permute.xlu0 %9737
    %9739 = vrot.lane.b32.xlu0 %v9201, 28
    %v9740 = vpop.permute.xlu0 %9739
    %9741 = vrot.lane.b32.xlu0 %v9204, 28
    %v9742 = vpop.permute.xlu0 %9741
    %9743 = vrot.lane.b32.xlu0 %v9205, 28
    %v9744 = vpop.permute.xlu0 %9743
    %9745 = vrot.lane.b32.xlu0 %v9206, 28
    %v9746 = vpop.permute.xlu0 %9745
    %9747 = vrot.lane.b32.xlu0 %v9207, 28
    %v9748 = vpop.permute.xlu0 %9747
    %9749 = vrot.lane.b32.xlu0 %v9208, 28
    %v9750 = vpop.permute.xlu0 %9749
    %9751 = vrot.lane.b32.xlu0 %v9211, 28
    %v9752 = vpop.permute.xlu0 %9751
    %9753 = vrot.lane.b32.xlu0 %v9212, 28
    %v9754 = vpop.permute.xlu0 %9753
    %9755 = vrot.lane.b32.xlu0 %v9213, 28
    %v9756 = vpop.permute.xlu0 %9755
    %9757 = vrot.lane.b32.xlu0 %v9214, 28
    %v9758 = vpop.permute.xlu0 %9757
    %9759 = vrot.lane.b32.xlu0 %v9215, 28
    %v9760 = vpop.permute.xlu0 %9759
    %9761 = vrot.lane.b32.xlu0 %v9218, 28
    %v9762 = vpop.permute.xlu0 %9761
    %9763 = vrot.lane.b32.xlu0 %v9219, 28
    %v9764 = vpop.permute.xlu0 %9763
    %9765 = vrot.lane.b32.xlu0 %v9220, 28
    %v9766 = vpop.permute.xlu0 %9765
    %9767 = vrot.lane.b32.xlu0 %v9221, 28
    %v9768 = vpop.permute.xlu0 %9767
    %9769 = vrot.lane.b32.xlu0 %v9222, 28
    %v9770 = vpop.permute.xlu0 %9769
    %9797 = vrot.lane.b32.xlu0 %v9191, 32
    %v9798 = vpop.permute.xlu0 %9797
    %9799 = vrot.lane.b32.xlu0 %v9192, 32
    %v9800 = vpop.permute.xlu0 %9799
    %9801 = vrot.lane.b32.xlu0 %v9193, 32
    %v9802 = vpop.permute.xlu0 %9801
    %9803 = vrot.lane.b32.xlu0 %v9194, 32
    %v9804 = vpop.permute.xlu0 %9803
    %9805 = vrot.lane.b32.xlu0 %v9195, 32
    %v9806 = vpop.permute.xlu0 %9805
    %9807 = vrot.lane.b32.xlu0 %v9198, 32
    %v9808 = vpop.permute.xlu0 %9807
    %9809 = vrot.lane.b32.xlu0 %v9199, 32
    %v9810 = vpop.permute.xlu0 %9809
    %9811 = vrot.lane.b32.xlu0 %v9200, 32
    %v9812 = vpop.permute.xlu0 %9811
    %9813 = vrot.lane.b32.xlu0 %v9201, 32
    %v9814 = vpop.permute.xlu0 %9813
    %9815 = vrot.lane.b32.xlu0 %v9202, 32
    %v9816 = vpop.permute.xlu0 %9815
    %9817 = vrot.lane.b32.xlu0 %v9205, 32
    %v9818 = vpop.permute.xlu0 %9817
    %9819 = vrot.lane.b32.xlu0 %v9206, 32
    %v9820 = vpop.permute.xlu0 %9819
    %9821 = vrot.lane.b32.xlu0 %v9207, 32
    %v9822 = vpop.permute.xlu0 %9821
    %9823 = vrot.lane.b32.xlu0 %v9208, 32
    %v9824 = vpop.permute.xlu0 %9823
    %9825 = vrot.lane.b32.xlu0 %v9209, 32
    %v9826 = vpop.permute.xlu0 %9825
    %9827 = vrot.lane.b32.xlu0 %v9212, 32
    %v9828 = vpop.permute.xlu0 %9827
    %9829 = vrot.lane.b32.xlu0 %v9213, 32
    %v9830 = vpop.permute.xlu0 %9829
    %9831 = vrot.lane.b32.xlu0 %v9214, 32
    %v9832 = vpop.permute.xlu0 %9831
    %9833 = vrot.lane.b32.xlu0 %v9215, 32
    %v9834 = vpop.permute.xlu0 %9833
    %9835 = vrot.lane.b32.xlu0 %v9216, 32
    %v9836 = vpop.permute.xlu0 %9835
    %9837 = vrot.lane.b32.xlu0 %v9219, 32
    %v9838 = vpop.permute.xlu0 %9837
    %9839 = vrot.lane.b32.xlu0 %v9220, 32
    %v9840 = vpop.permute.xlu0 %9839
    %9841 = vrot.lane.b32.xlu0 %v9221, 32
    %v9842 = vpop.permute.xlu0 %9841
    %9843 = vrot.lane.b32.xlu0 %v9222, 32
    %v9844 = vpop.permute.xlu0 %9843
    %9845 = vrot.lane.b32.xlu0 %v9223, 32
    %v9846 = vpop.permute.xlu0 %9845
    %vm9872 = vcmask 31744
    %v9873 = vsel %vm9872, %v9175, %v9250
    %v9874 = vsel %vm9872, %v9176, %v9252
    %v9875 = vsel %vm9872, %v9177, %v9254
    %v9876 = vsel %vm9872, %v9178, %v9256
    %v9877 = vsel %vm9872, %v9179, %v9258
    %v9878 = vsel %vm9872, %v9182, %v9260
    %v9879 = vsel %vm9872, %v9183, %v9262
    %v9880 = vsel %vm9872, %v9184, %v9264
    %v9881 = vsel %vm9872, %v9185, %v9266
    %v9882 = vsel %vm9872, %v9186, %v9268
    %v9883 = vsel %vm9872, %v9189, %v9270
    %v9884 = vsel %vm9872, %v9190, %v9272
    %v9885 = vsel %vm9872, %v9191, %v9274
    %v9886 = vsel %vm9872, %v9192, %v9276
    %v9887 = vsel %vm9872, %v9193, %v9278
    %v9888 = vsel %vm9872, %v9196, %v9280
    %v9889 = vsel %vm9872, %v9197, %v9282
    %v9890 = vsel %vm9872, %v9198, %v9284
    %v9891 = vsel %vm9872, %v9199, %v9286
    %v9892 = vsel %vm9872, %v9200, %v9288
    %v9893 = vsel %vm9872, %v9203, %v9290
    %v9894 = vsel %vm9872, %v9204, %v9292
    %v9895 = vsel %vm9872, %v9205, %v9294
    %v9896 = vsel %vm9872, %v9206, %v9296
    %v9897 = vsel %vm9872, %v9207, %v9298
    %v9898 = vsel %vm5256, %v9873, %v9330
    %v9899 = vsel %vm5256, %v9874, %v9332
    %v9900 = vsel %vm5256, %v9875, %v9334
    %v9901 = vsel %vm5256, %v9876, %v9336
    %v9902 = vsel %vm5256, %v9877, %v9338
    %v9903 = vsel %vm5256, %v9878, %v9340
    %v9904 = vsel %vm5256, %v9879, %v9342
    %v9905 = vsel %vm5256, %v9880, %v9344
    %v9906 = vsel %vm5256, %v9881, %v9346
    %v9907 = vsel %vm5256, %v9882, %v9348
    %v9908 = vsel %vm5256, %v9883, %v9350
    %v9909 = vsel %vm5256, %v9884, %v9352
    %v9910 = vsel %vm5256, %v9885, %v9354
    %v9911 = vsel %vm5256, %v9886, %v9356
    %v9912 = vsel %vm5256, %v9887, %v9358
    %v9913 = vsel %vm5256, %v9888, %v9360
    %v9914 = vsel %vm5256, %v9889, %v9362
    %v9915 = vsel %vm5256, %v9890, %v9364
    %v9916 = vsel %vm5256, %v9891, %v9366
    %v9917 = vsel %vm5256, %v9892, %v9368
    %v9918 = vsel %vm5256, %v9893, %v9370
    %v9919 = vsel %vm5256, %v9894, %v9372
    %v9920 = vsel %vm5256, %v9895, %v9374
    %v9921 = vsel %vm5256, %v9896, %v9376
    %v9922 = vsel %vm5256, %v9897, %v9378
    %vm9923 = vcmask 97280
    %v9924 = vsel %vm9923, %v9898, %v9414
    %v9925 = vsel %vm9923, %v9899, %v9416
    %v9926 = vsel %vm9923, %v9900, %v9418
    %v9927 = vsel %vm9923, %v9901, %v9420
    %v9928 = vsel %vm9923, %v9902, %v9422
    %v9929 = vsel %vm9923, %v9903, %v9424
    %v9930 = vsel %vm9923, %v9904, %v9426
    %v9931 = vsel %vm9923, %v9905, %v9428
    %v9932 = vsel %vm9923, %v9906, %v9430
    %v9933 = vsel %vm9923, %v9907, %v9432
    %v9934 = vsel %vm9923, %v9908, %v9434
    %v9935 = vsel %vm9923, %v9909, %v9436
    %v9936 = vsel %vm9923, %v9910, %v9438
    %v9937 = vsel %vm9923, %v9911, %v9440
    %v9938 = vsel %vm9923, %v9912, %v9442
    %v9939 = vsel %vm9923, %v9913, %v9444
    %v9940 = vsel %vm9923, %v9914, %v9446
    %v9941 = vsel %vm9923, %v9915, %v9448
    %v9942 = vsel %vm9923, %v9916, %v9450
    %v9943 = vsel %vm9923, %v9917, %v9452
    %v9944 = vsel %vm9923, %v9918, %v9454
    %v9945 = vsel %vm9923, %v9919, %v9456
    %v9946 = vsel %vm9923, %v9920, %v9458
    %v9947 = vsel %vm9923, %v9921, %v9460
    %v9948 = vsel %vm9923, %v9922, %v9462
    %v9949 = vsel %vm5453, %v9924, %v9490
    %v9950 = vsel %vm5453, %v9925, %v9492
    %v9951 = vsel %vm5453, %v9926, %v9494
    %v9952 = vsel %vm5453, %v9927, %v9496
    %v9953 = vsel %vm5453, %v9928, %v9498
    %v9954 = vsel %vm5453, %v9929, %v9500
    %v9955 = vsel %vm5453, %v9930, %v9502
    %v9956 = vsel %vm5453, %v9931, %v9504
    %v9957 = vsel %vm5453, %v9932, %v9506
    %v9958 = vsel %vm5453, %v9933, %v9508
    %v9959 = vsel %vm5453, %v9934, %v9510
    %v9960 = vsel %vm5453, %v9935, %v9512
    %v9961 = vsel %vm5453, %v9936, %v9514
    %v9962 = vsel %vm5453, %v9937, %v9516
    %v9963 = vsel %vm5453, %v9938, %v9518
    %v9964 = vsel %vm5453, %v9939, %v9520
    %v9965 = vsel %vm5453, %v9940, %v9522
    %v9966 = vsel %vm5453, %v9941, %v9524
    %v9967 = vsel %vm5453, %v9942, %v9526
    %v9968 = vsel %vm5453, %v9943, %v9528
    %v9969 = vsel %vm5453, %v9944, %v9530
    %v9970 = vsel %vm5453, %v9945, %v9532
    %v9971 = vsel %vm5453, %v9946, %v9534
    %v9972 = vsel %vm5453, %v9947, %v9536
    %v9973 = vsel %vm5453, %v9948, %v9538
    %vm9974 = vcmask 162816
    %v9975 = vsel %vm9974, %v9949, %v9566
    %v9976 = vsel %vm9974, %v9950, %v9568
    %v9977 = vsel %vm9974, %v9951, %v9570
    %v9978 = vsel %vm9974, %v9952, %v9572
    %v9979 = vsel %vm9974, %v9953, %v9574
    %v9980 = vsel %vm9974, %v9954, %v9576
    %v9981 = vsel %vm9974, %v9955, %v9578
    %v9982 = vsel %vm9974, %v9956, %v9580
    %v9983 = vsel %vm9974, %v9957, %v9582
    %v9984 = vsel %vm9974, %v9958, %v9584
    %v9985 = vsel %vm9974, %v9959, %v9586
    %v9986 = vsel %vm9974, %v9960, %v9588
    %v9987 = vsel %vm9974, %v9961, %v9590
    %v9988 = vsel %vm9974, %v9962, %v9592
    %v9989 = vsel %vm9974, %v9963, %v9594
    %v9990 = vsel %vm9974, %v9964, %v9596
    %v9991 = vsel %vm9974, %v9965, %v9598
    %v9992 = vsel %vm9974, %v9966, %v9600
    %v9993 = vsel %vm9974, %v9967, %v9602
    %v9994 = vsel %vm9974, %v9968, %v9604
    %v9995 = vsel %vm9974, %v9969, %v9606
    %v9996 = vsel %vm9974, %v9970, %v9608
    %v9997 = vsel %vm9974, %v9971, %v9610
    %v9998 = vsel %vm9974, %v9972, %v9612
    %v9999 = vsel %vm9974, %v9973, %v9614
    %v10000 = vsel %vm5650, %v9975, %v9646
    %v10001 = vsel %vm5650, %v9976, %v9648
    %v10002 = vsel %vm5650, %v9977, %v9650
    %v10003 = vsel %vm5650, %v9978, %v9652
    %v10004 = vsel %vm5650, %v9979, %v9654
    %v10005 = vsel %vm5650, %v9980, %v9656
    %v10006 = vsel %vm5650, %v9981, %v9658
    %v10007 = vsel %vm5650, %v9982, %v9660
    %v10008 = vsel %vm5650, %v9983, %v9662
    %v10009 = vsel %vm5650, %v9984, %v9664
    %v10010 = vsel %vm5650, %v9985, %v9666
    %v10011 = vsel %vm5650, %v9986, %v9668
    %v10012 = vsel %vm5650, %v9987, %v9670
    %v10013 = vsel %vm5650, %v9988, %v9672
    %v10014 = vsel %vm5650, %v9989, %v9674
    %v10015 = vsel %vm5650, %v9990, %v9676
    %v10016 = vsel %vm5650, %v9991, %v9678
    %v10017 = vsel %vm5650, %v9992, %v9680
    %v10018 = vsel %vm5650, %v9993, %v9682
    %v10019 = vsel %vm5650, %v9994, %v9684
    %v10020 = vsel %vm5650, %v9995, %v9686
    %v10021 = vsel %vm5650, %v9996, %v9688
    %v10022 = vsel %vm5650, %v9997, %v9690
    %v10023 = vsel %vm5650, %v9998, %v9692
    %v10024 = vsel %vm5650, %v9999, %v9694
    %vm10025 = vcmask 228352
    %v10026 = vsel %vm10025, %v10000, %v9722
    %v10027 = vsel %vm10025, %v10001, %v9724
    %v10028 = vsel %vm10025, %v10002, %v9726
    %v10029 = vsel %vm10025, %v10003, %v9728
    %v10030 = vsel %vm10025, %v10004, %v9730
    %v10031 = vsel %vm10025, %v10005, %v9732
    %v10032 = vsel %vm10025, %v10006, %v9734
    %v10033 = vsel %vm10025, %v10007, %v9736
    %v10034 = vsel %vm10025, %v10008, %v9738
    %v10035 = vsel %vm10025, %v10009, %v9740
    %v10036 = vsel %vm10025, %v10010, %v9742
    %v10037 = vsel %vm10025, %v10011, %v9744
    %v10038 = vsel %vm10025, %v10012, %v9746
    %v10039 = vsel %vm10025, %v10013, %v9748
    %v10040 = vsel %vm10025, %v10014, %v9750
    %v10041 = vsel %vm10025, %v10015, %v9752
    %v10042 = vsel %vm10025, %v10016, %v9754
    %v10043 = vsel %vm10025, %v10017, %v9756
    %v10044 = vsel %vm10025, %v10018, %v9758
    %v10045 = vsel %vm10025, %v10019, %v9760
    %v10046 = vsel %vm10025, %v10020, %v9762
    %v10047 = vsel %vm10025, %v10021, %v9764
    %v10048 = vsel %vm10025, %v10022, %v9766
    %v10049 = vsel %vm10025, %v10023, %v9768
    %v10050 = vsel %vm10025, %v10024, %v9770
    %v10051 = vsel %vm5847, %v10026, %v9798
    %v10052 = vsel %vm5847, %v10027, %v9800
    %v10053 = vsel %vm5847, %v10028, %v9802
    %v10054 = vsel %vm5847, %v10029, %v9804
    %v10055 = vsel %vm5847, %v10030, %v9806
    %v10056 = vsel %vm5847, %v10031, %v9808
    %v10057 = vsel %vm5847, %v10032, %v9810
    %v10058 = vsel %vm5847, %v10033, %v9812
    %v10059 = vsel %vm5847, %v10034, %v9814
    %v10060 = vsel %vm5847, %v10035, %v9816
    %v10061 = vsel %vm5847, %v10036, %v9818
    %v10062 = vsel %vm5847, %v10037, %v9820
    %v10063 = vsel %vm5847, %v10038, %v9822
    %v10064 = vsel %vm5847, %v10039, %v9824
    %v10065 = vsel %vm5847, %v10040, %v9826
    %v10066 = vsel %vm5847, %v10041, %v9828
    %v10067 = vsel %vm5847, %v10042, %v9830
    %v10068 = vsel %vm5847, %v10043, %v9832
    %v10069 = vsel %vm5847, %v10044, %v9834
    %v10070 = vsel %vm5847, %v10045, %v9836
    %v10071 = vsel %vm5847, %v10046, %v9838
    %v10072 = vsel %vm5847, %v10047, %v9840
    %v10073 = vsel %vm5847, %v10048, %v9842
    %v10074 = vsel %vm5847, %v10049, %v9844
    %v10075 = vsel %vm5847, %v10050, %v9846
    %v10076 = vld [vmem:[%s4] sm:$0xff]
    %v10077 = vld [vmem:[%s4 + $0x8] sm:$0xff]
    %v10078 = vld [vmem:[%s4 + $0x10] sm:$0xff]
    %v10079 = vld [vmem:[%s4 + $0x18] sm:$0xff]
    %v10080 = vld [vmem:[%s4 + $0x20] sm:$0xf]
    %vm10081 = vcmask 293888
    %v10083 = vsel %vm10081, %v10051, 0
    %v10086 = vsel %vm10081, %v10052, 0
    %v10089 = vsel %vm10081, %v10053, 0
    %v10092 = vsel %vm10081, %v10054, 0
    %v10095 = vsel %vm10081, %v10055, 0
    %v10098 = vsel %vm10081, %v10056, 0
    %v10101 = vsel %vm10081, %v10057, 0
    %v10104 = vsel %vm10081, %v10058, 0
    %v10107 = vsel %vm10081, %v10059, 0
    %v10110 = vsel %vm10081, %v10060, 0
    %v10113 = vsel %vm10081, %v10061, 0
    %v10116 = vsel %vm10081, %v10062, 0
    %v10119 = vsel %vm10081, %v10063, 0
    %v10122 = vsel %vm10081, %v10064, 0
    %v10125 = vsel %vm10081, %v10065, 0
    %v10128 = vsel %vm10081, %v10066, 0
    %v10131 = vsel %vm10081, %v10067, 0
    %v10134 = vsel %vm10081, %v10068, 0
    %v10137 = vsel %vm10081, %v10069, 0
    %v10140 = vsel %vm10081, %v10070, 0
    %v10143 = vsel %vm10081, %v10071, 0
    %v10146 = vsel %vm10081, %v10072, 0
    %v10149 = vsel %vm10081, %v10073, 0
    %v10152 = vsel %vm10081, %v10074, 0
    %v10155 = vsel %vm10081, %v10075, 0
    %vm10157 = vcmask 1043456
    %v10159 = vsel %vm10157, %v10080, 0
    %10161 = vmatprep.subr.mxu0 0.0
    %10162 = vmatpush1.msra.mxu0 %v10076
    %10163 = vmatprep.subr.mxu0 0.0
    %10164 = vmatpush1.msra.mxu0 %v10077
    %10165 = vmatprep.subr.mxu0 0.0
    %10166 = vmatpush1.msra.mxu0 %v10078
    %10167 = vmatprep.subr.mxu0 0.0
    %10168 = vmatpush1.msra.mxu0 %v10079
    %10169 = vmatprep.subr.mxu0 0.0
    %10170 = vmatpush1.msra.mxu0 %v10159
    %10171 = vmatprep.subr.mxu0 0.0
    %10172 = vmatpush1.msra.mxu0 0.0
    %10173 = vmatprep.subr.mxu0 0.0
    %10174 = vmatpush1.msra.mxu0 0.0
    %10175 = vmatprep.subr.mxu0 0.0
    %10176 = vmatpush1.msra.mxu0 0.0
    %10177 = vmatprep.subr.mxu0 0.0
    %10178 = vmatpush1.msra.mxu0 0.0
    %10179 = vmatprep.subr.mxu0 0.0
    %10180 = vmatpush1.msra.mxu0 0.0
    %10181 = vmatprep.subr.mxu0 0.0
    %10182 = vmatpush1.msra.mxu0 0.0
    %10183 = vmatprep.subr.mxu0 0.0
    %10184 = vmatpush1.msra.mxu0 0.0
    %10185 = vmatprep.subr.mxu0 0.0
    %10186 = vmatpush1.msra.mxu0 0.0
    %10187 = vmatprep.subr.mxu0 0.0
    %10188 = vmatpush1.msra.mxu0 0.0
    %10189 = vmatprep.subr.mxu0 0.0
    %10190 = vmatpush1.msra.mxu0 0.0
    %10191 = vmatprep.subr.mxu0 0.0
    %10192 = vmatpush1.msra.mxu0 0.0
    %10193 = vmatprep.subr.mxu0 0.0
    %10194 = vmatpush1.msra.mxu0 0.0
    %10195 = vmatprep.subr.mxu0 0.0
    %10196 = vmatpush1.msra.mxu0 0.0
    %10197 = vmatprep.subr.mxu0 0.0
    %10198 = vmatpush1.msra.mxu0 0.0
    %10199 = vmatprep.subr.mxu0 0.0
    %10200 = vmatpush1.msra.mxu0 0.0
    %10201 = vmatprep.subr.mxu0 0.0
    %10202 = vmatpush1.msra.mxu0 0.0
    %10203 = vmatprep.subr.mxu0 0.0
    %10204 = vmatpush1.msra.mxu0 0.0
    %10205 = vmatprep.subr.mxu0 0.0
    %10206 = vmatpush1.msra.mxu0 0.0
    %10207 = vmatprep.subr.mxu0 0.0
    %10208 = vmatpush1.msra.mxu0 0.0
    %10209 = vmatprep.subr.mxu0 0.0
    %10210 = vmatpush1.msra.mxu0 0.0
    %10211 = vmatprep.subr.mxu0 0.0
    %10212 = vmatpush1.msra.mxu0 0.0
    %10213 = vmatprep.subr.mxu0 0.0
    %10214 = vmatpush1.msra.mxu0 0.0
    %10215 = vmatprep.subr.mxu0 0.0
    %10216 = vmatpush1.msra.mxu0 0.0
    %10217 = vmatprep.subr.mxu0 0.0
    %10218 = vmatpush1.msra.mxu0 0.0
    %10219 = vmatprep.subr.mxu0 0.0
    %10220 = vmatpush1.msra.mxu0 0.0
    %10221 = vmatprep.subr.mxu0 0.0
    %10222 = vmatpush1.msra.mxu0 0.0
    %10223 = vmatprep.subr.mxu0 0.0
    %10224 = vmatpush1.msra.mxu0 0.0
    %10225 = vmatprep.mubr.f32.mxu0 0.0
    %10226 = vmatmul.mubr.f32.gmra.mrb[0].mxu0 %v10083
    %v10227 = vpop.f32.mrb[0].mxu0
    %v10228 = vadd.f32 0.0, %v10227
    %v10229 = vpop.f32.mrb[0].mxu0
    %10230 = vmatprep.mubr.f32.mxu0 0.0
    %10231 = vmatmul.mubr.f32.gmra.mrb[0].mxu0 %v10086
    %v10232 = vpop.f32.mrb[0].mxu0
    %v10233 = vadd.f32 0.0, %v10232
    %v10234 = vpop.f32.mrb[0].mxu0
    %10235 = vmatprep.mubr.f32.mxu0 0.0
    %10236 = vmatmul.mubr.f32.gmra.mrb[0].mxu0 %v10089
    %v10237 = vpop.f32.mrb[0].mxu0
    %v10238 = vadd.f32 0.0, %v10237
    %v10239 = vpop.f32.mrb[0].mxu0
    %10240 = vmatprep.mubr.f32.mxu0 0.0
    %10241 = vmatmul.mubr.f32.gmra.mrb[0].mxu0 %v10092
    %v10242 = vpop.f32.mrb[0].mxu0
    %v10243 = vadd.f32 0.0, %v10242
    %v10244 = vpop.f32.mrb[0].mxu0
    %10245 = vmatprep.mubr.f32.mxu0 0.0
    %10246 = vmatmul.mubr.f32.gmra.mrb[0].mxu0 %v10095
    %v10247 = vpop.f32.mrb[0].mxu0
    %v10248 = vpop.f32.mrb[0].mxu0
    %10249 = vmatprep.mubr.f32.mxu0 0.0
    %10250 = vmatmul.mubr.f32.gmra.mrb[0].mxu0 %v10098
    %v10251 = vpop.f32.mrb[0].mxu0
    %v10252 = vadd.f32 0.0, %v10251
    %v10253 = vpop.f32.mrb[0].mxu0
    %10254 = vmatprep.mubr.f32.mxu0 0.0
    %10255 = vmatmul.mubr.f32.gmra.mrb[0].mxu0 %v10101
    %v10256 = vpop.f32.mrb[0].mxu0
    %v10257 = vadd.f32 0.0, %v10256
    %v10258 = vpop.f32.mrb[0].mxu0
    %10259 = vmatprep.mubr.f32.mxu0 0.0
    %10260 = vmatmul.mubr.f32.gmra.mrb[0].mxu0 %v10104
    %v10261 = vpop.f32.mrb[0].mxu0
    %v10262 = vadd.f32 0.0, %v10261
    %v10263 = vpop.f32.mrb[0].mxu0
    %10264 = vmatprep.mubr.f32.mxu0 0.0
    %10265 = vmatmul.mubr.f32.gmra.mrb[0].mxu0 %v10107
    %v10266 = vpop.f32.mrb[0].mxu0
    %v10267 = vadd.f32 0.0, %v10266
    %v10268 = vpop.f32.mrb[0].mxu0
    %10269 = vmatprep.mubr.f32.mxu0 0.0
    %10270 = vmatmul.mubr.f32.gmra.mrb[0].mxu0 %v10110
    %v10271 = vpop.f32.mrb[0].mxu0
    %v10272 = vpop.f32.mrb[0].mxu0
    %10273 = vmatprep.mubr.f32.mxu0 0.0
    %10274 = vmatmul.mubr.f32.gmra.mrb[0].mxu0 %v10113
    %v10275 = vpop.f32.mrb[0].mxu0
    %v10276 = vadd.f32 0.0, %v10275
    %v10277 = vpop.f32.mrb[0].mxu0
    %10278 = vmatprep.mubr.f32.mxu0 0.0
    %10279 = vmatmul.mubr.f32.gmra.mrb[0].mxu0 %v10116
    %v10280 = vpop.f32.mrb[0].mxu0
    %v10281 = vadd.f32 0.0, %v10280
    %v10282 = vpop.f32.mrb[0].mxu0
    %10283 = vmatprep.mubr.f32.mxu0 0.0
    %10284 = vmatmul.mubr.f32.gmra.mrb[0].mxu0 %v10119
    %v10285 = vpop.f32.mrb[0].mxu0
    %v10286 = vadd.f32 0.0, %v10285
    %v10287 = vpop.f32.mrb[0].mxu0
    %10288 = vmatprep.mubr.f32.mxu0 0.0
    %10289 = vmatmul.mubr.f32.gmra.mrb[0].mxu0 %v10122
    %v10290 = vpop.f32.mrb[0].mxu0
    %v10291 = vadd.f32 0.0, %v10290
    %v10292 = vpop.f32.mrb[0].mxu0
    %10293 = vmatprep.mubr.f32.mxu0 0.0
    %10294 = vmatmul.mubr.f32.gmra.mrb[0].mxu0 %v10125
    %v10295 = vpop.f32.mrb[0].mxu0
    %v10296 = vpop.f32.mrb[0].mxu0
    %10297 = vmatprep.mubr.f32.mxu0 0.0
    %10298 = vmatmul.mubr.f32.gmra.mrb[0].mxu0 %v10128
    %v10299 = vpop.f32.mrb[0].mxu0
    %v10300 = vadd.f32 0.0, %v10299
    %v10301 = vpop.f32.mrb[0].mxu0
    %10302 = vmatprep.mubr.f32.mxu0 0.0
    %10303 = vmatmul.mubr.f32.gmra.mrb[0].mxu0 %v10131
    %v10304 = vpop.f32.mrb[0].mxu0
    %v10305 = vadd.f32 0.0, %v10304
    %v10306 = vpop.f32.mrb[0].mxu0
    %10307 = vmatprep.mubr.f32.mxu0 0.0
    %10308 = vmatmul.mubr.f32.gmra.mrb[0].mxu0 %v10134
    %v10309 = vpop.f32.mrb[0].mxu0
    %v10310 = vadd.f32 0.0, %v10309
    %v10311 = vpop.f32.mrb[0].mxu0
    %10312 = vmatprep.mubr.f32.mxu0 0.0
    %10313 = vmatmul.mubr.f32.gmra.mrb[0].mxu0 %v10137
    %v10314 = vpop.f32.mrb[0].mxu0
    %v10315 = vadd.f32 0.0, %v10314
    %v10316 = vpop.f32.mrb[0].mxu0
    %10317 = vmatprep.mubr.f32.mxu0 0.0
    %10318 = vmatmul.mubr.f32.gmra.mrb[0].mxu0 %v10140
    %v10319 = vpop.f32.mrb[0].mxu0
    %v10320 = vpop.f32.mrb[0].mxu0
    %10321 = vmatprep.mubr.f32.mxu0 0.0
    %10322 = vmatmul.mubr.f32.gmra.mrb[0].mxu0 %v10143
    %v10323 = vpop.f32.mrb[0].mxu0
    %v10324 = vpop.f32.mrb[0].mxu0
    %10325 = vmatprep.mubr.f32.mxu0 0.0
    %10326 = vmatmul.mubr.f32.gmra.mrb[0].mxu0 %v10146
    %v10327 = vpop.f32.mrb[0].mxu0
    %v10328 = vpop.f32.mrb[0].mxu0
    %10329 = vmatprep.mubr.f32.mxu0 0.0
    %10330 = vmatmul.mubr.f32.gmra.mrb[0].mxu0 %v10149
    %v10331 = vpop.f32.mrb[0].mxu0
    %v10332 = vpop.f32.mrb[0].mxu0
    %10333 = vmatprep.mubr.f32.mxu0 0.0
    %10334 = vmatmul.mubr.f32.gmra.mrb[0].mxu0 %v10152
    %v10335 = vpop.f32.mrb[0].mxu0
    %v10336 = vpop.f32.mrb[0].mxu0
    %10337 = vmatprep.mubr.f32.mxu0 0.0
    %10338 = vmatmul.mubr.f32.gmra.mrb[0].mxu0 %v10155
    %v10339 = vpop.f32.mrb[0].mxu0
    %v10340 = vpop.f32.mrb[0].mxu0
    %10341 = vdwg.mxu0
    %v10342 = vld [vmem:[%s5] sm:$0x1]
    %v10344 = vlaneseq
    %v10345 = vshrl.u32 %v10344, 7
    %v10346 = vsub.s32 0, %v10345
    %v10347 = vrot.slane %v10342, %v10346
    %v10349 = vmul.f32 %v10228, %v10347
    %v10350 = vmul.f32 %v10233, %v10347
    %v10351 = vmul.f32 %v10238, %v10347
    %v10352 = vmul.f32 %v10243, %v10347
    %v10353 = vmul.f32 %v10252, %v10347
    %v10354 = vmul.f32 %v10257, %v10347
    %v10355 = vmul.f32 %v10262, %v10347
    %v10356 = vmul.f32 %v10267, %v10347
    %v10357 = vmul.f32 %v10276, %v10347
    %v10358 = vmul.f32 %v10281, %v10347
    %v10359 = vmul.f32 %v10286, %v10347
    %v10360 = vmul.f32 %v10291, %v10347
    %v10361 = vmul.f32 %v10300, %v10347
    %v10362 = vmul.f32 %v10305, %v10347
    %v10363 = vmul.f32 %v10310, %v10347
    %v10364 = vmul.f32 %v10315, %v10347
    %v10365 = vld [vmem:[%s6] sm:$0x1]
    %v10367 = vlaneseq
    %v10368 = vshrl.u32 %v10367, 7
    %v10369 = vsub.s32 0, %v10368
    %v10370 = vrot.slane %v10365, %v10369
    %v10372 = vadd.f32 %v10349, %v10370
    %v10373 = vadd.f32 %v10350, %v10370
    %v10374 = vadd.f32 %v10351, %v10370
    %v10375 = vadd.f32 %v10352, %v10370
    %v10376 = vadd.f32 %v10353, %v10370
    %v10377 = vadd.f32 %v10354, %v10370
    %v10378 = vadd.f32 %v10355, %v10370
    %v10379 = vadd.f32 %v10356, %v10370
    %v10380 = vadd.f32 %v10357, %v10370
    %v10381 = vadd.f32 %v10358, %v10370
    %v10382 = vadd.f32 %v10359, %v10370
    %v10383 = vadd.f32 %v10360, %v10370
    %v10384 = vadd.f32 %v10361, %v10370
    %v10385 = vadd.f32 %v10362, %v10370
    %v10386 = vadd.f32 %v10363, %v10370
    %v10387 = vadd.f32 %v10364, %v10370
    %v10388 = vmax.f32 %v10372, 0.0
    %v10389 = vmax.f32 %v10373, 0.0
    %v10390 = vmax.f32 %v10374, 0.0
    %v10391 = vmax.f32 %v10375, 0.0
    %v10392 = vmax.f32 %v10376, 0.0
    %v10393 = vmax.f32 %v10377, 0.0
    %v10394 = vmax.f32 %v10378, 0.0
    %v10395 = vmax.f32 %v10379, 0.0
    %v10396 = vmax.f32 %v10380, 0.0
    %v10397 = vmax.f32 %v10381, 0.0
    %v10398 = vmax.f32 %v10382, 0.0
    %v10399 = vmax.f32 %v10383, 0.0
    %v10400 = vmax.f32 %v10384, 0.0
    %v10401 = vmax.f32 %v10385, 0.0
    %v10402 = vmax.f32 %v10386, 0.0
    %v10403 = vmax.f32 %v10387, 0.0
    %v10404 = vmax.f32 %v10388, %v10392
    %v10405 = vmax.f32 %v10389, %v10393
    %v10406 = vmax.f32 %v10390, %v10394
    %v10407 = vmax.f32 %v10391, %v10395
    %v10408 = vmax.f32 %v10396, %v10400
    %v10409 = vmax.f32 %v10397, %v10401
    %v10410 = vmax.f32 %v10398, %v10402
    %v10411 = vmax.f32 %v10399, %v10403
    %v10412 = vmax.f32 %v10404, %v10405
    %v10413 = vmax.f32 %v10406, %v10407
    %v10414 = vmax.f32 %v10408, %v10409
    %v10415 = vmax.f32 %v10410, %v10411
    %10417 = vrot.lane.b32.xlu0 %v10413, 4
    %v10418 = vpop.permute.xlu0 %10417
    %10421 = vrot.lane.b32.xlu0 %v10414, 8
    %v10422 = vpop.permute.xlu0 %10421
    %10425 = vrot.lane.b32.xlu0 %v10415, 12
    %v10426 = vpop.permute.xlu0 %10425
    %v10428 = vsel %vm9872, %v10412, %v10418
    %v10429 = vsel %vm5256, %v10428, %v10422
    %v10430 = vsel %vm9923, %v10429, %v10426
    %v10431 = vld [vmem:[%s7] sm:$0xff]
    %v10432 = vld [vmem:[%s7 + $0x8] sm:$0xff]
    %v10433 = vld [vmem:[%s8] sm:$0x1]
    %v10435 = vlaneseq
    %v10436 = vshrl.u32 %v10435, 7
    %v10437 = vsub.s32 0, %v10436
    %v10438 = vrot.slane %v10433, %v10437
    %v10441 = vsel %vm5453, %v10430, 0
    %10443 = vmatprep.subr.mxu0 0.0
    %10444 = vmatpush1.msra.mxu0 %v10431
    %10445 = vmatprep.subr.mxu0 0.0
    %10446 = vmatpush1.msra.mxu0 %v10432
    %10447 = vmatprep.subr.mxu0 0.0
    %10448 = vmatpush1.msra.mxu0 0.0
    %10449 = vmatprep.subr.mxu0 0.0
    %10450 = vmatpush1.msra.mxu0 0.0
    %10451 = vmatprep.subr.mxu0 0.0
    %10452 = vmatpush1.msra.mxu0 0.0
    %10453 = vmatprep.subr.mxu0 0.0
    %10454 = vmatpush1.msra.mxu0 0.0
    %10455 = vmatprep.subr.mxu0 0.0
    %10456 = vmatpush1.msra.mxu0 0.0
    %10457 = vmatprep.subr.mxu0 0.0
    %10458 = vmatpush1.msra.mxu0 0.0
    %10459 = vmatprep.subr.mxu0 0.0
    %10460 = vmatpush1.msra.mxu0 0.0
    %10461 = vmatprep.subr.mxu0 0.0
    %10462 = vmatpush1.msra.mxu0 0.0
    %10463 = vmatprep.subr.mxu0 0.0
    %10464 = vmatpush1.msra.mxu0 0.0
    %10465 = vmatprep.subr.mxu0 0.0
    %10466 = vmatpush1.msra.mxu0 0.0
    %10467 = vmatprep.subr.mxu0 0.0
    %10468 = vmatpush1.msra.mxu0 0.0
    %10469 = vmatprep.subr.mxu0 0.0
    %10470 = vmatpush1.msra.mxu0 0.0
    %10471 = vmatprep.subr.mxu0 0.0
    %10472 = vmatpush1.msra.mxu0 0.0
    %10473 = vmatprep.subr.mxu0 0.0
    %10474 = vmatpush1.msra.mxu0 0.0
    %10475 = vmatprep.subr.mxu0 0.0
    %10476 = vmatpush1.msra.mxu0 0.0
    %10477 = vmatprep.subr.mxu0 0.0
    %10478 = vmatpush1.msra.mxu0 0.0
    %10479 = vmatprep.subr.mxu0 0.0
    %10480 = vmatpush1.msra.mxu0 0.0
    %10481 = vmatprep.subr.mxu0 0.0
    %10482 = vmatpush1.msra.mxu0 0.0
    %10483 = vmatprep.subr.mxu0 0.0
    %10484 = vmatpush1.msra.mxu0 0.0
    %10485 = vmatprep.subr.mxu0 0.0
    %10486 = vmatpush1.msra.mxu0 0.0
    %10487 = vmatprep.subr.mxu0 0.0
    %10488 = vmatpush1.msra.mxu0 0.0
    %10489 = vmatprep.subr.mxu0 0.0
    %10490 = vmatpush1.msra.mxu0 0.0
    %10491 = vmatprep.subr.mxu0 0.0
    %10492 = vmatpush1.msra.mxu0 0.0
    %10493 = vmatprep.subr.mxu0 0.0
    %10494 = vmatpush1.msra.mxu0 0.0
    %10495 = vmatprep.subr.mxu0 0.0
    %10496 = vmatpush1.msra.mxu0 0.0
    %10497 = vmatprep.subr.mxu0 0.0
    %10498 = vmatpush1.msra.mxu0 0.0
    %10499 = vmatprep.subr.mxu0 0.0
    %10500 = vmatpush1.msra.mxu0 0.0
    %10501 = vmatprep.subr.mxu0 0.0
    %10502 = vmatpush1.msra.mxu0 0.0
    %10503 = vmatprep.subr.mxu0 0.0
    %10504 = vmatpush1.msra.mxu0 0.0
    %10505 = vmatprep.subr.mxu0 0.0
    %10506 = vmatpush1.msra.mxu0 0.0
    %10507 = vmatprep.mubr.f32.mxu0 0.0
    %10508 = vmatmul.mubr.f32.gmra.mrb[0].mxu0 %v10441
    %v10509 = vpop.f32.mrb[0].mxu0
    %v10510 = vadd.f32 %v10438, %v10509
    %v10511 = vpop.f32.mrb[0].mxu0
    %10512 = vdwg.mxu0
    %v10513 = vmax.f32 %v10510, 0.0
    %v10514 = vld [vmem:[%s9] sm:$0x1]
    %v10515 = vld [vmem:[#allocation2] sm:$0x1]
    %10517 = vset.pattern.permute.xlu0 0
    %10518 = vperm.xlu0 %10517, %v10515
    %v10519 = vpop.permute.xlu0 %10518
    %v10521 = vlaneseq
    %v10522 = vshrl.u32 %v10521, 7
    %v10523 = vsub.s32 0, %v10522
    %v10524 = vrot.slane %v10519, %v10523
    %v10526 = vsel %vm5847, %v10514, 0
    %v10529 = vsel %vm5847, %v10513, 0
    %10531 = vmatprep.subr.mxu0 0.0
    %10532 = vmatpush1.xpose.msra.mxu0 %v10529
    %10533 = vmatprep.subr.mxu0 0.0
    %10534 = vmatpush1.xpose.msra.mxu0 0.0
    %10535 = vmatprep.subr.mxu0 0.0
    %10536 = vmatpush1.xpose.msra.mxu0 0.0
    %10537 = vmatprep.subr.mxu0 0.0
    %10538 = vmatpush1.xpose.msra.mxu0 0.0
    %10539 = vmatprep.subr.mxu0 0.0
    %10540 = vmatpush1.xpose.msra.mxu0 0.0
    %10541 = vmatprep.subr.mxu0 0.0
    %10542 = vmatpush1.xpose.msra.mxu0 0.0
    %10543 = vmatprep.subr.mxu0 0.0
    %10544 = vmatpush1.xpose.msra.mxu0 0.0
    %10545 = vmatprep.subr.mxu0 0.0
    %10546 = vmatpush1.xpose.msra.mxu0 0.0
    %10547 = vmatprep.subr.mxu0 0.0
    %10548 = vmatpush1.xpose.msra.mxu0 0.0
    %10549 = vmatprep.subr.mxu0 0.0
    %10550 = vmatpush1.xpose.msra.mxu0 0.0
    %10551 = vmatprep.subr.mxu0 0.0
    %10552 = vmatpush1.xpose.msra.mxu0 0.0
    %10553 = vmatprep.subr.mxu0 0.0
    %10554 = vmatpush1.xpose.msra.mxu0 0.0
    %10555 = vmatprep.subr.mxu0 0.0
    %10556 = vmatpush1.xpose.msra.mxu0 0.0
    %10557 = vmatprep.subr.mxu0 0.0
    %10558 = vmatpush1.xpose.msra.mxu0 0.0
    %10559 = vmatprep.subr.mxu0 0.0
    %10560 = vmatpush1.xpose.msra.mxu0 0.0
    %10561 = vmatprep.subr.mxu0 0.0
    %10562 = vmatpush1.xpose.msra.mxu0 0.0
    %10563 = vmatprep.subr.mxu0 0.0
    %10564 = vmatpush1.xpose.msra.mxu0 0.0
    %10565 = vmatprep.subr.mxu0 0.0
    %10566 = vmatpush1.xpose.msra.mxu0 0.0
    %10567 = vmatprep.subr.mxu0 0.0
    %10568 = vmatpush1.xpose.msra.mxu0 0.0
    %10569 = vmatprep.subr.mxu0 0.0
    %10570 = vmatpush1.xpose.msra.mxu0 0.0
    %10571 = vmatprep.subr.mxu0 0.0
    %10572 = vmatpush1.xpose.msra.mxu0 0.0
    %10573 = vmatprep.subr.mxu0 0.0
    %10574 = vmatpush1.xpose.msra.mxu0 0.0
    %10575 = vmatprep.subr.mxu0 0.0
    %10576 = vmatpush1.xpose.msra.mxu0 0.0
    %10577 = vmatprep.subr.mxu0 0.0
    %10578 = vmatpush1.xpose.msra.mxu0 0.0
    %10579 = vmatprep.subr.mxu0 0.0
    %10580 = vmatpush1.xpose.msra.mxu0 0.0
    %10581 = vmatprep.subr.mxu0 0.0
    %10582 = vmatpush1.xpose.msra.mxu0 0.0
    %10583 = vmatprep.subr.mxu0 0.0
    %10584 = vmatpush1.xpose.msra.mxu0 0.0
    %10585 = vmatprep.subr.mxu0 0.0
    %10586 = vmatpush1.xpose.msra.mxu0 0.0
    %10587 = vmatprep.subr.mxu0 0.0
    %10588 = vmatpush1.xpose.msra.mxu0 0.0
    %10589 = vmatprep.subr.mxu0 0.0
    %10590 = vmatpush1.xpose.msra.mxu0 0.0
    %10591 = vmatprep.subr.mxu0 0.0
    %10592 = vmatpush1.xpose.msra.mxu0 0.0
    %10593 = vmatprep.subr.mxu0 0.0
    %10594 = vmatpush1.xpose.msra.mxu0 0.0
    %10595 = vmatprep.mubr.f32.mxu0 0.0
    %10596 = vmatmul.mubr.f32.gmra.mrb[0].mxu0 %v10526
    %v10597 = vpop.f32.mrb[0].mxu0
    %v10598 = vadd.f32 %v10524, %v10597
    %v10599 = vpop.f32.mrb[0].mxu0
    %10600 = vdwg.mxu0
    %v10601 = vxor.u32 %v10598, 2147483648
    %v10602 = vmul.f32 %v10601, 1.442695
    %v10603 = vpow.pop %v10602
    %v10604 = vadd.f32 %v10603, 1.0
    %v10605 = vrcp.pop %v10604
    %v10606 = vmul.f32 1.0, %v10605
    %vm10607 = vcmask 57344
    %10608 = vst.msk [vmem:[#allocation3] sm:$0x1] %vm10607, %v10606
    // Predicated region
    $region46: #{tpu_custom_call.1} parent=1 // pred_check
      _
    $region47: #{tpu_custom_call.1} parent=1 // pred_check_branch
      %10610 = sbr.rel (0) target = $region49
    $region48: #{tpu_custom_call.1} parent=1 // pred_region
      %s10612 = ssub.s32 16, 16
      %10613 = vsyncadd [#allocation4], %s10612
      %s10615 = sshll.u32 [#allocation3], 4
      %s10616 = int_to_ptr.vmem [resolvable:$true] %s10615
      %10618 = dma.vmem_to_hbm [thread:$0]  %s10616, 16, %s11, [#allocation4]
    $region49: #{tpu_custom_call.1} parent=1 // pred_fallthru
      _
    // Predicated region
    $region50: #{tpu_custom_call.1} parent=1 // pred_check
      _
    $region51: #{tpu_custom_call.1} parent=1 // pred_check_branch
      %10620 = sbr.rel (0) target = $region53
    $region52: #{tpu_custom_call.1} parent=1 // pred_region
      %10621 = dma.done [#allocation4], 16
    $region53: #{tpu_custom_call.1} parent=1 // pred_fallthru
      _
    %10622 = vsyncpa [#allocation4], 1

</llo_original>
